<compile_context>
chip_gen: v7x
topology: tpu7x:2x2x1
jax: 0.10.0
libtpu: 0.0.40
codegen_flags: <defaults>
</compile_context>

<pallas_src>
import functools

import numpy as np
import jax
import jax.numpy as jnp
from jax import lax
from jax.experimental import pallas as pl
from jax.experimental.pallas import tpu as pltpu


def _round_up(v, m):
    return -(-v // m) * m


# ---------------------------------------------------------------------------
# One-time weight packing: torch-layout conv weights -> block-tap matrices.
# Block convention at a level with `pin` samples per row: sample (pin*row + u)
# of channel c lives in column (u*Cin + c).
# ---------------------------------------------------------------------------
def _conv_block_weights(w, b, stride, pad, pin, pout):
    """Conv1d, torch layout w:(Cout,Cin,K), b:(Cout,). Requires pin == stride*pout."""
    w = np.asarray(w, np.float32)
    b = np.asarray(b, np.float32)
    cout, cin, ksz = w.shape
    assert pin == stride * pout
    offs = [stride * q + k - pad for q in range(pout) for k in range(ksz)]
    dmin = min(o // pin for o in offs)
    dmax = max(o // pin for o in offs)
    ntaps = dmax - dmin + 1
    wb = np.zeros((ntaps, pin * cin, pout * cout), np.float32)
    for q in range(pout):
        for k in range(ksz):
            off = stride * q + k - pad          # input-sample offset for output phase q
            d, u = off // pin, off % pin        # block-row offset, phase within block
            wb[d - dmin, u * cin:(u + 1) * cin, q * cout:(q + 1) * cout] += w[:, :, k].T
    wb = wb.reshape(ntaps * pin * cin, pout * cout)
    bb = np.tile(b, pout)[None, :]
    return jnp.asarray(wb), jnp.asarray(bb), -dmin, ntaps


def _convt_block_weights(w, b, stride, pad, pin, pout):
    """ConvTranspose1d, torch layout w:(Cin,Cout,K), b:(Cout,). Requires pout == stride*pin."""
    w = np.asarray(w, np.float32)
    b = np.asarray(b, np.float32)
    cin, cout, ksz = w.shape
    assert pout == stride * pin
    offs = [(q + pad - k) // stride for q in range(pout) for k in range(ksz)
            if (q + pad - k) % stride == 0]
    dmin = min(o // pin for o in offs)
    dmax = max(o // pin for o in offs)
    ntaps = dmax - dmin + 1
    wb = np.zeros((ntaps, pin * cin, pout * cout), np.float32)
    for q in range(pout):
        for k in range(ksz):
            if (q + pad - k) % stride:
                continue
            off = (q + pad - k) // stride       # input-sample offset contributing to phase q
            d, u = off // pin, off % pin
            wb[d - dmin, u * cin:(u + 1) * cin, q * cout:(q + 1) * cout] += w[:, :, k]
    wb = wb.reshape(ntaps * pin * cin, pout * cout)
    bb = np.tile(b, pout)[None, :]
    return jnp.asarray(wb), jnp.asarray(bb), -dmin, ntaps


# Base resolution L/8: every intermediate activation is 256 lanes wide.
_LAYER_DEFS = (
    # name,   builder,               stride, pad, pin, pout, act
    ("enc1", _conv_block_weights,  1, 7, 8, 8, "relu"),
    ("enc2", _conv_block_weights,  2, 7, 8, 4, "relu"),
    ("enc3", _conv_block_weights,  2, 7, 4, 2, "relu"),
    ("dec3", _convt_block_weights, 2, 7, 2, 4, "relu"),
    ("dec2", _convt_block_weights, 2, 7, 4, 8, "relu"),
    ("out",  _conv_block_weights,  1, 7, 8, 8, "tanh"),
)
_BASE = _LAYER_DEFS[0][4]                       # samples folded per row (8)
assert _LAYER_DEFS[-1][5] == _BASE
_VMEM_LIMIT = 48 * 1024 * 1024                  # < v7x's 64 MiB physical, with headroom


def pack_params(params):
    """Convert torch-layout params into fused-kernel block weights (done once)."""
    tensors, cfg = [], []
    h_left = h_right = max_side = 0
    for name, build, stride, pad, pin, pout, act in _LAYER_DEFS:
        wb, bb, front, ntaps = build(params[name + "_w"], params[name + "_b"],
                                     stride, pad, pin, pout)
        tensors += [wb, bb]
        cfg.append((front, ntaps, wb.shape[0] // ntaps, act))
        h_left += front
        h_right += ntaps - 1 - front
        max_side = max(max_side, front, ntaps - 1 - front)
    halo = _round_up(max(h_left, h_right), 8)   # total network halo per side (rows)
    spad = _round_up(max_side, 8)               # per-layer tap pad on the scratch
    # Tap reads must never escape the scratch pad / window halo (review concern).
    assert max_side <= spad and max(h_left, h_right) <= halo
    # All intermediate activations must share one lane width (scratch reuse).
    widths = {tensors[2 * i].shape[1] for i in range(len(cfg) - 1)}
    assert len(widths) == 1
    for li in range(1, len(cfg)):
        assert cfg[li][2] == next(iter(widths))
    return tensors, tuple(cfg), halo, spad


# ---------------------------------------------------------------------------
# Fused Pallas kernel: one batch element x one sequence tile per grid step.
# ---------------------------------------------------------------------------
def _activate(y, act):
    if act == "relu":
        return jnp.maximum(y, 0.0)
    if act == "tanh":
        return jnp.tanh(y)
    return y


def unet_fused_kernel(*refs, cfg, tile_rows, halo, spad, hpad, seq_rows):
    nlayers = len(cfg)
    x_ref = refs[0]                                   # (1, 1, WX, 8) halo'd input window
    wrefs = refs[1:1 + 2 * nlayers]                   # (w1,b1, ..., w6,b6), VMEM-resident
    o_ref = refs[1 + 2 * nlayers]                     # (1, T, 8)
    scr = [refs[2 + 2 * nlayers], refs[3 + 2 * nlayers]]   # ping-pong padded scratch

    T = tile_rows
    W = T + 2 * halo                                  # rows computed per hidden layer
    lanes = scr[0].shape[1]
    t = pl.program_id(1)

    # Zero the per-layer tap pad of both scratches (layer outputs only ever
    # write the interior [spad, spad+W), so these rows stay zero all kernel).
    for s in scr:
        s[0:spad, :] = jnp.zeros((spad, lanes), jnp.float32)
        s[spad + W: spad + W + spad, :] = jnp.zeros((spad, lanes), jnp.float32)

    # Window rows lying inside the real sequence. Out-of-range rows must be
    # zeroed after every hidden layer (ReLU(bias) != 0) to reproduce the conv
    # zero-padding at the sequence boundaries and the ragged last tile.
    g0 = t * T - halo
    row_id = lax.broadcasted_iota(jnp.int32, (W, lanes), 0) + g0
    valid = jnp.logical_and(row_id >= 0, row_id < seq_rows)

    # ---- enc1: 8-lane input; fold the 3 taps into one (W, 24) x (24, 256) matmul.
    front, ntaps, cinb, act = cfg[0]
    base = hpad - halo - front
    cols = jnp.concatenate(
        [x_ref[0, 0, base + d: base + d + W, :] for d in range(ntaps)], axis=1)
    y = jnp.dot(cols, wrefs[0][...], preferred_element_type=jnp.float32) + wrefs[1][...]
    scr[0][spad: spad + W, :] = jnp.where(valid, _activate(y, act), 0.0)

    # ---- hidden layers: per-tap 256-deep MXU matmuls accumulated in f32,
    #      taps read as shifted rows straight from the padded scratch
    #      (no zero-pad concat, no materialized im2col).
    src = 0
    for li in range(1, nlayers - 1):
        front, ntaps, cinb, act = cfg[li]
        w_ref, b_ref = wrefs[2 * li], wrefs[2 * li + 1]
        acc = None
        for d in range(ntaps):
            a = scr[src][spad - front + d: spad - front + d + W, :]
            p = jnp.dot(a, w_ref[d * cinb:(d + 1) * cinb, :],
                        preferred_element_type=jnp.float32)
            acc = p if acc is None else acc + p
        y = acc + b_ref[...]
        scr[1 - src][spad: spad + W, :] = jnp.where(valid, _activate(y, act), 0.0)
        src = 1 - src

    # ---- out layer: only the T tile rows are needed; tanh; store the (T, 8) block.
    front, ntaps, cinb, act = cfg[nlayers - 1]
    w_ref, b_ref = wrefs[2 * (nlayers - 1)], wrefs[2 * (nlayers - 1) + 1]
    acc = None
    for d in range(ntaps):
        a = scr[src][spad + halo - front + d: spad + halo - front + d + T, :]
        p = jnp.dot(a, w_ref[d * cinb:(d + 1) * cinb, :],
                    preferred_element_type=jnp.float32)
        acc = p if acc is None else acc + p
    o_ref[0] = _activate(acc + b_ref[...], act).astype(o_ref.dtype)


def unet_forward(packed, x_ncl, *, row_tile=512):
    """packed = pack_params(params); x_ncl: (N, 1, L), L divisible by 8.

    row_tile: rows (of 8 samples) per grid step.  Guidance: ~512 on v7x
    (64 MiB VMEM), 1024-2048 on v5e/v6e (128 MiB) to amortize per-step overhead.
    """
    tensors, cfg, halo, spad = packed
    n, c, length = x_ncl.shape
    assert c == 1 and length % _BASE == 0
    lr = length // _BASE

    T = int(min(_round_up(row_tile, 8), _round_up(lr, 8)))
    n_tiles = -(-lr // T)
    lr_pad = n_tiles * T
    W = T + 2 * halo
    front0, ntaps0 = cfg[0][0], cfg[0][1]
    hpad = _round_up(halo + max(front0, ntaps0 - 1 - front0), 8)
    wx = T + 2 * hpad                                      # input window rows per tile
    bpad = lr_pad - lr + hpad
    lanes = tensors[0].shape[1]

    # Host-side packing: space-to-depth, zero pad, halo'd-window gather (so the
    # kernel's BlockSpecs are plain non-overlapping blocks and x is streamed
    # tile-by-tile; duplication is only the 2*hpad halo per tile).
    xb = x_ncl.reshape(n, lr, _BASE).astype(jnp.float32)
    xp = jnp.pad(xb, ((0, 0), (hpad, bpad), (0, 0)))
    widx = (np.arange(n_tiles, dtype=np.int32)[:, None] * T
            + np.arange(wx, dtype=np.int32)[None, :])
    xwin = xp[:, widx, :]                                   # (N, n_tiles, wx, 8)

    in_specs = [pl.BlockSpec((1, 1, wx, _BASE), lambda i, t: (i, t, 0, 0))]
    in_specs += [pl.BlockSpec(w.shape, lambda i, t: (0, 0)) for w in tensors]

    srows = W + 2 * spad
    kernel = functools.partial(
        unet_fused_kernel, cfg=cfg, tile_rows=T, halo=halo, spad=spad,
        hpad=hpad, seq_rows=lr)

    macs = sum(int(t.shape[0]) * int(t.shape[1]) for t in tensors[0::2])
    cost = pl.CostEstimate(
        flops=int(2 * n * n_tiles * W * macs),
        transcendentals=int(n * lr_pad * _BASE),
        bytes_accessed=int(4 * (xwin.size + n * lr_pad * _BASE
                                + sum(int(t.size) for t in tensors))))

    y = pl.pallas_call(
        kernel,
        out_shape=jax.ShapeDtypeStruct((n, lr_pad, _BASE), jnp.float32),
        grid=(n, n_tiles),
        in_specs=in_specs,
        out_specs=pl.BlockSpec((1, T, _BASE), lambda i, t: (i, t, 0)),
        scratch_shapes=[pltpu.VMEM((srows, lanes), jnp.float32),
                        pltpu.VMEM((srows, lanes), jnp.float32)],
        compiler_params=pltpu.CompilerParams(
            dimension_semantics=("parallel", "parallel"),
            vmem_limit_bytes=_VMEM_LIMIT),
        cost_estimate=cost,
    )(xwin, *tensors)
    return y[:, :lr, :].reshape(n, 1, length)               # drop ragged pad, depth-to-space


# ---------------------------------------------------------------------------
# Parameter init (PyTorch default uniform) and pure-XLA reference.
# ---------------------------------------------------------------------------
def init_params(key):
    def u(k, shape, fan_in):
        bound = 1.0 / np.sqrt(fan_in)
        return jax.random.uniform(k, shape, jnp.float32, -bound, bound)

    ks = jax.random.split(key, 12)
    return {
        "enc1_w": u(ks[0], (32, 1, 15), 1 * 15),    "enc1_b": u(ks[1], (32,), 1 * 15),
        "enc2_w": u(ks[2], (64, 32, 15), 32 * 15),  "enc2_b": u(ks[3], (64,), 32 * 15),
        "enc3_w": u(ks[4], (128, 64, 15), 64 * 15), "enc3_b": u(ks[5], (128,), 64 * 15),
        "dec3_w": u(ks[6], (128, 64, 16), 64 * 16), "dec3_b": u(ks[7], (64,), 64 * 16),
        "dec2_w": u(ks[8], (64, 32, 16), 32 * 16),  "dec2_b": u(ks[9], (32,), 32 * 16),
        "out_w": u(ks[10], (1, 32, 15), 32 * 15),   "out_b": u(ks[11], (1,), 32 * 15),
    }


def unet_reference(params, x_ncl):
    """Pure-XLA reference (lax.conv_general_dilated) matching PyTorch semantics."""
    def conv(x, w, b, stride, pad):
        y = lax.conv_general_dilated(x, w, (stride,), [(pad, pad)],
                                     dimension_numbers=("NCH", "OIH", "NCH"))
        return y + b[None, :, None]

    def convT(x, w, b, stride, pad):
        k = w.shape[2]
        w_eq = jnp.transpose(w[:, :, ::-1], (1, 0, 2))       # (Cout, Cin, K)
        y = lax.conv_general_dilated(x, w_eq, (1,), [(k - 1 - pad, k - 1 - pad)],
                                     lhs_dilation=(stride,),
                                     dimension_numbers=("NCH", "OIH", "NCH"))
        return y + b[None, :, None]

    e1 = jax.nn.relu(conv(x_ncl, params["enc1_w"], params["enc1_b"], 1, 7))
    e2 = jax.nn.relu(conv(e1, params["enc2_w"], params["enc2_b"], 2, 7))
    e3 = jax.nn.relu(conv(e2, params["enc3_w"], params["enc3_b"], 2, 7))
    d3 = jax.nn.relu(convT(e3, params["dec3_w"], params["dec3_b"], 2, 7))
    d2 = jax.nn.relu(convT(d3, params["dec2_w"], params["dec2_b"], 2, 7))
    return jnp.tanh(conv(d2, params["out_w"], params["out_b"], 1, 7))


if __name__ == "__main__":
    key = jax.random.PRNGKey(0)
    pkey, xkey1, xkey2 = jax.random.split(key, 3)
    params = init_params(pkey)
    packed = pack_params(params)                            # one-time weight packing

    # Multi-tile, multi-batch case: L >> row tile, exercises halo recompute,
    # boundary masking, and the (batch, tile) parallel grid.
    N, L = 2, 2048                                          # 256 rows -> 4 tiles of 64
    x = jax.random.normal(xkey1, (N, 1, L), jnp.float32)
    y = jax.block_until_ready(unet_forward(packed, x, row_tile=64))
    assert y.shape == (N, 1, L), y.shape
    y_ref = jax.block_until_ready(unet_reference(params, x))
    np.testing.assert_allclose(np.asarray(y), np.asarray(y_ref), atol=1e-4, rtol=1e-4)

    # Ragged case: lr = 231 rows is not a multiple of the 64-row tile, so the
    # last tile's padded tail must be masked correctly.
    N2, L2 = 1, 1848
    x2 = jax.random.normal(xkey2, (N2, 1, L2), jnp.float32)
    y2 = jax.block_until_ready(unet_forward(packed, x2, row_tile=64))
    assert y2.shape == (N2, 1, L2), y2.shape
    y2_ref = jax.block_until_ready(unet_reference(params, x2))
    np.testing.assert_allclose(np.asarray(y2), np.asarray(y2_ref), atol=1e-4, rtol=1e-4)

    print("KERNEL_OK")
</pallas_src>

<mosaic_0001>
module attributes {stable_mosaic.version = 11 : i64} {
  func.func @unet_fused_kernel(%arg0: i32, %arg1: i32, %arg2: memref<1x1x96x8xf32, #tpu.memory_space<vmem>>, %arg3: memref<24x256xf32, #tpu.memory_space<vmem>>, %arg4: memref<1x256xf32, #tpu.memory_space<vmem>>, %arg5: memref<768x256xf32, #tpu.memory_space<vmem>>, %arg6: memref<1x256xf32, #tpu.memory_space<vmem>>, %arg7: memref<1280x256xf32, #tpu.memory_space<vmem>>, %arg8: memref<1x256xf32, #tpu.memory_space<vmem>>, %arg9: memref<1280x256xf32, #tpu.memory_space<vmem>>, %arg10: memref<1x256xf32, #tpu.memory_space<vmem>>, %arg11: memref<768x256xf32, #tpu.memory_space<vmem>>, %arg12: memref<1x256xf32, #tpu.memory_space<vmem>>, %arg13: memref<768x8xf32, #tpu.memory_space<vmem>>, %arg14: memref<1x8xf32, #tpu.memory_space<vmem>>, %arg15: memref<1x64x8xf32, #tpu.memory_space<vmem>>, %arg16: memref<96x256xf32, #tpu.memory_space<vmem>>, %arg17: memref<96x256xf32, #tpu.memory_space<vmem>>) attributes {dimension_semantics = [#tpu.dimension_semantics<parallel>, #tpu.dimension_semantics<parallel>], iteration_bounds = array<i64: 2, 4>, scalar_prefetch = 0 : i64, scratch_operands = 2 : i64, tpu.core_type = #tpu.core_type<tc>, window_params = [{transform_indices = @transform_0, window_bounds = array<i64: 1, 1, 96, 8>}, {pipeline_mode = #tpu.pipeline_mode<synchronous>, transform_indices = @transform_1, window_bounds = array<i64: 24, 256>}, {pipeline_mode = #tpu.pipeline_mode<synchronous>, transform_indices = @transform_2, window_bounds = array<i64: 1, 256>}, {pipeline_mode = #tpu.pipeline_mode<synchronous>, transform_indices = @transform_3, window_bounds = array<i64: 768, 256>}, {pipeline_mode = #tpu.pipeline_mode<synchronous>, transform_indices = @transform_4, window_bounds = array<i64: 1, 256>}, {pipeline_mode = #tpu.pipeline_mode<synchronous>, transform_indices = @transform_5, window_bounds = array<i64: 1280, 256>}, {pipeline_mode = #tpu.pipeline_mode<synchronous>, transform_indices = @transform_6, window_bounds = array<i64: 1, 256>}, {pipeline_mode = #tpu.pipeline_mode<synchronous>, transform_indices = @transform_7, window_bounds = array<i64: 1280, 256>}, {pipeline_mode = #tpu.pipeline_mode<synchronous>, transform_indices = @transform_8, window_bounds = array<i64: 1, 256>}, {pipeline_mode = #tpu.pipeline_mode<synchronous>, transform_indices = @transform_9, window_bounds = array<i64: 768, 256>}, {pipeline_mode = #tpu.pipeline_mode<synchronous>, transform_indices = @transform_10, window_bounds = array<i64: 1, 256>}, {pipeline_mode = #tpu.pipeline_mode<synchronous>, transform_indices = @transform_11, window_bounds = array<i64: 768, 8>}, {pipeline_mode = #tpu.pipeline_mode<synchronous>, transform_indices = @transform_12, window_bounds = array<i64: 1, 8>}, {transform_indices = @transform_13, window_bounds = array<i64: 1, 64, 8>}]} {
    %cst = arith.constant 0.000000e+00 : f32
    %0 = vector.broadcast %cst : f32 to vector<8x256xf32>
    %c0 = arith.constant 0 : index
    %c0_0 = arith.constant 0 : index
    %1 = vector.load %arg16[%c0, %c0_0] : memref<96x256xf32, #tpu.memory_space<vmem>>, vector<8x256xf32>
    tpu.vector_store %arg16[%c0, %c0_0], %0 {strides = array<i32>} : memref<96x256xf32, #tpu.memory_space<vmem>>, vector<8x256xf32>,
    %cst_1 = arith.constant 0.000000e+00 : f32
    %2 = vector.broadcast %cst_1 : f32 to vector<8x256xf32>
    %c88 = arith.constant 88 : index
    %c0_2 = arith.constant 0 : index
    %3 = vector.load %arg16[%c88, %c0_2] : memref<96x256xf32, #tpu.memory_space<vmem>>, vector<8x256xf32>
    tpu.vector_store %arg16[%c88, %c0_2], %2 {strides = array<i32>} : memref<96x256xf32, #tpu.memory_space<vmem>>, vector<8x256xf32>,
    %cst_3 = arith.constant 0.000000e+00 : f32
    %4 = vector.broadcast %cst_3 : f32 to vector<8x256xf32>
    %c0_4 = arith.constant 0 : index
    %c0_5 = arith.constant 0 : index
    %5 = vector.load %arg17[%c0_4, %c0_5] : memref<96x256xf32, #tpu.memory_space<vmem>>, vector<8x256xf32>
    tpu.vector_store %arg17[%c0_4, %c0_5], %4 {strides = array<i32>} : memref<96x256xf32, #tpu.memory_space<vmem>>, vector<8x256xf32>,
    %cst_6 = arith.constant 0.000000e+00 : f32
    %6 = vector.broadcast %cst_6 : f32 to vector<8x256xf32>
    %c88_7 = arith.constant 88 : index
    %c0_8 = arith.constant 0 : index
    %7 = vector.load %arg17[%c88_7, %c0_8] : memref<96x256xf32, #tpu.memory_space<vmem>>, vector<8x256xf32>
    tpu.vector_store %arg17[%c88_7, %c0_8], %6 {strides = array<i32>} : memref<96x256xf32, #tpu.memory_space<vmem>>, vector<8x256xf32>,
    %c64_i32 = arith.constant 64 : i32
    %8 = arith.muli %arg1, %c64_i32 : i32
    %c8_i32 = arith.constant 8 : i32
    %9 = arith.subi %8, %c8_i32 : i32
    %10 = tpu.iota {dimensions = array<i32: 0>} : vector<80x256xi32>
    %11 = vector.broadcast %9 : i32 to vector<80x256xi32>
    %12 = arith.addi %10, %11 : vector<80x256xi32>
    %c0_i32 = arith.constant 0 : i32
    %13 = vector.broadcast %c0_i32 : i32 to vector<80x256xi32>
    %14 = arith.cmpi sge, %12, %13 : vector<80x256xi32>
    %c256_i32 = arith.constant 256 : i32
    %15 = vector.broadcast %c256_i32 : i32 to vector<80x256xi32>
    %16 = arith.cmpi slt, %12, %15 : vector<80x256xi32>
    %17 = arith.andi %14, %16 : vector<80x256xi1>
    %c0_9 = arith.constant 0 : index
    %c0_10 = arith.constant 0 : index
    %c7 = arith.constant 7 : index
    %c0_11 = arith.constant 0 : index
    %18 = vector.load %arg2[%c0_9, %c0_10, %c7, %c0_11] : memref<1x1x96x8xf32, #tpu.memory_space<vmem>>, vector<1x1x80x8xf32>
    %19 = vector.shape_cast %18 : vector<1x1x80x8xf32> to vector<80x8xf32>
    %c0_12 = arith.constant 0 : index
    %c0_13 = arith.constant 0 : index
    %c8 = arith.constant 8 : index
    %c0_14 = arith.constant 0 : index
    %20 = vector.load %arg2[%c0_12, %c0_13, %c8, %c0_14] : memref<1x1x96x8xf32, #tpu.memory_space<vmem>>, vector<1x1x80x8xf32>
    %21 = vector.shape_cast %20 : vector<1x1x80x8xf32> to vector<80x8xf32>
    %c0_15 = arith.constant 0 : index
    %c0_16 = arith.constant 0 : index
    %c9 = arith.constant 9 : index
    %c0_17 = arith.constant 0 : index
    %22 = vector.load %arg2[%c0_15, %c0_16, %c9, %c0_17] : memref<1x1x96x8xf32, #tpu.memory_space<vmem>>, vector<1x1x80x8xf32>
    %23 = vector.shape_cast %22 : vector<1x1x80x8xf32> to vector<80x8xf32>
    %24 = tpu.concatenate %19, %21, %23 in 1 : vector<80x8xf32>, vector<80x8xf32>, vector<80x8xf32> -> vector<80x24xf32>
    %c0_18 = arith.constant 0 : index
    %c0_19 = arith.constant 0 : index
    %25 = vector.load %arg3[%c0_18, %c0_19] : memref<24x256xf32, #tpu.memory_space<vmem>>, vector<24x256xf32>
    %cst_20 = arith.constant dense<0.000000e+00> : vector<80x256xf32>
    %26 = tpu.matmul %24, %25, %cst_20 {dimension_numbers = #tpu.dot_dimension_numbers<[1], [0], [0], [1], [0, 0, 1, 1], [], []>} : vector<80x24xf32>, vector<24x256xf32>, vector<80x256xf32> -> vector<80x256xf32>
    %c0_21 = arith.constant 0 : index
    %c0_22 = arith.constant 0 : index
    %27 = vector.load %arg4[%c0_21, %c0_22] : memref<1x256xf32, #tpu.memory_space<vmem>>, vector<1x256xf32>
    %28 = vector.broadcast %27 : vector<1x256xf32> to vector<80x256xf32>
    %29 = arith.addf %26, %28 : vector<80x256xf32>
    %cst_23 = arith.constant 0.000000e+00 : f32
    %30 = vector.broadcast %cst_23 : f32 to vector<80x256xf32>
    %31 = arith.maximumf %29, %30 : vector<80x256xf32>
    %cst_24 = arith.constant 0.000000e+00 : f32
    %32 = vector.broadcast %cst_24 : f32 to vector<80x256xf32>
    %33 = arith.select %17, %31, %32 : vector<80x256xi1>, vector<80x256xf32>
    %c8_25 = arith.constant 8 : index
    %c0_26 = arith.constant 0 : index
    %34 = vector.load %arg16[%c8_25, %c0_26] : memref<96x256xf32, #tpu.memory_space<vmem>>, vector<80x256xf32>
    tpu.vector_store %arg16[%c8_25, %c0_26], %33 {strides = array<i32>} : memref<96x256xf32, #tpu.memory_space<vmem>>, vector<80x256xf32>,
    %c7_27 = arith.constant 7 : index
    %c0_28 = arith.constant 0 : index
    %35 = vector.load %arg16[%c7_27, %c0_28] : memref<96x256xf32, #tpu.memory_space<vmem>>, vector<80x256xf32>
    %c0_29 = arith.constant 0 : index
    %c0_30 = arith.constant 0 : index
    %36 = vector.load %arg5[%c0_29, %c0_30] : memref<768x256xf32, #tpu.memory_space<vmem>>, vector<256x256xf32>
    %cst_31 = arith.constant dense<0.000000e+00> : vector<80x256xf32>
    %37 = tpu.matmul %35, %36, %cst_31 {dimension_numbers = #tpu.dot_dimension_numbers<[1], [0], [0], [1], [0, 0, 1, 1], [], []>} : vector<80x256xf32>, vector<256x256xf32>, vector<80x256xf32> -> vector<80x256xf32>
    %c8_32 = arith.constant 8 : index
    %c0_33 = arith.constant 0 : index
    %38 = vector.load %arg16[%c8_32, %c0_33] : memref<96x256xf32, #tpu.memory_space<vmem>>, vector<80x256xf32>
    %c256 = arith.constant 256 : index
    %c0_34 = arith.constant 0 : index
    %39 = vector.load %arg5[%c256, %c0_34] : memref<768x256xf32, #tpu.memory_space<vmem>>, vector<256x256xf32>
    %cst_35 = arith.constant dense<0.000000e+00> : vector<80x256xf32>
    %40 = tpu.matmul %38, %39, %cst_35 {dimension_numbers = #tpu.dot_dimension_numbers<[1], [0], [0], [1], [0, 0, 1, 1], [], []>} : vector<80x256xf32>, vector<256x256xf32>, vector<80x256xf32> -> vector<80x256xf32>
    %41 = arith.addf %37, %40 : vector<80x256xf32>
    %c9_36 = arith.constant 9 : index
    %c0_37 = arith.constant 0 : index
    %42 = vector.load %arg16[%c9_36, %c0_37] : memref<96x256xf32, #tpu.memory_space<vmem>>, vector<80x256xf32>
    %c512 = arith.constant 512 : index
    %c0_38 = arith.constant 0 : index
    %43 = vector.load %arg5[%c512, %c0_38] : memref<768x256xf32, #tpu.memory_space<vmem>>, vector<256x256xf32>
    %cst_39 = arith.constant dense<0.000000e+00> : vector<80x256xf32>
    %44 = tpu.matmul %42, %43, %cst_39 {dimension_numbers = #tpu.dot_dimension_numbers<[1], [0], [0], [1], [0, 0, 1, 1], [], []>} : vector<80x256xf32>, vector<256x256xf32>, vector<80x256xf32> -> vector<80x256xf32>
    %45 = arith.addf %41, %44 : vector<80x256xf32>
    %c0_40 = arith.constant 0 : index
    %c0_41 = arith.constant 0 : index
    %46 = vector.load %arg6[%c0_40, %c0_41] : memref<1x256xf32, #tpu.memory_space<vmem>>, vector<1x256xf32>
    %47 = vector.broadcast %46 : vector<1x256xf32> to vector<80x256xf32>
    %48 = arith.addf %45, %47 : vector<80x256xf32>
    %cst_42 = arith.constant 0.000000e+00 : f32
    %49 = vector.broadcast %cst_42 : f32 to vector<80x256xf32>
    %50 = arith.maximumf %48, %49 : vector<80x256xf32>
    %cst_43 = arith.constant 0.000000e+00 : f32
    %51 = vector.broadcast %cst_43 : f32 to vector<80x256xf32>
    %52 = arith.select %17, %50, %51 : vector<80x256xi1>, vector<80x256xf32>
    %c8_44 = arith.constant 8 : index
    %c0_45 = arith.constant 0 : index
    %53 = vector.load %arg17[%c8_44, %c0_45] : memref<96x256xf32, #tpu.memory_space<vmem>>, vector<80x256xf32>
    tpu.vector_store %arg17[%c8_44, %c0_45], %52 {strides = array<i32>} : memref<96x256xf32, #tpu.memory_space<vmem>>, vector<80x256xf32>,
    %c6 = arith.constant 6 : index
    %c0_46 = arith.constant 0 : index
    %54 = vector.load %arg17[%c6, %c0_46] : memref<96x256xf32, #tpu.memory_space<vmem>>, vector<80x256xf32>
    %c0_47 = arith.constant 0 : index
    %c0_48 = arith.constant 0 : index
    %55 = vector.load %arg7[%c0_47, %c0_48] : memref<1280x256xf32, #tpu.memory_space<vmem>>, vector<256x256xf32>
    %cst_49 = arith.constant dense<0.000000e+00> : vector<80x256xf32>
    %56 = tpu.matmul %54, %55, %cst_49 {dimension_numbers = #tpu.dot_dimension_numbers<[1], [0], [0], [1], [0, 0, 1, 1], [], []>} : vector<80x256xf32>, vector<256x256xf32>, vector<80x256xf32> -> vector<80x256xf32>
    %c7_50 = arith.constant 7 : index
    %c0_51 = arith.constant 0 : index
    %57 = vector.load %arg17[%c7_50, %c0_51] : memref<96x256xf32, #tpu.memory_space<vmem>>, vector<80x256xf32>
    %c256_52 = arith.constant 256 : index
    %c0_53 = arith.constant 0 : index
    %58 = vector.load %arg7[%c256_52, %c0_53] : memref<1280x256xf32, #tpu.memory_space<vmem>>, vector<256x256xf32>
    %cst_54 = arith.constant dense<0.000000e+00> : vector<80x256xf32>
    %59 = tpu.matmul %57, %58, %cst_54 {dimension_numbers = #tpu.dot_dimension_numbers<[1], [0], [0], [1], [0, 0, 1, 1], [], []>} : vector<80x256xf32>, vector<256x256xf32>, vector<80x256xf32> -> vector<80x256xf32>
    %60 = arith.addf %56, %59 : vector<80x256xf32>
    %c8_55 = arith.constant 8 : index
    %c0_56 = arith.constant 0 : index
    %61 = vector.load %arg17[%c8_55, %c0_56] : memref<96x256xf32, #tpu.memory_space<vmem>>, vector<80x256xf32>
    %c512_57 = arith.constant 512 : index
    %c0_58 = arith.constant 0 : index
    %62 = vector.load %arg7[%c512_57, %c0_58] : memref<1280x256xf32, #tpu.memory_space<vmem>>, vector<256x256xf32>
    %cst_59 = arith.constant dense<0.000000e+00> : vector<80x256xf32>
    %63 = tpu.matmul %61, %62, %cst_59 {dimension_numbers = #tpu.dot_dimension_numbers<[1], [0], [0], [1], [0, 0, 1, 1], [], []>} : vector<80x256xf32>, vector<256x256xf32>, vector<80x256xf32> -> vector<80x256xf32>
    %64 = arith.addf %60, %63 : vector<80x256xf32>
    %c9_60 = arith.constant 9 : index
    %c0_61 = arith.constant 0 : index
    %65 = vector.load %arg17[%c9_60, %c0_61] : memref<96x256xf32, #tpu.memory_space<vmem>>, vector<80x256xf32>
    %c768 = arith.constant 768 : index
    %c0_62 = arith.constant 0 : index
    %66 = vector.load %arg7[%c768, %c0_62] : memref<1280x256xf32, #tpu.memory_space<vmem>>, vector<256x256xf32>
    %cst_63 = arith.constant dense<0.000000e+00> : vector<80x256xf32>
    %67 = tpu.matmul %65, %66, %cst_63 {dimension_numbers = #tpu.dot_dimension_numbers<[1], [0], [0], [1], [0, 0, 1, 1], [], []>} : vector<80x256xf32>, vector<256x256xf32>, vector<80x256xf32> -> vector<80x256xf32>
    %68 = arith.addf %64, %67 : vector<80x256xf32>
    %c10 = arith.constant 10 : index
    %c0_64 = arith.constant 0 : index
    %69 = vector.load %arg17[%c10, %c0_64] : memref<96x256xf32, #tpu.memory_space<vmem>>, vector<80x256xf32>
    %c1024 = arith.constant 1024 : index
    %c0_65 = arith.constant 0 : index
    %70 = vector.load %arg7[%c1024, %c0_65] : memref<1280x256xf32, #tpu.memory_space<vmem>>, vector<256x256xf32>
    %cst_66 = arith.constant dense<0.000000e+00> : vector<80x256xf32>
    %71 = tpu.matmul %69, %70, %cst_66 {dimension_numbers = #tpu.dot_dimension_numbers<[1], [0], [0], [1], [0, 0, 1, 1], [], []>} : vector<80x256xf32>, vector<256x256xf32>, vector<80x256xf32> -> vector<80x256xf32>
    %72 = arith.addf %68, %71 : vector<80x256xf32>
    %c0_67 = arith.constant 0 : index
    %c0_68 = arith.constant 0 : index
    %73 = vector.load %arg8[%c0_67, %c0_68] : memref<1x256xf32, #tpu.memory_space<vmem>>, vector<1x256xf32>
    %74 = vector.broadcast %73 : vector<1x256xf32> to vector<80x256xf32>
    %75 = arith.addf %72, %74 : vector<80x256xf32>
    %cst_69 = arith.constant 0.000000e+00 : f32
    %76 = vector.broadcast %cst_69 : f32 to vector<80x256xf32>
    %77 = arith.maximumf %75, %76 : vector<80x256xf32>
    %cst_70 = arith.constant 0.000000e+00 : f32
    %78 = vector.broadcast %cst_70 : f32 to vector<80x256xf32>
    %79 = arith.select %17, %77, %78 : vector<80x256xi1>, vector<80x256xf32>
    %c8_71 = arith.constant 8 : index
    %c0_72 = arith.constant 0 : index
    %80 = vector.load %arg16[%c8_71, %c0_72] : memref<96x256xf32, #tpu.memory_space<vmem>>, vector<80x256xf32>
    tpu.vector_store %arg16[%c8_71, %c0_72], %79 {strides = array<i32>} : memref<96x256xf32, #tpu.memory_space<vmem>>, vector<80x256xf32>,
    %c6_73 = arith.constant 6 : index
    %c0_74 = arith.constant 0 : index
    %81 = vector.load %arg16[%c6_73, %c0_74] : memref<96x256xf32, #tpu.memory_space<vmem>>, vector<80x256xf32>
    %c0_75 = arith.constant 0 : index
    %c0_76 = arith.constant 0 : index
    %82 = vector.load %arg9[%c0_75, %c0_76] : memref<1280x256xf32, #tpu.memory_space<vmem>>, vector<256x256xf32>
    %cst_77 = arith.constant dense<0.000000e+00> : vector<80x256xf32>
    %83 = tpu.matmul %81, %82, %cst_77 {dimension_numbers = #tpu.dot_dimension_numbers<[1], [0], [0], [1], [0, 0, 1, 1], [], []>} : vector<80x256xf32>, vector<256x256xf32>, vector<80x256xf32> -> vector<80x256xf32>
    %c7_78 = arith.constant 7 : index
    %c0_79 = arith.constant 0 : index
    %84 = vector.load %arg16[%c7_78, %c0_79] : memref<96x256xf32, #tpu.memory_space<vmem>>, vector<80x256xf32>
    %c256_80 = arith.constant 256 : index
    %c0_81 = arith.constant 0 : index
    %85 = vector.load %arg9[%c256_80, %c0_81] : memref<1280x256xf32, #tpu.memory_space<vmem>>, vector<256x256xf32>
    %cst_82 = arith.constant dense<0.000000e+00> : vector<80x256xf32>
    %86 = tpu.matmul %84, %85, %cst_82 {dimension_numbers = #tpu.dot_dimension_numbers<[1], [0], [0], [1], [0, 0, 1, 1], [], []>} : vector<80x256xf32>, vector<256x256xf32>, vector<80x256xf32> -> vector<80x256xf32>
    %87 = arith.addf %83, %86 : vector<80x256xf32>
    %c8_83 = arith.constant 8 : index
    %c0_84 = arith.constant 0 : index
    %88 = vector.load %arg16[%c8_83, %c0_84] : memref<96x256xf32, #tpu.memory_space<vmem>>, vector<80x256xf32>
    %c512_85 = arith.constant 512 : index
    %c0_86 = arith.constant 0 : index
    %89 = vector.load %arg9[%c512_85, %c0_86] : memref<1280x256xf32, #tpu.memory_space<vmem>>, vector<256x256xf32>
    %cst_87 = arith.constant dense<0.000000e+00> : vector<80x256xf32>
    %90 = tpu.matmul %88, %89, %cst_87 {dimension_numbers = #tpu.dot_dimension_numbers<[1], [0], [0], [1], [0, 0, 1, 1], [], []>} : vector<80x256xf32>, vector<256x256xf32>, vector<80x256xf32> -> vector<80x256xf32>
    %91 = arith.addf %87, %90 : vector<80x256xf32>
    %c9_88 = arith.constant 9 : index
    %c0_89 = arith.constant 0 : index
    %92 = vector.load %arg16[%c9_88, %c0_89] : memref<96x256xf32, #tpu.memory_space<vmem>>, vector<80x256xf32>
    %c768_90 = arith.constant 768 : index
    %c0_91 = arith.constant 0 : index
    %93 = vector.load %arg9[%c768_90, %c0_91] : memref<1280x256xf32, #tpu.memory_space<vmem>>, vector<256x256xf32>
    %cst_92 = arith.constant dense<0.000000e+00> : vector<80x256xf32>
    %94 = tpu.matmul %92, %93, %cst_92 {dimension_numbers = #tpu.dot_dimension_numbers<[1], [0], [0], [1], [0, 0, 1, 1], [], []>} : vector<80x256xf32>, vector<256x256xf32>, vector<80x256xf32> -> vector<80x256xf32>
    %95 = arith.addf %91, %94 : vector<80x256xf32>
    %c10_93 = arith.constant 10 : index
    %c0_94 = arith.constant 0 : index
    %96 = vector.load %arg16[%c10_93, %c0_94] : memref<96x256xf32, #tpu.memory_space<vmem>>, vector<80x256xf32>
    %c1024_95 = arith.constant 1024 : index
    %c0_96 = arith.constant 0 : index
    %97 = vector.load %arg9[%c1024_95, %c0_96] : memref<1280x256xf32, #tpu.memory_space<vmem>>, vector<256x256xf32>
    %cst_97 = arith.constant dense<0.000000e+00> : vector<80x256xf32>
    %98 = tpu.matmul %96, %97, %cst_97 {dimension_numbers = #tpu.dot_dimension_numbers<[1], [0], [0], [1], [0, 0, 1, 1], [], []>} : vector<80x256xf32>, vector<256x256xf32>, vector<80x256xf32> -> vector<80x256xf32>
    %99 = arith.addf %95, %98 : vector<80x256xf32>
    %c0_98 = arith.constant 0 : index
    %c0_99 = arith.constant 0 : index
    %100 = vector.load %arg10[%c0_98, %c0_99] : memref<1x256xf32, #tpu.memory_space<vmem>>, vector<1x256xf32>
    %101 = vector.broadcast %100 : vector<1x256xf32> to vector<80x256xf32>
    %102 = arith.addf %99, %101 : vector<80x256xf32>
    %cst_100 = arith.constant 0.000000e+00 : f32
    %103 = vector.broadcast %cst_100 : f32 to vector<80x256xf32>
    %104 = arith.maximumf %102, %103 : vector<80x256xf32>
    %cst_101 = arith.constant 0.000000e+00 : f32
    %105 = vector.broadcast %cst_101 : f32 to vector<80x256xf32>
    %106 = arith.select %17, %104, %105 : vector<80x256xi1>, vector<80x256xf32>
    %c8_102 = arith.constant 8 : index
    %c0_103 = arith.constant 0 : index
    %107 = vector.load %arg17[%c8_102, %c0_103] : memref<96x256xf32, #tpu.memory_space<vmem>>, vector<80x256xf32>
    tpu.vector_store %arg17[%c8_102, %c0_103], %106 {strides = array<i32>} : memref<96x256xf32, #tpu.memory_space<vmem>>, vector<80x256xf32>,
    %c7_104 = arith.constant 7 : index
    %c0_105 = arith.constant 0 : index
    %108 = vector.load %arg17[%c7_104, %c0_105] : memref<96x256xf32, #tpu.memory_space<vmem>>, vector<80x256xf32>
    %c0_106 = arith.constant 0 : index
    %c0_107 = arith.constant 0 : index
    %109 = vector.load %arg11[%c0_106, %c0_107] : memref<768x256xf32, #tpu.memory_space<vmem>>, vector<256x256xf32>
    %cst_108 = arith.constant dense<0.000000e+00> : vector<80x256xf32>
    %110 = tpu.matmul %108, %109, %cst_108 {dimension_numbers = #tpu.dot_dimension_numbers<[1], [0], [0], [1], [0, 0, 1, 1], [], []>} : vector<80x256xf32>, vector<256x256xf32>, vector<80x256xf32> -> vector<80x256xf32>
    %c8_109 = arith.constant 8 : index
    %c0_110 = arith.constant 0 : index
    %111 = vector.load %arg17[%c8_109, %c0_110] : memref<96x256xf32, #tpu.memory_space<vmem>>, vector<80x256xf32>
    %c256_111 = arith.constant 256 : index
    %c0_112 = arith.constant 0 : index
    %112 = vector.load %arg11[%c256_111, %c0_112] : memref<768x256xf32, #tpu.memory_space<vmem>>, vector<256x256xf32>
    %cst_113 = arith.constant dense<0.000000e+00> : vector<80x256xf32>
    %113 = tpu.matmul %111, %112, %cst_113 {dimension_numbers = #tpu.dot_dimension_numbers<[1], [0], [0], [1], [0, 0, 1, 1], [], []>} : vector<80x256xf32>, vector<256x256xf32>, vector<80x256xf32> -> vector<80x256xf32>
    %114 = arith.addf %110, %113 : vector<80x256xf32>
    %c9_114 = arith.constant 9 : index
    %c0_115 = arith.constant 0 : index
    %115 = vector.load %arg17[%c9_114, %c0_115] : memref<96x256xf32, #tpu.memory_space<vmem>>, vector<80x256xf32>
    %c512_116 = arith.constant 512 : index
    %c0_117 = arith.constant 0 : index
    %116 = vector.load %arg11[%c512_116, %c0_117] : memref<768x256xf32, #tpu.memory_space<vmem>>, vector<256x256xf32>
    %cst_118 = arith.constant dense<0.000000e+00> : vector<80x256xf32>
    %117 = tpu.matmul %115, %116, %cst_118 {dimension_numbers = #tpu.dot_dimension_numbers<[1], [0], [0], [1], [0, 0, 1, 1], [], []>} : vector<80x256xf32>, vector<256x256xf32>, vector<80x256xf32> -> vector<80x256xf32>
    %118 = arith.addf %114, %117 : vector<80x256xf32>
    %c0_119 = arith.constant 0 : index
    %c0_120 = arith.constant 0 : index
    %119 = vector.load %arg12[%c0_119, %c0_120] : memref<1x256xf32, #tpu.memory_space<vmem>>, vector<1x256xf32>
    %120 = vector.broadcast %119 : vector<1x256xf32> to vector<80x256xf32>
    %121 = arith.addf %118, %120 : vector<80x256xf32>
    %cst_121 = arith.constant 0.000000e+00 : f32
    %122 = vector.broadcast %cst_121 : f32 to vector<80x256xf32>
    %123 = arith.maximumf %121, %122 : vector<80x256xf32>
    %cst_122 = arith.constant 0.000000e+00 : f32
    %124 = vector.broadcast %cst_122 : f32 to vector<80x256xf32>
    %125 = arith.select %17, %123, %124 : vector<80x256xi1>, vector<80x256xf32>
    %c8_123 = arith.constant 8 : index
    %c0_124 = arith.constant 0 : index
    %126 = vector.load %arg16[%c8_123, %c0_124] : memref<96x256xf32, #tpu.memory_space<vmem>>, vector<80x256xf32>
    tpu.vector_store %arg16[%c8_123, %c0_124], %125 {strides = array<i32>} : memref<96x256xf32, #tpu.memory_space<vmem>>, vector<80x256xf32>,
    %c15 = arith.constant 15 : index
    %c0_125 = arith.constant 0 : index
    %127 = vector.load %arg16[%c15, %c0_125] : memref<96x256xf32, #tpu.memory_space<vmem>>, vector<64x256xf32>
    %c0_126 = arith.constant 0 : index
    %c0_127 = arith.constant 0 : index
    %128 = vector.load %arg13[%c0_126, %c0_127] : memref<768x8xf32, #tpu.memory_space<vmem>>, vector<256x8xf32>
    %cst_128 = arith.constant dense<0.000000e+00> : vector<64x8xf32>
    %129 = tpu.matmul %127, %128, %cst_128 {dimension_numbers = #tpu.dot_dimension_numbers<[1], [0], [0], [1], [0, 0, 1, 1], [], []>} : vector<64x256xf32>, vector<256x8xf32>, vector<64x8xf32> -> vector<64x8xf32>
    %c16 = arith.constant 16 : index
    %c0_129 = arith.constant 0 : index
    %130 = vector.load %arg16[%c16, %c0_129] : memref<96x256xf32, #tpu.memory_space<vmem>>, vector<64x256xf32>
    %c256_130 = arith.constant 256 : index
    %c0_131 = arith.constant 0 : index
    %131 = vector.load %arg13[%c256_130, %c0_131] : memref<768x8xf32, #tpu.memory_space<vmem>>, vector<256x8xf32>
    %cst_132 = arith.constant dense<0.000000e+00> : vector<64x8xf32>
    %132 = tpu.matmul %130, %131, %cst_132 {dimension_numbers = #tpu.dot_dimension_numbers<[1], [0], [0], [1], [0, 0, 1, 1], [], []>} : vector<64x256xf32>, vector<256x8xf32>, vector<64x8xf32> -> vector<64x8xf32>
    %133 = arith.addf %129, %132 : vector<64x8xf32>
    %c17 = arith.constant 17 : index
    %c0_133 = arith.constant 0 : index
    %134 = vector.load %arg16[%c17, %c0_133] : memref<96x256xf32, #tpu.memory_space<vmem>>, vector<64x256xf32>
    %c512_134 = arith.constant 512 : index
    %c0_135 = arith.constant 0 : index
    %135 = vector.load %arg13[%c512_134, %c0_135] : memref<768x8xf32, #tpu.memory_space<vmem>>, vector<256x8xf32>
    %cst_136 = arith.constant dense<0.000000e+00> : vector<64x8xf32>
    %136 = tpu.matmul %134, %135, %cst_136 {dimension_numbers = #tpu.dot_dimension_numbers<[1], [0], [0], [1], [0, 0, 1, 1], [], []>} : vector<64x256xf32>, vector<256x8xf32>, vector<64x8xf32> -> vector<64x8xf32>
    %137 = arith.addf %133, %136 : vector<64x8xf32>
    %c0_137 = arith.constant 0 : index
    %c0_138 = arith.constant 0 : index
    %138 = vector.load %arg14[%c0_137, %c0_138] : memref<1x8xf32, #tpu.memory_space<vmem>>, vector<1x8xf32>
    %139 = vector.broadcast %138 : vector<1x8xf32> to vector<64x8xf32>
    %140 = arith.addf %137, %139 : vector<64x8xf32>
    %141 = math.tanh %140 : vector<64x8xf32>
    %c0_139 = arith.constant 0 : index
    %c0_140 = arith.constant 0 : index
    %c0_141 = arith.constant 0 : index
    %142 = vector.load %arg15[%c0_139, %c0_140, %c0_141] : memref<1x64x8xf32, #tpu.memory_space<vmem>>, vector<1x64x8xf32>
    %143 = vector.shape_cast %142 : vector<1x64x8xf32> to vector<64x8xf32>
    %144 = vector.shape_cast %141 : vector<64x8xf32> to vector<1x64x8xf32>
    tpu.vector_store %arg15[%c0_139, %c0_140, %c0_141], %144 {strides = array<i32>} : memref<1x64x8xf32, #tpu.memory_space<vmem>>, vector<1x64x8xf32>,
    return
  }
  func.func @transform_0(%arg0: i32, %arg1: i32) -> (i32, i32, i32, i32) {
    %c0_i32 = arith.constant 0 : i32
    %c0_i32_0 = arith.constant 0 : i32
    %c0_i32_1 = arith.constant 0 : i32
    return %arg0, %arg1, %c0_i32, %c0_i32_0 : i32, i32, i32, i32
  }
  func.func @transform_1(%arg0: i32, %arg1: i32) -> (i32, i32) {
    %c0_i32 = arith.constant 0 : i32
    %c0_i32_0 = arith.constant 0 : i32
    %c0_i32_1 = arith.constant 0 : i32
    return %c0_i32, %c0_i32_0 : i32, i32
  }
  func.func @transform_2(%arg0: i32, %arg1: i32) -> (i32, i32) {
    %c0_i32 = arith.constant 0 : i32
    %c0_i32_0 = arith.constant 0 : i32
    %c0_i32_1 = arith.constant 0 : i32
    return %c0_i32, %c0_i32_0 : i32, i32
  }
  func.func @transform_3(%arg0: i32, %arg1: i32) -> (i32, i32) {
    %c0_i32 = arith.constant 0 : i32
    %c0_i32_0 = arith.constant 0 : i32
    %c0_i32_1 = arith.constant 0 : i32
    return %c0_i32, %c0_i32_0 : i32, i32
  }
  func.func @transform_4(%arg0: i32, %arg1: i32) -> (i32, i32) {
    %c0_i32 = arith.constant 0 : i32
    %c0_i32_0 = arith.constant 0 : i32
    %c0_i32_1 = arith.constant 0 : i32
    return %c0_i32, %c0_i32_0 : i32, i32
  }
  func.func @transform_5(%arg0: i32, %arg1: i32) -> (i32, i32) {
    %c0_i32 = arith.constant 0 : i32
    %c0_i32_0 = arith.constant 0 : i32
    %c0_i32_1 = arith.constant 0 : i32
    return %c0_i32, %c0_i32_0 : i32, i32
  }
  func.func @transform_6(%arg0: i32, %arg1: i32) -> (i32, i32) {
    %c0_i32 = arith.constant 0 : i32
    %c0_i32_0 = arith.constant 0 : i32
    %c0_i32_1 = arith.constant 0 : i32
    return %c0_i32, %c0_i32_0 : i32, i32
  }
  func.func @transform_7(%arg0: i32, %arg1: i32) -> (i32, i32) {
    %c0_i32 = arith.constant 0 : i32
    %c0_i32_0 = arith.constant 0 : i32
    %c0_i32_1 = arith.constant 0 : i32
    return %c0_i32, %c0_i32_0 : i32, i32
  }
  func.func @transform_8(%arg0: i32, %arg1: i32) -> (i32, i32) {
    %c0_i32 = arith.constant 0 : i32
    %c0_i32_0 = arith.constant 0 : i32
    %c0_i32_1 = arith.constant 0 : i32
    return %c0_i32, %c0_i32_0 : i32, i32
  }
  func.func @transform_9(%arg0: i32, %arg1: i32) -> (i32, i32) {
    %c0_i32 = arith.constant 0 : i32
    %c0_i32_0 = arith.constant 0 : i32
    %c0_i32_1 = arith.constant 0 : i32
    return %c0_i32, %c0_i32_0 : i32, i32
  }
  func.func @transform_10(%arg0: i32, %arg1: i32) -> (i32, i32) {
    %c0_i32 = arith.constant 0 : i32
    %c0_i32_0 = arith.constant 0 : i32
    %c0_i32_1 = arith.constant 0 : i32
    return %c0_i32, %c0_i32_0 : i32, i32
  }
  func.func @transform_11(%arg0: i32, %arg1: i32) -> (i32, i32) {
    %c0_i32 = arith.constant 0 : i32
    %c0_i32_0 = arith.constant 0 : i32
    %c0_i32_1 = arith.constant 0 : i32
    return %c0_i32, %c0_i32_0 : i32, i32
  }
  func.func @transform_12(%arg0: i32, %arg1: i32) -> (i32, i32) {
    %c0_i32 = arith.constant 0 : i32
    %c0_i32_0 = arith.constant 0 : i32
    %c0_i32_1 = arith.constant 0 : i32
    return %c0_i32, %c0_i32_0 : i32, i32
  }
  func.func @transform_13(%arg0: i32, %arg1: i32) -> (i32, i32, i32) {
    %c0_i32 = arith.constant 0 : i32
    %c0_i32_0 = arith.constant 0 : i32
    return %arg0, %arg1, %c0_i32 : i32, i32, i32
  }
}

</mosaic_0001>

<llo_original>
// kernel: tpu_custom_call.1
$region0: #{tpu_custom_call.1}
  #allocation0 [shape = 'u32[]', space=smem, size = 0x4, offset = 0x4, fixed_abs, tag = 'smem constant byte address 0x4 - core index']
  #allocation1 [shape = 'u32[144,128]{1,0:T(1,128)}', space=vmem, size = 0x12000, scoped, tag = 'internal scratch']
  #allocation2 [shape = 'f32[96,256]{1,0:T(8,128)}', space=vmem, size = 0x18000, scoped, tag = 'scratch operand']
  #allocation3 [shape = 'f32[96,256]{1,0:T(8,128)}', space=vmem, size = 0x18000, scoped, tag = 'scratch operand']
  %s0 = inlined_call_operand.vmem [shape: f32[2,4,96,8], index: 0, kind: input, shape index: {}]
  %s1 = inlined_call_operand.hbm [shape: f32[24,256], index: 1, kind: input, shape index: {}]
  %s2 = inlined_call_operand.hbm [shape: f32[1,256], index: 2, kind: input, shape index: {}]
  %s3 = inlined_call_operand.hbm [shape: f32[768,256], index: 3, kind: input, shape index: {}]
  %s4 = inlined_call_operand.hbm [shape: f32[1,256], index: 4, kind: input, shape index: {}]
  %s5 = inlined_call_operand.hbm [shape: f32[1280,256], index: 5, kind: input, shape index: {}]
  %s6 = inlined_call_operand.hbm [shape: f32[1,256], index: 6, kind: input, shape index: {}]
  %s7 = inlined_call_operand.hbm [shape: f32[1280,256], index: 7, kind: input, shape index: {}]
  %s8 = inlined_call_operand.hbm [shape: f32[1,256], index: 8, kind: input, shape index: {}]
  %s9 = inlined_call_operand.hbm [shape: f32[768,256], index: 9, kind: input, shape index: {}]
  %s10 = inlined_call_operand.hbm [shape: f32[1,256], index: 10, kind: input, shape index: {}]
  %s11 = inlined_call_operand.vmem [shape: f32[768,8], index: 11, kind: input, shape index: {}]
  %s12 = inlined_call_operand.hbm [shape: f32[1,8], index: 12, kind: input, shape index: {}]
  %s13 = inlined_call_operand.vmem [shape: f32[2,256,8], index: 13, kind: output, shape index: {}]
  %s14 = sld [smem:[#allocation0]]
  $region129: #{tpu_custom_call.1} parent=0
    _
  %s16 = ssub.s32 1, %s14
  %s17 = scalar_select 0, %s16, %s14
  $region1: #{tpu_custom_call.1} parent=0
    #allocation4 [shape = 'u8[24576]{0}', space=vmem, size = 0x6000, scoped, tag = 'input window, operand 1, single buffered']
    #allocation5 [shape = 's32[2]{0}', space=sflag, size = 0x8, scoped, tag = 'scoped memory for tpu_custom_call.1']
    #allocation6 [shape = 'u8[1024]{0}', space=vmem, size = 0x400, scoped, tag = 'input window, operand 2, single buffered']
    #allocation7 [shape = 's32[1]{0}', space=sflag, size = 0x4, scoped, tag = 'scoped memory for tpu_custom_call.1']
    #allocation8 [shape = 'u8[786432]{0}', space=vmem, size = 0xc0000, scoped, tag = 'input window, operand 3, single buffered']
    #allocation9 [shape = 'u8[1024]{0}', space=vmem, size = 0x400, scoped, tag = 'input window, operand 4, single buffered']
    #allocation10 [shape = 's32[1]{0}', space=sflag, size = 0x4, scoped, tag = 'scoped memory for tpu_custom_call.1']
    #allocation11 [shape = 'u8[1310720]{0}', space=vmem, size = 0x140000, scoped, tag = 'input window, operand 5, single buffered']
    #allocation12 [shape = 'u8[1024]{0}', space=vmem, size = 0x400, scoped, tag = 'input window, operand 6, single buffered']
    #allocation13 [shape = 's32[1]{0}', space=sflag, size = 0x4, scoped, tag = 'scoped memory for tpu_custom_call.1']
    #allocation14 [shape = 'u8[1310720]{0}', space=vmem, size = 0x140000, scoped, tag = 'input window, operand 7, single buffered']
    #allocation15 [shape = 'u8[1024]{0}', space=vmem, size = 0x400, scoped, tag = 'input window, operand 8, single buffered']
    #allocation16 [shape = 's32[1]{0}', space=sflag, size = 0x4, scoped, tag = 'scoped memory for tpu_custom_call.1']
    #allocation17 [shape = 'u8[786432]{0}', space=vmem, size = 0xc0000, scoped, tag = 'input window, operand 9, single buffered']
    #allocation18 [shape = 'u8[1024]{0}', space=vmem, size = 0x400, scoped, tag = 'input window, operand 10, single buffered']
    #allocation19 [shape = 's32[1]{0}', space=sflag, size = 0x4, scoped, tag = 'scoped memory for tpu_custom_call.1']
    #allocation20 [shape = 'u8[512]{0}', space=vmem, size = 0x400, scoped, tag = 'input window, operand 12, single buffered']
    %18 = vsyncpa [#allocation5], 0
    %19 = vsyncpa [#allocation7], 0
    %20 = vsyncpa [#allocation10], 0
    %21 = vsyncpa [#allocation13], 0
    %22 = vsyncpa [#allocation16], 0
    %23 = vsyncpa [#allocation19], 0
    loop: start=0, step=1, limit=10
    $region2: #{tpu_custom_call.1} parent=1 // loop_pre_header
      _
    $region3: #{tpu_custom_call.1} parent=1 // loop_header
      %s25 = sphi 0, %s29
      %p26 = scmp.ge.s32.totalorder %s25, 10
      %s32 = sphi 0, %s44
      %s33 = sphi 0, %s40
      %s34 = sphi 0, %s32
      %s35 = sphi 0, %s33
      %s36 = sphi 0, %s34
      %s37 = sphi 0, %s35
      %s49 = sphi 0, %s51
      %s52 = sphi 0, %s49
      %s53 = sphi 0, %s52
      %s69 = sphi 0, %s53
      %s73 = sphi 0, %s73
      %s75 = sphi 0, %s73
      %s76 = sphi 0, %s75
      %s90 = sphi 0, %s76
      %s94 = sphi 0, %s94
      %s96 = sphi 0, %s94
      %s97 = sphi 0, %s96
      %s111 = sphi 0, %s97
      %s115 = sphi 0, %s115
      %s117 = sphi 0, %s115
      %s118 = sphi 0, %s117
      %s132 = sphi 0, %s118
      %s136 = sphi 0, %s136
      %s138 = sphi 0, %s136
      %s139 = sphi 0, %s138
      %s153 = sphi 0, %s139
      %s157 = sphi 0, %s157
      %s159 = sphi 0, %s157
      %s160 = sphi 0, %s159
      %s174 = sphi 0, %s160
      %s178 = sphi 0, %s178
      %s180 = sphi 0, %s178
      %s181 = sphi 0, %s180
      %s195 = sphi 0, %s181
      %s199 = sphi 0, %s199
      %s201 = sphi 0, %s199
      %s202 = sphi 0, %s201
      %s216 = sphi 0, %s202
      %s220 = sphi 0, %s220
      %s222 = sphi 0, %s220
      %s223 = sphi 0, %s222
      %s237 = sphi 0, %s223
      %s241 = sphi 0, %s241
      %s243 = sphi 0, %s241
      %s244 = sphi 0, %s243
      %s258 = sphi 0, %s244
      %s262 = sphi 0, %s262
      %s264 = sphi 0, %s262
      %s265 = sphi 0, %s264
      %s279 = sphi 0, %s265
      %s283 = sphi 0, %s283
      %s285 = sphi 0, %s283
      %s286 = sphi 0, %s285
      %s300 = sphi 0, %s286
      %s304 = sphi 0, %s304
      %s306 = sphi 0, %s304
      %s307 = sphi 0, %s306
      %s321 = sphi 0, %s307
      %s329 = sphi 0, %s331
      %s332 = sphi 0, %s329
      %s333 = sphi 0, %s332
      %s349 = sphi 0, %s333
    $region4: #{tpu_custom_call.1} parent=1 // loop_header_branch
      %28 = sbr.rel (%p26) target = $region8
    $region5: #{tpu_custom_call.1} parent=1 // loop_body
      %s30 = ssub.s32 %s25, 1
      %s31 = ssub.s32 %s25, 2
      %s38 = sadd.s32 1, %s33
      %p39 = scmp.ge.s32.totalorder %s38, 4
      %s40 = scalar_select %p39, 0, %s38
      %s41 = sadd.s32 1, %s32
      %s42 = scalar_select %p39, %s41, %s32
      %p43 = scmp.ge.s32.totalorder %s42, 2
      %s44 = scalar_select %p43, 0, %s42
      %s45 = ssub.s32 %s32, %s44
      %s46 = ssub.s32 %s33, %s40
      %s47 = sor.u32 %s45, %s46
      %p48 = scmp.eq.s32.totalorder %s47, 0
      %s50 = sadd.s32 %s49, 1
      %s51 = scalar_select %p48, %s49, %s50
      %p54 = pneg %p48
      %p55 = scmp.eq.s32.totalorder %s25, 7
      %p56 = por %p54, %p55
      %p57 = scmp.ne.s32.totalorder %s49, %s52
      %p58 = scmp.eq.s32.totalorder %s25, 0
      %p59 = por %p57, %p58
      %p60 = scmp.ne.s32.totalorder %s49, %s52
      %p61 = scmp.eq.s32.totalorder %s30, 7
      %p62 = por %p60, %p61
      %p63 = scmp.ne.s32.totalorder %s52, %s53
      %p64 = scmp.eq.s32.totalorder %s30, 0
      %p65 = por %p63, %p64
      %p66 = scmp.ne.s32.totalorder %s52, %s53
      %p67 = scmp.eq.s32.totalorder %s31, 7
      %p68 = por %p66, %p67
      %p70 = scmp.ne.s32.totalorder %s53, %s69
      %p71 = scmp.eq.s32.totalorder %s31, 0
      %p72 = por %p70, %p71
      %s74 = sadd.s32 %s73, 1
      %p77 = scmp.eq.s32.totalorder %s25, 7
      %p78 = scmp.ne.s32.totalorder %s73, %s75
      %p79 = scmp.eq.s32.totalorder %s25, 0
      %p80 = por %p78, %p79
      %p81 = scmp.ne.s32.totalorder %s73, %s75
      %p82 = scmp.eq.s32.totalorder %s30, 7
      %p83 = por %p81, %p82
      %p84 = scmp.ne.s32.totalorder %s75, %s76
      %p85 = scmp.eq.s32.totalorder %s30, 0
      %p86 = por %p84, %p85
      %p87 = scmp.ne.s32.totalorder %s75, %s76
      %p88 = scmp.eq.s32.totalorder %s31, 7
      %p89 = por %p87, %p88
      %p91 = scmp.ne.s32.totalorder %s76, %s90
      %p92 = scmp.eq.s32.totalorder %s31, 0
      %p93 = por %p91, %p92
      %s95 = sadd.s32 %s94, 1
      %p98 = scmp.eq.s32.totalorder %s25, 7
      %p99 = scmp.ne.s32.totalorder %s94, %s96
      %p100 = scmp.eq.s32.totalorder %s25, 0
      %p101 = por %p99, %p100
      %p102 = scmp.ne.s32.totalorder %s94, %s96
      %p103 = scmp.eq.s32.totalorder %s30, 7
      %p104 = por %p102, %p103
      %p105 = scmp.ne.s32.totalorder %s96, %s97
      %p106 = scmp.eq.s32.totalorder %s30, 0
      %p107 = por %p105, %p106
      %p108 = scmp.ne.s32.totalorder %s96, %s97
      %p109 = scmp.eq.s32.totalorder %s31, 7
      %p110 = por %p108, %p109
      %p112 = scmp.ne.s32.totalorder %s97, %s111
      %p113 = scmp.eq.s32.totalorder %s31, 0
      %p114 = por %p112, %p113
      %s116 = sadd.s32 %s115, 1
      %p119 = scmp.eq.s32.totalorder %s25, 7
      %p120 = scmp.ne.s32.totalorder %s115, %s117
      %p121 = scmp.eq.s32.totalorder %s25, 0
      %p122 = por %p120, %p121
      %p123 = scmp.ne.s32.totalorder %s115, %s117
      %p124 = scmp.eq.s32.totalorder %s30, 7
      %p125 = por %p123, %p124
      %p126 = scmp.ne.s32.totalorder %s117, %s118
      %p127 = scmp.eq.s32.totalorder %s30, 0
      %p128 = por %p126, %p127
      %p129 = scmp.ne.s32.totalorder %s117, %s118
      %p130 = scmp.eq.s32.totalorder %s31, 7
      %p131 = por %p129, %p130
      %p133 = scmp.ne.s32.totalorder %s118, %s132
      %p134 = scmp.eq.s32.totalorder %s31, 0
      %p135 = por %p133, %p134
      %s137 = sadd.s32 %s136, 1
      %p140 = scmp.eq.s32.totalorder %s25, 7
      %p141 = scmp.ne.s32.totalorder %s136, %s138
      %p142 = scmp.eq.s32.totalorder %s25, 0
      %p143 = por %p141, %p142
      %p144 = scmp.ne.s32.totalorder %s136, %s138
      %p145 = scmp.eq.s32.totalorder %s30, 7
      %p146 = por %p144, %p145
      %p147 = scmp.ne.s32.totalorder %s138, %s139
      %p148 = scmp.eq.s32.totalorder %s30, 0
      %p149 = por %p147, %p148
      %p150 = scmp.ne.s32.totalorder %s138, %s139
      %p151 = scmp.eq.s32.totalorder %s31, 7
      %p152 = por %p150, %p151
      %p154 = scmp.ne.s32.totalorder %s139, %s153
      %p155 = scmp.eq.s32.totalorder %s31, 0
      %p156 = por %p154, %p155
      %s158 = sadd.s32 %s157, 1
      %p161 = scmp.eq.s32.totalorder %s25, 7
      %p162 = scmp.ne.s32.totalorder %s157, %s159
      %p163 = scmp.eq.s32.totalorder %s25, 0
      %p164 = por %p162, %p163
      %p165 = scmp.ne.s32.totalorder %s157, %s159
      %p166 = scmp.eq.s32.totalorder %s30, 7
      %p167 = por %p165, %p166
      %p168 = scmp.ne.s32.totalorder %s159, %s160
      %p169 = scmp.eq.s32.totalorder %s30, 0
      %p170 = por %p168, %p169
      %p171 = scmp.ne.s32.totalorder %s159, %s160
      %p172 = scmp.eq.s32.totalorder %s31, 7
      %p173 = por %p171, %p172
      %p175 = scmp.ne.s32.totalorder %s160, %s174
      %p176 = scmp.eq.s32.totalorder %s31, 0
      %p177 = por %p175, %p176
      %s179 = sadd.s32 %s178, 1
      %p182 = scmp.eq.s32.totalorder %s25, 7
      %p183 = scmp.ne.s32.totalorder %s178, %s180
      %p184 = scmp.eq.s32.totalorder %s25, 0
      %p185 = por %p183, %p184
      %p186 = scmp.ne.s32.totalorder %s178, %s180
      %p187 = scmp.eq.s32.totalorder %s30, 7
      %p188 = por %p186, %p187
      %p189 = scmp.ne.s32.totalorder %s180, %s181
      %p190 = scmp.eq.s32.totalorder %s30, 0
      %p191 = por %p189, %p190
      %p192 = scmp.ne.s32.totalorder %s180, %s181
      %p193 = scmp.eq.s32.totalorder %s31, 7
      %p194 = por %p192, %p193
      %p196 = scmp.ne.s32.totalorder %s181, %s195
      %p197 = scmp.eq.s32.totalorder %s31, 0
      %p198 = por %p196, %p197
      %s200 = sadd.s32 %s199, 1
      %p203 = scmp.eq.s32.totalorder %s25, 7
      %p204 = scmp.ne.s32.totalorder %s199, %s201
      %p205 = scmp.eq.s32.totalorder %s25, 0
      %p206 = por %p204, %p205
      %p207 = scmp.ne.s32.totalorder %s199, %s201
      %p208 = scmp.eq.s32.totalorder %s30, 7
      %p209 = por %p207, %p208
      %p210 = scmp.ne.s32.totalorder %s201, %s202
      %p211 = scmp.eq.s32.totalorder %s30, 0
      %p212 = por %p210, %p211
      %p213 = scmp.ne.s32.totalorder %s201, %s202
      %p214 = scmp.eq.s32.totalorder %s31, 7
      %p215 = por %p213, %p214
      %p217 = scmp.ne.s32.totalorder %s202, %s216
      %p218 = scmp.eq.s32.totalorder %s31, 0
      %p219 = por %p217, %p218
      %s221 = sadd.s32 %s220, 1
      %p224 = scmp.eq.s32.totalorder %s25, 7
      %p225 = scmp.ne.s32.totalorder %s220, %s222
      %p226 = scmp.eq.s32.totalorder %s25, 0
      %p227 = por %p225, %p226
      %p228 = scmp.ne.s32.totalorder %s220, %s222
      %p229 = scmp.eq.s32.totalorder %s30, 7
      %p230 = por %p228, %p229
      %p231 = scmp.ne.s32.totalorder %s222, %s223
      %p232 = scmp.eq.s32.totalorder %s30, 0
      %p233 = por %p231, %p232
      %p234 = scmp.ne.s32.totalorder %s222, %s223
      %p235 = scmp.eq.s32.totalorder %s31, 7
      %p236 = por %p234, %p235
      %p238 = scmp.ne.s32.totalorder %s223, %s237
      %p239 = scmp.eq.s32.totalorder %s31, 0
      %p240 = por %p238, %p239
      %s242 = sadd.s32 %s241, 1
      %p245 = scmp.eq.s32.totalorder %s25, 7
      %p246 = scmp.ne.s32.totalorder %s241, %s243
      %p247 = scmp.eq.s32.totalorder %s25, 0
      %p248 = por %p246, %p247
      %p249 = scmp.ne.s32.totalorder %s241, %s243
      %p250 = scmp.eq.s32.totalorder %s30, 7
      %p251 = por %p249, %p250
      %p252 = scmp.ne.s32.totalorder %s243, %s244
      %p253 = scmp.eq.s32.totalorder %s30, 0
      %p254 = por %p252, %p253
      %p255 = scmp.ne.s32.totalorder %s243, %s244
      %p256 = scmp.eq.s32.totalorder %s31, 7
      %p257 = por %p255, %p256
      %p259 = scmp.ne.s32.totalorder %s244, %s258
      %p260 = scmp.eq.s32.totalorder %s31, 0
      %p261 = por %p259, %p260
      %s263 = sadd.s32 %s262, 1
      %p266 = scmp.eq.s32.totalorder %s25, 7
      %p267 = scmp.ne.s32.totalorder %s262, %s264
      %p268 = scmp.eq.s32.totalorder %s25, 0
      %p269 = por %p267, %p268
      %p270 = scmp.ne.s32.totalorder %s262, %s264
      %p271 = scmp.eq.s32.totalorder %s30, 7
      %p272 = por %p270, %p271
      %p273 = scmp.ne.s32.totalorder %s264, %s265
      %p274 = scmp.eq.s32.totalorder %s30, 0
      %p275 = por %p273, %p274
      %p276 = scmp.ne.s32.totalorder %s264, %s265
      %p277 = scmp.eq.s32.totalorder %s31, 7
      %p278 = por %p276, %p277
      %p280 = scmp.ne.s32.totalorder %s265, %s279
      %p281 = scmp.eq.s32.totalorder %s31, 0
      %p282 = por %p280, %p281
      %s284 = sadd.s32 %s283, 1
      %p287 = scmp.eq.s32.totalorder %s25, 7
      %p288 = scmp.ne.s32.totalorder %s283, %s285
      %p289 = scmp.eq.s32.totalorder %s25, 0
      %p290 = por %p288, %p289
      %p291 = scmp.ne.s32.totalorder %s283, %s285
      %p292 = scmp.eq.s32.totalorder %s30, 7
      %p293 = por %p291, %p292
      %p294 = scmp.ne.s32.totalorder %s285, %s286
      %p295 = scmp.eq.s32.totalorder %s30, 0
      %p296 = por %p294, %p295
      %p297 = scmp.ne.s32.totalorder %s285, %s286
      %p298 = scmp.eq.s32.totalorder %s31, 7
      %p299 = por %p297, %p298
      %p301 = scmp.ne.s32.totalorder %s286, %s300
      %p302 = scmp.eq.s32.totalorder %s31, 0
      %p303 = por %p301, %p302
      %s305 = sadd.s32 %s304, 1
      %p308 = scmp.eq.s32.totalorder %s25, 7
      %p309 = scmp.ne.s32.totalorder %s304, %s306
      %p310 = scmp.eq.s32.totalorder %s25, 0
      %p311 = por %p309, %p310
      %p312 = scmp.ne.s32.totalorder %s304, %s306
      %p313 = scmp.eq.s32.totalorder %s30, 7
      %p314 = por %p312, %p313
      %p315 = scmp.ne.s32.totalorder %s306, %s307
      %p316 = scmp.eq.s32.totalorder %s30, 0
      %p317 = por %p315, %p316
      %p318 = scmp.ne.s32.totalorder %s306, %s307
      %p319 = scmp.eq.s32.totalorder %s31, 7
      %p320 = por %p318, %p319
      %p322 = scmp.ne.s32.totalorder %s307, %s321
      %p323 = scmp.eq.s32.totalorder %s31, 0
      %p324 = por %p322, %p323
      %s325 = ssub.s32 %s32, %s44
      %s326 = ssub.s32 %s33, %s40
      %s327 = sor.u32 %s325, %s326
      %p328 = scmp.eq.s32.totalorder %s327, 0
      %s330 = sadd.s32 %s329, 1
      %s331 = scalar_select %p328, %s329, %s330
      %p334 = pneg %p328
      %p335 = scmp.eq.s32.totalorder %s25, 7
      %p336 = por %p334, %p335
      %p337 = scmp.ne.s32.totalorder %s329, %s332
      %p338 = scmp.eq.s32.totalorder %s25, 0
      %p339 = por %p337, %p338
      %p340 = scmp.ne.s32.totalorder %s329, %s332
      %p341 = scmp.eq.s32.totalorder %s30, 7
      %p342 = por %p340, %p341
      %p343 = scmp.ne.s32.totalorder %s332, %s333
      %p344 = scmp.eq.s32.totalorder %s30, 0
      %p345 = por %p343, %p344
      %p346 = scmp.ne.s32.totalorder %s332, %s333
      %p347 = scmp.eq.s32.totalorder %s31, 7
      %p348 = por %p346, %p347
      %p350 = scmp.ne.s32.totalorder %s333, %s349
      %p351 = scmp.eq.s32.totalorder %s31, 0
      %p352 = por %p350, %p351
      %p353 = scmp.le.s32.totalorder 1, %s25
      %p354 = scmp.lt.s32.totalorder %s25, 9
      %p355 = pnand %p353, %p354
      %p356 = pneg %p355
      // Predicated region
      $region9: #{tpu_custom_call.1} parent=5 // pred_check
        _
      $region10: #{tpu_custom_call.1} parent=5 // pred_check_branch
        %358 = sbr.rel (%p355) target = $region12
      $region11: #{tpu_custom_call.1} parent=5 // pred_region
        %s359 = ssub.s32 %s25, 1
        // Predicated region
        $region13: #{tpu_custom_call.1} parent=11 // pred_check
          %p360 = pneg %p86
        $region14: #{tpu_custom_call.1} parent=11 // pred_check_branch
          %362 = sbr.rel (%p360) target = $region16
        $region15: #{tpu_custom_call.1} parent=11 // pred_region
          %s364 = ssub.s32 768, 768
          %365 = vsyncadd [#allocation5], %s364
          %s366 = sshll.u32 [#allocation4], 4
          %s367 = int_to_ptr.vmem [resolvable:$true] %s366
          %372 = dma.hbm_to_vmem [thread:$0]  %s1, 768, %s367, [#allocation5], 256, 256, 16
        $region16: #{tpu_custom_call.1} parent=11 // pred_fallthru
          _
        // Predicated region
        $region17: #{tpu_custom_call.1} parent=11 // pred_check
          %p373 = pneg %p107
        $region18: #{tpu_custom_call.1} parent=11 // pred_check_branch
          %375 = sbr.rel (%p373) target = $region20
        $region19: #{tpu_custom_call.1} parent=11 // pred_region
          %s377 = ssub.s32 32, 32
          %378 = vsyncadd [#allocation7], %s377
          %s380 = sshll.u32 [#allocation6], 4
          %s381 = int_to_ptr.vmem [resolvable:$true] %s380
          %383 = dma.hbm_to_vmem [thread:$0]  %s2, 32, %s381, [#allocation7]
        $region20: #{tpu_custom_call.1} parent=11 // pred_fallthru
          _
        // Predicated region
        $region21: #{tpu_custom_call.1} parent=11 // pred_check
          %p384 = pneg %p128
        $region22: #{tpu_custom_call.1} parent=11 // pred_check_branch
          %386 = sbr.rel (%p384) target = $region24
        $region23: #{tpu_custom_call.1} parent=11 // pred_region
          %s388 = ssub.s32 24576, 24576
          %389 = vsyncadd [#allocation7], %s388
          %s390 = sshll.u32 [#allocation8], 4
          %s391 = int_to_ptr.vmem [resolvable:$true] %s390
          %396 = dma.hbm_to_vmem [thread:$0]  %s3, 24576, %s391, [#allocation7], 256, 256, 16
        $region24: #{tpu_custom_call.1} parent=11 // pred_fallthru
          _
        // Predicated region
        $region25: #{tpu_custom_call.1} parent=11 // pred_check
          %p397 = pneg %p149
        $region26: #{tpu_custom_call.1} parent=11 // pred_check_branch
          %399 = sbr.rel (%p397) target = $region28
        $region27: #{tpu_custom_call.1} parent=11 // pred_region
          %s401 = ssub.s32 32, 32
          %402 = vsyncadd [#allocation10], %s401
          %s404 = sshll.u32 [#allocation9], 4
          %s405 = int_to_ptr.vmem [resolvable:$true] %s404
          %407 = dma.hbm_to_vmem [thread:$0]  %s4, 32, %s405, [#allocation10]
        $region28: #{tpu_custom_call.1} parent=11 // pred_fallthru
          _
        // Predicated region
        $region29: #{tpu_custom_call.1} parent=11 // pred_check
          %p408 = pneg %p170
        $region30: #{tpu_custom_call.1} parent=11 // pred_check_branch
          %410 = sbr.rel (%p408) target = $region32
        $region31: #{tpu_custom_call.1} parent=11 // pred_region
          %s412 = ssub.s32 40960, 40960
          %413 = vsyncadd [#allocation10], %s412
          %s414 = sshll.u32 [#allocation11], 4
          %s415 = int_to_ptr.vmem [resolvable:$true] %s414
          %420 = dma.hbm_to_vmem [thread:$0]  %s5, 40960, %s415, [#allocation10], 256, 256, 16
        $region32: #{tpu_custom_call.1} parent=11 // pred_fallthru
          _
        // Predicated region
        $region33: #{tpu_custom_call.1} parent=11 // pred_check
          %p421 = pneg %p191
        $region34: #{tpu_custom_call.1} parent=11 // pred_check_branch
          %423 = sbr.rel (%p421) target = $region36
        $region35: #{tpu_custom_call.1} parent=11 // pred_region
          %s425 = ssub.s32 32, 32
          %426 = vsyncadd [#allocation13], %s425
          %s428 = sshll.u32 [#allocation12], 4
          %s429 = int_to_ptr.vmem [resolvable:$true] %s428
          %431 = dma.hbm_to_vmem [thread:$0]  %s6, 32, %s429, [#allocation13]
        $region36: #{tpu_custom_call.1} parent=11 // pred_fallthru
          _
        // Predicated region
        $region37: #{tpu_custom_call.1} parent=11 // pred_check
          %p432 = pneg %p212
        $region38: #{tpu_custom_call.1} parent=11 // pred_check_branch
          %434 = sbr.rel (%p432) target = $region40
        $region39: #{tpu_custom_call.1} parent=11 // pred_region
          %s436 = ssub.s32 40960, 40960
          %437 = vsyncadd [#allocation13], %s436
          %s438 = sshll.u32 [#allocation14], 4
          %s439 = int_to_ptr.vmem [resolvable:$true] %s438
          %444 = dma.hbm_to_vmem [thread:$0]  %s7, 40960, %s439, [#allocation13], 256, 256, 16
        $region40: #{tpu_custom_call.1} parent=11 // pred_fallthru
          _
        // Predicated region
        $region41: #{tpu_custom_call.1} parent=11 // pred_check
          %p445 = pneg %p233
        $region42: #{tpu_custom_call.1} parent=11 // pred_check_branch
          %447 = sbr.rel (%p445) target = $region44
        $region43: #{tpu_custom_call.1} parent=11 // pred_region
          %s449 = ssub.s32 32, 32
          %450 = vsyncadd [#allocation16], %s449
          %s452 = sshll.u32 [#allocation15], 4
          %s453 = int_to_ptr.vmem [resolvable:$true] %s452
          %455 = dma.hbm_to_vmem [thread:$0]  %s8, 32, %s453, [#allocation16]
        $region44: #{tpu_custom_call.1} parent=11 // pred_fallthru
          _
        // Predicated region
        $region45: #{tpu_custom_call.1} parent=11 // pred_check
          %p456 = pneg %p254
        $region46: #{tpu_custom_call.1} parent=11 // pred_check_branch
          %458 = sbr.rel (%p456) target = $region48
        $region47: #{tpu_custom_call.1} parent=11 // pred_region
          %s460 = ssub.s32 24576, 24576
          %461 = vsyncadd [#allocation16], %s460
          %s462 = sshll.u32 [#allocation17], 4
          %s463 = int_to_ptr.vmem [resolvable:$true] %s462
          %468 = dma.hbm_to_vmem [thread:$0]  %s9, 24576, %s463, [#allocation16], 256, 256, 16
        $region48: #{tpu_custom_call.1} parent=11 // pred_fallthru
          _
        // Predicated region
        $region49: #{tpu_custom_call.1} parent=11 // pred_check
          %p469 = pneg %p275
        $region50: #{tpu_custom_call.1} parent=11 // pred_check_branch
          %471 = sbr.rel (%p469) target = $region52
        $region51: #{tpu_custom_call.1} parent=11 // pred_region
          %s473 = ssub.s32 32, 32
          %474 = vsyncadd [#allocation19], %s473
          %s476 = sshll.u32 [#allocation18], 4
          %s477 = int_to_ptr.vmem [resolvable:$true] %s476
          %479 = dma.hbm_to_vmem [thread:$0]  %s10, 32, %s477, [#allocation19]
        $region52: #{tpu_custom_call.1} parent=11 // pred_fallthru
          _
        // Predicated region
        $region53: #{tpu_custom_call.1} parent=11 // pred_check
          %p480 = pneg %p296
        $region54: #{tpu_custom_call.1} parent=11 // pred_check_branch
          %482 = sbr.rel (%p480) target = $region56
        $region55: #{tpu_custom_call.1} parent=11 // pred_region
          _
        $region56: #{tpu_custom_call.1} parent=11 // pred_fallthru
          _
        // Predicated region
        $region57: #{tpu_custom_call.1} parent=11 // pred_check
          %p483 = pneg %p317
        $region58: #{tpu_custom_call.1} parent=11 // pred_check_branch
          %485 = sbr.rel (%p483) target = $region60
        $region59: #{tpu_custom_call.1} parent=11 // pred_region
          %s487 = ssub.s32 16, 16
          %488 = vsyncadd [#allocation19], %s487
          %s490 = sshll.u32 [#allocation20], 4
          %s491 = int_to_ptr.vmem [resolvable:$true] %s490
          %493 = dma.hbm_to_vmem [thread:$0]  %s12, 16, %s491, [#allocation19]
        $region60: #{tpu_custom_call.1} parent=11 // pred_fallthru
          _
      $region12: #{tpu_custom_call.1} parent=5 // pred_fallthru
        _
      %p494 = scmp.lt.s32.totalorder %s25, 8
      // Predicated region
      $region61: #{tpu_custom_call.1} parent=5 // pred_check
        %p495 = pneg %p494
      $region62: #{tpu_custom_call.1} parent=5 // pred_check_branch
        %497 = sbr.rel (%p495) target = $region64
      $region63: #{tpu_custom_call.1} parent=5 // pred_region
        // Predicated region
        $region65: #{tpu_custom_call.1} parent=63 // pred_check
          %p498 = pneg %p59
        $region66: #{tpu_custom_call.1} parent=63 // pred_check_branch
          %500 = sbr.rel (%p498) target = $region68
        $region67: #{tpu_custom_call.1} parent=63 // pred_region
          %p501 = scmp.lt.s32.totalorder %s32, 1
          %s502 = scalar_select %p501, %s32, 1
          %p503 = scmp.lt.s32.totalorder %s33, 3
          %s504 = scalar_select %p503, %s33, 3
          %s505 = smul.addr %s504, 12
          %s506 = smul.addr %s502, 48
          %s507 = sadd.s32 %s505, %s506
          %s508 = smul.addr %s507, 8
          %s509 = scalar_lea.vmem %s0, %s508
        $region68: #{tpu_custom_call.1} parent=63 // pred_fallthru
          _
      $region64: #{tpu_custom_call.1} parent=5 // pred_fallthru
        _
      %p510 = scmp.le.s32.totalorder 1, %s25
      %p511 = scmp.lt.s32.totalorder %s25, 9
      %p512 = pnand %p510, %p511
      %p513 = pneg %p512
      // Predicated region
      $region69: #{tpu_custom_call.1} parent=5 // pred_check
        _
      $region70: #{tpu_custom_call.1} parent=5 // pred_check_branch
        %515 = sbr.rel (%p512) target = $region72
      $region71: #{tpu_custom_call.1} parent=5 // pred_region
        %s516 = ssub.s32 %s25, 1
        // Predicated region
        $region73: #{tpu_custom_call.1} parent=71 // pred_check
          %p517 = pneg %p86
        $region74: #{tpu_custom_call.1} parent=71 // pred_check_branch
          %519 = sbr.rel (%p517) target = $region76
        $region75: #{tpu_custom_call.1} parent=71 // pred_region
          %520 = dma.done [#allocation5], 768
        $region76: #{tpu_custom_call.1} parent=71 // pred_fallthru
          _
        // Predicated region
        $region77: #{tpu_custom_call.1} parent=71 // pred_check
          %p521 = pneg %p107
        $region78: #{tpu_custom_call.1} parent=71 // pred_check_branch
          %523 = sbr.rel (%p521) target = $region80
        $region79: #{tpu_custom_call.1} parent=71 // pred_region
          %524 = dma.done [#allocation7], 32
        $region80: #{tpu_custom_call.1} parent=71 // pred_fallthru
          _
        // Predicated region
        $region81: #{tpu_custom_call.1} parent=71 // pred_check
          %p525 = pneg %p128
        $region82: #{tpu_custom_call.1} parent=71 // pred_check_branch
          %527 = sbr.rel (%p525) target = $region84
        $region83: #{tpu_custom_call.1} parent=71 // pred_region
          %528 = dma.done [#allocation7], 24576
        $region84: #{tpu_custom_call.1} parent=71 // pred_fallthru
          _
        // Predicated region
        $region85: #{tpu_custom_call.1} parent=71 // pred_check
          %p529 = pneg %p149
        $region86: #{tpu_custom_call.1} parent=71 // pred_check_branch
          %531 = sbr.rel (%p529) target = $region88
        $region87: #{tpu_custom_call.1} parent=71 // pred_region
          %532 = dma.done [#allocation10], 32
        $region88: #{tpu_custom_call.1} parent=71 // pred_fallthru
          _
        // Predicated region
        $region89: #{tpu_custom_call.1} parent=71 // pred_check
          %p533 = pneg %p170
        $region90: #{tpu_custom_call.1} parent=71 // pred_check_branch
          %535 = sbr.rel (%p533) target = $region92
        $region91: #{tpu_custom_call.1} parent=71 // pred_region
          %536 = dma.done [#allocation10], 40960
        $region92: #{tpu_custom_call.1} parent=71 // pred_fallthru
          _
        // Predicated region
        $region93: #{tpu_custom_call.1} parent=71 // pred_check
          %p537 = pneg %p191
        $region94: #{tpu_custom_call.1} parent=71 // pred_check_branch
          %539 = sbr.rel (%p537) target = $region96
        $region95: #{tpu_custom_call.1} parent=71 // pred_region
          %540 = dma.done [#allocation13], 32
        $region96: #{tpu_custom_call.1} parent=71 // pred_fallthru
          _
        // Predicated region
        $region97: #{tpu_custom_call.1} parent=71 // pred_check
          %p541 = pneg %p212
        $region98: #{tpu_custom_call.1} parent=71 // pred_check_branch
          %543 = sbr.rel (%p541) target = $region100
        $region99: #{tpu_custom_call.1} parent=71 // pred_region
          %544 = dma.done [#allocation13], 40960
        $region100: #{tpu_custom_call.1} parent=71 // pred_fallthru
          _
        // Predicated region
        $region101: #{tpu_custom_call.1} parent=71 // pred_check
          %p545 = pneg %p233
        $region102: #{tpu_custom_call.1} parent=71 // pred_check_branch
          %547 = sbr.rel (%p545) target = $region104
        $region103: #{tpu_custom_call.1} parent=71 // pred_region
          %548 = dma.done [#allocation16], 32
        $region104: #{tpu_custom_call.1} parent=71 // pred_fallthru
          _
        // Predicated region
        $region105: #{tpu_custom_call.1} parent=71 // pred_check
          %p549 = pneg %p254
        $region106: #{tpu_custom_call.1} parent=71 // pred_check_branch
          %551 = sbr.rel (%p549) target = $region108
        $region107: #{tpu_custom_call.1} parent=71 // pred_region
          %552 = dma.done [#allocation16], 24576
        $region108: #{tpu_custom_call.1} parent=71 // pred_fallthru
          _
        // Predicated region
        $region109: #{tpu_custom_call.1} parent=71 // pred_check
          %p553 = pneg %p275
        $region110: #{tpu_custom_call.1} parent=71 // pred_check_branch
          %555 = sbr.rel (%p553) target = $region112
        $region111: #{tpu_custom_call.1} parent=71 // pred_region
          %556 = dma.done [#allocation19], 32
        $region112: #{tpu_custom_call.1} parent=71 // pred_fallthru
          _
        // Predicated region
        $region113: #{tpu_custom_call.1} parent=71 // pred_check
          %p557 = pneg %p317
        $region114: #{tpu_custom_call.1} parent=71 // pred_check_branch
          %559 = sbr.rel (%p557) target = $region116
        $region115: #{tpu_custom_call.1} parent=71 // pred_region
          %560 = dma.done [#allocation19], 16
        $region116: #{tpu_custom_call.1} parent=71 // pred_fallthru
          _
        %p561 = scmp.lt.s32.totalorder %s34, 1
        %s562 = scalar_select %p561, %s34, 1
        %p563 = scmp.lt.s32.totalorder %s35, 3
        %s564 = scalar_select %p563, %s35, 3
        %s565 = smul.addr %s564, 12
        %s566 = smul.addr %s562, 48
        %s567 = sadd.s32 %s565, %s566
        %s568 = smul.addr %s567, 8
        %s569 = scalar_lea.vmem %s0, %s568
        %p570 = pneg %p65
        %p571 = pneg %p62
        %p572 = pneg %p86
        %p573 = pneg %p83
        %p574 = pneg %p107
        %p575 = pneg %p104
        %p576 = pneg %p128
        %p577 = pneg %p125
        %p578 = pneg %p149
        %p579 = pneg %p146
        %p580 = pneg %p170
        %p581 = pneg %p167
        %p582 = pneg %p191
        %p583 = pneg %p188
        %p584 = pneg %p212
        %p585 = pneg %p209
        %p586 = pneg %p233
        %p587 = pneg %p230
        %p588 = pneg %p254
        %p589 = pneg %p251
        %p590 = pneg %p275
        %p591 = pneg %p272
        %p592 = pneg %p296
        %p593 = pneg %p293
        %p594 = pneg %p317
        %p595 = pneg %p314
        %p596 = pneg %p345
        %p597 = pneg %p342
        %s598 = smul.u32 8, %s35
        %p599 = scmp.lt.s32.totalorder %s34, 1
        %s600 = scalar_select %p599, %s34, 1
        %p601 = scmp.lt.s32.totalorder %s598, 31
        %s602 = scalar_select %p601, %s598, 31
        %s603 = smul.addr %s600, 32
        %s604 = sadd.s32 %s602, %s603
        %s605 = smul.addr %s604, 8
        %s606 = scalar_lea.vmem %s13, %s605
        %p607 = scmp.lt.s32.totalorder %s34, 1
        %s608 = scalar_select %p607, %s34, 1
        %p609 = scmp.lt.s32.totalorder %s35, 3
        %s610 = scalar_select %p609, %s35, 3
        %s611 = smul.addr %s610, 12
        %s612 = smul.addr %s608, 48
        %s613 = sadd.s32 %s611, %s612
        %s614 = smul.addr %s613, 8
        %s615 = scalar_lea.vmem %s0, %s614
        %s616 = smul.u32 8, %s35
        %p617 = scmp.lt.s32.totalorder %s34, 1
        %s618 = scalar_select %p617, %s34, 1
        %p619 = scmp.lt.s32.totalorder %s616, 31
        %s620 = scalar_select %p619, %s616, 31
        %s621 = smul.addr %s618, 32
        %s622 = sadd.s32 %s620, %s621
        %s623 = smul.addr %s622, 8
        %s624 = scalar_lea.vmem %s13, %s623
        %s625 = smul.u32 8, %s35
        %626 = vst [vmem:[#allocation2] sm:$0xff] 0.0
        %627 = vst [vmem:[#allocation2 + $0x8] sm:$0xff] 0.0
        %628 = vst [vmem:[#allocation2 + $0xb0] sm:$0xff] 0.0
        %629 = vst [vmem:[#allocation2 + $0xb8] sm:$0xff] 0.0
        %630 = vst [vmem:[#allocation3] sm:$0xff] 0.0
        %631 = vst [vmem:[#allocation3 + $0x8] sm:$0xff] 0.0
        %632 = vst [vmem:[#allocation3 + $0xb0] sm:$0xff] 0.0
        %633 = vst [vmem:[#allocation3 + $0xb8] sm:$0xff] 0.0
        %s634 = smul.u32 %s35, 64
        %s635 = ssub.s32 %s634, 8
        %v636 = vlaneseq
        %v637 = vshrl.u32 %v636, 7
        %v638 = vadd.s32 %v637, 8
        %v639 = vadd.s32 %v637, 16
        %v640 = vadd.s32 %v637, 24
        %v641 = vadd.s32 %v637, 32
        %v642 = vadd.s32 %v637, 40
        %v643 = vadd.s32 %v637, 48
        %v644 = vadd.s32 %v637, 56
        %v645 = vadd.s32 %v637, 64
        %v646 = vadd.s32 %v637, 72
        %v647 = vstv %s635
        %v648 = vadd.s32 %v637, %v647
        %v649 = vadd.s32 %v638, %v647
        %v650 = vadd.s32 %v639, %v647
        %v651 = vadd.s32 %v640, %v647
        %v652 = vadd.s32 %v641, %v647
        %v653 = vadd.s32 %v642, %v647
        %v654 = vadd.s32 %v643, %v647
        %v655 = vadd.s32 %v644, %v647
        %v656 = vadd.s32 %v645, %v647
        %v657 = vadd.s32 %v646, %v647
        %vm658 = vcmp.ge.s32.totalorder %v648, 0
        %vm659 = vcmp.ge.s32.totalorder %v649, 0
        %vm660 = vcmp.ge.s32.totalorder %v650, 0
        %vm661 = vcmp.ge.s32.totalorder %v651, 0
        %vm662 = vcmp.ge.s32.totalorder %v652, 0
        %vm663 = vcmp.ge.s32.totalorder %v653, 0
        %vm664 = vcmp.ge.s32.totalorder %v654, 0
        %vm665 = vcmp.ge.s32.totalorder %v655, 0
        %vm666 = vcmp.ge.s32.totalorder %v656, 0
        %vm667 = vcmp.ge.s32.totalorder %v657, 0
        %vm668 = vcmp.lt.s32.totalorder %v648, 256
        %vm669 = vcmp.lt.s32.totalorder %v649, 256
        %vm670 = vcmp.lt.s32.totalorder %v650, 256
        %vm671 = vcmp.lt.s32.totalorder %v651, 256
        %vm672 = vcmp.lt.s32.totalorder %v652, 256
        %vm673 = vcmp.lt.s32.totalorder %v653, 256
        %vm674 = vcmp.lt.s32.totalorder %v654, 256
        %vm675 = vcmp.lt.s32.totalorder %v655, 256
        %vm676 = vcmp.lt.s32.totalorder %v656, 256
        %vm677 = vcmp.lt.s32.totalorder %v657, 256
        %vm678 = vmand %vm658, %vm668
        %vm679 = vmand %vm659, %vm669
        %vm680 = vmand %vm660, %vm670
        %vm681 = vmand %vm661, %vm671
        %vm682 = vmand %vm662, %vm672
        %vm683 = vmand %vm663, %vm673
        %vm684 = vmand %vm664, %vm674
        %vm685 = vmand %vm665, %vm675
        %vm686 = vmand %vm666, %vm676
        %vm687 = vmand %vm667, %vm677
        %v688 = vld [vmem:[%s615 + $0x7] sm:$0xff]
        %v689 = vld [vmem:[%s615 + $0xf] sm:$0xff]
        %v690 = vld [vmem:[%s615 + $0x17] sm:$0xff]
        %v691 = vld [vmem:[%s615 + $0x1f] sm:$0xff]
        %v692 = vld [vmem:[%s615 + $0x27] sm:$0xff]
        %v693 = vld [vmem:[%s615 + $0x2f] sm:$0xff]
        %v694 = vld [vmem:[%s615 + $0x37] sm:$0xff]
        %v695 = vld [vmem:[%s615 + $0x3f] sm:$0xff]
        %v696 = vld [vmem:[%s615 + $0x47] sm:$0xff]
        %v697 = vld [vmem:[%s615 + $0x4f] sm:$0xff]
        %v698 = vld [vmem:[%s615 + $0x8] sm:$0xff]
        %v699 = vld [vmem:[%s615 + $0x10] sm:$0xff]
        %v700 = vld [vmem:[%s615 + $0x18] sm:$0xff]
        %v701 = vld [vmem:[%s615 + $0x20] sm:$0xff]
        %v702 = vld [vmem:[%s615 + $0x28] sm:$0xff]
        %v703 = vld [vmem:[%s615 + $0x30] sm:$0xff]
        %v704 = vld [vmem:[%s615 + $0x38] sm:$0xff]
        %v705 = vld [vmem:[%s615 + $0x40] sm:$0xff]
        %v706 = vld [vmem:[%s615 + $0x48] sm:$0xff]
        %v707 = vld [vmem:[%s615 + $0x50] sm:$0xff]
        %v708 = vld [vmem:[%s615 + $0x9] sm:$0xff]
        %v709 = vld [vmem:[%s615 + $0x11] sm:$0xff]
        %v710 = vld [vmem:[%s615 + $0x19] sm:$0xff]
        %v711 = vld [vmem:[%s615 + $0x21] sm:$0xff]
        %v712 = vld [vmem:[%s615 + $0x29] sm:$0xff]
        %v713 = vld [vmem:[%s615 + $0x31] sm:$0xff]
        %v714 = vld [vmem:[%s615 + $0x39] sm:$0xff]
        %v715 = vld [vmem:[%s615 + $0x41] sm:$0xff]
        %v716 = vld [vmem:[%s615 + $0x49] sm:$0xff]
        %v717 = vld [vmem:[%s615 + $0x51] sm:$0xff]
        %728 = vrot.lane.b32.xlu0 %v698, 8
        %v729 = vpop.permute.xlu0 %728
        %730 = vrot.lane.b32.xlu0 %v699, 8
        %v731 = vpop.permute.xlu0 %730
        %732 = vrot.lane.b32.xlu0 %v700, 8
        %v733 = vpop.permute.xlu0 %732
        %734 = vrot.lane.b32.xlu0 %v701, 8
        %v735 = vpop.permute.xlu0 %734
        %736 = vrot.lane.b32.xlu0 %v702, 8
        %v737 = vpop.permute.xlu0 %736
        %738 = vrot.lane.b32.xlu0 %v703, 8
        %v739 = vpop.permute.xlu0 %738
        %740 = vrot.lane.b32.xlu0 %v704, 8
        %v741 = vpop.permute.xlu0 %740
        %742 = vrot.lane.b32.xlu0 %v705, 8
        %v743 = vpop.permute.xlu0 %742
        %744 = vrot.lane.b32.xlu0 %v706, 8
        %v745 = vpop.permute.xlu0 %744
        %746 = vrot.lane.b32.xlu0 %v707, 8
        %v747 = vpop.permute.xlu0 %746
        %768 = vrot.lane.b32.xlu0 %v708, 16
        %v769 = vpop.permute.xlu0 %768
        %770 = vrot.lane.b32.xlu0 %v709, 16
        %v771 = vpop.permute.xlu0 %770
        %772 = vrot.lane.b32.xlu0 %v710, 16
        %v773 = vpop.permute.xlu0 %772
        %774 = vrot.lane.b32.xlu0 %v711, 16
        %v775 = vpop.permute.xlu0 %774
        %776 = vrot.lane.b32.xlu0 %v712, 16
        %v777 = vpop.permute.xlu0 %776
        %778 = vrot.lane.b32.xlu0 %v713, 16
        %v779 = vpop.permute.xlu0 %778
        %780 = vrot.lane.b32.xlu0 %v714, 16
        %v781 = vpop.permute.xlu0 %780
        %782 = vrot.lane.b32.xlu0 %v715, 16
        %v783 = vpop.permute.xlu0 %782
        %784 = vrot.lane.b32.xlu0 %v716, 16
        %v785 = vpop.permute.xlu0 %784
        %786 = vrot.lane.b32.xlu0 %v717, 16
        %v787 = vpop.permute.xlu0 %786
        %vm798 = vcmask 64512
        %v799 = vsel %vm798, %v688, %v729
        %v800 = vsel %vm798, %v689, %v731
        %v801 = vsel %vm798, %v690, %v733
        %v802 = vsel %vm798, %v691, %v735
        %v803 = vsel %vm798, %v692, %v737
        %v804 = vsel %vm798, %v693, %v739
        %v805 = vsel %vm798, %v694, %v741
        %v806 = vsel %vm798, %v695, %v743
        %v807 = vsel %vm798, %v696, %v745
        %v808 = vsel %vm798, %v697, %v747
        %vm809 = vcmask 130048
        %v810 = vsel %vm809, %v799, %v769
        %v811 = vsel %vm809, %v800, %v771
        %v812 = vsel %vm809, %v801, %v773
        %v813 = vsel %vm809, %v802, %v775
        %v814 = vsel %vm809, %v803, %v777
        %v815 = vsel %vm809, %v804, %v779
        %v816 = vsel %vm809, %v805, %v781
        %v817 = vsel %vm809, %v806, %v783
        %v818 = vsel %vm809, %v807, %v785
        %v819 = vsel %vm809, %v808, %v787
        %v820 = vld [vmem:[#allocation4] sm:$0xff]
        %v821 = vld [vmem:[#allocation4 + $0x8] sm:$0xff]
        %v822 = vld [vmem:[#allocation4 + $0x10] sm:$0xff]
        %v823 = vld [vmem:[#allocation4 + $0x18] sm:$0xff]
        %v824 = vld [vmem:[#allocation4 + $0x20] sm:$0xff]
        %v825 = vld [vmem:[#allocation4 + $0x28] sm:$0xff]
        %v826 = vld [vmem:[#allocation6] sm:$0x3]
        %v828 = vlaneseq
        %v829 = vshrl.u32 %v828, 7
        %v830 = vsub.s32 0, %v829
        %v831 = vrot.slane %v826, %v830
        %v832 = vlaneseq
        %v833 = vshrl.u32 %v832, 7
        %v834 = vsub.s32 1, %v833
        %v835 = vrot.slane %v826, %v834
        %vm838 = vcmask 195584
        %v840 = vsel %vm838, %v810, 0
        %v843 = vsel %vm838, %v811, 0
        %v846 = vsel %vm838, %v812, 0
        %v849 = vsel %vm838, %v813, 0
        %v852 = vsel %vm838, %v814, 0
        %v855 = vsel %vm838, %v815, 0
        %v858 = vsel %vm838, %v816, 0
        %v861 = vsel %vm838, %v817, 0
        %v864 = vsel %vm838, %v818, 0
        %v867 = vsel %vm838, %v819, 0
        %869 = vmatprep.subr.mxu0 %v821
        %870 = vmatpush1.msra.mxu0 %v820
        %871 = vmatprep.subr.mxu0 %v823
        %872 = vmatpush1.msra.mxu0 %v822
        %873 = vmatprep.subr.mxu0 %v825
        %874 = vmatpush1.msra.mxu0 %v824
        %875 = vmatprep.subr.mxu0 0.0
        %876 = vmatpush1.msra.mxu0 0.0
        %877 = vmatprep.subr.mxu0 0.0
        %878 = vmatpush1.msra.mxu0 0.0
        %879 = vmatprep.subr.mxu0 0.0
        %880 = vmatpush1.msra.mxu0 0.0
        %881 = vmatprep.subr.mxu0 0.0
        %882 = vmatpush1.msra.mxu0 0.0
        %883 = vmatprep.subr.mxu0 0.0
        %884 = vmatpush1.msra.mxu0 0.0
        %885 = vmatprep.subr.mxu0 0.0
        %886 = vmatpush1.msra.mxu0 0.0
        %887 = vmatprep.subr.mxu0 0.0
        %888 = vmatpush1.msra.mxu0 0.0
        %889 = vmatprep.subr.mxu0 0.0
        %890 = vmatpush1.msra.mxu0 0.0
        %891 = vmatprep.subr.mxu0 0.0
        %892 = vmatpush1.msra.mxu0 0.0
        %893 = vmatprep.subr.mxu0 0.0
        %894 = vmatpush1.msra.mxu0 0.0
        %895 = vmatprep.subr.mxu0 0.0
        %896 = vmatpush1.msra.mxu0 0.0
        %897 = vmatprep.subr.mxu0 0.0
        %898 = vmatpush1.msra.mxu0 0.0
        %899 = vmatprep.subr.mxu0 0.0
        %900 = vmatpush1.msra.mxu0 0.0
        %901 = vmatprep.subr.mxu0 0.0
        %902 = vmatpush1.msra.mxu0 0.0
        %903 = vmatprep.subr.mxu0 0.0
        %904 = vmatpush1.msra.mxu0 0.0
        %905 = vmatprep.subr.mxu0 0.0
        %906 = vmatpush1.msra.mxu0 0.0
        %907 = vmatprep.subr.mxu0 0.0
        %908 = vmatpush1.msra.mxu0 0.0
        %909 = vmatprep.subr.mxu0 0.0
        %910 = vmatpush1.msra.mxu0 0.0
        %911 = vmatprep.subr.mxu0 0.0
        %912 = vmatpush1.msra.mxu0 0.0
        %913 = vmatprep.subr.mxu0 0.0
        %914 = vmatpush1.msra.mxu0 0.0
        %915 = vmatprep.subr.mxu0 0.0
        %916 = vmatpush1.msra.mxu0 0.0
        %917 = vmatprep.subr.mxu0 0.0
        %918 = vmatpush1.msra.mxu0 0.0
        %919 = vmatprep.subr.mxu0 0.0
        %920 = vmatpush1.msra.mxu0 0.0
        %921 = vmatprep.subr.mxu0 0.0
        %922 = vmatpush1.msra.mxu0 0.0
        %923 = vmatprep.subr.mxu0 0.0
        %924 = vmatpush1.msra.mxu0 0.0
        %925 = vmatprep.subr.mxu0 0.0
        %926 = vmatpush1.msra.mxu0 0.0
        %927 = vmatprep.subr.mxu0 0.0
        %928 = vmatpush1.msra.mxu0 0.0
        %929 = vmatprep.subr.mxu0 0.0
        %930 = vmatpush1.msra.mxu0 0.0
        %931 = vmatprep.subr.mxu0 0.0
        %932 = vmatpush1.msra.mxu0 0.0
        %933 = vmatprep.mubr.f32.mxu0 0.0
        %934 = vmatmul.mubr.f32.gmra.mrb[0].mxu0 %v840
        %v935 = vpop.f32.mrb[0].mxu0
        %v936 = vadd.f32 %v831, %v935
        %v937 = vpop.f32.mrb[0].mxu0
        %v938 = vadd.f32 %v835, %v937
        %939 = vmatprep.mubr.f32.mxu0 0.0
        %940 = vmatmul.mubr.f32.gmra.mrb[0].mxu0 %v843
        %v941 = vpop.f32.mrb[0].mxu0
        %v942 = vadd.f32 %v831, %v941
        %v943 = vpop.f32.mrb[0].mxu0
        %v944 = vadd.f32 %v835, %v943
        %945 = vmatprep.mubr.f32.mxu0 0.0
        %946 = vmatmul.mubr.f32.gmra.mrb[0].mxu0 %v846
        %v947 = vpop.f32.mrb[0].mxu0
        %v948 = vadd.f32 %v831, %v947
        %v949 = vpop.f32.mrb[0].mxu0
        %v950 = vadd.f32 %v835, %v949
        %951 = vmatprep.mubr.f32.mxu0 0.0
        %952 = vmatmul.mubr.f32.gmra.mrb[0].mxu0 %v849
        %v953 = vpop.f32.mrb[0].mxu0
        %v954 = vadd.f32 %v831, %v953
        %v955 = vpop.f32.mrb[0].mxu0
        %v956 = vadd.f32 %v835, %v955
        %957 = vmatprep.mubr.f32.mxu0 0.0
        %958 = vmatmul.mubr.f32.gmra.mrb[0].mxu0 %v852
        %v959 = vpop.f32.mrb[0].mxu0
        %v960 = vadd.f32 %v831, %v959
        %v961 = vpop.f32.mrb[0].mxu0
        %v962 = vadd.f32 %v835, %v961
        %963 = vmatprep.mubr.f32.mxu0 0.0
        %964 = vmatmul.mubr.f32.gmra.mrb[0].mxu0 %v855
        %v965 = vpop.f32.mrb[0].mxu0
        %v966 = vadd.f32 %v831, %v965
        %v967 = vpop.f32.mrb[0].mxu0
        %v968 = vadd.f32 %v835, %v967
        %969 = vmatprep.mubr.f32.mxu0 0.0
        %970 = vmatmul.mubr.f32.gmra.mrb[0].mxu0 %v858
        %v971 = vpop.f32.mrb[0].mxu0
        %v972 = vadd.f32 %v831, %v971
        %v973 = vpop.f32.mrb[0].mxu0
        %v974 = vadd.f32 %v835, %v973
        %975 = vmatprep.mubr.f32.mxu0 0.0
        %976 = vmatmul.mubr.f32.gmra.mrb[0].mxu0 %v861
        %v977 = vpop.f32.mrb[0].mxu0
        %v978 = vadd.f32 %v831, %v977
        %v979 = vpop.f32.mrb[0].mxu0
        %v980 = vadd.f32 %v835, %v979
        %981 = vmatprep.mubr.f32.mxu0 0.0
        %982 = vmatmul.mubr.f32.gmra.mrb[0].mxu0 %v864
        %v983 = vpop.f32.mrb[0].mxu0
        %v984 = vadd.f32 %v831, %v983
        %v985 = vpop.f32.mrb[0].mxu0
        %v986 = vadd.f32 %v835, %v985
        %987 = vmatprep.mubr.f32.mxu0 0.0
        %988 = vmatmul.mubr.f32.gmra.mrb[0].mxu0 %v867
        %v989 = vpop.f32.mrb[0].mxu0
        %v990 = vadd.f32 %v831, %v989
        %v991 = vpop.f32.mrb[0].mxu0
        %v992 = vadd.f32 %v835, %v991
        %993 = vdwg.mxu0
        %v994 = vmax.f32 %v936, 0.0
        %v995 = vmax.f32 %v938, 0.0
        %v996 = vmax.f32 %v942, 0.0
        %v997 = vmax.f32 %v944, 0.0
        %v998 = vmax.f32 %v948, 0.0
        %v999 = vmax.f32 %v950, 0.0
        %v1000 = vmax.f32 %v954, 0.0
        %v1001 = vmax.f32 %v956, 0.0
        %v1002 = vmax.f32 %v960, 0.0
        %v1003 = vmax.f32 %v962, 0.0
        %v1004 = vmax.f32 %v966, 0.0
        %v1005 = vmax.f32 %v968, 0.0
        %v1006 = vmax.f32 %v972, 0.0
        %v1007 = vmax.f32 %v974, 0.0
        %v1008 = vmax.f32 %v978, 0.0
        %v1009 = vmax.f32 %v980, 0.0
        %v1010 = vmax.f32 %v984, 0.0
        %v1011 = vmax.f32 %v986, 0.0
        %v1012 = vmax.f32 %v990, 0.0
        %v1013 = vmax.f32 %v992, 0.0
        %v1014 = vsel %vm678, %v994, 0.0
        %v1015 = vsel %vm678, %v995, 0.0
        %v1016 = vsel %vm679, %v996, 0.0
        %v1017 = vsel %vm679, %v997, 0.0
        %v1018 = vsel %vm680, %v998, 0.0
        %v1019 = vsel %vm680, %v999, 0.0
        %v1020 = vsel %vm681, %v1000, 0.0
        %v1021 = vsel %vm681, %v1001, 0.0
        %v1022 = vsel %vm682, %v1002, 0.0
        %v1023 = vsel %vm682, %v1003, 0.0
        %v1024 = vsel %vm683, %v1004, 0.0
        %v1025 = vsel %vm683, %v1005, 0.0
        %v1026 = vsel %vm684, %v1006, 0.0
        %v1027 = vsel %vm684, %v1007, 0.0
        %v1028 = vsel %vm685, %v1008, 0.0
        %v1029 = vsel %vm685, %v1009, 0.0
        %v1030 = vsel %vm686, %v1010, 0.0
        %v1031 = vsel %vm686, %v1011, 0.0
        %v1032 = vsel %vm687, %v1012, 0.0
        %v1033 = vsel %vm687, %v1013, 0.0
        %1034 = vst [vmem:[#allocation2 + $0x10] sm:$0xff] %v1014
        %1035 = vst [vmem:[#allocation2 + $0x18] sm:$0xff] %v1015
        %1036 = vst [vmem:[#allocation2 + $0x20] sm:$0xff] %v1016
        %1037 = vst [vmem:[#allocation2 + $0x28] sm:$0xff] %v1017
        %1038 = vst [vmem:[#allocation2 + $0x30] sm:$0xff] %v1018
        %1039 = vst [vmem:[#allocation2 + $0x38] sm:$0xff] %v1019
        %1040 = vst [vmem:[#allocation2 + $0x40] sm:$0xff] %v1020
        %1041 = vst [vmem:[#allocation2 + $0x48] sm:$0xff] %v1021
        %1042 = vst [vmem:[#allocation2 + $0x50] sm:$0xff] %v1022
        %1043 = vst [vmem:[#allocation2 + $0x58] sm:$0xff] %v1023
        %1044 = vst [vmem:[#allocation2 + $0x60] sm:$0xff] %v1024
        %1045 = vst [vmem:[#allocation2 + $0x68] sm:$0xff] %v1025
        %1046 = vst [vmem:[#allocation2 + $0x70] sm:$0xff] %v1026
        %1047 = vst [vmem:[#allocation2 + $0x78] sm:$0xff] %v1027
        %1048 = vst [vmem:[#allocation2 + $0x80] sm:$0xff] %v1028
        %1049 = vst [vmem:[#allocation2 + $0x88] sm:$0xff] %v1029
        %1050 = vst [vmem:[#allocation2 + $0x90] sm:$0xff] %v1030
        %1051 = vst [vmem:[#allocation2 + $0x98] sm:$0xff] %v1031
        %1052 = vst [vmem:[#allocation2 + $0xa0] sm:$0xff] %v1032
        %1053 = vst [vmem:[#allocation2 + $0xa8] sm:$0xff] %v1033
        %v1054 = vld [vmem:[#allocation2] sm:$0x80]
        %v1055 = vld [vmem:[#allocation2 + $0x8] sm:$0x80]
        %v1056 = vld [vmem:[#allocation2 + $0x10] sm:$0xff]
        %v1057 = vld [vmem:[#allocation2 + $0x18] sm:$0xff]
        %v1058 = vld [vmem:[#allocation2 + $0x20] sm:$0xff]
        %v1059 = vld [vmem:[#allocation2 + $0x28] sm:$0xff]
        %v1060 = vld [vmem:[#allocation2 + $0x30] sm:$0xff]
        %v1061 = vld [vmem:[#allocation2 + $0x38] sm:$0xff]
        %v1062 = vld [vmem:[#allocation2 + $0x40] sm:$0xff]
        %v1063 = vld [vmem:[#allocation2 + $0x48] sm:$0xff]
        %v1064 = vld [vmem:[#allocation2 + $0x50] sm:$0xff]
        %v1065 = vld [vmem:[#allocation2 + $0x58] sm:$0xff]
        %v1066 = vld [vmem:[#allocation2 + $0x60] sm:$0xff]
        %v1067 = vld [vmem:[#allocation2 + $0x68] sm:$0xff]
        %v1068 = vld [vmem:[#allocation2 + $0x70] sm:$0xff]
        %v1069 = vld [vmem:[#allocation2 + $0x78] sm:$0xff]
        %v1070 = vld [vmem:[#allocation2 + $0x80] sm:$0xff]
        %v1071 = vld [vmem:[#allocation2 + $0x88] sm:$0xff]
        %v1072 = vld [vmem:[#allocation2 + $0x90] sm:$0xff]
        %v1073 = vld [vmem:[#allocation2 + $0x98] sm:$0xff]
        %v1074 = vld [vmem:[#allocation2 + $0xa0] sm:$0x7f]
        %v1075 = vld [vmem:[#allocation2 + $0xa8] sm:$0x7f]
        %v1076 = vld [vmem:[#allocation8] sm:$0xff]
        %v1077 = vld [vmem:[#allocation8 + $0x8] sm:$0xff]
        %v1078 = vld [vmem:[#allocation8 + $0x10] sm:$0xff]
        %v1079 = vld [vmem:[#allocation8 + $0x18] sm:$0xff]
        %v1080 = vld [vmem:[#allocation8 + $0x20] sm:$0xff]
        %v1081 = vld [vmem:[#allocation8 + $0x28] sm:$0xff]
        %v1082 = vld [vmem:[#allocation8 + $0x30] sm:$0xff]
        %v1083 = vld [vmem:[#allocation8 + $0x38] sm:$0xff]
        %v1084 = vld [vmem:[#allocation8 + $0x40] sm:$0xff]
        %v1085 = vld [vmem:[#allocation8 + $0x48] sm:$0xff]
        %v1086 = vld [vmem:[#allocation8 + $0x50] sm:$0xff]
        %v1087 = vld [vmem:[#allocation8 + $0x58] sm:$0xff]
        %v1088 = vld [vmem:[#allocation8 + $0x60] sm:$0xff]
        %v1089 = vld [vmem:[#allocation8 + $0x68] sm:$0xff]
        %v1090 = vld [vmem:[#allocation8 + $0x70] sm:$0xff]
        %v1091 = vld [vmem:[#allocation8 + $0x78] sm:$0xff]
        %v1092 = vld [vmem:[#allocation8 + $0x80] sm:$0xff]
        %v1093 = vld [vmem:[#allocation8 + $0x88] sm:$0xff]
        %v1094 = vld [vmem:[#allocation8 + $0x90] sm:$0xff]
        %v1095 = vld [vmem:[#allocation8 + $0x98] sm:$0xff]
        %v1096 = vld [vmem:[#allocation8 + $0xa0] sm:$0xff]
        %v1097 = vld [vmem:[#allocation8 + $0xa8] sm:$0xff]
        %v1098 = vld [vmem:[#allocation8 + $0xb0] sm:$0xff]
        %v1099 = vld [vmem:[#allocation8 + $0xb8] sm:$0xff]
        %v1100 = vld [vmem:[#allocation8 + $0xc0] sm:$0xff]
        %v1101 = vld [vmem:[#allocation8 + $0xc8] sm:$0xff]
        %v1102 = vld [vmem:[#allocation8 + $0xd0] sm:$0xff]
        %v1103 = vld [vmem:[#allocation8 + $0xd8] sm:$0xff]
        %v1104 = vld [vmem:[#allocation8 + $0xe0] sm:$0xff]
        %v1105 = vld [vmem:[#allocation8 + $0xe8] sm:$0xff]
        %v1106 = vld [vmem:[#allocation8 + $0xf0] sm:$0xff]
        %v1107 = vld [vmem:[#allocation8 + $0xf8] sm:$0xff]
        %v1108 = vld [vmem:[#allocation8 + $0x100] sm:$0xff]
        %v1109 = vld [vmem:[#allocation8 + $0x108] sm:$0xff]
        %v1110 = vld [vmem:[#allocation8 + $0x110] sm:$0xff]
        %v1111 = vld [vmem:[#allocation8 + $0x118] sm:$0xff]
        %v1112 = vld [vmem:[#allocation8 + $0x120] sm:$0xff]
        %v1113 = vld [vmem:[#allocation8 + $0x128] sm:$0xff]
        %v1114 = vld [vmem:[#allocation8 + $0x130] sm:$0xff]
        %v1115 = vld [vmem:[#allocation8 + $0x138] sm:$0xff]
        %v1116 = vld [vmem:[#allocation8 + $0x140] sm:$0xff]
        %v1117 = vld [vmem:[#allocation8 + $0x148] sm:$0xff]
        %v1118 = vld [vmem:[#allocation8 + $0x150] sm:$0xff]
        %v1119 = vld [vmem:[#allocation8 + $0x158] sm:$0xff]
        %v1120 = vld [vmem:[#allocation8 + $0x160] sm:$0xff]
        %v1121 = vld [vmem:[#allocation8 + $0x168] sm:$0xff]
        %v1122 = vld [vmem:[#allocation8 + $0x170] sm:$0xff]
        %v1123 = vld [vmem:[#allocation8 + $0x178] sm:$0xff]
        %v1124 = vld [vmem:[#allocation8 + $0x180] sm:$0xff]
        %v1125 = vld [vmem:[#allocation8 + $0x188] sm:$0xff]
        %v1126 = vld [vmem:[#allocation8 + $0x190] sm:$0xff]
        %v1127 = vld [vmem:[#allocation8 + $0x198] sm:$0xff]
        %v1128 = vld [vmem:[#allocation8 + $0x1a0] sm:$0xff]
        %v1129 = vld [vmem:[#allocation8 + $0x1a8] sm:$0xff]
        %v1130 = vld [vmem:[#allocation8 + $0x1b0] sm:$0xff]
        %v1131 = vld [vmem:[#allocation8 + $0x1b8] sm:$0xff]
        %v1132 = vld [vmem:[#allocation8 + $0x1c0] sm:$0xff]
        %v1133 = vld [vmem:[#allocation8 + $0x1c8] sm:$0xff]
        %v1134 = vld [vmem:[#allocation8 + $0x1d0] sm:$0xff]
        %v1135 = vld [vmem:[#allocation8 + $0x1d8] sm:$0xff]
        %v1136 = vld [vmem:[#allocation8 + $0x1e0] sm:$0xff]
        %v1137 = vld [vmem:[#allocation8 + $0x1e8] sm:$0xff]
        %v1138 = vld [vmem:[#allocation8 + $0x1f0] sm:$0xff]
        %v1139 = vld [vmem:[#allocation8 + $0x1f8] sm:$0xff]
        %v1140 = vld [vmem:[#allocation2 + $0xa0] sm:$0xff]
        %v1141 = vld [vmem:[#allocation2 + $0xa8] sm:$0xff]
        %v1142 = vld [vmem:[#allocation8 + $0x200] sm:$0xff]
        %v1143 = vld [vmem:[#allocation8 + $0x208] sm:$0xff]
        %v1144 = vld [vmem:[#allocation8 + $0x210] sm:$0xff]
        %v1145 = vld [vmem:[#allocation8 + $0x218] sm:$0xff]
        %v1146 = vld [vmem:[#allocation8 + $0x220] sm:$0xff]
        %v1147 = vld [vmem:[#allocation8 + $0x228] sm:$0xff]
        %v1148 = vld [vmem:[#allocation8 + $0x230] sm:$0xff]
        %v1149 = vld [vmem:[#allocation8 + $0x238] sm:$0xff]
        %v1150 = vld [vmem:[#allocation8 + $0x240] sm:$0xff]
        %v1151 = vld [vmem:[#allocation8 + $0x248] sm:$0xff]
        %v1152 = vld [vmem:[#allocation8 + $0x250] sm:$0xff]
        %v1153 = vld [vmem:[#allocation8 + $0x258] sm:$0xff]
        %v1154 = vld [vmem:[#allocation8 + $0x260] sm:$0xff]
        %v1155 = vld [vmem:[#allocation8 + $0x268] sm:$0xff]
        %v1156 = vld [vmem:[#allocation8 + $0x270] sm:$0xff]
        %v1157 = vld [vmem:[#allocation8 + $0x278] sm:$0xff]
        %v1158 = vld [vmem:[#allocation8 + $0x280] sm:$0xff]
        %v1159 = vld [vmem:[#allocation8 + $0x288] sm:$0xff]
        %v1160 = vld [vmem:[#allocation8 + $0x290] sm:$0xff]
        %v1161 = vld [vmem:[#allocation8 + $0x298] sm:$0xff]
        %v1162 = vld [vmem:[#allocation8 + $0x2a0] sm:$0xff]
        %v1163 = vld [vmem:[#allocation8 + $0x2a8] sm:$0xff]
        %v1164 = vld [vmem:[#allocation8 + $0x2b0] sm:$0xff]
        %v1165 = vld [vmem:[#allocation8 + $0x2b8] sm:$0xff]
        %v1166 = vld [vmem:[#allocation8 + $0x2c0] sm:$0xff]
        %v1167 = vld [vmem:[#allocation8 + $0x2c8] sm:$0xff]
        %v1168 = vld [vmem:[#allocation8 + $0x2d0] sm:$0xff]
        %v1169 = vld [vmem:[#allocation8 + $0x2d8] sm:$0xff]
        %v1170 = vld [vmem:[#allocation8 + $0x2e0] sm:$0xff]
        %v1171 = vld [vmem:[#allocation8 + $0x2e8] sm:$0xff]
        %v1172 = vld [vmem:[#allocation8 + $0x2f0] sm:$0xff]
        %v1173 = vld [vmem:[#allocation8 + $0x2f8] sm:$0xff]
        %v1174 = vld [vmem:[#allocation8 + $0x300] sm:$0xff]
        %v1175 = vld [vmem:[#allocation8 + $0x308] sm:$0xff]
        %v1176 = vld [vmem:[#allocation8 + $0x310] sm:$0xff]
        %v1177 = vld [vmem:[#allocation8 + $0x318] sm:$0xff]
        %v1178 = vld [vmem:[#allocation8 + $0x320] sm:$0xff]
        %v1179 = vld [vmem:[#allocation8 + $0x328] sm:$0xff]
        %v1180 = vld [vmem:[#allocation8 + $0x330] sm:$0xff]
        %v1181 = vld [vmem:[#allocation8 + $0x338] sm:$0xff]
        %v1182 = vld [vmem:[#allocation8 + $0x340] sm:$0xff]
        %v1183 = vld [vmem:[#allocation8 + $0x348] sm:$0xff]
        %v1184 = vld [vmem:[#allocation8 + $0x350] sm:$0xff]
        %v1185 = vld [vmem:[#allocation8 + $0x358] sm:$0xff]
        %v1186 = vld [vmem:[#allocation8 + $0x360] sm:$0xff]
        %v1187 = vld [vmem:[#allocation8 + $0x368] sm:$0xff]
        %v1188 = vld [vmem:[#allocation8 + $0x370] sm:$0xff]
        %v1189 = vld [vmem:[#allocation8 + $0x378] sm:$0xff]
        %v1190 = vld [vmem:[#allocation8 + $0x380] sm:$0xff]
        %v1191 = vld [vmem:[#allocation8 + $0x388] sm:$0xff]
        %v1192 = vld [vmem:[#allocation8 + $0x390] sm:$0xff]
        %v1193 = vld [vmem:[#allocation8 + $0x398] sm:$0xff]
        %v1194 = vld [vmem:[#allocation8 + $0x3a0] sm:$0xff]
        %v1195 = vld [vmem:[#allocation8 + $0x3a8] sm:$0xff]
        %v1196 = vld [vmem:[#allocation8 + $0x3b0] sm:$0xff]
        %v1197 = vld [vmem:[#allocation8 + $0x3b8] sm:$0xff]
        %v1198 = vld [vmem:[#allocation8 + $0x3c0] sm:$0xff]
        %v1199 = vld [vmem:[#allocation8 + $0x3c8] sm:$0xff]
        %v1200 = vld [vmem:[#allocation8 + $0x3d0] sm:$0xff]
        %v1201 = vld [vmem:[#allocation8 + $0x3d8] sm:$0xff]
        %v1202 = vld [vmem:[#allocation8 + $0x3e0] sm:$0xff]
        %v1203 = vld [vmem:[#allocation8 + $0x3e8] sm:$0xff]
        %v1204 = vld [vmem:[#allocation8 + $0x3f0] sm:$0xff]
        %v1205 = vld [vmem:[#allocation8 + $0x3f8] sm:$0xff]
        %1206 = vmatprep.subr.mxu0 %v1143
        %1207 = vmatpush1.msra.mxu0 %v1142
        %1208 = vmatprep.subr.mxu0 %v1145
        %1209 = vmatpush1.msra.mxu0 %v1144
        %1210 = vmatprep.subr.mxu0 %v1147
        %1211 = vmatpush1.msra.mxu0 %v1146
        %1212 = vmatprep.subr.mxu0 %v1149
        %1213 = vmatpush1.msra.mxu0 %v1148
        %1214 = vmatprep.subr.mxu0 %v1151
        %1215 = vmatpush1.msra.mxu0 %v1150
        %1216 = vmatprep.subr.mxu0 %v1153
        %1217 = vmatpush1.msra.mxu0 %v1152
        %1218 = vmatprep.subr.mxu0 %v1155
        %1219 = vmatpush1.msra.mxu0 %v1154
        %1220 = vmatprep.subr.mxu0 %v1157
        %1221 = vmatpush1.msra.mxu0 %v1156
        %1222 = vmatprep.subr.mxu0 %v1159
        %1223 = vmatpush1.msra.mxu0 %v1158
        %1224 = vmatprep.subr.mxu0 %v1161
        %1225 = vmatpush1.msra.mxu0 %v1160
        %1226 = vmatprep.subr.mxu0 %v1163
        %1227 = vmatpush1.msra.mxu0 %v1162
        %1228 = vmatprep.subr.mxu0 %v1165
        %1229 = vmatpush1.msra.mxu0 %v1164
        %1230 = vmatprep.subr.mxu0 %v1167
        %1231 = vmatpush1.msra.mxu0 %v1166
        %1232 = vmatprep.subr.mxu0 %v1169
        %1233 = vmatpush1.msra.mxu0 %v1168
        %1234 = vmatprep.subr.mxu0 %v1171
        %1235 = vmatpush1.msra.mxu0 %v1170
        %1236 = vmatprep.subr.mxu0 %v1173
        %1237 = vmatpush1.msra.mxu0 %v1172
        %1238 = vmatprep.subr.mxu0 %v1175
        %1239 = vmatpush1.msra.mxu0 %v1174
        %1240 = vmatprep.subr.mxu0 %v1177
        %1241 = vmatpush1.msra.mxu0 %v1176
        %1242 = vmatprep.subr.mxu0 %v1179
        %1243 = vmatpush1.msra.mxu0 %v1178
        %1244 = vmatprep.subr.mxu0 %v1181
        %1245 = vmatpush1.msra.mxu0 %v1180
        %1246 = vmatprep.subr.mxu0 %v1183
        %1247 = vmatpush1.msra.mxu0 %v1182
        %1248 = vmatprep.subr.mxu0 %v1185
        %1249 = vmatpush1.msra.mxu0 %v1184
        %1250 = vmatprep.subr.mxu0 %v1187
        %1251 = vmatpush1.msra.mxu0 %v1186
        %1252 = vmatprep.subr.mxu0 %v1189
        %1253 = vmatpush1.msra.mxu0 %v1188
        %1254 = vmatprep.subr.mxu0 %v1191
        %1255 = vmatpush1.msra.mxu0 %v1190
        %1256 = vmatprep.subr.mxu0 %v1193
        %1257 = vmatpush1.msra.mxu0 %v1192
        %1258 = vmatprep.subr.mxu0 %v1195
        %1259 = vmatpush1.msra.mxu0 %v1194
        %1260 = vmatprep.subr.mxu0 %v1197
        %1261 = vmatpush1.msra.mxu0 %v1196
        %1262 = vmatprep.subr.mxu0 %v1199
        %1263 = vmatpush1.msra.mxu0 %v1198
        %1264 = vmatprep.subr.mxu0 %v1201
        %1265 = vmatpush1.msra.mxu0 %v1200
        %1266 = vmatprep.subr.mxu0 %v1203
        %1267 = vmatpush1.msra.mxu0 %v1202
        %1268 = vmatprep.subr.mxu0 %v1205
        %1269 = vmatpush1.msra.mxu0 %v1204
        %1270 = vmatprep.mubr.f32.mxu0 %v1057
        %1271 = vmatmul.mubr.f32.gmra.mrb[0].mxu0 %v1056
        %v1272 = vpop.f32.mrb[0].mxu0
        %v1273 = vadd.f32 0.0, %v1272
        %v1274 = vpop.f32.mrb[0].mxu0
        %v1275 = vadd.f32 0.0, %v1274
        %1276 = vmatprep.mubr.f32.mxu0 %v1059
        %1277 = vmatmul.mubr.f32.gmra.mrb[0].mxu0 %v1058
        %v1278 = vpop.f32.mrb[0].mxu0
        %v1279 = vadd.f32 0.0, %v1278
        %v1280 = vpop.f32.mrb[0].mxu0
        %v1281 = vadd.f32 0.0, %v1280
        %1282 = vmatprep.mubr.f32.mxu0 %v1061
        %1283 = vmatmul.mubr.f32.gmra.mrb[0].mxu0 %v1060
        %v1284 = vpop.f32.mrb[0].mxu0
        %v1285 = vadd.f32 0.0, %v1284
        %v1286 = vpop.f32.mrb[0].mxu0
        %v1287 = vadd.f32 0.0, %v1286
        %1288 = vmatprep.mubr.f32.mxu0 %v1063
        %1289 = vmatmul.mubr.f32.gmra.mrb[0].mxu0 %v1062
        %v1290 = vpop.f32.mrb[0].mxu0
        %v1291 = vadd.f32 0.0, %v1290
        %v1292 = vpop.f32.mrb[0].mxu0
        %v1293 = vadd.f32 0.0, %v1292
        %1294 = vmatprep.mubr.f32.mxu0 %v1065
        %1295 = vmatmul.mubr.f32.gmra.mrb[0].mxu0 %v1064
        %v1296 = vpop.f32.mrb[0].mxu0
        %v1297 = vadd.f32 0.0, %v1296
        %v1298 = vpop.f32.mrb[0].mxu0
        %v1299 = vadd.f32 0.0, %v1298
        %1300 = vmatprep.mubr.f32.mxu0 %v1067
        %1301 = vmatmul.mubr.f32.gmra.mrb[0].mxu0 %v1066
        %v1302 = vpop.f32.mrb[0].mxu0
        %v1303 = vadd.f32 0.0, %v1302
        %v1304 = vpop.f32.mrb[0].mxu0
        %v1305 = vadd.f32 0.0, %v1304
        %1306 = vmatprep.mubr.f32.mxu0 %v1069
        %1307 = vmatmul.mubr.f32.gmra.mrb[0].mxu0 %v1068
        %v1308 = vpop.f32.mrb[0].mxu0
        %v1309 = vadd.f32 0.0, %v1308
        %v1310 = vpop.f32.mrb[0].mxu0
        %v1311 = vadd.f32 0.0, %v1310
        %1312 = vmatprep.mubr.f32.mxu0 %v1071
        %1313 = vmatmul.mubr.f32.gmra.mrb[0].mxu0 %v1070
        %v1314 = vpop.f32.mrb[0].mxu0
        %v1315 = vadd.f32 0.0, %v1314
        %v1316 = vpop.f32.mrb[0].mxu0
        %v1317 = vadd.f32 0.0, %v1316
        %1318 = vmatprep.mubr.f32.mxu0 %v1073
        %1319 = vmatmul.mubr.f32.gmra.mrb[0].mxu0 %v1072
        %v1320 = vpop.f32.mrb[0].mxu0
        %v1321 = vadd.f32 0.0, %v1320
        %v1322 = vpop.f32.mrb[0].mxu0
        %v1323 = vadd.f32 0.0, %v1322
        %1324 = vmatprep.mubr.f32.mxu0 %v1141
        %1325 = vmatmul.mubr.f32.gmra.mrb[0].mxu0 %v1140
        %v1326 = vpop.f32.mrb[0].mxu0
        %v1327 = vadd.f32 0.0, %v1326
        %v1328 = vpop.f32.mrb[0].mxu0
        %v1329 = vadd.f32 0.0, %v1328
        %1330 = vdwg.mxu0
        %vm1353 = vcmask 1040384
        %v1354 = vrot.slane %v1054, 7
        %v1355 = vrot.slane %v1056, 7
        %v1356 = vsel %vm1353, %v1354, %v1355
        %v1357 = vrot.slane %v1055, 7
        %v1358 = vrot.slane %v1057, 7
        %v1359 = vsel %vm1353, %v1357, %v1358
        %v1360 = vrot.slane %v1058, 7
        %v1361 = vsel %vm1353, %v1355, %v1360
        %v1362 = vrot.slane %v1059, 7
        %v1363 = vsel %vm1353, %v1358, %v1362
        %v1364 = vrot.slane %v1060, 7
        %v1365 = vsel %vm1353, %v1360, %v1364
        %v1366 = vrot.slane %v1061, 7
        %v1367 = vsel %vm1353, %v1362, %v1366
        %v1368 = vrot.slane %v1062, 7
        %v1369 = vsel %vm1353, %v1364, %v1368
        %v1370 = vrot.slane %v1063, 7
        %v1371 = vsel %vm1353, %v1366, %v1370
        %v1372 = vrot.slane %v1064, 7
        %v1373 = vsel %vm1353, %v1368, %v1372
        %v1374 = vrot.slane %v1065, 7
        %v1375 = vsel %vm1353, %v1370, %v1374
        %v1376 = vrot.slane %v1066, 7
        %v1377 = vsel %vm1353, %v1372, %v1376
        %v1378 = vrot.slane %v1067, 7
        %v1379 = vsel %vm1353, %v1374, %v1378
        %v1380 = vrot.slane %v1068, 7
        %v1381 = vsel %vm1353, %v1376, %v1380
        %v1382 = vrot.slane %v1069, 7
        %v1383 = vsel %vm1353, %v1378, %v1382
        %v1384 = vrot.slane %v1070, 7
        %v1385 = vsel %vm1353, %v1380, %v1384
        %v1386 = vrot.slane %v1071, 7
        %v1387 = vsel %vm1353, %v1382, %v1386
        %v1388 = vrot.slane %v1072, 7
        %v1389 = vsel %vm1353, %v1384, %v1388
        %v1390 = vrot.slane %v1073, 7
        %v1391 = vsel %vm1353, %v1386, %v1390
        %v1392 = vrot.slane %v1074, 7
        %v1393 = vsel %vm1353, %v1388, %v1392
        %v1394 = vrot.slane %v1075, 7
        %v1395 = vsel %vm1353, %v1390, %v1394
        %1416 = vmatprep.subr.mxu0 %v1077
        %1417 = vmatpush1.msra.mxu0 %v1076
        %1418 = vmatprep.subr.mxu0 %v1079
        %1419 = vmatpush1.msra.mxu0 %v1078
        %1420 = vmatprep.subr.mxu0 %v1081
        %1421 = vmatpush1.msra.mxu0 %v1080
        %1422 = vmatprep.subr.mxu0 %v1083
        %1423 = vmatpush1.msra.mxu0 %v1082
        %1424 = vmatprep.subr.mxu0 %v1085
        %1425 = vmatpush1.msra.mxu0 %v1084
        %1426 = vmatprep.subr.mxu0 %v1087
        %1427 = vmatpush1.msra.mxu0 %v1086
        %1428 = vmatprep.subr.mxu0 %v1089
        %1429 = vmatpush1.msra.mxu0 %v1088
        %1430 = vmatprep.subr.mxu0 %v1091
        %1431 = vmatpush1.msra.mxu0 %v1090
        %1432 = vmatprep.subr.mxu0 %v1093
        %1433 = vmatpush1.msra.mxu0 %v1092
        %1434 = vmatprep.subr.mxu0 %v1095
        %1435 = vmatpush1.msra.mxu0 %v1094
        %1436 = vmatprep.subr.mxu0 %v1097
        %1437 = vmatpush1.msra.mxu0 %v1096
        %1438 = vmatprep.subr.mxu0 %v1099
        %1439 = vmatpush1.msra.mxu0 %v1098
        %1440 = vmatprep.subr.mxu0 %v1101
        %1441 = vmatpush1.msra.mxu0 %v1100
        %1442 = vmatprep.subr.mxu0 %v1103
        %1443 = vmatpush1.msra.mxu0 %v1102
        %1444 = vmatprep.subr.mxu0 %v1105
        %1445 = vmatpush1.msra.mxu0 %v1104
        %1446 = vmatprep.subr.mxu0 %v1107
        %1447 = vmatpush1.msra.mxu0 %v1106
        %1448 = vmatprep.subr.mxu0 %v1109
        %1449 = vmatpush1.msra.mxu0 %v1108
        %1450 = vmatprep.subr.mxu0 %v1111
        %1451 = vmatpush1.msra.mxu0 %v1110
        %1452 = vmatprep.subr.mxu0 %v1113
        %1453 = vmatpush1.msra.mxu0 %v1112
        %1454 = vmatprep.subr.mxu0 %v1115
        %1455 = vmatpush1.msra.mxu0 %v1114
        %1456 = vmatprep.subr.mxu0 %v1117
        %1457 = vmatpush1.msra.mxu0 %v1116
        %1458 = vmatprep.subr.mxu0 %v1119
        %1459 = vmatpush1.msra.mxu0 %v1118
        %1460 = vmatprep.subr.mxu0 %v1121
        %1461 = vmatpush1.msra.mxu0 %v1120
        %1462 = vmatprep.subr.mxu0 %v1123
        %1463 = vmatpush1.msra.mxu0 %v1122
        %1464 = vmatprep.subr.mxu0 %v1125
        %1465 = vmatpush1.msra.mxu0 %v1124
        %1466 = vmatprep.subr.mxu0 %v1127
        %1467 = vmatpush1.msra.mxu0 %v1126
        %1468 = vmatprep.subr.mxu0 %v1129
        %1469 = vmatpush1.msra.mxu0 %v1128
        %1470 = vmatprep.subr.mxu0 %v1131
        %1471 = vmatpush1.msra.mxu0 %v1130
        %1472 = vmatprep.subr.mxu0 %v1133
        %1473 = vmatpush1.msra.mxu0 %v1132
        %1474 = vmatprep.subr.mxu0 %v1135
        %1475 = vmatpush1.msra.mxu0 %v1134
        %1476 = vmatprep.subr.mxu0 %v1137
        %1477 = vmatpush1.msra.mxu0 %v1136
        %1478 = vmatprep.subr.mxu0 %v1139
        %1479 = vmatpush1.msra.mxu0 %v1138
        %1480 = vmatprep.mubr.f32.mxu0 %v1359
        %1481 = vmatmul.mubr.f32.gmra.mrb[0].mxu0 %v1356
        %v1482 = vpop.f32.mrb[0].mxu0
        %v1483 = vadd.f32 %v1273, %v1482
        %v1484 = vpop.f32.mrb[0].mxu0
        %v1485 = vadd.f32 %v1275, %v1484
        %1486 = vmatprep.mubr.f32.mxu0 %v1363
        %1487 = vmatmul.mubr.f32.gmra.mrb[0].mxu0 %v1361
        %v1488 = vpop.f32.mrb[0].mxu0
        %v1489 = vadd.f32 %v1279, %v1488
        %v1490 = vpop.f32.mrb[0].mxu0
        %v1491 = vadd.f32 %v1281, %v1490
        %1492 = vmatprep.mubr.f32.mxu0 %v1367
        %1493 = vmatmul.mubr.f32.gmra.mrb[0].mxu0 %v1365
        %v1494 = vpop.f32.mrb[0].mxu0
        %v1495 = vadd.f32 %v1285, %v1494
        %v1496 = vpop.f32.mrb[0].mxu0
        %v1497 = vadd.f32 %v1287, %v1496
        %1498 = vmatprep.mubr.f32.mxu0 %v1371
        %1499 = vmatmul.mubr.f32.gmra.mrb[0].mxu0 %v1369
        %v1500 = vpop.f32.mrb[0].mxu0
        %v1501 = vadd.f32 %v1291, %v1500
        %v1502 = vpop.f32.mrb[0].mxu0
        %v1503 = vadd.f32 %v1293, %v1502
        %1504 = vmatprep.mubr.f32.mxu0 %v1375
        %1505 = vmatmul.mubr.f32.gmra.mrb[0].mxu0 %v1373
        %v1506 = vpop.f32.mrb[0].mxu0
        %v1507 = vadd.f32 %v1297, %v1506
        %v1508 = vpop.f32.mrb[0].mxu0
        %v1509 = vadd.f32 %v1299, %v1508
        %1510 = vmatprep.mubr.f32.mxu0 %v1379
        %1511 = vmatmul.mubr.f32.gmra.mrb[0].mxu0 %v1377
        %v1512 = vpop.f32.mrb[0].mxu0
        %v1513 = vadd.f32 %v1303, %v1512
        %v1514 = vpop.f32.mrb[0].mxu0
        %v1515 = vadd.f32 %v1305, %v1514
        %1516 = vmatprep.mubr.f32.mxu0 %v1383
        %1517 = vmatmul.mubr.f32.gmra.mrb[0].mxu0 %v1381
        %v1518 = vpop.f32.mrb[0].mxu0
        %v1519 = vadd.f32 %v1309, %v1518
        %v1520 = vpop.f32.mrb[0].mxu0
        %v1521 = vadd.f32 %v1311, %v1520
        %1522 = vmatprep.mubr.f32.mxu0 %v1387
        %1523 = vmatmul.mubr.f32.gmra.mrb[0].mxu0 %v1385
        %v1524 = vpop.f32.mrb[0].mxu0
        %v1525 = vadd.f32 %v1315, %v1524
        %v1526 = vpop.f32.mrb[0].mxu0
        %v1527 = vadd.f32 %v1317, %v1526
        %1528 = vmatprep.mubr.f32.mxu0 %v1391
        %1529 = vmatmul.mubr.f32.gmra.mrb[0].mxu0 %v1389
        %v1530 = vpop.f32.mrb[0].mxu0
        %v1531 = vadd.f32 %v1321, %v1530
        %v1532 = vpop.f32.mrb[0].mxu0
        %v1533 = vadd.f32 %v1323, %v1532
        %1534 = vmatprep.mubr.f32.mxu0 %v1395
        %1535 = vmatmul.mubr.f32.gmra.mrb[0].mxu0 %v1393
        %v1536 = vpop.f32.mrb[0].mxu0
        %v1537 = vadd.f32 %v1327, %v1536
        %v1538 = vpop.f32.mrb[0].mxu0
        %v1539 = vadd.f32 %v1329, %v1538
        %1540 = vdwg.mxu0
        %v1541 = vld [vmem:[#allocation2 + $0x10] sm:$0xfe]
        %v1542 = vld [vmem:[#allocation2 + $0x18] sm:$0xfe]
        %v1543 = vld [vmem:[#allocation2 + $0x20] sm:$0xff]
        %v1544 = vld [vmem:[#allocation2 + $0x28] sm:$0xff]
        %v1545 = vld [vmem:[#allocation2 + $0x30] sm:$0xff]
        %v1546 = vld [vmem:[#allocation2 + $0x38] sm:$0xff]
        %v1547 = vld [vmem:[#allocation2 + $0x40] sm:$0xff]
        %v1548 = vld [vmem:[#allocation2 + $0x48] sm:$0xff]
        %v1549 = vld [vmem:[#allocation2 + $0x50] sm:$0xff]
        %v1550 = vld [vmem:[#allocation2 + $0x58] sm:$0xff]
        %v1551 = vld [vmem:[#allocation2 + $0x60] sm:$0xff]
        %v1552 = vld [vmem:[#allocation2 + $0x68] sm:$0xff]
        %v1553 = vld [vmem:[#allocation2 + $0x70] sm:$0xff]
        %v1554 = vld [vmem:[#allocation2 + $0x78] sm:$0xff]
        %v1555 = vld [vmem:[#allocation2 + $0x80] sm:$0xff]
        %v1556 = vld [vmem:[#allocation2 + $0x88] sm:$0xff]
        %v1557 = vld [vmem:[#allocation2 + $0x90] sm:$0xff]
        %v1558 = vld [vmem:[#allocation2 + $0x98] sm:$0xff]
        %v1559 = vld [vmem:[#allocation2 + $0xa0] sm:$0xff]
        %v1560 = vld [vmem:[#allocation2 + $0xa8] sm:$0xff]
        %v1561 = vld [vmem:[#allocation2 + $0xb0] sm:$0x1]
        %v1562 = vld [vmem:[#allocation2 + $0xb8] sm:$0x1]
        %v1563 = vld [vmem:[#allocation8 + $0x400] sm:$0xff]
        %v1564 = vld [vmem:[#allocation8 + $0x408] sm:$0xff]
        %v1565 = vld [vmem:[#allocation8 + $0x410] sm:$0xff]
        %v1566 = vld [vmem:[#allocation8 + $0x418] sm:$0xff]
        %v1567 = vld [vmem:[#allocation8 + $0x420] sm:$0xff]
        %v1568 = vld [vmem:[#allocation8 + $0x428] sm:$0xff]
        %v1569 = vld [vmem:[#allocation8 + $0x430] sm:$0xff]
        %v1570 = vld [vmem:[#allocation8 + $0x438] sm:$0xff]
        %v1571 = vld [vmem:[#allocation8 + $0x440] sm:$0xff]
        %v1572 = vld [vmem:[#allocation8 + $0x448] sm:$0xff]
        %v1573 = vld [vmem:[#allocation8 + $0x450] sm:$0xff]
        %v1574 = vld [vmem:[#allocation8 + $0x458] sm:$0xff]
        %v1575 = vld [vmem:[#allocation8 + $0x460] sm:$0xff]
        %v1576 = vld [vmem:[#allocation8 + $0x468] sm:$0xff]
        %v1577 = vld [vmem:[#allocation8 + $0x470] sm:$0xff]
        %v1578 = vld [vmem:[#allocation8 + $0x478] sm:$0xff]
        %v1579 = vld [vmem:[#allocation8 + $0x480] sm:$0xff]
        %v1580 = vld [vmem:[#allocation8 + $0x488] sm:$0xff]
        %v1581 = vld [vmem:[#allocation8 + $0x490] sm:$0xff]
        %v1582 = vld [vmem:[#allocation8 + $0x498] sm:$0xff]
        %v1583 = vld [vmem:[#allocation8 + $0x4a0] sm:$0xff]
        %v1584 = vld [vmem:[#allocation8 + $0x4a8] sm:$0xff]
        %v1585 = vld [vmem:[#allocation8 + $0x4b0] sm:$0xff]
        %v1586 = vld [vmem:[#allocation8 + $0x4b8] sm:$0xff]
        %v1587 = vld [vmem:[#allocation8 + $0x4c0] sm:$0xff]
        %v1588 = vld [vmem:[#allocation8 + $0x4c8] sm:$0xff]
        %v1589 = vld [vmem:[#allocation8 + $0x4d0] sm:$0xff]
        %v1590 = vld [vmem:[#allocation8 + $0x4d8] sm:$0xff]
        %v1591 = vld [vmem:[#allocation8 + $0x4e0] sm:$0xff]
        %v1592 = vld [vmem:[#allocation8 + $0x4e8] sm:$0xff]
        %v1593 = vld [vmem:[#allocation8 + $0x4f0] sm:$0xff]
        %v1594 = vld [vmem:[#allocation8 + $0x4f8] sm:$0xff]
        %v1595 = vld [vmem:[#allocation8 + $0x500] sm:$0xff]
        %v1596 = vld [vmem:[#allocation8 + $0x508] sm:$0xff]
        %v1597 = vld [vmem:[#allocation8 + $0x510] sm:$0xff]
        %v1598 = vld [vmem:[#allocation8 + $0x518] sm:$0xff]
        %v1599 = vld [vmem:[#allocation8 + $0x520] sm:$0xff]
        %v1600 = vld [vmem:[#allocation8 + $0x528] sm:$0xff]
        %v1601 = vld [vmem:[#allocation8 + $0x530] sm:$0xff]
        %v1602 = vld [vmem:[#allocation8 + $0x538] sm:$0xff]
        %v1603 = vld [vmem:[#allocation8 + $0x540] sm:$0xff]
        %v1604 = vld [vmem:[#allocation8 + $0x548] sm:$0xff]
        %v1605 = vld [vmem:[#allocation8 + $0x550] sm:$0xff]
        %v1606 = vld [vmem:[#allocation8 + $0x558] sm:$0xff]
        %v1607 = vld [vmem:[#allocation8 + $0x560] sm:$0xff]
        %v1608 = vld [vmem:[#allocation8 + $0x568] sm:$0xff]
        %v1609 = vld [vmem:[#allocation8 + $0x570] sm:$0xff]
        %v1610 = vld [vmem:[#allocation8 + $0x578] sm:$0xff]
        %v1611 = vld [vmem:[#allocation8 + $0x580] sm:$0xff]
        %v1612 = vld [vmem:[#allocation8 + $0x588] sm:$0xff]
        %v1613 = vld [vmem:[#allocation8 + $0x590] sm:$0xff]
        %v1614 = vld [vmem:[#allocation8 + $0x598] sm:$0xff]
        %v1615 = vld [vmem:[#allocation8 + $0x5a0] sm:$0xff]
        %v1616 = vld [vmem:[#allocation8 + $0x5a8] sm:$0xff]
        %v1617 = vld [vmem:[#allocation8 + $0x5b0] sm:$0xff]
        %v1618 = vld [vmem:[#allocation8 + $0x5b8] sm:$0xff]
        %v1619 = vld [vmem:[#allocation8 + $0x5c0] sm:$0xff]
        %v1620 = vld [vmem:[#allocation8 + $0x5c8] sm:$0xff]
        %v1621 = vld [vmem:[#allocation8 + $0x5d0] sm:$0xff]
        %v1622 = vld [vmem:[#allocation8 + $0x5d8] sm:$0xff]
        %v1623 = vld [vmem:[#allocation8 + $0x5e0] sm:$0xff]
        %v1624 = vld [vmem:[#allocation8 + $0x5e8] sm:$0xff]
        %v1625 = vld [vmem:[#allocation8 + $0x5f0] sm:$0xff]
        %v1626 = vld [vmem:[#allocation8 + $0x5f8] sm:$0xff]
        %vm1649 = vcmask 1046528
        %v1650 = vrot.slane %v1541, 1
        %v1651 = vrot.slane %v1543, 1
        %v1652 = vsel %vm1649, %v1650, %v1651
        %v1653 = vrot.slane %v1542, 1
        %v1654 = vrot.slane %v1544, 1
        %v1655 = vsel %vm1649, %v1653, %v1654
        %v1656 = vrot.slane %v1545, 1
        %v1657 = vsel %vm1649, %v1651, %v1656
        %v1658 = vrot.slane %v1546, 1
        %v1659 = vsel %vm1649, %v1654, %v1658
        %v1660 = vrot.slane %v1547, 1
        %v1661 = vsel %vm1649, %v1656, %v1660
        %v1662 = vrot.slane %v1548, 1
        %v1663 = vsel %vm1649, %v1658, %v1662
        %v1664 = vrot.slane %v1549, 1
        %v1665 = vsel %vm1649, %v1660, %v1664
        %v1666 = vrot.slane %v1550, 1
        %v1667 = vsel %vm1649, %v1662, %v1666
        %v1668 = vrot.slane %v1551, 1
        %v1669 = vsel %vm1649, %v1664, %v1668
        %v1670 = vrot.slane %v1552, 1
        %v1671 = vsel %vm1649, %v1666, %v1670
        %v1672 = vrot.slane %v1553, 1
        %v1673 = vsel %vm1649, %v1668, %v1672
        %v1674 = vrot.slane %v1554, 1
        %v1675 = vsel %vm1649, %v1670, %v1674
        %v1676 = vrot.slane %v1555, 1
        %v1677 = vsel %vm1649, %v1672, %v1676
        %v1678 = vrot.slane %v1556, 1
        %v1679 = vsel %vm1649, %v1674, %v1678
        %v1680 = vrot.slane %v1557, 1
        %v1681 = vsel %vm1649, %v1676, %v1680
        %v1682 = vrot.slane %v1558, 1
        %v1683 = vsel %vm1649, %v1678, %v1682
        %v1684 = vrot.slane %v1559, 1
        %v1685 = vsel %vm1649, %v1680, %v1684
        %v1686 = vrot.slane %v1560, 1
        %v1687 = vsel %vm1649, %v1682, %v1686
        %v1688 = vrot.slane %v1561, 1
        %v1689 = vsel %vm1649, %v1684, %v1688
        %v1690 = vrot.slane %v1562, 1
        %v1691 = vsel %vm1649, %v1686, %v1690
        %1712 = vmatprep.subr.mxu0 %v1564
        %1713 = vmatpush1.msra.mxu0 %v1563
        %1714 = vmatprep.subr.mxu0 %v1566
        %1715 = vmatpush1.msra.mxu0 %v1565
        %1716 = vmatprep.subr.mxu0 %v1568
        %1717 = vmatpush1.msra.mxu0 %v1567
        %1718 = vmatprep.subr.mxu0 %v1570
        %1719 = vmatpush1.msra.mxu0 %v1569
        %1720 = vmatprep.subr.mxu0 %v1572
        %1721 = vmatpush1.msra.mxu0 %v1571
        %1722 = vmatprep.subr.mxu0 %v1574
        %1723 = vmatpush1.msra.mxu0 %v1573
        %1724 = vmatprep.subr.mxu0 %v1576
        %1725 = vmatpush1.msra.mxu0 %v1575
        %1726 = vmatprep.subr.mxu0 %v1578
        %1727 = vmatpush1.msra.mxu0 %v1577
        %1728 = vmatprep.subr.mxu0 %v1580
        %1729 = vmatpush1.msra.mxu0 %v1579
        %1730 = vmatprep.subr.mxu0 %v1582
        %1731 = vmatpush1.msra.mxu0 %v1581
        %1732 = vmatprep.subr.mxu0 %v1584
        %1733 = vmatpush1.msra.mxu0 %v1583
        %1734 = vmatprep.subr.mxu0 %v1586
        %1735 = vmatpush1.msra.mxu0 %v1585
        %1736 = vmatprep.subr.mxu0 %v1588
        %1737 = vmatpush1.msra.mxu0 %v1587
        %1738 = vmatprep.subr.mxu0 %v1590
        %1739 = vmatpush1.msra.mxu0 %v1589
        %1740 = vmatprep.subr.mxu0 %v1592
        %1741 = vmatpush1.msra.mxu0 %v1591
        %1742 = vmatprep.subr.mxu0 %v1594
        %1743 = vmatpush1.msra.mxu0 %v1593
        %1744 = vmatprep.subr.mxu0 %v1596
        %1745 = vmatpush1.msra.mxu0 %v1595
        %1746 = vmatprep.subr.mxu0 %v1598
        %1747 = vmatpush1.msra.mxu0 %v1597
        %1748 = vmatprep.subr.mxu0 %v1600
        %1749 = vmatpush1.msra.mxu0 %v1599
        %1750 = vmatprep.subr.mxu0 %v1602
        %1751 = vmatpush1.msra.mxu0 %v1601
        %1752 = vmatprep.subr.mxu0 %v1604
        %1753 = vmatpush1.msra.mxu0 %v1603
        %1754 = vmatprep.subr.mxu0 %v1606
        %1755 = vmatpush1.msra.mxu0 %v1605
        %1756 = vmatprep.subr.mxu0 %v1608
        %1757 = vmatpush1.msra.mxu0 %v1607
        %1758 = vmatprep.subr.mxu0 %v1610
        %1759 = vmatpush1.msra.mxu0 %v1609
        %1760 = vmatprep.subr.mxu0 %v1612
        %1761 = vmatpush1.msra.mxu0 %v1611
        %1762 = vmatprep.subr.mxu0 %v1614
        %1763 = vmatpush1.msra.mxu0 %v1613
        %1764 = vmatprep.subr.mxu0 %v1616
        %1765 = vmatpush1.msra.mxu0 %v1615
        %1766 = vmatprep.subr.mxu0 %v1618
        %1767 = vmatpush1.msra.mxu0 %v1617
        %1768 = vmatprep.subr.mxu0 %v1620
        %1769 = vmatpush1.msra.mxu0 %v1619
        %1770 = vmatprep.subr.mxu0 %v1622
        %1771 = vmatpush1.msra.mxu0 %v1621
        %1772 = vmatprep.subr.mxu0 %v1624
        %1773 = vmatpush1.msra.mxu0 %v1623
        %1774 = vmatprep.subr.mxu0 %v1626
        %1775 = vmatpush1.msra.mxu0 %v1625
        %1776 = vmatprep.mubr.f32.mxu0 %v1655
        %1777 = vmatmul.mubr.f32.gmra.mrb[0].mxu0 %v1652
        %v1778 = vpop.f32.mrb[0].mxu0
        %v1779 = vadd.f32 0.0, %v1778
        %v1780 = vpop.f32.mrb[0].mxu0
        %v1781 = vadd.f32 0.0, %v1780
        %1782 = vmatprep.mubr.f32.mxu0 %v1659
        %1783 = vmatmul.mubr.f32.gmra.mrb[0].mxu0 %v1657
        %v1784 = vpop.f32.mrb[0].mxu0
        %v1785 = vadd.f32 0.0, %v1784
        %v1786 = vpop.f32.mrb[0].mxu0
        %v1787 = vadd.f32 0.0, %v1786
        %1788 = vmatprep.mubr.f32.mxu0 %v1663
        %1789 = vmatmul.mubr.f32.gmra.mrb[0].mxu0 %v1661
        %v1790 = vpop.f32.mrb[0].mxu0
        %v1791 = vadd.f32 0.0, %v1790
        %v1792 = vpop.f32.mrb[0].mxu0
        %v1793 = vadd.f32 0.0, %v1792
        %1794 = vmatprep.mubr.f32.mxu0 %v1667
        %1795 = vmatmul.mubr.f32.gmra.mrb[0].mxu0 %v1665
        %v1796 = vpop.f32.mrb[0].mxu0
        %v1797 = vadd.f32 0.0, %v1796
        %v1798 = vpop.f32.mrb[0].mxu0
        %v1799 = vadd.f32 0.0, %v1798
        %1800 = vmatprep.mubr.f32.mxu0 %v1671
        %1801 = vmatmul.mubr.f32.gmra.mrb[0].mxu0 %v1669
        %v1802 = vpop.f32.mrb[0].mxu0
        %v1803 = vadd.f32 0.0, %v1802
        %v1804 = vpop.f32.mrb[0].mxu0
        %v1805 = vadd.f32 0.0, %v1804
        %1806 = vmatprep.mubr.f32.mxu0 %v1675
        %1807 = vmatmul.mubr.f32.gmra.mrb[0].mxu0 %v1673
        %v1808 = vpop.f32.mrb[0].mxu0
        %v1809 = vadd.f32 0.0, %v1808
        %v1810 = vpop.f32.mrb[0].mxu0
        %v1811 = vadd.f32 0.0, %v1810
        %1812 = vmatprep.mubr.f32.mxu0 %v1679
        %1813 = vmatmul.mubr.f32.gmra.mrb[0].mxu0 %v1677
        %v1814 = vpop.f32.mrb[0].mxu0
        %v1815 = vadd.f32 0.0, %v1814
        %v1816 = vpop.f32.mrb[0].mxu0
        %v1817 = vadd.f32 0.0, %v1816
        %1818 = vmatprep.mubr.f32.mxu0 %v1683
        %1819 = vmatmul.mubr.f32.gmra.mrb[0].mxu0 %v1681
        %v1820 = vpop.f32.mrb[0].mxu0
        %v1821 = vadd.f32 0.0, %v1820
        %v1822 = vpop.f32.mrb[0].mxu0
        %v1823 = vadd.f32 0.0, %v1822
        %1824 = vmatprep.mubr.f32.mxu0 %v1687
        %1825 = vmatmul.mubr.f32.gmra.mrb[0].mxu0 %v1685
        %v1826 = vpop.f32.mrb[0].mxu0
        %v1827 = vadd.f32 0.0, %v1826
        %v1828 = vpop.f32.mrb[0].mxu0
        %v1829 = vadd.f32 0.0, %v1828
        %1830 = vmatprep.mubr.f32.mxu0 %v1691
        %1831 = vmatmul.mubr.f32.gmra.mrb[0].mxu0 %v1689
        %v1832 = vpop.f32.mrb[0].mxu0
        %v1833 = vadd.f32 0.0, %v1832
        %v1834 = vpop.f32.mrb[0].mxu0
        %v1835 = vadd.f32 0.0, %v1834
        %1836 = vdwg.mxu0
        %v1837 = vadd.f32 %v1483, %v1779
        %v1838 = vadd.f32 %v1485, %v1781
        %v1839 = vadd.f32 %v1489, %v1785
        %v1840 = vadd.f32 %v1491, %v1787
        %v1841 = vadd.f32 %v1495, %v1791
        %v1842 = vadd.f32 %v1497, %v1793
        %v1843 = vadd.f32 %v1501, %v1797
        %v1844 = vadd.f32 %v1503, %v1799
        %v1845 = vadd.f32 %v1507, %v1803
        %v1846 = vadd.f32 %v1509, %v1805
        %v1847 = vadd.f32 %v1513, %v1809
        %v1848 = vadd.f32 %v1515, %v1811
        %v1849 = vadd.f32 %v1519, %v1815
        %v1850 = vadd.f32 %v1521, %v1817
        %v1851 = vadd.f32 %v1525, %v1821
        %v1852 = vadd.f32 %v1527, %v1823
        %v1853 = vadd.f32 %v1531, %v1827
        %v1854 = vadd.f32 %v1533, %v1829
        %v1855 = vadd.f32 %v1537, %v1833
        %v1856 = vadd.f32 %v1539, %v1835
        %v1857 = vld [vmem:[#allocation9] sm:$0x3]
        %v1859 = vlaneseq
        %v1860 = vshrl.u32 %v1859, 7
        %v1861 = vsub.s32 0, %v1860
        %v1862 = vrot.slane %v1857, %v1861
        %v1863 = vlaneseq
        %v1864 = vshrl.u32 %v1863, 7
        %v1865 = vsub.s32 1, %v1864
        %v1866 = vrot.slane %v1857, %v1865
        %v1869 = vadd.f32 %v1837, %v1862
        %v1870 = vadd.f32 %v1838, %v1866
        %v1871 = vadd.f32 %v1839, %v1862
        %v1872 = vadd.f32 %v1840, %v1866
        %v1873 = vadd.f32 %v1841, %v1862
        %v1874 = vadd.f32 %v1842, %v1866
        %v1875 = vadd.f32 %v1843, %v1862
        %v1876 = vadd.f32 %v1844, %v1866
        %v1877 = vadd.f32 %v1845, %v1862
        %v1878 = vadd.f32 %v1846, %v1866
        %v1879 = vadd.f32 %v1847, %v1862
        %v1880 = vadd.f32 %v1848, %v1866
        %v1881 = vadd.f32 %v1849, %v1862
        %v1882 = vadd.f32 %v1850, %v1866
        %v1883 = vadd.f32 %v1851, %v1862
        %v1884 = vadd.f32 %v1852, %v1866
        %v1885 = vadd.f32 %v1853, %v1862
        %v1886 = vadd.f32 %v1854, %v1866
        %v1887 = vadd.f32 %v1855, %v1862
        %v1888 = vadd.f32 %v1856, %v1866
        %v1889 = vmax.f32 %v1869, 0.0
        %v1890 = vmax.f32 %v1870, 0.0
        %v1891 = vmax.f32 %v1871, 0.0
        %v1892 = vmax.f32 %v1872, 0.0
        %v1893 = vmax.f32 %v1873, 0.0
        %v1894 = vmax.f32 %v1874, 0.0
        %v1895 = vmax.f32 %v1875, 0.0
        %v1896 = vmax.f32 %v1876, 0.0
        %v1897 = vmax.f32 %v1877, 0.0
        %v1898 = vmax.f32 %v1878, 0.0
        %v1899 = vmax.f32 %v1879, 0.0
        %v1900 = vmax.f32 %v1880, 0.0
        %v1901 = vmax.f32 %v1881, 0.0
        %v1902 = vmax.f32 %v1882, 0.0
        %v1903 = vmax.f32 %v1883, 0.0
        %v1904 = vmax.f32 %v1884, 0.0
        %v1905 = vmax.f32 %v1885, 0.0
        %v1906 = vmax.f32 %v1886, 0.0
        %v1907 = vmax.f32 %v1887, 0.0
        %v1908 = vmax.f32 %v1888, 0.0
        %v1909 = vsel %vm678, %v1889, 0.0
        %v1910 = vsel %vm678, %v1890, 0.0
        %v1911 = vsel %vm679, %v1891, 0.0
        %v1912 = vsel %vm679, %v1892, 0.0
        %v1913 = vsel %vm680, %v1893, 0.0
        %v1914 = vsel %vm680, %v1894, 0.0
        %v1915 = vsel %vm681, %v1895, 0.0
        %v1916 = vsel %vm681, %v1896, 0.0
        %v1917 = vsel %vm682, %v1897, 0.0
        %v1918 = vsel %vm682, %v1898, 0.0
        %v1919 = vsel %vm683, %v1899, 0.0
        %v1920 = vsel %vm683, %v1900, 0.0
        %v1921 = vsel %vm684, %v1901, 0.0
        %v1922 = vsel %vm684, %v1902, 0.0
        %v1923 = vsel %vm685, %v1903, 0.0
        %v1924 = vsel %vm685, %v1904, 0.0
        %v1925 = vsel %vm686, %v1905, 0.0
        %v1926 = vsel %vm686, %v1906, 0.0
        %v1927 = vsel %vm687, %v1907, 0.0
        %v1928 = vsel %vm687, %v1908, 0.0
        %1929 = vst [vmem:[#allocation3 + $0x10] sm:$0xff] %v1909
        %1930 = vst [vmem:[#allocation3 + $0x18] sm:$0xff] %v1910
        %1931 = vst [vmem:[#allocation3 + $0x20] sm:$0xff] %v1911
        %1932 = vst [vmem:[#allocation3 + $0x28] sm:$0xff] %v1912
        %1933 = vst [vmem:[#allocation3 + $0x30] sm:$0xff] %v1913
        %1934 = vst [vmem:[#allocation3 + $0x38] sm:$0xff] %v1914
        %1935 = vst [vmem:[#allocation3 + $0x40] sm:$0xff] %v1915
        %1936 = vst [vmem:[#allocation3 + $0x48] sm:$0xff] %v1916
        %1937 = vst [vmem:[#allocation3 + $0x50] sm:$0xff] %v1917
        %1938 = vst [vmem:[#allocation3 + $0x58] sm:$0xff] %v1918
        %1939 = vst [vmem:[#allocation3 + $0x60] sm:$0xff] %v1919
        %1940 = vst [vmem:[#allocation3 + $0x68] sm:$0xff] %v1920
        %1941 = vst [vmem:[#allocation3 + $0x70] sm:$0xff] %v1921
        %1942 = vst [vmem:[#allocation3 + $0x78] sm:$0xff] %v1922
        %1943 = vst [vmem:[#allocation3 + $0x80] sm:$0xff] %v1923
        %1944 = vst [vmem:[#allocation3 + $0x88] sm:$0xff] %v1924
        %1945 = vst [vmem:[#allocation3 + $0x90] sm:$0xff] %v1925
        %1946 = vst [vmem:[#allocation3 + $0x98] sm:$0xff] %v1926
        %1947 = vst [vmem:[#allocation3 + $0xa0] sm:$0xff] %v1927
        %1948 = vst [vmem:[#allocation3 + $0xa8] sm:$0xff] %v1928
        %v1949 = vld [vmem:[#allocation3] sm:$0xc0]
        %v1950 = vld [vmem:[#allocation3 + $0x8] sm:$0xc0]
        %v1951 = vld [vmem:[#allocation3 + $0x10] sm:$0xff]
        %v1952 = vld [vmem:[#allocation3 + $0x18] sm:$0xff]
        %v1953 = vld [vmem:[#allocation3 + $0x20] sm:$0xff]
        %v1954 = vld [vmem:[#allocation3 + $0x28] sm:$0xff]
        %v1955 = vld [vmem:[#allocation3 + $0x30] sm:$0xff]
        %v1956 = vld [vmem:[#allocation3 + $0x38] sm:$0xff]
        %v1957 = vld [vmem:[#allocation3 + $0x40] sm:$0xff]
        %v1958 = vld [vmem:[#allocation3 + $0x48] sm:$0xff]
        %v1959 = vld [vmem:[#allocation3 + $0x50] sm:$0xff]
        %v1960 = vld [vmem:[#allocation3 + $0x58] sm:$0xff]
        %v1961 = vld [vmem:[#allocation3 + $0x60] sm:$0xff]
        %v1962 = vld [vmem:[#allocation3 + $0x68] sm:$0xff]
        %v1963 = vld [vmem:[#allocation3 + $0x70] sm:$0xff]
        %v1964 = vld [vmem:[#allocation3 + $0x78] sm:$0xff]
        %v1965 = vld [vmem:[#allocation3 + $0x80] sm:$0xff]
        %v1966 = vld [vmem:[#allocation3 + $0x88] sm:$0xff]
        %v1967 = vld [vmem:[#allocation3 + $0x90] sm:$0xff]
        %v1968 = vld [vmem:[#allocation3 + $0x98] sm:$0xff]
        %v1969 = vld [vmem:[#allocation3 + $0xa0] sm:$0x3f]
        %v1970 = vld [vmem:[#allocation3 + $0xa8] sm:$0x3f]
        %v1971 = vld [vmem:[#allocation11] sm:$0xff]
        %v1972 = vld [vmem:[#allocation11 + $0x8] sm:$0xff]
        %v1973 = vld [vmem:[#allocation11 + $0x10] sm:$0xff]
        %v1974 = vld [vmem:[#allocation11 + $0x18] sm:$0xff]
        %v1975 = vld [vmem:[#allocation11 + $0x20] sm:$0xff]
        %v1976 = vld [vmem:[#allocation11 + $0x28] sm:$0xff]
        %v1977 = vld [vmem:[#allocation11 + $0x30] sm:$0xff]
        %v1978 = vld [vmem:[#allocation11 + $0x38] sm:$0xff]
        %v1979 = vld [vmem:[#allocation11 + $0x40] sm:$0xff]
        %v1980 = vld [vmem:[#allocation11 + $0x48] sm:$0xff]
        %v1981 = vld [vmem:[#allocation11 + $0x50] sm:$0xff]
        %v1982 = vld [vmem:[#allocation11 + $0x58] sm:$0xff]
        %v1983 = vld [vmem:[#allocation11 + $0x60] sm:$0xff]
        %v1984 = vld [vmem:[#allocation11 + $0x68] sm:$0xff]
        %v1985 = vld [vmem:[#allocation11 + $0x70] sm:$0xff]
        %v1986 = vld [vmem:[#allocation11 + $0x78] sm:$0xff]
        %v1987 = vld [vmem:[#allocation11 + $0x80] sm:$0xff]
        %v1988 = vld [vmem:[#allocation11 + $0x88] sm:$0xff]
        %v1989 = vld [vmem:[#allocation11 + $0x90] sm:$0xff]
        %v1990 = vld [vmem:[#allocation11 + $0x98] sm:$0xff]
        %v1991 = vld [vmem:[#allocation11 + $0xa0] sm:$0xff]
        %v1992 = vld [vmem:[#allocation11 + $0xa8] sm:$0xff]
        %v1993 = vld [vmem:[#allocation11 + $0xb0] sm:$0xff]
        %v1994 = vld [vmem:[#allocation11 + $0xb8] sm:$0xff]
        %v1995 = vld [vmem:[#allocation11 + $0xc0] sm:$0xff]
        %v1996 = vld [vmem:[#allocation11 + $0xc8] sm:$0xff]
        %v1997 = vld [vmem:[#allocation11 + $0xd0] sm:$0xff]
        %v1998 = vld [vmem:[#allocation11 + $0xd8] sm:$0xff]
        %v1999 = vld [vmem:[#allocation11 + $0xe0] sm:$0xff]
        %v2000 = vld [vmem:[#allocation11 + $0xe8] sm:$0xff]
        %v2001 = vld [vmem:[#allocation11 + $0xf0] sm:$0xff]
        %v2002 = vld [vmem:[#allocation11 + $0xf8] sm:$0xff]
        %v2003 = vld [vmem:[#allocation11 + $0x100] sm:$0xff]
        %v2004 = vld [vmem:[#allocation11 + $0x108] sm:$0xff]
        %v2005 = vld [vmem:[#allocation11 + $0x110] sm:$0xff]
        %v2006 = vld [vmem:[#allocation11 + $0x118] sm:$0xff]
        %v2007 = vld [vmem:[#allocation11 + $0x120] sm:$0xff]
        %v2008 = vld [vmem:[#allocation11 + $0x128] sm:$0xff]
        %v2009 = vld [vmem:[#allocation11 + $0x130] sm:$0xff]
        %v2010 = vld [vmem:[#allocation11 + $0x138] sm:$0xff]
        %v2011 = vld [vmem:[#allocation11 + $0x140] sm:$0xff]
        %v2012 = vld [vmem:[#allocation11 + $0x148] sm:$0xff]
        %v2013 = vld [vmem:[#allocation11 + $0x150] sm:$0xff]
        %v2014 = vld [vmem:[#allocation11 + $0x158] sm:$0xff]
        %v2015 = vld [vmem:[#allocation11 + $0x160] sm:$0xff]
        %v2016 = vld [vmem:[#allocation11 + $0x168] sm:$0xff]
        %v2017 = vld [vmem:[#allocation11 + $0x170] sm:$0xff]
        %v2018 = vld [vmem:[#allocation11 + $0x178] sm:$0xff]
        %v2019 = vld [vmem:[#allocation11 + $0x180] sm:$0xff]
        %v2020 = vld [vmem:[#allocation11 + $0x188] sm:$0xff]
        %v2021 = vld [vmem:[#allocation11 + $0x190] sm:$0xff]
        %v2022 = vld [vmem:[#allocation11 + $0x198] sm:$0xff]
        %v2023 = vld [vmem:[#allocation11 + $0x1a0] sm:$0xff]
        %v2024 = vld [vmem:[#allocation11 + $0x1a8] sm:$0xff]
        %v2025 = vld [vmem:[#allocation11 + $0x1b0] sm:$0xff]
        %v2026 = vld [vmem:[#allocation11 + $0x1b8] sm:$0xff]
        %v2027 = vld [vmem:[#allocation11 + $0x1c0] sm:$0xff]
        %v2028 = vld [vmem:[#allocation11 + $0x1c8] sm:$0xff]
        %v2029 = vld [vmem:[#allocation11 + $0x1d0] sm:$0xff]
        %v2030 = vld [vmem:[#allocation11 + $0x1d8] sm:$0xff]
        %v2031 = vld [vmem:[#allocation11 + $0x1e0] sm:$0xff]
        %v2032 = vld [vmem:[#allocation11 + $0x1e8] sm:$0xff]
        %v2033 = vld [vmem:[#allocation11 + $0x1f0] sm:$0xff]
        %v2034 = vld [vmem:[#allocation11 + $0x1f8] sm:$0xff]
        %v2035 = vld [vmem:[#allocation3] sm:$0x80]
        %v2036 = vld [vmem:[#allocation3 + $0x8] sm:$0x80]
        %v2037 = vld [vmem:[#allocation3 + $0xa0] sm:$0x7f]
        %v2038 = vld [vmem:[#allocation3 + $0xa8] sm:$0x7f]
        %v2039 = vld [vmem:[#allocation11 + $0x200] sm:$0xff]
        %v2040 = vld [vmem:[#allocation11 + $0x208] sm:$0xff]
        %v2041 = vld [vmem:[#allocation11 + $0x210] sm:$0xff]
        %v2042 = vld [vmem:[#allocation11 + $0x218] sm:$0xff]
        %v2043 = vld [vmem:[#allocation11 + $0x220] sm:$0xff]
        %v2044 = vld [vmem:[#allocation11 + $0x228] sm:$0xff]
        %v2045 = vld [vmem:[#allocation11 + $0x230] sm:$0xff]
        %v2046 = vld [vmem:[#allocation11 + $0x238] sm:$0xff]
        %v2047 = vld [vmem:[#allocation11 + $0x240] sm:$0xff]
        %v2048 = vld [vmem:[#allocation11 + $0x248] sm:$0xff]
        %v2049 = vld [vmem:[#allocation11 + $0x250] sm:$0xff]
        %v2050 = vld [vmem:[#allocation11 + $0x258] sm:$0xff]
        %v2051 = vld [vmem:[#allocation11 + $0x260] sm:$0xff]
        %v2052 = vld [vmem:[#allocation11 + $0x268] sm:$0xff]
        %v2053 = vld [vmem:[#allocation11 + $0x270] sm:$0xff]
        %v2054 = vld [vmem:[#allocation11 + $0x278] sm:$0xff]
        %v2055 = vld [vmem:[#allocation11 + $0x280] sm:$0xff]
        %v2056 = vld [vmem:[#allocation11 + $0x288] sm:$0xff]
        %v2057 = vld [vmem:[#allocation11 + $0x290] sm:$0xff]
        %v2058 = vld [vmem:[#allocation11 + $0x298] sm:$0xff]
        %v2059 = vld [vmem:[#allocation11 + $0x2a0] sm:$0xff]
        %v2060 = vld [vmem:[#allocation11 + $0x2a8] sm:$0xff]
        %v2061 = vld [vmem:[#allocation11 + $0x2b0] sm:$0xff]
        %v2062 = vld [vmem:[#allocation11 + $0x2b8] sm:$0xff]
        %v2063 = vld [vmem:[#allocation11 + $0x2c0] sm:$0xff]
        %v2064 = vld [vmem:[#allocation11 + $0x2c8] sm:$0xff]
        %v2065 = vld [vmem:[#allocation11 + $0x2d0] sm:$0xff]
        %v2066 = vld [vmem:[#allocation11 + $0x2d8] sm:$0xff]
        %v2067 = vld [vmem:[#allocation11 + $0x2e0] sm:$0xff]
        %v2068 = vld [vmem:[#allocation11 + $0x2e8] sm:$0xff]
        %v2069 = vld [vmem:[#allocation11 + $0x2f0] sm:$0xff]
        %v2070 = vld [vmem:[#allocation11 + $0x2f8] sm:$0xff]
        %v2071 = vld [vmem:[#allocation11 + $0x300] sm:$0xff]
        %v2072 = vld [vmem:[#allocation11 + $0x308] sm:$0xff]
        %v2073 = vld [vmem:[#allocation11 + $0x310] sm:$0xff]
        %v2074 = vld [vmem:[#allocation11 + $0x318] sm:$0xff]
        %v2075 = vld [vmem:[#allocation11 + $0x320] sm:$0xff]
        %v2076 = vld [vmem:[#allocation11 + $0x328] sm:$0xff]
        %v2077 = vld [vmem:[#allocation11 + $0x330] sm:$0xff]
        %v2078 = vld [vmem:[#allocation11 + $0x338] sm:$0xff]
        %v2079 = vld [vmem:[#allocation11 + $0x340] sm:$0xff]
        %v2080 = vld [vmem:[#allocation11 + $0x348] sm:$0xff]
        %v2081 = vld [vmem:[#allocation11 + $0x350] sm:$0xff]
        %v2082 = vld [vmem:[#allocation11 + $0x358] sm:$0xff]
        %v2083 = vld [vmem:[#allocation11 + $0x360] sm:$0xff]
        %v2084 = vld [vmem:[#allocation11 + $0x368] sm:$0xff]
        %v2085 = vld [vmem:[#allocation11 + $0x370] sm:$0xff]
        %v2086 = vld [vmem:[#allocation11 + $0x378] sm:$0xff]
        %v2087 = vld [vmem:[#allocation11 + $0x380] sm:$0xff]
        %v2088 = vld [vmem:[#allocation11 + $0x388] sm:$0xff]
        %v2089 = vld [vmem:[#allocation11 + $0x390] sm:$0xff]
        %v2090 = vld [vmem:[#allocation11 + $0x398] sm:$0xff]
        %v2091 = vld [vmem:[#allocation11 + $0x3a0] sm:$0xff]
        %v2092 = vld [vmem:[#allocation11 + $0x3a8] sm:$0xff]
        %v2093 = vld [vmem:[#allocation11 + $0x3b0] sm:$0xff]
        %v2094 = vld [vmem:[#allocation11 + $0x3b8] sm:$0xff]
        %v2095 = vld [vmem:[#allocation11 + $0x3c0] sm:$0xff]
        %v2096 = vld [vmem:[#allocation11 + $0x3c8] sm:$0xff]
        %v2097 = vld [vmem:[#allocation11 + $0x3d0] sm:$0xff]
        %v2098 = vld [vmem:[#allocation11 + $0x3d8] sm:$0xff]
        %v2099 = vld [vmem:[#allocation11 + $0x3e0] sm:$0xff]
        %v2100 = vld [vmem:[#allocation11 + $0x3e8] sm:$0xff]
        %v2101 = vld [vmem:[#allocation11 + $0x3f0] sm:$0xff]
        %v2102 = vld [vmem:[#allocation11 + $0x3f8] sm:$0xff]
        %v2125 = vrot.slane %v2035, 7
        %v2126 = vrot.slane %v1951, 7
        %v2127 = vsel %vm1353, %v2125, %v2126
        %v2128 = vrot.slane %v2036, 7
        %v2129 = vrot.slane %v1952, 7
        %v2130 = vsel %vm1353, %v2128, %v2129
        %v2131 = vrot.slane %v1953, 7
        %v2132 = vsel %vm1353, %v2126, %v2131
        %v2133 = vrot.slane %v1954, 7
        %v2134 = vsel %vm1353, %v2129, %v2133
        %v2135 = vrot.slane %v1955, 7
        %v2136 = vsel %vm1353, %v2131, %v2135
        %v2137 = vrot.slane %v1956, 7
        %v2138 = vsel %vm1353, %v2133, %v2137
        %v2139 = vrot.slane %v1957, 7
        %v2140 = vsel %vm1353, %v2135, %v2139
        %v2141 = vrot.slane %v1958, 7
        %v2142 = vsel %vm1353, %v2137, %v2141
        %v2143 = vrot.slane %v1959, 7
        %v2144 = vsel %vm1353, %v2139, %v2143
        %v2145 = vrot.slane %v1960, 7
        %v2146 = vsel %vm1353, %v2141, %v2145
        %v2147 = vrot.slane %v1961, 7
        %v2148 = vsel %vm1353, %v2143, %v2147
        %v2149 = vrot.slane %v1962, 7
        %v2150 = vsel %vm1353, %v2145, %v2149
        %v2151 = vrot.slane %v1963, 7
        %v2152 = vsel %vm1353, %v2147, %v2151
        %v2153 = vrot.slane %v1964, 7
        %v2154 = vsel %vm1353, %v2149, %v2153
        %v2155 = vrot.slane %v1965, 7
        %v2156 = vsel %vm1353, %v2151, %v2155
        %v2157 = vrot.slane %v1966, 7
        %v2158 = vsel %vm1353, %v2153, %v2157
        %v2159 = vrot.slane %v1967, 7
        %v2160 = vsel %vm1353, %v2155, %v2159
        %v2161 = vrot.slane %v1968, 7
        %v2162 = vsel %vm1353, %v2157, %v2161
        %v2163 = vrot.slane %v2037, 7
        %v2164 = vsel %vm1353, %v2159, %v2163
        %v2165 = vrot.slane %v2038, 7
        %v2166 = vsel %vm1353, %v2161, %v2165
        %2187 = vmatprep.subr.mxu0 %v2040
        %2188 = vmatpush1.msra.mxu0 %v2039
        %2189 = vmatprep.subr.mxu0 %v2042
        %2190 = vmatpush1.msra.mxu0 %v2041
        %2191 = vmatprep.subr.mxu0 %v2044
        %2192 = vmatpush1.msra.mxu0 %v2043
        %2193 = vmatprep.subr.mxu0 %v2046
        %2194 = vmatpush1.msra.mxu0 %v2045
        %2195 = vmatprep.subr.mxu0 %v2048
        %2196 = vmatpush1.msra.mxu0 %v2047
        %2197 = vmatprep.subr.mxu0 %v2050
        %2198 = vmatpush1.msra.mxu0 %v2049
        %2199 = vmatprep.subr.mxu0 %v2052
        %2200 = vmatpush1.msra.mxu0 %v2051
        %2201 = vmatprep.subr.mxu0 %v2054
        %2202 = vmatpush1.msra.mxu0 %v2053
        %2203 = vmatprep.subr.mxu0 %v2056
        %2204 = vmatpush1.msra.mxu0 %v2055
        %2205 = vmatprep.subr.mxu0 %v2058
        %2206 = vmatpush1.msra.mxu0 %v2057
        %2207 = vmatprep.subr.mxu0 %v2060
        %2208 = vmatpush1.msra.mxu0 %v2059
        %2209 = vmatprep.subr.mxu0 %v2062
        %2210 = vmatpush1.msra.mxu0 %v2061
        %2211 = vmatprep.subr.mxu0 %v2064
        %2212 = vmatpush1.msra.mxu0 %v2063
        %2213 = vmatprep.subr.mxu0 %v2066
        %2214 = vmatpush1.msra.mxu0 %v2065
        %2215 = vmatprep.subr.mxu0 %v2068
        %2216 = vmatpush1.msra.mxu0 %v2067
        %2217 = vmatprep.subr.mxu0 %v2070
        %2218 = vmatpush1.msra.mxu0 %v2069
        %2219 = vmatprep.subr.mxu0 %v2072
        %2220 = vmatpush1.msra.mxu0 %v2071
        %2221 = vmatprep.subr.mxu0 %v2074
        %2222 = vmatpush1.msra.mxu0 %v2073
        %2223 = vmatprep.subr.mxu0 %v2076
        %2224 = vmatpush1.msra.mxu0 %v2075
        %2225 = vmatprep.subr.mxu0 %v2078
        %2226 = vmatpush1.msra.mxu0 %v2077
        %2227 = vmatprep.subr.mxu0 %v2080
        %2228 = vmatpush1.msra.mxu0 %v2079
        %2229 = vmatprep.subr.mxu0 %v2082
        %2230 = vmatpush1.msra.mxu0 %v2081
        %2231 = vmatprep.subr.mxu0 %v2084
        %2232 = vmatpush1.msra.mxu0 %v2083
        %2233 = vmatprep.subr.mxu0 %v2086
        %2234 = vmatpush1.msra.mxu0 %v2085
        %2235 = vmatprep.subr.mxu0 %v2088
        %2236 = vmatpush1.msra.mxu0 %v2087
        %2237 = vmatprep.subr.mxu0 %v2090
        %2238 = vmatpush1.msra.mxu0 %v2089
        %2239 = vmatprep.subr.mxu0 %v2092
        %2240 = vmatpush1.msra.mxu0 %v2091
        %2241 = vmatprep.subr.mxu0 %v2094
        %2242 = vmatpush1.msra.mxu0 %v2093
        %2243 = vmatprep.subr.mxu0 %v2096
        %2244 = vmatpush1.msra.mxu0 %v2095
        %2245 = vmatprep.subr.mxu0 %v2098
        %2246 = vmatpush1.msra.mxu0 %v2097
        %2247 = vmatprep.subr.mxu0 %v2100
        %2248 = vmatpush1.msra.mxu0 %v2099
        %2249 = vmatprep.subr.mxu0 %v2102
        %2250 = vmatpush1.msra.mxu0 %v2101
        %2251 = vmatprep.mubr.f32.mxu0 %v2130
        %2252 = vmatmul.mubr.f32.gmra.mrb[0].mxu0 %v2127
        %v2253 = vpop.f32.mrb[0].mxu0
        %v2254 = vadd.f32 0.0, %v2253
        %v2255 = vpop.f32.mrb[0].mxu0
        %v2256 = vadd.f32 0.0, %v2255
        %2257 = vmatprep.mubr.f32.mxu0 %v2134
        %2258 = vmatmul.mubr.f32.gmra.mrb[0].mxu0 %v2132
        %v2259 = vpop.f32.mrb[0].mxu0
        %v2260 = vadd.f32 0.0, %v2259
        %v2261 = vpop.f32.mrb[0].mxu0
        %v2262 = vadd.f32 0.0, %v2261
        %2263 = vmatprep.mubr.f32.mxu0 %v2138
        %2264 = vmatmul.mubr.f32.gmra.mrb[0].mxu0 %v2136
        %v2265 = vpop.f32.mrb[0].mxu0
        %v2266 = vadd.f32 0.0, %v2265
        %v2267 = vpop.f32.mrb[0].mxu0
        %v2268 = vadd.f32 0.0, %v2267
        %2269 = vmatprep.mubr.f32.mxu0 %v2142
        %2270 = vmatmul.mubr.f32.gmra.mrb[0].mxu0 %v2140
        %v2271 = vpop.f32.mrb[0].mxu0
        %v2272 = vadd.f32 0.0, %v2271
        %v2273 = vpop.f32.mrb[0].mxu0
        %v2274 = vadd.f32 0.0, %v2273
        %2275 = vmatprep.mubr.f32.mxu0 %v2146
        %2276 = vmatmul.mubr.f32.gmra.mrb[0].mxu0 %v2144
        %v2277 = vpop.f32.mrb[0].mxu0
        %v2278 = vadd.f32 0.0, %v2277
        %v2279 = vpop.f32.mrb[0].mxu0
        %v2280 = vadd.f32 0.0, %v2279
        %2281 = vmatprep.mubr.f32.mxu0 %v2150
        %2282 = vmatmul.mubr.f32.gmra.mrb[0].mxu0 %v2148
        %v2283 = vpop.f32.mrb[0].mxu0
        %v2284 = vadd.f32 0.0, %v2283
        %v2285 = vpop.f32.mrb[0].mxu0
        %v2286 = vadd.f32 0.0, %v2285
        %2287 = vmatprep.mubr.f32.mxu0 %v2154
        %2288 = vmatmul.mubr.f32.gmra.mrb[0].mxu0 %v2152
        %v2289 = vpop.f32.mrb[0].mxu0
        %v2290 = vadd.f32 0.0, %v2289
        %v2291 = vpop.f32.mrb[0].mxu0
        %v2292 = vadd.f32 0.0, %v2291
        %2293 = vmatprep.mubr.f32.mxu0 %v2158
        %2294 = vmatmul.mubr.f32.gmra.mrb[0].mxu0 %v2156
        %v2295 = vpop.f32.mrb[0].mxu0
        %v2296 = vadd.f32 0.0, %v2295
        %v2297 = vpop.f32.mrb[0].mxu0
        %v2298 = vadd.f32 0.0, %v2297
        %2299 = vmatprep.mubr.f32.mxu0 %v2162
        %2300 = vmatmul.mubr.f32.gmra.mrb[0].mxu0 %v2160
        %v2301 = vpop.f32.mrb[0].mxu0
        %v2302 = vadd.f32 0.0, %v2301
        %v2303 = vpop.f32.mrb[0].mxu0
        %v2304 = vadd.f32 0.0, %v2303
        %2305 = vmatprep.mubr.f32.mxu0 %v2166
        %2306 = vmatmul.mubr.f32.gmra.mrb[0].mxu0 %v2164
        %v2307 = vpop.f32.mrb[0].mxu0
        %v2308 = vadd.f32 0.0, %v2307
        %v2309 = vpop.f32.mrb[0].mxu0
        %v2310 = vadd.f32 0.0, %v2309
        %2311 = vdwg.mxu0
        %vm2316 = vcmask 1041408
        %v2317 = vrot.slane %v1949, 6
        %v2318 = vrot.slane %v1951, 6
        %v2319 = vsel %vm2316, %v2317, %v2318
        %v2320 = vrot.slane %v1950, 6
        %v2321 = vrot.slane %v1952, 6
        %v2322 = vsel %vm2316, %v2320, %v2321
        %v2323 = vrot.slane %v1953, 6
        %v2324 = vsel %vm2316, %v2318, %v2323
        %v2325 = vrot.slane %v1954, 6
        %v2326 = vsel %vm2316, %v2321, %v2325
        %v2327 = vrot.slane %v1955, 6
        %v2328 = vsel %vm2316, %v2323, %v2327
        %v2329 = vrot.slane %v1956, 6
        %v2330 = vsel %vm2316, %v2325, %v2329
        %v2331 = vrot.slane %v1957, 6
        %v2332 = vsel %vm2316, %v2327, %v2331
        %v2333 = vrot.slane %v1958, 6
        %v2334 = vsel %vm2316, %v2329, %v2333
        %v2335 = vrot.slane %v1959, 6
        %v2336 = vsel %vm2316, %v2331, %v2335
        %v2337 = vrot.slane %v1960, 6
        %v2338 = vsel %vm2316, %v2333, %v2337
        %v2339 = vrot.slane %v1961, 6
        %v2340 = vsel %vm2316, %v2335, %v2339
        %v2341 = vrot.slane %v1962, 6
        %v2342 = vsel %vm2316, %v2337, %v2341
        %v2343 = vrot.slane %v1963, 6
        %v2344 = vsel %vm2316, %v2339, %v2343
        %v2345 = vrot.slane %v1964, 6
        %v2346 = vsel %vm2316, %v2341, %v2345
        %v2347 = vrot.slane %v1965, 6
        %v2348 = vsel %vm2316, %v2343, %v2347
        %v2349 = vrot.slane %v1966, 6
        %v2350 = vsel %vm2316, %v2345, %v2349
        %v2351 = vrot.slane %v1967, 6
        %v2352 = vsel %vm2316, %v2347, %v2351
        %v2353 = vrot.slane %v1968, 6
        %v2354 = vsel %vm2316, %v2349, %v2353
        %v2355 = vrot.slane %v1969, 6
        %v2356 = vsel %vm2316, %v2351, %v2355
        %v2357 = vrot.slane %v1970, 6
        %v2358 = vsel %vm2316, %v2353, %v2357
        %2379 = vmatprep.subr.mxu0 %v1972
        %2380 = vmatpush1.msra.mxu0 %v1971
        %2381 = vmatprep.subr.mxu0 %v1974
        %2382 = vmatpush1.msra.mxu0 %v1973
        %2383 = vmatprep.subr.mxu0 %v1976
        %2384 = vmatpush1.msra.mxu0 %v1975
        %2385 = vmatprep.subr.mxu0 %v1978
        %2386 = vmatpush1.msra.mxu0 %v1977
        %2387 = vmatprep.subr.mxu0 %v1980
        %2388 = vmatpush1.msra.mxu0 %v1979
        %2389 = vmatprep.subr.mxu0 %v1982
        %2390 = vmatpush1.msra.mxu0 %v1981
        %2391 = vmatprep.subr.mxu0 %v1984
        %2392 = vmatpush1.msra.mxu0 %v1983
        %2393 = vmatprep.subr.mxu0 %v1986
        %2394 = vmatpush1.msra.mxu0 %v1985
        %2395 = vmatprep.subr.mxu0 %v1988
        %2396 = vmatpush1.msra.mxu0 %v1987
        %2397 = vmatprep.subr.mxu0 %v1990
        %2398 = vmatpush1.msra.mxu0 %v1989
        %2399 = vmatprep.subr.mxu0 %v1992
        %2400 = vmatpush1.msra.mxu0 %v1991
        %2401 = vmatprep.subr.mxu0 %v1994
        %2402 = vmatpush1.msra.mxu0 %v1993
        %2403 = vmatprep.subr.mxu0 %v1996
        %2404 = vmatpush1.msra.mxu0 %v1995
        %2405 = vmatprep.subr.mxu0 %v1998
        %2406 = vmatpush1.msra.mxu0 %v1997
        %2407 = vmatprep.subr.mxu0 %v2000
        %2408 = vmatpush1.msra.mxu0 %v1999
        %2409 = vmatprep.subr.mxu0 %v2002
        %2410 = vmatpush1.msra.mxu0 %v2001
        %2411 = vmatprep.subr.mxu0 %v2004
        %2412 = vmatpush1.msra.mxu0 %v2003
        %2413 = vmatprep.subr.mxu0 %v2006
        %2414 = vmatpush1.msra.mxu0 %v2005
        %2415 = vmatprep.subr.mxu0 %v2008
        %2416 = vmatpush1.msra.mxu0 %v2007
        %2417 = vmatprep.subr.mxu0 %v2010
        %2418 = vmatpush1.msra.mxu0 %v2009
        %2419 = vmatprep.subr.mxu0 %v2012
        %2420 = vmatpush1.msra.mxu0 %v2011
        %2421 = vmatprep.subr.mxu0 %v2014
        %2422 = vmatpush1.msra.mxu0 %v2013
        %2423 = vmatprep.subr.mxu0 %v2016
        %2424 = vmatpush1.msra.mxu0 %v2015
        %2425 = vmatprep.subr.mxu0 %v2018
        %2426 = vmatpush1.msra.mxu0 %v2017
        %2427 = vmatprep.subr.mxu0 %v2020
        %2428 = vmatpush1.msra.mxu0 %v2019
        %2429 = vmatprep.subr.mxu0 %v2022
        %2430 = vmatpush1.msra.mxu0 %v2021
        %2431 = vmatprep.subr.mxu0 %v2024
        %2432 = vmatpush1.msra.mxu0 %v2023
        %2433 = vmatprep.subr.mxu0 %v2026
        %2434 = vmatpush1.msra.mxu0 %v2025
        %2435 = vmatprep.subr.mxu0 %v2028
        %2436 = vmatpush1.msra.mxu0 %v2027
        %2437 = vmatprep.subr.mxu0 %v2030
        %2438 = vmatpush1.msra.mxu0 %v2029
        %2439 = vmatprep.subr.mxu0 %v2032
        %2440 = vmatpush1.msra.mxu0 %v2031
        %2441 = vmatprep.subr.mxu0 %v2034
        %2442 = vmatpush1.msra.mxu0 %v2033
        %2443 = vmatprep.mubr.f32.mxu0 %v2322
        %2444 = vmatmul.mubr.f32.gmra.mrb[0].mxu0 %v2319
        %v2445 = vpop.f32.mrb[0].mxu0
        %v2446 = vadd.f32 %v2254, %v2445
        %v2447 = vpop.f32.mrb[0].mxu0
        %v2448 = vadd.f32 %v2256, %v2447
        %2449 = vmatprep.mubr.f32.mxu0 %v2326
        %2450 = vmatmul.mubr.f32.gmra.mrb[0].mxu0 %v2324
        %v2451 = vpop.f32.mrb[0].mxu0
        %v2452 = vadd.f32 %v2260, %v2451
        %v2453 = vpop.f32.mrb[0].mxu0
        %v2454 = vadd.f32 %v2262, %v2453
        %2455 = vmatprep.mubr.f32.mxu0 %v2330
        %2456 = vmatmul.mubr.f32.gmra.mrb[0].mxu0 %v2328
        %v2457 = vpop.f32.mrb[0].mxu0
        %v2458 = vadd.f32 %v2266, %v2457
        %v2459 = vpop.f32.mrb[0].mxu0
        %v2460 = vadd.f32 %v2268, %v2459
        %2461 = vmatprep.mubr.f32.mxu0 %v2334
        %2462 = vmatmul.mubr.f32.gmra.mrb[0].mxu0 %v2332
        %v2463 = vpop.f32.mrb[0].mxu0
        %v2464 = vadd.f32 %v2272, %v2463
        %v2465 = vpop.f32.mrb[0].mxu0
        %v2466 = vadd.f32 %v2274, %v2465
        %2467 = vmatprep.mubr.f32.mxu0 %v2338
        %2468 = vmatmul.mubr.f32.gmra.mrb[0].mxu0 %v2336
        %v2469 = vpop.f32.mrb[0].mxu0
        %v2470 = vadd.f32 %v2278, %v2469
        %v2471 = vpop.f32.mrb[0].mxu0
        %v2472 = vadd.f32 %v2280, %v2471
        %2473 = vmatprep.mubr.f32.mxu0 %v2342
        %2474 = vmatmul.mubr.f32.gmra.mrb[0].mxu0 %v2340
        %v2475 = vpop.f32.mrb[0].mxu0
        %v2476 = vadd.f32 %v2284, %v2475
        %v2477 = vpop.f32.mrb[0].mxu0
        %v2478 = vadd.f32 %v2286, %v2477
        %2479 = vmatprep.mubr.f32.mxu0 %v2346
        %2480 = vmatmul.mubr.f32.gmra.mrb[0].mxu0 %v2344
        %v2481 = vpop.f32.mrb[0].mxu0
        %v2482 = vadd.f32 %v2290, %v2481
        %v2483 = vpop.f32.mrb[0].mxu0
        %v2484 = vadd.f32 %v2292, %v2483
        %2485 = vmatprep.mubr.f32.mxu0 %v2350
        %2486 = vmatmul.mubr.f32.gmra.mrb[0].mxu0 %v2348
        %v2487 = vpop.f32.mrb[0].mxu0
        %v2488 = vadd.f32 %v2296, %v2487
        %v2489 = vpop.f32.mrb[0].mxu0
        %v2490 = vadd.f32 %v2298, %v2489
        %2491 = vmatprep.mubr.f32.mxu0 %v2354
        %2492 = vmatmul.mubr.f32.gmra.mrb[0].mxu0 %v2352
        %v2493 = vpop.f32.mrb[0].mxu0
        %v2494 = vadd.f32 %v2302, %v2493
        %v2495 = vpop.f32.mrb[0].mxu0
        %v2496 = vadd.f32 %v2304, %v2495
        %2497 = vmatprep.mubr.f32.mxu0 %v2358
        %2498 = vmatmul.mubr.f32.gmra.mrb[0].mxu0 %v2356
        %v2499 = vpop.f32.mrb[0].mxu0
        %v2500 = vadd.f32 %v2308, %v2499
        %v2501 = vpop.f32.mrb[0].mxu0
        %v2502 = vadd.f32 %v2310, %v2501
        %2503 = vdwg.mxu0
        %v2504 = vld [vmem:[#allocation3 + $0xa0] sm:$0xff]
        %v2505 = vld [vmem:[#allocation3 + $0xa8] sm:$0xff]
        %v2506 = vld [vmem:[#allocation11 + $0x400] sm:$0xff]
        %v2507 = vld [vmem:[#allocation11 + $0x408] sm:$0xff]
        %v2508 = vld [vmem:[#allocation11 + $0x410] sm:$0xff]
        %v2509 = vld [vmem:[#allocation11 + $0x418] sm:$0xff]
        %v2510 = vld [vmem:[#allocation11 + $0x420] sm:$0xff]
        %v2511 = vld [vmem:[#allocation11 + $0x428] sm:$0xff]
        %v2512 = vld [vmem:[#allocation11 + $0x430] sm:$0xff]
        %v2513 = vld [vmem:[#allocation11 + $0x438] sm:$0xff]
        %v2514 = vld [vmem:[#allocation11 + $0x440] sm:$0xff]
        %v2515 = vld [vmem:[#allocation11 + $0x448] sm:$0xff]
        %v2516 = vld [vmem:[#allocation11 + $0x450] sm:$0xff]
        %v2517 = vld [vmem:[#allocation11 + $0x458] sm:$0xff]
        %v2518 = vld [vmem:[#allocation11 + $0x460] sm:$0xff]
        %v2519 = vld [vmem:[#allocation11 + $0x468] sm:$0xff]
        %v2520 = vld [vmem:[#allocation11 + $0x470] sm:$0xff]
        %v2521 = vld [vmem:[#allocation11 + $0x478] sm:$0xff]
        %v2522 = vld [vmem:[#allocation11 + $0x480] sm:$0xff]
        %v2523 = vld [vmem:[#allocation11 + $0x488] sm:$0xff]
        %v2524 = vld [vmem:[#allocation11 + $0x490] sm:$0xff]
        %v2525 = vld [vmem:[#allocation11 + $0x498] sm:$0xff]
        %v2526 = vld [vmem:[#allocation11 + $0x4a0] sm:$0xff]
        %v2527 = vld [vmem:[#allocation11 + $0x4a8] sm:$0xff]
        %v2528 = vld [vmem:[#allocation11 + $0x4b0] sm:$0xff]
        %v2529 = vld [vmem:[#allocation11 + $0x4b8] sm:$0xff]
        %v2530 = vld [vmem:[#allocation11 + $0x4c0] sm:$0xff]
        %v2531 = vld [vmem:[#allocation11 + $0x4c8] sm:$0xff]
        %v2532 = vld [vmem:[#allocation11 + $0x4d0] sm:$0xff]
        %v2533 = vld [vmem:[#allocation11 + $0x4d8] sm:$0xff]
        %v2534 = vld [vmem:[#allocation11 + $0x4e0] sm:$0xff]
        %v2535 = vld [vmem:[#allocation11 + $0x4e8] sm:$0xff]
        %v2536 = vld [vmem:[#allocation11 + $0x4f0] sm:$0xff]
        %v2537 = vld [vmem:[#allocation11 + $0x4f8] sm:$0xff]
        %v2538 = vld [vmem:[#allocation11 + $0x500] sm:$0xff]
        %v2539 = vld [vmem:[#allocation11 + $0x508] sm:$0xff]
        %v2540 = vld [vmem:[#allocation11 + $0x510] sm:$0xff]
        %v2541 = vld [vmem:[#allocation11 + $0x518] sm:$0xff]
        %v2542 = vld [vmem:[#allocation11 + $0x520] sm:$0xff]
        %v2543 = vld [vmem:[#allocation11 + $0x528] sm:$0xff]
        %v2544 = vld [vmem:[#allocation11 + $0x530] sm:$0xff]
        %v2545 = vld [vmem:[#allocation11 + $0x538] sm:$0xff]
        %v2546 = vld [vmem:[#allocation11 + $0x540] sm:$0xff]
        %v2547 = vld [vmem:[#allocation11 + $0x548] sm:$0xff]
        %v2548 = vld [vmem:[#allocation11 + $0x550] sm:$0xff]
        %v2549 = vld [vmem:[#allocation11 + $0x558] sm:$0xff]
        %v2550 = vld [vmem:[#allocation11 + $0x560] sm:$0xff]
        %v2551 = vld [vmem:[#allocation11 + $0x568] sm:$0xff]
        %v2552 = vld [vmem:[#allocation11 + $0x570] sm:$0xff]
        %v2553 = vld [vmem:[#allocation11 + $0x578] sm:$0xff]
        %v2554 = vld [vmem:[#allocation11 + $0x580] sm:$0xff]
        %v2555 = vld [vmem:[#allocation11 + $0x588] sm:$0xff]
        %v2556 = vld [vmem:[#allocation11 + $0x590] sm:$0xff]
        %v2557 = vld [vmem:[#allocation11 + $0x598] sm:$0xff]
        %v2558 = vld [vmem:[#allocation11 + $0x5a0] sm:$0xff]
        %v2559 = vld [vmem:[#allocation11 + $0x5a8] sm:$0xff]
        %v2560 = vld [vmem:[#allocation11 + $0x5b0] sm:$0xff]
        %v2561 = vld [vmem:[#allocation11 + $0x5b8] sm:$0xff]
        %v2562 = vld [vmem:[#allocation11 + $0x5c0] sm:$0xff]
        %v2563 = vld [vmem:[#allocation11 + $0x5c8] sm:$0xff]
        %v2564 = vld [vmem:[#allocation11 + $0x5d0] sm:$0xff]
        %v2565 = vld [vmem:[#allocation11 + $0x5d8] sm:$0xff]
        %v2566 = vld [vmem:[#allocation11 + $0x5e0] sm:$0xff]
        %v2567 = vld [vmem:[#allocation11 + $0x5e8] sm:$0xff]
        %v2568 = vld [vmem:[#allocation11 + $0x5f0] sm:$0xff]
        %v2569 = vld [vmem:[#allocation11 + $0x5f8] sm:$0xff]
        %2570 = vmatprep.subr.mxu0 %v2507
        %2571 = vmatpush1.msra.mxu0 %v2506
        %2572 = vmatprep.subr.mxu0 %v2509
        %2573 = vmatpush1.msra.mxu0 %v2508
        %2574 = vmatprep.subr.mxu0 %v2511
        %2575 = vmatpush1.msra.mxu0 %v2510
        %2576 = vmatprep.subr.mxu0 %v2513
        %2577 = vmatpush1.msra.mxu0 %v2512
        %2578 = vmatprep.subr.mxu0 %v2515
        %2579 = vmatpush1.msra.mxu0 %v2514
        %2580 = vmatprep.subr.mxu0 %v2517
        %2581 = vmatpush1.msra.mxu0 %v2516
        %2582 = vmatprep.subr.mxu0 %v2519
        %2583 = vmatpush1.msra.mxu0 %v2518
        %2584 = vmatprep.subr.mxu0 %v2521
        %2585 = vmatpush1.msra.mxu0 %v2520
        %2586 = vmatprep.subr.mxu0 %v2523
        %2587 = vmatpush1.msra.mxu0 %v2522
        %2588 = vmatprep.subr.mxu0 %v2525
        %2589 = vmatpush1.msra.mxu0 %v2524
        %2590 = vmatprep.subr.mxu0 %v2527
        %2591 = vmatpush1.msra.mxu0 %v2526
        %2592 = vmatprep.subr.mxu0 %v2529
        %2593 = vmatpush1.msra.mxu0 %v2528
        %2594 = vmatprep.subr.mxu0 %v2531
        %2595 = vmatpush1.msra.mxu0 %v2530
        %2596 = vmatprep.subr.mxu0 %v2533
        %2597 = vmatpush1.msra.mxu0 %v2532
        %2598 = vmatprep.subr.mxu0 %v2535
        %2599 = vmatpush1.msra.mxu0 %v2534
        %2600 = vmatprep.subr.mxu0 %v2537
        %2601 = vmatpush1.msra.mxu0 %v2536
        %2602 = vmatprep.subr.mxu0 %v2539
        %2603 = vmatpush1.msra.mxu0 %v2538
        %2604 = vmatprep.subr.mxu0 %v2541
        %2605 = vmatpush1.msra.mxu0 %v2540
        %2606 = vmatprep.subr.mxu0 %v2543
        %2607 = vmatpush1.msra.mxu0 %v2542
        %2608 = vmatprep.subr.mxu0 %v2545
        %2609 = vmatpush1.msra.mxu0 %v2544
        %2610 = vmatprep.subr.mxu0 %v2547
        %2611 = vmatpush1.msra.mxu0 %v2546
        %2612 = vmatprep.subr.mxu0 %v2549
        %2613 = vmatpush1.msra.mxu0 %v2548
        %2614 = vmatprep.subr.mxu0 %v2551
        %2615 = vmatpush1.msra.mxu0 %v2550
        %2616 = vmatprep.subr.mxu0 %v2553
        %2617 = vmatpush1.msra.mxu0 %v2552
        %2618 = vmatprep.subr.mxu0 %v2555
        %2619 = vmatpush1.msra.mxu0 %v2554
        %2620 = vmatprep.subr.mxu0 %v2557
        %2621 = vmatpush1.msra.mxu0 %v2556
        %2622 = vmatprep.subr.mxu0 %v2559
        %2623 = vmatpush1.msra.mxu0 %v2558
        %2624 = vmatprep.subr.mxu0 %v2561
        %2625 = vmatpush1.msra.mxu0 %v2560
        %2626 = vmatprep.subr.mxu0 %v2563
        %2627 = vmatpush1.msra.mxu0 %v2562
        %2628 = vmatprep.subr.mxu0 %v2565
        %2629 = vmatpush1.msra.mxu0 %v2564
        %2630 = vmatprep.subr.mxu0 %v2567
        %2631 = vmatpush1.msra.mxu0 %v2566
        %2632 = vmatprep.subr.mxu0 %v2569
        %2633 = vmatpush1.msra.mxu0 %v2568
        %2634 = vmatprep.mubr.f32.mxu0 %v1952
        %2635 = vmatmul.mubr.f32.gmra.mrb[0].mxu0 %v1951
        %v2636 = vpop.f32.mrb[0].mxu0
        %v2637 = vadd.f32 0.0, %v2636
        %v2638 = vpop.f32.mrb[0].mxu0
        %v2639 = vadd.f32 0.0, %v2638
        %2640 = vmatprep.mubr.f32.mxu0 %v1954
        %2641 = vmatmul.mubr.f32.gmra.mrb[0].mxu0 %v1953
        %v2642 = vpop.f32.mrb[0].mxu0
        %v2643 = vadd.f32 0.0, %v2642
        %v2644 = vpop.f32.mrb[0].mxu0
        %v2645 = vadd.f32 0.0, %v2644
        %2646 = vmatprep.mubr.f32.mxu0 %v1956
        %2647 = vmatmul.mubr.f32.gmra.mrb[0].mxu0 %v1955
        %v2648 = vpop.f32.mrb[0].mxu0
        %v2649 = vadd.f32 0.0, %v2648
        %v2650 = vpop.f32.mrb[0].mxu0
        %v2651 = vadd.f32 0.0, %v2650
        %2652 = vmatprep.mubr.f32.mxu0 %v1958
        %2653 = vmatmul.mubr.f32.gmra.mrb[0].mxu0 %v1957
        %v2654 = vpop.f32.mrb[0].mxu0
        %v2655 = vadd.f32 0.0, %v2654
        %v2656 = vpop.f32.mrb[0].mxu0
        %v2657 = vadd.f32 0.0, %v2656
        %2658 = vmatprep.mubr.f32.mxu0 %v1960
        %2659 = vmatmul.mubr.f32.gmra.mrb[0].mxu0 %v1959
        %v2660 = vpop.f32.mrb[0].mxu0
        %v2661 = vadd.f32 0.0, %v2660
        %v2662 = vpop.f32.mrb[0].mxu0
        %v2663 = vadd.f32 0.0, %v2662
        %2664 = vmatprep.mubr.f32.mxu0 %v1962
        %2665 = vmatmul.mubr.f32.gmra.mrb[0].mxu0 %v1961
        %v2666 = vpop.f32.mrb[0].mxu0
        %v2667 = vadd.f32 0.0, %v2666
        %v2668 = vpop.f32.mrb[0].mxu0
        %v2669 = vadd.f32 0.0, %v2668
        %2670 = vmatprep.mubr.f32.mxu0 %v1964
        %2671 = vmatmul.mubr.f32.gmra.mrb[0].mxu0 %v1963
        %v2672 = vpop.f32.mrb[0].mxu0
        %v2673 = vadd.f32 0.0, %v2672
        %v2674 = vpop.f32.mrb[0].mxu0
        %v2675 = vadd.f32 0.0, %v2674
        %2676 = vmatprep.mubr.f32.mxu0 %v1966
        %2677 = vmatmul.mubr.f32.gmra.mrb[0].mxu0 %v1965
        %v2678 = vpop.f32.mrb[0].mxu0
        %v2679 = vadd.f32 0.0, %v2678
        %v2680 = vpop.f32.mrb[0].mxu0
        %v2681 = vadd.f32 0.0, %v2680
        %2682 = vmatprep.mubr.f32.mxu0 %v1968
        %2683 = vmatmul.mubr.f32.gmra.mrb[0].mxu0 %v1967
        %v2684 = vpop.f32.mrb[0].mxu0
        %v2685 = vadd.f32 0.0, %v2684
        %v2686 = vpop.f32.mrb[0].mxu0
        %v2687 = vadd.f32 0.0, %v2686
        %2688 = vmatprep.mubr.f32.mxu0 %v2505
        %2689 = vmatmul.mubr.f32.gmra.mrb[0].mxu0 %v2504
        %v2690 = vpop.f32.mrb[0].mxu0
        %v2691 = vadd.f32 0.0, %v2690
        %v2692 = vpop.f32.mrb[0].mxu0
        %v2693 = vadd.f32 0.0, %v2692
        %2694 = vdwg.mxu0
        %v2695 = vadd.f32 %v2446, %v2637
        %v2696 = vadd.f32 %v2448, %v2639
        %v2697 = vadd.f32 %v2452, %v2643
        %v2698 = vadd.f32 %v2454, %v2645
        %v2699 = vadd.f32 %v2458, %v2649
        %v2700 = vadd.f32 %v2460, %v2651
        %v2701 = vadd.f32 %v2464, %v2655
        %v2702 = vadd.f32 %v2466, %v2657
        %v2703 = vadd.f32 %v2470, %v2661
        %v2704 = vadd.f32 %v2472, %v2663
        %v2705 = vadd.f32 %v2476, %v2667
        %v2706 = vadd.f32 %v2478, %v2669
        %v2707 = vadd.f32 %v2482, %v2673
        %v2708 = vadd.f32 %v2484, %v2675
        %v2709 = vadd.f32 %v2488, %v2679
        %v2710 = vadd.f32 %v2490, %v2681
        %v2711 = vadd.f32 %v2494, %v2685
        %v2712 = vadd.f32 %v2496, %v2687
        %v2713 = vadd.f32 %v2500, %v2691
        %v2714 = vadd.f32 %v2502, %v2693
        %v2715 = vld [vmem:[#allocation3 + $0x10] sm:$0xfe]
        %v2716 = vld [vmem:[#allocation3 + $0x18] sm:$0xfe]
        %v2717 = vld [vmem:[#allocation3 + $0x20] sm:$0xff]
        %v2718 = vld [vmem:[#allocation3 + $0x28] sm:$0xff]
        %v2719 = vld [vmem:[#allocation3 + $0x30] sm:$0xff]
        %v2720 = vld [vmem:[#allocation3 + $0x38] sm:$0xff]
        %v2721 = vld [vmem:[#allocation3 + $0x40] sm:$0xff]
        %v2722 = vld [vmem:[#allocation3 + $0x48] sm:$0xff]
        %v2723 = vld [vmem:[#allocation3 + $0x50] sm:$0xff]
        %v2724 = vld [vmem:[#allocation3 + $0x58] sm:$0xff]
        %v2725 = vld [vmem:[#allocation3 + $0x60] sm:$0xff]
        %v2726 = vld [vmem:[#allocation3 + $0x68] sm:$0xff]
        %v2727 = vld [vmem:[#allocation3 + $0x70] sm:$0xff]
        %v2728 = vld [vmem:[#allocation3 + $0x78] sm:$0xff]
        %v2729 = vld [vmem:[#allocation3 + $0x80] sm:$0xff]
        %v2730 = vld [vmem:[#allocation3 + $0x88] sm:$0xff]
        %v2731 = vld [vmem:[#allocation3 + $0x90] sm:$0xff]
        %v2732 = vld [vmem:[#allocation3 + $0x98] sm:$0xff]
        %v2733 = vld [vmem:[#allocation3 + $0xa0] sm:$0xff]
        %v2734 = vld [vmem:[#allocation3 + $0xa8] sm:$0xff]
        %v2735 = vld [vmem:[#allocation3 + $0xb0] sm:$0x1]
        %v2736 = vld [vmem:[#allocation3 + $0xb8] sm:$0x1]
        %v2737 = vld [vmem:[#allocation11 + $0x600] sm:$0xff]
        %v2738 = vld [vmem:[#allocation11 + $0x608] sm:$0xff]
        %v2739 = vld [vmem:[#allocation11 + $0x610] sm:$0xff]
        %v2740 = vld [vmem:[#allocation11 + $0x618] sm:$0xff]
        %v2741 = vld [vmem:[#allocation11 + $0x620] sm:$0xff]
        %v2742 = vld [vmem:[#allocation11 + $0x628] sm:$0xff]
        %v2743 = vld [vmem:[#allocation11 + $0x630] sm:$0xff]
        %v2744 = vld [vmem:[#allocation11 + $0x638] sm:$0xff]
        %v2745 = vld [vmem:[#allocation11 + $0x640] sm:$0xff]
        %v2746 = vld [vmem:[#allocation11 + $0x648] sm:$0xff]
        %v2747 = vld [vmem:[#allocation11 + $0x650] sm:$0xff]
        %v2748 = vld [vmem:[#allocation11 + $0x658] sm:$0xff]
        %v2749 = vld [vmem:[#allocation11 + $0x660] sm:$0xff]
        %v2750 = vld [vmem:[#allocation11 + $0x668] sm:$0xff]
        %v2751 = vld [vmem:[#allocation11 + $0x670] sm:$0xff]
        %v2752 = vld [vmem:[#allocation11 + $0x678] sm:$0xff]
        %v2753 = vld [vmem:[#allocation11 + $0x680] sm:$0xff]
        %v2754 = vld [vmem:[#allocation11 + $0x688] sm:$0xff]
        %v2755 = vld [vmem:[#allocation11 + $0x690] sm:$0xff]
        %v2756 = vld [vmem:[#allocation11 + $0x698] sm:$0xff]
        %v2757 = vld [vmem:[#allocation11 + $0x6a0] sm:$0xff]
        %v2758 = vld [vmem:[#allocation11 + $0x6a8] sm:$0xff]
        %v2759 = vld [vmem:[#allocation11 + $0x6b0] sm:$0xff]
        %v2760 = vld [vmem:[#allocation11 + $0x6b8] sm:$0xff]
        %v2761 = vld [vmem:[#allocation11 + $0x6c0] sm:$0xff]
        %v2762 = vld [vmem:[#allocation11 + $0x6c8] sm:$0xff]
        %v2763 = vld [vmem:[#allocation11 + $0x6d0] sm:$0xff]
        %v2764 = vld [vmem:[#allocation11 + $0x6d8] sm:$0xff]
        %v2765 = vld [vmem:[#allocation11 + $0x6e0] sm:$0xff]
        %v2766 = vld [vmem:[#allocation11 + $0x6e8] sm:$0xff]
        %v2767 = vld [vmem:[#allocation11 + $0x6f0] sm:$0xff]
        %v2768 = vld [vmem:[#allocation11 + $0x6f8] sm:$0xff]
        %v2769 = vld [vmem:[#allocation11 + $0x700] sm:$0xff]
        %v2770 = vld [vmem:[#allocation11 + $0x708] sm:$0xff]
        %v2771 = vld [vmem:[#allocation11 + $0x710] sm:$0xff]
        %v2772 = vld [vmem:[#allocation11 + $0x718] sm:$0xff]
        %v2773 = vld [vmem:[#allocation11 + $0x720] sm:$0xff]
        %v2774 = vld [vmem:[#allocation11 + $0x728] sm:$0xff]
        %v2775 = vld [vmem:[#allocation11 + $0x730] sm:$0xff]
        %v2776 = vld [vmem:[#allocation11 + $0x738] sm:$0xff]
        %v2777 = vld [vmem:[#allocation11 + $0x740] sm:$0xff]
        %v2778 = vld [vmem:[#allocation11 + $0x748] sm:$0xff]
        %v2779 = vld [vmem:[#allocation11 + $0x750] sm:$0xff]
        %v2780 = vld [vmem:[#allocation11 + $0x758] sm:$0xff]
        %v2781 = vld [vmem:[#allocation11 + $0x760] sm:$0xff]
        %v2782 = vld [vmem:[#allocation11 + $0x768] sm:$0xff]
        %v2783 = vld [vmem:[#allocation11 + $0x770] sm:$0xff]
        %v2784 = vld [vmem:[#allocation11 + $0x778] sm:$0xff]
        %v2785 = vld [vmem:[#allocation11 + $0x780] sm:$0xff]
        %v2786 = vld [vmem:[#allocation11 + $0x788] sm:$0xff]
        %v2787 = vld [vmem:[#allocation11 + $0x790] sm:$0xff]
        %v2788 = vld [vmem:[#allocation11 + $0x798] sm:$0xff]
        %v2789 = vld [vmem:[#allocation11 + $0x7a0] sm:$0xff]
        %v2790 = vld [vmem:[#allocation11 + $0x7a8] sm:$0xff]
        %v2791 = vld [vmem:[#allocation11 + $0x7b0] sm:$0xff]
        %v2792 = vld [vmem:[#allocation11 + $0x7b8] sm:$0xff]
        %v2793 = vld [vmem:[#allocation11 + $0x7c0] sm:$0xff]
        %v2794 = vld [vmem:[#allocation11 + $0x7c8] sm:$0xff]
        %v2795 = vld [vmem:[#allocation11 + $0x7d0] sm:$0xff]
        %v2796 = vld [vmem:[#allocation11 + $0x7d8] sm:$0xff]
        %v2797 = vld [vmem:[#allocation11 + $0x7e0] sm:$0xff]
        %v2798 = vld [vmem:[#allocation11 + $0x7e8] sm:$0xff]
        %v2799 = vld [vmem:[#allocation11 + $0x7f0] sm:$0xff]
        %v2800 = vld [vmem:[#allocation11 + $0x7f8] sm:$0xff]
        %v2823 = vrot.slane %v2715, 1
        %v2824 = vrot.slane %v2717, 1
        %v2825 = vsel %vm1649, %v2823, %v2824
        %v2826 = vrot.slane %v2716, 1
        %v2827 = vrot.slane %v2718, 1
        %v2828 = vsel %vm1649, %v2826, %v2827
        %v2829 = vrot.slane %v2719, 1
        %v2830 = vsel %vm1649, %v2824, %v2829
        %v2831 = vrot.slane %v2720, 1
        %v2832 = vsel %vm1649, %v2827, %v2831
        %v2833 = vrot.slane %v2721, 1
        %v2834 = vsel %vm1649, %v2829, %v2833
        %v2835 = vrot.slane %v2722, 1
        %v2836 = vsel %vm1649, %v2831, %v2835
        %v2837 = vrot.slane %v2723, 1
        %v2838 = vsel %vm1649, %v2833, %v2837
        %v2839 = vrot.slane %v2724, 1
        %v2840 = vsel %vm1649, %v2835, %v2839
        %v2841 = vrot.slane %v2725, 1
        %v2842 = vsel %vm1649, %v2837, %v2841
        %v2843 = vrot.slane %v2726, 1
        %v2844 = vsel %vm1649, %v2839, %v2843
        %v2845 = vrot.slane %v2727, 1
        %v2846 = vsel %vm1649, %v2841, %v2845
        %v2847 = vrot.slane %v2728, 1
        %v2848 = vsel %vm1649, %v2843, %v2847
        %v2849 = vrot.slane %v2729, 1
        %v2850 = vsel %vm1649, %v2845, %v2849
        %v2851 = vrot.slane %v2730, 1
        %v2852 = vsel %vm1649, %v2847, %v2851
        %v2853 = vrot.slane %v2731, 1
        %v2854 = vsel %vm1649, %v2849, %v2853
        %v2855 = vrot.slane %v2732, 1
        %v2856 = vsel %vm1649, %v2851, %v2855
        %v2857 = vrot.slane %v2733, 1
        %v2858 = vsel %vm1649, %v2853, %v2857
        %v2859 = vrot.slane %v2734, 1
        %v2860 = vsel %vm1649, %v2855, %v2859
        %v2861 = vrot.slane %v2735, 1
        %v2862 = vsel %vm1649, %v2857, %v2861
        %v2863 = vrot.slane %v2736, 1
        %v2864 = vsel %vm1649, %v2859, %v2863
        %2885 = vmatprep.subr.mxu0 %v2738
        %2886 = vmatpush1.msra.mxu0 %v2737
        %2887 = vmatprep.subr.mxu0 %v2740
        %2888 = vmatpush1.msra.mxu0 %v2739
        %2889 = vmatprep.subr.mxu0 %v2742
        %2890 = vmatpush1.msra.mxu0 %v2741
        %2891 = vmatprep.subr.mxu0 %v2744
        %2892 = vmatpush1.msra.mxu0 %v2743
        %2893 = vmatprep.subr.mxu0 %v2746
        %2894 = vmatpush1.msra.mxu0 %v2745
        %2895 = vmatprep.subr.mxu0 %v2748
        %2896 = vmatpush1.msra.mxu0 %v2747
        %2897 = vmatprep.subr.mxu0 %v2750
        %2898 = vmatpush1.msra.mxu0 %v2749
        %2899 = vmatprep.subr.mxu0 %v2752
        %2900 = vmatpush1.msra.mxu0 %v2751
        %2901 = vmatprep.subr.mxu0 %v2754
        %2902 = vmatpush1.msra.mxu0 %v2753
        %2903 = vmatprep.subr.mxu0 %v2756
        %2904 = vmatpush1.msra.mxu0 %v2755
        %2905 = vmatprep.subr.mxu0 %v2758
        %2906 = vmatpush1.msra.mxu0 %v2757
        %2907 = vmatprep.subr.mxu0 %v2760
        %2908 = vmatpush1.msra.mxu0 %v2759
        %2909 = vmatprep.subr.mxu0 %v2762
        %2910 = vmatpush1.msra.mxu0 %v2761
        %2911 = vmatprep.subr.mxu0 %v2764
        %2912 = vmatpush1.msra.mxu0 %v2763
        %2913 = vmatprep.subr.mxu0 %v2766
        %2914 = vmatpush1.msra.mxu0 %v2765
        %2915 = vmatprep.subr.mxu0 %v2768
        %2916 = vmatpush1.msra.mxu0 %v2767
        %2917 = vmatprep.subr.mxu0 %v2770
        %2918 = vmatpush1.msra.mxu0 %v2769
        %2919 = vmatprep.subr.mxu0 %v2772
        %2920 = vmatpush1.msra.mxu0 %v2771
        %2921 = vmatprep.subr.mxu0 %v2774
        %2922 = vmatpush1.msra.mxu0 %v2773
        %2923 = vmatprep.subr.mxu0 %v2776
        %2924 = vmatpush1.msra.mxu0 %v2775
        %2925 = vmatprep.subr.mxu0 %v2778
        %2926 = vmatpush1.msra.mxu0 %v2777
        %2927 = vmatprep.subr.mxu0 %v2780
        %2928 = vmatpush1.msra.mxu0 %v2779
        %2929 = vmatprep.subr.mxu0 %v2782
        %2930 = vmatpush1.msra.mxu0 %v2781
        %2931 = vmatprep.subr.mxu0 %v2784
        %2932 = vmatpush1.msra.mxu0 %v2783
        %2933 = vmatprep.subr.mxu0 %v2786
        %2934 = vmatpush1.msra.mxu0 %v2785
        %2935 = vmatprep.subr.mxu0 %v2788
        %2936 = vmatpush1.msra.mxu0 %v2787
        %2937 = vmatprep.subr.mxu0 %v2790
        %2938 = vmatpush1.msra.mxu0 %v2789
        %2939 = vmatprep.subr.mxu0 %v2792
        %2940 = vmatpush1.msra.mxu0 %v2791
        %2941 = vmatprep.subr.mxu0 %v2794
        %2942 = vmatpush1.msra.mxu0 %v2793
        %2943 = vmatprep.subr.mxu0 %v2796
        %2944 = vmatpush1.msra.mxu0 %v2795
        %2945 = vmatprep.subr.mxu0 %v2798
        %2946 = vmatpush1.msra.mxu0 %v2797
        %2947 = vmatprep.subr.mxu0 %v2800
        %2948 = vmatpush1.msra.mxu0 %v2799
        %2949 = vmatprep.mubr.f32.mxu0 %v2828
        %2950 = vmatmul.mubr.f32.gmra.mrb[0].mxu0 %v2825
        %v2951 = vpop.f32.mrb[0].mxu0
        %v2952 = vadd.f32 0.0, %v2951
        %v2953 = vpop.f32.mrb[0].mxu0
        %v2954 = vadd.f32 0.0, %v2953
        %2955 = vmatprep.mubr.f32.mxu0 %v2832
        %2956 = vmatmul.mubr.f32.gmra.mrb[0].mxu0 %v2830
        %v2957 = vpop.f32.mrb[0].mxu0
        %v2958 = vadd.f32 0.0, %v2957
        %v2959 = vpop.f32.mrb[0].mxu0
        %v2960 = vadd.f32 0.0, %v2959
        %2961 = vmatprep.mubr.f32.mxu0 %v2836
        %2962 = vmatmul.mubr.f32.gmra.mrb[0].mxu0 %v2834
        %v2963 = vpop.f32.mrb[0].mxu0
        %v2964 = vadd.f32 0.0, %v2963
        %v2965 = vpop.f32.mrb[0].mxu0
        %v2966 = vadd.f32 0.0, %v2965
        %2967 = vmatprep.mubr.f32.mxu0 %v2840
        %2968 = vmatmul.mubr.f32.gmra.mrb[0].mxu0 %v2838
        %v2969 = vpop.f32.mrb[0].mxu0
        %v2970 = vadd.f32 0.0, %v2969
        %v2971 = vpop.f32.mrb[0].mxu0
        %v2972 = vadd.f32 0.0, %v2971
        %2973 = vmatprep.mubr.f32.mxu0 %v2844
        %2974 = vmatmul.mubr.f32.gmra.mrb[0].mxu0 %v2842
        %v2975 = vpop.f32.mrb[0].mxu0
        %v2976 = vadd.f32 0.0, %v2975
        %v2977 = vpop.f32.mrb[0].mxu0
        %v2978 = vadd.f32 0.0, %v2977
        %2979 = vmatprep.mubr.f32.mxu0 %v2848
        %2980 = vmatmul.mubr.f32.gmra.mrb[0].mxu0 %v2846
        %v2981 = vpop.f32.mrb[0].mxu0
        %v2982 = vadd.f32 0.0, %v2981
        %v2983 = vpop.f32.mrb[0].mxu0
        %v2984 = vadd.f32 0.0, %v2983
        %2985 = vmatprep.mubr.f32.mxu0 %v2852
        %2986 = vmatmul.mubr.f32.gmra.mrb[0].mxu0 %v2850
        %v2987 = vpop.f32.mrb[0].mxu0
        %v2988 = vadd.f32 0.0, %v2987
        %v2989 = vpop.f32.mrb[0].mxu0
        %v2990 = vadd.f32 0.0, %v2989
        %2991 = vmatprep.mubr.f32.mxu0 %v2856
        %2992 = vmatmul.mubr.f32.gmra.mrb[0].mxu0 %v2854
        %v2993 = vpop.f32.mrb[0].mxu0
        %v2994 = vadd.f32 0.0, %v2993
        %v2995 = vpop.f32.mrb[0].mxu0
        %v2996 = vadd.f32 0.0, %v2995
        %2997 = vmatprep.mubr.f32.mxu0 %v2860
        %2998 = vmatmul.mubr.f32.gmra.mrb[0].mxu0 %v2858
        %v2999 = vpop.f32.mrb[0].mxu0
        %v3000 = vadd.f32 0.0, %v2999
        %v3001 = vpop.f32.mrb[0].mxu0
        %v3002 = vadd.f32 0.0, %v3001
        %3003 = vmatprep.mubr.f32.mxu0 %v2864
        %3004 = vmatmul.mubr.f32.gmra.mrb[0].mxu0 %v2862
        %v3005 = vpop.f32.mrb[0].mxu0
        %v3006 = vadd.f32 0.0, %v3005
        %v3007 = vpop.f32.mrb[0].mxu0
        %v3008 = vadd.f32 0.0, %v3007
        %3009 = vdwg.mxu0
        %v3010 = vadd.f32 %v2695, %v2952
        %v3011 = vadd.f32 %v2696, %v2954
        %v3012 = vadd.f32 %v2697, %v2958
        %v3013 = vadd.f32 %v2698, %v2960
        %v3014 = vadd.f32 %v2699, %v2964
        %v3015 = vadd.f32 %v2700, %v2966
        %v3016 = vadd.f32 %v2701, %v2970
        %v3017 = vadd.f32 %v2702, %v2972
        %v3018 = vadd.f32 %v2703, %v2976
        %v3019 = vadd.f32 %v2704, %v2978
        %v3020 = vadd.f32 %v2705, %v2982
        %v3021 = vadd.f32 %v2706, %v2984
        %v3022 = vadd.f32 %v2707, %v2988
        %v3023 = vadd.f32 %v2708, %v2990
        %v3024 = vadd.f32 %v2709, %v2994
        %v3025 = vadd.f32 %v2710, %v2996
        %v3026 = vadd.f32 %v2711, %v3000
        %v3027 = vadd.f32 %v2712, %v3002
        %v3028 = vadd.f32 %v2713, %v3006
        %v3029 = vadd.f32 %v2714, %v3008
        %v3030 = vld [vmem:[#allocation3 + $0x10] sm:$0xfc]
        %v3031 = vld [vmem:[#allocation3 + $0x18] sm:$0xfc]
        %v3032 = vld [vmem:[#allocation3 + $0xb0] sm:$0x3]
        %v3033 = vld [vmem:[#allocation3 + $0xb8] sm:$0x3]
        %v3034 = vld [vmem:[#allocation11 + $0x800] sm:$0xff]
        %v3035 = vld [vmem:[#allocation11 + $0x808] sm:$0xff]
        %v3036 = vld [vmem:[#allocation11 + $0x810] sm:$0xff]
        %v3037 = vld [vmem:[#allocation11 + $0x818] sm:$0xff]
        %v3038 = vld [vmem:[#allocation11 + $0x820] sm:$0xff]
        %v3039 = vld [vmem:[#allocation11 + $0x828] sm:$0xff]
        %v3040 = vld [vmem:[#allocation11 + $0x830] sm:$0xff]
        %v3041 = vld [vmem:[#allocation11 + $0x838] sm:$0xff]
        %v3042 = vld [vmem:[#allocation11 + $0x840] sm:$0xff]
        %v3043 = vld [vmem:[#allocation11 + $0x848] sm:$0xff]
        %v3044 = vld [vmem:[#allocation11 + $0x850] sm:$0xff]
        %v3045 = vld [vmem:[#allocation11 + $0x858] sm:$0xff]
        %v3046 = vld [vmem:[#allocation11 + $0x860] sm:$0xff]
        %v3047 = vld [vmem:[#allocation11 + $0x868] sm:$0xff]
        %v3048 = vld [vmem:[#allocation11 + $0x870] sm:$0xff]
        %v3049 = vld [vmem:[#allocation11 + $0x878] sm:$0xff]
        %v3050 = vld [vmem:[#allocation11 + $0x880] sm:$0xff]
        %v3051 = vld [vmem:[#allocation11 + $0x888] sm:$0xff]
        %v3052 = vld [vmem:[#allocation11 + $0x890] sm:$0xff]
        %v3053 = vld [vmem:[#allocation11 + $0x898] sm:$0xff]
        %v3054 = vld [vmem:[#allocation11 + $0x8a0] sm:$0xff]
        %v3055 = vld [vmem:[#allocation11 + $0x8a8] sm:$0xff]
        %v3056 = vld [vmem:[#allocation11 + $0x8b0] sm:$0xff]
        %v3057 = vld [vmem:[#allocation11 + $0x8b8] sm:$0xff]
        %v3058 = vld [vmem:[#allocation11 + $0x8c0] sm:$0xff]
        %v3059 = vld [vmem:[#allocation11 + $0x8c8] sm:$0xff]
        %v3060 = vld [vmem:[#allocation11 + $0x8d0] sm:$0xff]
        %v3061 = vld [vmem:[#allocation11 + $0x8d8] sm:$0xff]
        %v3062 = vld [vmem:[#allocation11 + $0x8e0] sm:$0xff]
        %v3063 = vld [vmem:[#allocation11 + $0x8e8] sm:$0xff]
        %v3064 = vld [vmem:[#allocation11 + $0x8f0] sm:$0xff]
        %v3065 = vld [vmem:[#allocation11 + $0x8f8] sm:$0xff]
        %v3066 = vld [vmem:[#allocation11 + $0x900] sm:$0xff]
        %v3067 = vld [vmem:[#allocation11 + $0x908] sm:$0xff]
        %v3068 = vld [vmem:[#allocation11 + $0x910] sm:$0xff]
        %v3069 = vld [vmem:[#allocation11 + $0x918] sm:$0xff]
        %v3070 = vld [vmem:[#allocation11 + $0x920] sm:$0xff]
        %v3071 = vld [vmem:[#allocation11 + $0x928] sm:$0xff]
        %v3072 = vld [vmem:[#allocation11 + $0x930] sm:$0xff]
        %v3073 = vld [vmem:[#allocation11 + $0x938] sm:$0xff]
        %v3074 = vld [vmem:[#allocation11 + $0x940] sm:$0xff]
        %v3075 = vld [vmem:[#allocation11 + $0x948] sm:$0xff]
        %v3076 = vld [vmem:[#allocation11 + $0x950] sm:$0xff]
        %v3077 = vld [vmem:[#allocation11 + $0x958] sm:$0xff]
        %v3078 = vld [vmem:[#allocation11 + $0x960] sm:$0xff]
        %v3079 = vld [vmem:[#allocation11 + $0x968] sm:$0xff]
        %v3080 = vld [vmem:[#allocation11 + $0x970] sm:$0xff]
        %v3081 = vld [vmem:[#allocation11 + $0x978] sm:$0xff]
        %v3082 = vld [vmem:[#allocation11 + $0x980] sm:$0xff]
        %v3083 = vld [vmem:[#allocation11 + $0x988] sm:$0xff]
        %v3084 = vld [vmem:[#allocation11 + $0x990] sm:$0xff]
        %v3085 = vld [vmem:[#allocation11 + $0x998] sm:$0xff]
        %v3086 = vld [vmem:[#allocation11 + $0x9a0] sm:$0xff]
        %v3087 = vld [vmem:[#allocation11 + $0x9a8] sm:$0xff]
        %v3088 = vld [vmem:[#allocation11 + $0x9b0] sm:$0xff]
        %v3089 = vld [vmem:[#allocation11 + $0x9b8] sm:$0xff]
        %v3090 = vld [vmem:[#allocation11 + $0x9c0] sm:$0xff]
        %v3091 = vld [vmem:[#allocation11 + $0x9c8] sm:$0xff]
        %v3092 = vld [vmem:[#allocation11 + $0x9d0] sm:$0xff]
        %v3093 = vld [vmem:[#allocation11 + $0x9d8] sm:$0xff]
        %v3094 = vld [vmem:[#allocation11 + $0x9e0] sm:$0xff]
        %v3095 = vld [vmem:[#allocation11 + $0x9e8] sm:$0xff]
        %v3096 = vld [vmem:[#allocation11 + $0x9f0] sm:$0xff]
        %v3097 = vld [vmem:[#allocation11 + $0x9f8] sm:$0xff]
        %vm3102 = vcmask 1045504
        %v3103 = vrot.slane %v3030, 2
        %v3104 = vrot.slane %v2717, 2
        %v3105 = vsel %vm3102, %v3103, %v3104
        %v3106 = vrot.slane %v3031, 2
        %v3107 = vrot.slane %v2718, 2
        %v3108 = vsel %vm3102, %v3106, %v3107
        %v3109 = vrot.slane %v2719, 2
        %v3110 = vsel %vm3102, %v3104, %v3109
        %v3111 = vrot.slane %v2720, 2
        %v3112 = vsel %vm3102, %v3107, %v3111
        %v3113 = vrot.slane %v2721, 2
        %v3114 = vsel %vm3102, %v3109, %v3113
        %v3115 = vrot.slane %v2722, 2
        %v3116 = vsel %vm3102, %v3111, %v3115
        %v3117 = vrot.slane %v2723, 2
        %v3118 = vsel %vm3102, %v3113, %v3117
        %v3119 = vrot.slane %v2724, 2
        %v3120 = vsel %vm3102, %v3115, %v3119
        %v3121 = vrot.slane %v2725, 2
        %v3122 = vsel %vm3102, %v3117, %v3121
        %v3123 = vrot.slane %v2726, 2
        %v3124 = vsel %vm3102, %v3119, %v3123
        %v3125 = vrot.slane %v2727, 2
        %v3126 = vsel %vm3102, %v3121, %v3125
        %v3127 = vrot.slane %v2728, 2
        %v3128 = vsel %vm3102, %v3123, %v3127
        %v3129 = vrot.slane %v2729, 2
        %v3130 = vsel %vm3102, %v3125, %v3129
        %v3131 = vrot.slane %v2730, 2
        %v3132 = vsel %vm3102, %v3127, %v3131
        %v3133 = vrot.slane %v2731, 2
        %v3134 = vsel %vm3102, %v3129, %v3133
        %v3135 = vrot.slane %v2732, 2
        %v3136 = vsel %vm3102, %v3131, %v3135
        %v3137 = vrot.slane %v2733, 2
        %v3138 = vsel %vm3102, %v3133, %v3137
        %v3139 = vrot.slane %v2734, 2
        %v3140 = vsel %vm3102, %v3135, %v3139
        %v3141 = vrot.slane %v3032, 2
        %v3142 = vsel %vm3102, %v3137, %v3141
        %v3143 = vrot.slane %v3033, 2
        %v3144 = vsel %vm3102, %v3139, %v3143
        %3165 = vmatprep.subr.mxu0 %v3035
        %3166 = vmatpush1.msra.mxu0 %v3034
        %3167 = vmatprep.subr.mxu0 %v3037
        %3168 = vmatpush1.msra.mxu0 %v3036
        %3169 = vmatprep.subr.mxu0 %v3039
        %3170 = vmatpush1.msra.mxu0 %v3038
        %3171 = vmatprep.subr.mxu0 %v3041
        %3172 = vmatpush1.msra.mxu0 %v3040
        %3173 = vmatprep.subr.mxu0 %v3043
        %3174 = vmatpush1.msra.mxu0 %v3042
        %3175 = vmatprep.subr.mxu0 %v3045
        %3176 = vmatpush1.msra.mxu0 %v3044
        %3177 = vmatprep.subr.mxu0 %v3047
        %3178 = vmatpush1.msra.mxu0 %v3046
        %3179 = vmatprep.subr.mxu0 %v3049
        %3180 = vmatpush1.msra.mxu0 %v3048
        %3181 = vmatprep.subr.mxu0 %v3051
        %3182 = vmatpush1.msra.mxu0 %v3050
        %3183 = vmatprep.subr.mxu0 %v3053
        %3184 = vmatpush1.msra.mxu0 %v3052
        %3185 = vmatprep.subr.mxu0 %v3055
        %3186 = vmatpush1.msra.mxu0 %v3054
        %3187 = vmatprep.subr.mxu0 %v3057
        %3188 = vmatpush1.msra.mxu0 %v3056
        %3189 = vmatprep.subr.mxu0 %v3059
        %3190 = vmatpush1.msra.mxu0 %v3058
        %3191 = vmatprep.subr.mxu0 %v3061
        %3192 = vmatpush1.msra.mxu0 %v3060
        %3193 = vmatprep.subr.mxu0 %v3063
        %3194 = vmatpush1.msra.mxu0 %v3062
        %3195 = vmatprep.subr.mxu0 %v3065
        %3196 = vmatpush1.msra.mxu0 %v3064
        %3197 = vmatprep.subr.mxu0 %v3067
        %3198 = vmatpush1.msra.mxu0 %v3066
        %3199 = vmatprep.subr.mxu0 %v3069
        %3200 = vmatpush1.msra.mxu0 %v3068
        %3201 = vmatprep.subr.mxu0 %v3071
        %3202 = vmatpush1.msra.mxu0 %v3070
        %3203 = vmatprep.subr.mxu0 %v3073
        %3204 = vmatpush1.msra.mxu0 %v3072
        %3205 = vmatprep.subr.mxu0 %v3075
        %3206 = vmatpush1.msra.mxu0 %v3074
        %3207 = vmatprep.subr.mxu0 %v3077
        %3208 = vmatpush1.msra.mxu0 %v3076
        %3209 = vmatprep.subr.mxu0 %v3079
        %3210 = vmatpush1.msra.mxu0 %v3078
        %3211 = vmatprep.subr.mxu0 %v3081
        %3212 = vmatpush1.msra.mxu0 %v3080
        %3213 = vmatprep.subr.mxu0 %v3083
        %3214 = vmatpush1.msra.mxu0 %v3082
        %3215 = vmatprep.subr.mxu0 %v3085
        %3216 = vmatpush1.msra.mxu0 %v3084
        %3217 = vmatprep.subr.mxu0 %v3087
        %3218 = vmatpush1.msra.mxu0 %v3086
        %3219 = vmatprep.subr.mxu0 %v3089
        %3220 = vmatpush1.msra.mxu0 %v3088
        %3221 = vmatprep.subr.mxu0 %v3091
        %3222 = vmatpush1.msra.mxu0 %v3090
        %3223 = vmatprep.subr.mxu0 %v3093
        %3224 = vmatpush1.msra.mxu0 %v3092
        %3225 = vmatprep.subr.mxu0 %v3095
        %3226 = vmatpush1.msra.mxu0 %v3094
        %3227 = vmatprep.subr.mxu0 %v3097
        %3228 = vmatpush1.msra.mxu0 %v3096
        %3229 = vmatprep.mubr.f32.mxu0 %v3108
        %3230 = vmatmul.mubr.f32.gmra.mrb[0].mxu0 %v3105
        %v3231 = vpop.f32.mrb[0].mxu0
        %v3232 = vadd.f32 0.0, %v3231
        %v3233 = vpop.f32.mrb[0].mxu0
        %v3234 = vadd.f32 0.0, %v3233
        %3235 = vmatprep.mubr.f32.mxu0 %v3112
        %3236 = vmatmul.mubr.f32.gmra.mrb[0].mxu0 %v3110
        %v3237 = vpop.f32.mrb[0].mxu0
        %v3238 = vadd.f32 0.0, %v3237
        %v3239 = vpop.f32.mrb[0].mxu0
        %v3240 = vadd.f32 0.0, %v3239
        %3241 = vmatprep.mubr.f32.mxu0 %v3116
        %3242 = vmatmul.mubr.f32.gmra.mrb[0].mxu0 %v3114
        %v3243 = vpop.f32.mrb[0].mxu0
        %v3244 = vadd.f32 0.0, %v3243
        %v3245 = vpop.f32.mrb[0].mxu0
        %v3246 = vadd.f32 0.0, %v3245
        %3247 = vmatprep.mubr.f32.mxu0 %v3120
        %3248 = vmatmul.mubr.f32.gmra.mrb[0].mxu0 %v3118
        %v3249 = vpop.f32.mrb[0].mxu0
        %v3250 = vadd.f32 0.0, %v3249
        %v3251 = vpop.f32.mrb[0].mxu0
        %v3252 = vadd.f32 0.0, %v3251
        %3253 = vmatprep.mubr.f32.mxu0 %v3124
        %3254 = vmatmul.mubr.f32.gmra.mrb[0].mxu0 %v3122
        %v3255 = vpop.f32.mrb[0].mxu0
        %v3256 = vadd.f32 0.0, %v3255
        %v3257 = vpop.f32.mrb[0].mxu0
        %v3258 = vadd.f32 0.0, %v3257
        %3259 = vmatprep.mubr.f32.mxu0 %v3128
        %3260 = vmatmul.mubr.f32.gmra.mrb[0].mxu0 %v3126
        %v3261 = vpop.f32.mrb[0].mxu0
        %v3262 = vadd.f32 0.0, %v3261
        %v3263 = vpop.f32.mrb[0].mxu0
        %v3264 = vadd.f32 0.0, %v3263
        %3265 = vmatprep.mubr.f32.mxu0 %v3132
        %3266 = vmatmul.mubr.f32.gmra.mrb[0].mxu0 %v3130
        %v3267 = vpop.f32.mrb[0].mxu0
        %v3268 = vadd.f32 0.0, %v3267
        %v3269 = vpop.f32.mrb[0].mxu0
        %v3270 = vadd.f32 0.0, %v3269
        %3271 = vmatprep.mubr.f32.mxu0 %v3136
        %3272 = vmatmul.mubr.f32.gmra.mrb[0].mxu0 %v3134
        %v3273 = vpop.f32.mrb[0].mxu0
        %v3274 = vadd.f32 0.0, %v3273
        %v3275 = vpop.f32.mrb[0].mxu0
        %v3276 = vadd.f32 0.0, %v3275
        %3277 = vmatprep.mubr.f32.mxu0 %v3140
        %3278 = vmatmul.mubr.f32.gmra.mrb[0].mxu0 %v3138
        %v3279 = vpop.f32.mrb[0].mxu0
        %v3280 = vadd.f32 0.0, %v3279
        %v3281 = vpop.f32.mrb[0].mxu0
        %v3282 = vadd.f32 0.0, %v3281
        %3283 = vmatprep.mubr.f32.mxu0 %v3144
        %3284 = vmatmul.mubr.f32.gmra.mrb[0].mxu0 %v3142
        %v3285 = vpop.f32.mrb[0].mxu0
        %v3286 = vadd.f32 0.0, %v3285
        %v3287 = vpop.f32.mrb[0].mxu0
        %v3288 = vadd.f32 0.0, %v3287
        %3289 = vdwg.mxu0
        %v3290 = vadd.f32 %v3010, %v3232
        %v3291 = vadd.f32 %v3011, %v3234
        %v3292 = vadd.f32 %v3012, %v3238
        %v3293 = vadd.f32 %v3013, %v3240
        %v3294 = vadd.f32 %v3014, %v3244
        %v3295 = vadd.f32 %v3015, %v3246
        %v3296 = vadd.f32 %v3016, %v3250
        %v3297 = vadd.f32 %v3017, %v3252
        %v3298 = vadd.f32 %v3018, %v3256
        %v3299 = vadd.f32 %v3019, %v3258
        %v3300 = vadd.f32 %v3020, %v3262
        %v3301 = vadd.f32 %v3021, %v3264
        %v3302 = vadd.f32 %v3022, %v3268
        %v3303 = vadd.f32 %v3023, %v3270
        %v3304 = vadd.f32 %v3024, %v3274
        %v3305 = vadd.f32 %v3025, %v3276
        %v3306 = vadd.f32 %v3026, %v3280
        %v3307 = vadd.f32 %v3027, %v3282
        %v3308 = vadd.f32 %v3028, %v3286
        %v3309 = vadd.f32 %v3029, %v3288
        %v3310 = vld [vmem:[#allocation12] sm:$0x3]
        %v3312 = vlaneseq
        %v3313 = vshrl.u32 %v3312, 7
        %v3314 = vsub.s32 0, %v3313
        %v3315 = vrot.slane %v3310, %v3314
        %v3316 = vlaneseq
        %v3317 = vshrl.u32 %v3316, 7
        %v3318 = vsub.s32 1, %v3317
        %v3319 = vrot.slane %v3310, %v3318
        %v3322 = vadd.f32 %v3290, %v3315
        %v3323 = vadd.f32 %v3291, %v3319
        %v3324 = vadd.f32 %v3292, %v3315
        %v3325 = vadd.f32 %v3293, %v3319
        %v3326 = vadd.f32 %v3294, %v3315
        %v3327 = vadd.f32 %v3295, %v3319
        %v3328 = vadd.f32 %v3296, %v3315
        %v3329 = vadd.f32 %v3297, %v3319
        %v3330 = vadd.f32 %v3298, %v3315
        %v3331 = vadd.f32 %v3299, %v3319
        %v3332 = vadd.f32 %v3300, %v3315
        %v3333 = vadd.f32 %v3301, %v3319
        %v3334 = vadd.f32 %v3302, %v3315
        %v3335 = vadd.f32 %v3303, %v3319
        %v3336 = vadd.f32 %v3304, %v3315
        %v3337 = vadd.f32 %v3305, %v3319
        %v3338 = vadd.f32 %v3306, %v3315
        %v3339 = vadd.f32 %v3307, %v3319
        %v3340 = vadd.f32 %v3308, %v3315
        %v3341 = vadd.f32 %v3309, %v3319
        %v3342 = vmax.f32 %v3322, 0.0
        %v3343 = vmax.f32 %v3323, 0.0
        %v3344 = vmax.f32 %v3324, 0.0
        %v3345 = vmax.f32 %v3325, 0.0
        %v3346 = vmax.f32 %v3326, 0.0
        %v3347 = vmax.f32 %v3327, 0.0
        %v3348 = vmax.f32 %v3328, 0.0
        %v3349 = vmax.f32 %v3329, 0.0
        %v3350 = vmax.f32 %v3330, 0.0
        %v3351 = vmax.f32 %v3331, 0.0
        %v3352 = vmax.f32 %v3332, 0.0
        %v3353 = vmax.f32 %v3333, 0.0
        %v3354 = vmax.f32 %v3334, 0.0
        %v3355 = vmax.f32 %v3335, 0.0
        %v3356 = vmax.f32 %v3336, 0.0
        %v3357 = vmax.f32 %v3337, 0.0
        %v3358 = vmax.f32 %v3338, 0.0
        %v3359 = vmax.f32 %v3339, 0.0
        %v3360 = vmax.f32 %v3340, 0.0
        %v3361 = vmax.f32 %v3341, 0.0
        %v3362 = vsel %vm678, %v3342, 0.0
        %v3363 = vsel %vm678, %v3343, 0.0
        %v3364 = vsel %vm679, %v3344, 0.0
        %v3365 = vsel %vm679, %v3345, 0.0
        %v3366 = vsel %vm680, %v3346, 0.0
        %v3367 = vsel %vm680, %v3347, 0.0
        %v3368 = vsel %vm681, %v3348, 0.0
        %v3369 = vsel %vm681, %v3349, 0.0
        %v3370 = vsel %vm682, %v3350, 0.0
        %v3371 = vsel %vm682, %v3351, 0.0
        %v3372 = vsel %vm683, %v3352, 0.0
        %v3373 = vsel %vm683, %v3353, 0.0
        %v3374 = vsel %vm684, %v3354, 0.0
        %v3375 = vsel %vm684, %v3355, 0.0
        %v3376 = vsel %vm685, %v3356, 0.0
        %v3377 = vsel %vm685, %v3357, 0.0
        %v3378 = vsel %vm686, %v3358, 0.0
        %v3379 = vsel %vm686, %v3359, 0.0
        %v3380 = vsel %vm687, %v3360, 0.0
        %v3381 = vsel %vm687, %v3361, 0.0
        %3382 = vst [vmem:[#allocation2 + $0x10] sm:$0xff] %v3362
        %3383 = vst [vmem:[#allocation2 + $0x18] sm:$0xff] %v3363
        %3384 = vst [vmem:[#allocation2 + $0x20] sm:$0xff] %v3364
        %3385 = vst [vmem:[#allocation2 + $0x28] sm:$0xff] %v3365
        %3386 = vst [vmem:[#allocation2 + $0x30] sm:$0xff] %v3366
        %3387 = vst [vmem:[#allocation2 + $0x38] sm:$0xff] %v3367
        %3388 = vst [vmem:[#allocation2 + $0x40] sm:$0xff] %v3368
        %3389 = vst [vmem:[#allocation2 + $0x48] sm:$0xff] %v3369
        %3390 = vst [vmem:[#allocation2 + $0x50] sm:$0xff] %v3370
        %3391 = vst [vmem:[#allocation2 + $0x58] sm:$0xff] %v3371
        %3392 = vst [vmem:[#allocation2 + $0x60] sm:$0xff] %v3372
        %3393 = vst [vmem:[#allocation2 + $0x68] sm:$0xff] %v3373
        %3394 = vst [vmem:[#allocation2 + $0x70] sm:$0xff] %v3374
        %3395 = vst [vmem:[#allocation2 + $0x78] sm:$0xff] %v3375
        %3396 = vst [vmem:[#allocation2 + $0x80] sm:$0xff] %v3376
        %3397 = vst [vmem:[#allocation2 + $0x88] sm:$0xff] %v3377
        %3398 = vst [vmem:[#allocation2 + $0x90] sm:$0xff] %v3378
        %3399 = vst [vmem:[#allocation2 + $0x98] sm:$0xff] %v3379
        %3400 = vst [vmem:[#allocation2 + $0xa0] sm:$0xff] %v3380
        %3401 = vst [vmem:[#allocation2 + $0xa8] sm:$0xff] %v3381
        %v3402 = vld [vmem:[#allocation2] sm:$0xc0]
        %v3403 = vld [vmem:[#allocation2 + $0x8] sm:$0xc0]
        %v3404 = vld [vmem:[#allocation2 + $0x10] sm:$0xff]
        %v3405 = vld [vmem:[#allocation2 + $0x18] sm:$0xff]
        %v3406 = vld [vmem:[#allocation2 + $0x20] sm:$0xff]
        %v3407 = vld [vmem:[#allocation2 + $0x28] sm:$0xff]
        %v3408 = vld [vmem:[#allocation2 + $0x30] sm:$0xff]
        %v3409 = vld [vmem:[#allocation2 + $0x38] sm:$0xff]
        %v3410 = vld [vmem:[#allocation2 + $0x40] sm:$0xff]
        %v3411 = vld [vmem:[#allocation2 + $0x48] sm:$0xff]
        %v3412 = vld [vmem:[#allocation2 + $0x50] sm:$0xff]
        %v3413 = vld [vmem:[#allocation2 + $0x58] sm:$0xff]
        %v3414 = vld [vmem:[#allocation2 + $0x60] sm:$0xff]
        %v3415 = vld [vmem:[#allocation2 + $0x68] sm:$0xff]
        %v3416 = vld [vmem:[#allocation2 + $0x70] sm:$0xff]
        %v3417 = vld [vmem:[#allocation2 + $0x78] sm:$0xff]
        %v3418 = vld [vmem:[#allocation2 + $0x80] sm:$0xff]
        %v3419 = vld [vmem:[#allocation2 + $0x88] sm:$0xff]
        %v3420 = vld [vmem:[#allocation2 + $0x90] sm:$0xff]
        %v3421 = vld [vmem:[#allocation2 + $0x98] sm:$0xff]
        %v3422 = vld [vmem:[#allocation2 + $0xa0] sm:$0x3f]
        %v3423 = vld [vmem:[#allocation2 + $0xa8] sm:$0x3f]
        %v3424 = vld [vmem:[#allocation14] sm:$0xff]
        %v3425 = vld [vmem:[#allocation14 + $0x8] sm:$0xff]
        %v3426 = vld [vmem:[#allocation14 + $0x10] sm:$0xff]
        %v3427 = vld [vmem:[#allocation14 + $0x18] sm:$0xff]
        %v3428 = vld [vmem:[#allocation14 + $0x20] sm:$0xff]
        %v3429 = vld [vmem:[#allocation14 + $0x28] sm:$0xff]
        %v3430 = vld [vmem:[#allocation14 + $0x30] sm:$0xff]
        %v3431 = vld [vmem:[#allocation14 + $0x38] sm:$0xff]
        %v3432 = vld [vmem:[#allocation14 + $0x40] sm:$0xff]
        %v3433 = vld [vmem:[#allocation14 + $0x48] sm:$0xff]
        %v3434 = vld [vmem:[#allocation14 + $0x50] sm:$0xff]
        %v3435 = vld [vmem:[#allocation14 + $0x58] sm:$0xff]
        %v3436 = vld [vmem:[#allocation14 + $0x60] sm:$0xff]
        %v3437 = vld [vmem:[#allocation14 + $0x68] sm:$0xff]
        %v3438 = vld [vmem:[#allocation14 + $0x70] sm:$0xff]
        %v3439 = vld [vmem:[#allocation14 + $0x78] sm:$0xff]
        %v3440 = vld [vmem:[#allocation14 + $0x80] sm:$0xff]
        %v3441 = vld [vmem:[#allocation14 + $0x88] sm:$0xff]
        %v3442 = vld [vmem:[#allocation14 + $0x90] sm:$0xff]
        %v3443 = vld [vmem:[#allocation14 + $0x98] sm:$0xff]
        %v3444 = vld [vmem:[#allocation14 + $0xa0] sm:$0xff]
        %v3445 = vld [vmem:[#allocation14 + $0xa8] sm:$0xff]
        %v3446 = vld [vmem:[#allocation14 + $0xb0] sm:$0xff]
        %v3447 = vld [vmem:[#allocation14 + $0xb8] sm:$0xff]
        %v3448 = vld [vmem:[#allocation14 + $0xc0] sm:$0xff]
        %v3449 = vld [vmem:[#allocation14 + $0xc8] sm:$0xff]
        %v3450 = vld [vmem:[#allocation14 + $0xd0] sm:$0xff]
        %v3451 = vld [vmem:[#allocation14 + $0xd8] sm:$0xff]
        %v3452 = vld [vmem:[#allocation14 + $0xe0] sm:$0xff]
        %v3453 = vld [vmem:[#allocation14 + $0xe8] sm:$0xff]
        %v3454 = vld [vmem:[#allocation14 + $0xf0] sm:$0xff]
        %v3455 = vld [vmem:[#allocation14 + $0xf8] sm:$0xff]
        %v3456 = vld [vmem:[#allocation14 + $0x100] sm:$0xff]
        %v3457 = vld [vmem:[#allocation14 + $0x108] sm:$0xff]
        %v3458 = vld [vmem:[#allocation14 + $0x110] sm:$0xff]
        %v3459 = vld [vmem:[#allocation14 + $0x118] sm:$0xff]
        %v3460 = vld [vmem:[#allocation14 + $0x120] sm:$0xff]
        %v3461 = vld [vmem:[#allocation14 + $0x128] sm:$0xff]
        %v3462 = vld [vmem:[#allocation14 + $0x130] sm:$0xff]
        %v3463 = vld [vmem:[#allocation14 + $0x138] sm:$0xff]
        %v3464 = vld [vmem:[#allocation14 + $0x140] sm:$0xff]
        %v3465 = vld [vmem:[#allocation14 + $0x148] sm:$0xff]
        %v3466 = vld [vmem:[#allocation14 + $0x150] sm:$0xff]
        %v3467 = vld [vmem:[#allocation14 + $0x158] sm:$0xff]
        %v3468 = vld [vmem:[#allocation14 + $0x160] sm:$0xff]
        %v3469 = vld [vmem:[#allocation14 + $0x168] sm:$0xff]
        %v3470 = vld [vmem:[#allocation14 + $0x170] sm:$0xff]
        %v3471 = vld [vmem:[#allocation14 + $0x178] sm:$0xff]
        %v3472 = vld [vmem:[#allocation14 + $0x180] sm:$0xff]
        %v3473 = vld [vmem:[#allocation14 + $0x188] sm:$0xff]
        %v3474 = vld [vmem:[#allocation14 + $0x190] sm:$0xff]
        %v3475 = vld [vmem:[#allocation14 + $0x198] sm:$0xff]
        %v3476 = vld [vmem:[#allocation14 + $0x1a0] sm:$0xff]
        %v3477 = vld [vmem:[#allocation14 + $0x1a8] sm:$0xff]
        %v3478 = vld [vmem:[#allocation14 + $0x1b0] sm:$0xff]
        %v3479 = vld [vmem:[#allocation14 + $0x1b8] sm:$0xff]
        %v3480 = vld [vmem:[#allocation14 + $0x1c0] sm:$0xff]
        %v3481 = vld [vmem:[#allocation14 + $0x1c8] sm:$0xff]
        %v3482 = vld [vmem:[#allocation14 + $0x1d0] sm:$0xff]
        %v3483 = vld [vmem:[#allocation14 + $0x1d8] sm:$0xff]
        %v3484 = vld [vmem:[#allocation14 + $0x1e0] sm:$0xff]
        %v3485 = vld [vmem:[#allocation14 + $0x1e8] sm:$0xff]
        %v3486 = vld [vmem:[#allocation14 + $0x1f0] sm:$0xff]
        %v3487 = vld [vmem:[#allocation14 + $0x1f8] sm:$0xff]
        %v3488 = vld [vmem:[#allocation2] sm:$0x80]
        %v3489 = vld [vmem:[#allocation2 + $0x8] sm:$0x80]
        %v3490 = vld [vmem:[#allocation2 + $0xa0] sm:$0x7f]
        %v3491 = vld [vmem:[#allocation2 + $0xa8] sm:$0x7f]
        %v3492 = vld [vmem:[#allocation14 + $0x200] sm:$0xff]
        %v3493 = vld [vmem:[#allocation14 + $0x208] sm:$0xff]
        %v3494 = vld [vmem:[#allocation14 + $0x210] sm:$0xff]
        %v3495 = vld [vmem:[#allocation14 + $0x218] sm:$0xff]
        %v3496 = vld [vmem:[#allocation14 + $0x220] sm:$0xff]
        %v3497 = vld [vmem:[#allocation14 + $0x228] sm:$0xff]
        %v3498 = vld [vmem:[#allocation14 + $0x230] sm:$0xff]
        %v3499 = vld [vmem:[#allocation14 + $0x238] sm:$0xff]
        %v3500 = vld [vmem:[#allocation14 + $0x240] sm:$0xff]
        %v3501 = vld [vmem:[#allocation14 + $0x248] sm:$0xff]
        %v3502 = vld [vmem:[#allocation14 + $0x250] sm:$0xff]
        %v3503 = vld [vmem:[#allocation14 + $0x258] sm:$0xff]
        %v3504 = vld [vmem:[#allocation14 + $0x260] sm:$0xff]
        %v3505 = vld [vmem:[#allocation14 + $0x268] sm:$0xff]
        %v3506 = vld [vmem:[#allocation14 + $0x270] sm:$0xff]
        %v3507 = vld [vmem:[#allocation14 + $0x278] sm:$0xff]
        %v3508 = vld [vmem:[#allocation14 + $0x280] sm:$0xff]
        %v3509 = vld [vmem:[#allocation14 + $0x288] sm:$0xff]
        %v3510 = vld [vmem:[#allocation14 + $0x290] sm:$0xff]
        %v3511 = vld [vmem:[#allocation14 + $0x298] sm:$0xff]
        %v3512 = vld [vmem:[#allocation14 + $0x2a0] sm:$0xff]
        %v3513 = vld [vmem:[#allocation14 + $0x2a8] sm:$0xff]
        %v3514 = vld [vmem:[#allocation14 + $0x2b0] sm:$0xff]
        %v3515 = vld [vmem:[#allocation14 + $0x2b8] sm:$0xff]
        %v3516 = vld [vmem:[#allocation14 + $0x2c0] sm:$0xff]
        %v3517 = vld [vmem:[#allocation14 + $0x2c8] sm:$0xff]
        %v3518 = vld [vmem:[#allocation14 + $0x2d0] sm:$0xff]
        %v3519 = vld [vmem:[#allocation14 + $0x2d8] sm:$0xff]
        %v3520 = vld [vmem:[#allocation14 + $0x2e0] sm:$0xff]
        %v3521 = vld [vmem:[#allocation14 + $0x2e8] sm:$0xff]
        %v3522 = vld [vmem:[#allocation14 + $0x2f0] sm:$0xff]
        %v3523 = vld [vmem:[#allocation14 + $0x2f8] sm:$0xff]
        %v3524 = vld [vmem:[#allocation14 + $0x300] sm:$0xff]
        %v3525 = vld [vmem:[#allocation14 + $0x308] sm:$0xff]
        %v3526 = vld [vmem:[#allocation14 + $0x310] sm:$0xff]
        %v3527 = vld [vmem:[#allocation14 + $0x318] sm:$0xff]
        %v3528 = vld [vmem:[#allocation14 + $0x320] sm:$0xff]
        %v3529 = vld [vmem:[#allocation14 + $0x328] sm:$0xff]
        %v3530 = vld [vmem:[#allocation14 + $0x330] sm:$0xff]
        %v3531 = vld [vmem:[#allocation14 + $0x338] sm:$0xff]
        %v3532 = vld [vmem:[#allocation14 + $0x340] sm:$0xff]
        %v3533 = vld [vmem:[#allocation14 + $0x348] sm:$0xff]
        %v3534 = vld [vmem:[#allocation14 + $0x350] sm:$0xff]
        %v3535 = vld [vmem:[#allocation14 + $0x358] sm:$0xff]
        %v3536 = vld [vmem:[#allocation14 + $0x360] sm:$0xff]
        %v3537 = vld [vmem:[#allocation14 + $0x368] sm:$0xff]
        %v3538 = vld [vmem:[#allocation14 + $0x370] sm:$0xff]
        %v3539 = vld [vmem:[#allocation14 + $0x378] sm:$0xff]
        %v3540 = vld [vmem:[#allocation14 + $0x380] sm:$0xff]
        %v3541 = vld [vmem:[#allocation14 + $0x388] sm:$0xff]
        %v3542 = vld [vmem:[#allocation14 + $0x390] sm:$0xff]
        %v3543 = vld [vmem:[#allocation14 + $0x398] sm:$0xff]
        %v3544 = vld [vmem:[#allocation14 + $0x3a0] sm:$0xff]
        %v3545 = vld [vmem:[#allocation14 + $0x3a8] sm:$0xff]
        %v3546 = vld [vmem:[#allocation14 + $0x3b0] sm:$0xff]
        %v3547 = vld [vmem:[#allocation14 + $0x3b8] sm:$0xff]
        %v3548 = vld [vmem:[#allocation14 + $0x3c0] sm:$0xff]
        %v3549 = vld [vmem:[#allocation14 + $0x3c8] sm:$0xff]
        %v3550 = vld [vmem:[#allocation14 + $0x3d0] sm:$0xff]
        %v3551 = vld [vmem:[#allocation14 + $0x3d8] sm:$0xff]
        %v3552 = vld [vmem:[#allocation14 + $0x3e0] sm:$0xff]
        %v3553 = vld [vmem:[#allocation14 + $0x3e8] sm:$0xff]
        %v3554 = vld [vmem:[#allocation14 + $0x3f0] sm:$0xff]
        %v3555 = vld [vmem:[#allocation14 + $0x3f8] sm:$0xff]
        %v3578 = vrot.slane %v3488, 7
        %v3579 = vrot.slane %v3404, 7
        %v3580 = vsel %vm1353, %v3578, %v3579
        %v3581 = vrot.slane %v3489, 7
        %v3582 = vrot.slane %v3405, 7
        %v3583 = vsel %vm1353, %v3581, %v3582
        %v3584 = vrot.slane %v3406, 7
        %v3585 = vsel %vm1353, %v3579, %v3584
        %v3586 = vrot.slane %v3407, 7
        %v3587 = vsel %vm1353, %v3582, %v3586
        %v3588 = vrot.slane %v3408, 7
        %v3589 = vsel %vm1353, %v3584, %v3588
        %v3590 = vrot.slane %v3409, 7
        %v3591 = vsel %vm1353, %v3586, %v3590
        %v3592 = vrot.slane %v3410, 7
        %v3593 = vsel %vm1353, %v3588, %v3592
        %v3594 = vrot.slane %v3411, 7
        %v3595 = vsel %vm1353, %v3590, %v3594
        %v3596 = vrot.slane %v3412, 7
        %v3597 = vsel %vm1353, %v3592, %v3596
        %v3598 = vrot.slane %v3413, 7
        %v3599 = vsel %vm1353, %v3594, %v3598
        %v3600 = vrot.slane %v3414, 7
        %v3601 = vsel %vm1353, %v3596, %v3600
        %v3602 = vrot.slane %v3415, 7
        %v3603 = vsel %vm1353, %v3598, %v3602
        %v3604 = vrot.slane %v3416, 7
        %v3605 = vsel %vm1353, %v3600, %v3604
        %v3606 = vrot.slane %v3417, 7
        %v3607 = vsel %vm1353, %v3602, %v3606
        %v3608 = vrot.slane %v3418, 7
        %v3609 = vsel %vm1353, %v3604, %v3608
        %v3610 = vrot.slane %v3419, 7
        %v3611 = vsel %vm1353, %v3606, %v3610
        %v3612 = vrot.slane %v3420, 7
        %v3613 = vsel %vm1353, %v3608, %v3612
        %v3614 = vrot.slane %v3421, 7
        %v3615 = vsel %vm1353, %v3610, %v3614
        %v3616 = vrot.slane %v3490, 7
        %v3617 = vsel %vm1353, %v3612, %v3616
        %v3618 = vrot.slane %v3491, 7
        %v3619 = vsel %vm1353, %v3614, %v3618
        %3640 = vmatprep.subr.mxu0 %v3493
        %3641 = vmatpush1.msra.mxu0 %v3492
        %3642 = vmatprep.subr.mxu0 %v3495
        %3643 = vmatpush1.msra.mxu0 %v3494
        %3644 = vmatprep.subr.mxu0 %v3497
        %3645 = vmatpush1.msra.mxu0 %v3496
        %3646 = vmatprep.subr.mxu0 %v3499
        %3647 = vmatpush1.msra.mxu0 %v3498
        %3648 = vmatprep.subr.mxu0 %v3501
        %3649 = vmatpush1.msra.mxu0 %v3500
        %3650 = vmatprep.subr.mxu0 %v3503
        %3651 = vmatpush1.msra.mxu0 %v3502
        %3652 = vmatprep.subr.mxu0 %v3505
        %3653 = vmatpush1.msra.mxu0 %v3504
        %3654 = vmatprep.subr.mxu0 %v3507
        %3655 = vmatpush1.msra.mxu0 %v3506
        %3656 = vmatprep.subr.mxu0 %v3509
        %3657 = vmatpush1.msra.mxu0 %v3508
        %3658 = vmatprep.subr.mxu0 %v3511
        %3659 = vmatpush1.msra.mxu0 %v3510
        %3660 = vmatprep.subr.mxu0 %v3513
        %3661 = vmatpush1.msra.mxu0 %v3512
        %3662 = vmatprep.subr.mxu0 %v3515
        %3663 = vmatpush1.msra.mxu0 %v3514
        %3664 = vmatprep.subr.mxu0 %v3517
        %3665 = vmatpush1.msra.mxu0 %v3516
        %3666 = vmatprep.subr.mxu0 %v3519
        %3667 = vmatpush1.msra.mxu0 %v3518
        %3668 = vmatprep.subr.mxu0 %v3521
        %3669 = vmatpush1.msra.mxu0 %v3520
        %3670 = vmatprep.subr.mxu0 %v3523
        %3671 = vmatpush1.msra.mxu0 %v3522
        %3672 = vmatprep.subr.mxu0 %v3525
        %3673 = vmatpush1.msra.mxu0 %v3524
        %3674 = vmatprep.subr.mxu0 %v3527
        %3675 = vmatpush1.msra.mxu0 %v3526
        %3676 = vmatprep.subr.mxu0 %v3529
        %3677 = vmatpush1.msra.mxu0 %v3528
        %3678 = vmatprep.subr.mxu0 %v3531
        %3679 = vmatpush1.msra.mxu0 %v3530
        %3680 = vmatprep.subr.mxu0 %v3533
        %3681 = vmatpush1.msra.mxu0 %v3532
        %3682 = vmatprep.subr.mxu0 %v3535
        %3683 = vmatpush1.msra.mxu0 %v3534
        %3684 = vmatprep.subr.mxu0 %v3537
        %3685 = vmatpush1.msra.mxu0 %v3536
        %3686 = vmatprep.subr.mxu0 %v3539
        %3687 = vmatpush1.msra.mxu0 %v3538
        %3688 = vmatprep.subr.mxu0 %v3541
        %3689 = vmatpush1.msra.mxu0 %v3540
        %3690 = vmatprep.subr.mxu0 %v3543
        %3691 = vmatpush1.msra.mxu0 %v3542
        %3692 = vmatprep.subr.mxu0 %v3545
        %3693 = vmatpush1.msra.mxu0 %v3544
        %3694 = vmatprep.subr.mxu0 %v3547
        %3695 = vmatpush1.msra.mxu0 %v3546
        %3696 = vmatprep.subr.mxu0 %v3549
        %3697 = vmatpush1.msra.mxu0 %v3548
        %3698 = vmatprep.subr.mxu0 %v3551
        %3699 = vmatpush1.msra.mxu0 %v3550
        %3700 = vmatprep.subr.mxu0 %v3553
        %3701 = vmatpush1.msra.mxu0 %v3552
        %3702 = vmatprep.subr.mxu0 %v3555
        %3703 = vmatpush1.msra.mxu0 %v3554
        %3704 = vmatprep.mubr.f32.mxu0 %v3583
        %3705 = vmatmul.mubr.f32.gmra.mrb[0].mxu0 %v3580
        %v3706 = vpop.f32.mrb[0].mxu0
        %v3707 = vadd.f32 0.0, %v3706
        %v3708 = vpop.f32.mrb[0].mxu0
        %v3709 = vadd.f32 0.0, %v3708
        %3710 = vmatprep.mubr.f32.mxu0 %v3587
        %3711 = vmatmul.mubr.f32.gmra.mrb[0].mxu0 %v3585
        %v3712 = vpop.f32.mrb[0].mxu0
        %v3713 = vadd.f32 0.0, %v3712
        %v3714 = vpop.f32.mrb[0].mxu0
        %v3715 = vadd.f32 0.0, %v3714
        %3716 = vmatprep.mubr.f32.mxu0 %v3591
        %3717 = vmatmul.mubr.f32.gmra.mrb[0].mxu0 %v3589
        %v3718 = vpop.f32.mrb[0].mxu0
        %v3719 = vadd.f32 0.0, %v3718
        %v3720 = vpop.f32.mrb[0].mxu0
        %v3721 = vadd.f32 0.0, %v3720
        %3722 = vmatprep.mubr.f32.mxu0 %v3595
        %3723 = vmatmul.mubr.f32.gmra.mrb[0].mxu0 %v3593
        %v3724 = vpop.f32.mrb[0].mxu0
        %v3725 = vadd.f32 0.0, %v3724
        %v3726 = vpop.f32.mrb[0].mxu0
        %v3727 = vadd.f32 0.0, %v3726
        %3728 = vmatprep.mubr.f32.mxu0 %v3599
        %3729 = vmatmul.mubr.f32.gmra.mrb[0].mxu0 %v3597
        %v3730 = vpop.f32.mrb[0].mxu0
        %v3731 = vadd.f32 0.0, %v3730
        %v3732 = vpop.f32.mrb[0].mxu0
        %v3733 = vadd.f32 0.0, %v3732
        %3734 = vmatprep.mubr.f32.mxu0 %v3603
        %3735 = vmatmul.mubr.f32.gmra.mrb[0].mxu0 %v3601
        %v3736 = vpop.f32.mrb[0].mxu0
        %v3737 = vadd.f32 0.0, %v3736
        %v3738 = vpop.f32.mrb[0].mxu0
        %v3739 = vadd.f32 0.0, %v3738
        %3740 = vmatprep.mubr.f32.mxu0 %v3607
        %3741 = vmatmul.mubr.f32.gmra.mrb[0].mxu0 %v3605
        %v3742 = vpop.f32.mrb[0].mxu0
        %v3743 = vadd.f32 0.0, %v3742
        %v3744 = vpop.f32.mrb[0].mxu0
        %v3745 = vadd.f32 0.0, %v3744
        %3746 = vmatprep.mubr.f32.mxu0 %v3611
        %3747 = vmatmul.mubr.f32.gmra.mrb[0].mxu0 %v3609
        %v3748 = vpop.f32.mrb[0].mxu0
        %v3749 = vadd.f32 0.0, %v3748
        %v3750 = vpop.f32.mrb[0].mxu0
        %v3751 = vadd.f32 0.0, %v3750
        %3752 = vmatprep.mubr.f32.mxu0 %v3615
        %3753 = vmatmul.mubr.f32.gmra.mrb[0].mxu0 %v3613
        %v3754 = vpop.f32.mrb[0].mxu0
        %v3755 = vadd.f32 0.0, %v3754
        %v3756 = vpop.f32.mrb[0].mxu0
        %v3757 = vadd.f32 0.0, %v3756
        %3758 = vmatprep.mubr.f32.mxu0 %v3619
        %3759 = vmatmul.mubr.f32.gmra.mrb[0].mxu0 %v3617
        %v3760 = vpop.f32.mrb[0].mxu0
        %v3761 = vadd.f32 0.0, %v3760
        %v3762 = vpop.f32.mrb[0].mxu0
        %v3763 = vadd.f32 0.0, %v3762
        %3764 = vdwg.mxu0
        %v3769 = vrot.slane %v3402, 6
        %v3770 = vrot.slane %v3404, 6
        %v3771 = vsel %vm2316, %v3769, %v3770
        %v3772 = vrot.slane %v3403, 6
        %v3773 = vrot.slane %v3405, 6
        %v3774 = vsel %vm2316, %v3772, %v3773
        %v3775 = vrot.slane %v3406, 6
        %v3776 = vsel %vm2316, %v3770, %v3775
        %v3777 = vrot.slane %v3407, 6
        %v3778 = vsel %vm2316, %v3773, %v3777
        %v3779 = vrot.slane %v3408, 6
        %v3780 = vsel %vm2316, %v3775, %v3779
        %v3781 = vrot.slane %v3409, 6
        %v3782 = vsel %vm2316, %v3777, %v3781
        %v3783 = vrot.slane %v3410, 6
        %v3784 = vsel %vm2316, %v3779, %v3783
        %v3785 = vrot.slane %v3411, 6
        %v3786 = vsel %vm2316, %v3781, %v3785
        %v3787 = vrot.slane %v3412, 6
        %v3788 = vsel %vm2316, %v3783, %v3787
        %v3789 = vrot.slane %v3413, 6
        %v3790 = vsel %vm2316, %v3785, %v3789
        %v3791 = vrot.slane %v3414, 6
        %v3792 = vsel %vm2316, %v3787, %v3791
        %v3793 = vrot.slane %v3415, 6
        %v3794 = vsel %vm2316, %v3789, %v3793
        %v3795 = vrot.slane %v3416, 6
        %v3796 = vsel %vm2316, %v3791, %v3795
        %v3797 = vrot.slane %v3417, 6
        %v3798 = vsel %vm2316, %v3793, %v3797
        %v3799 = vrot.slane %v3418, 6
        %v3800 = vsel %vm2316, %v3795, %v3799
        %v3801 = vrot.slane %v3419, 6
        %v3802 = vsel %vm2316, %v3797, %v3801
        %v3803 = vrot.slane %v3420, 6
        %v3804 = vsel %vm2316, %v3799, %v3803
        %v3805 = vrot.slane %v3421, 6
        %v3806 = vsel %vm2316, %v3801, %v3805
        %v3807 = vrot.slane %v3422, 6
        %v3808 = vsel %vm2316, %v3803, %v3807
        %v3809 = vrot.slane %v3423, 6
        %v3810 = vsel %vm2316, %v3805, %v3809
        %3831 = vmatprep.subr.mxu0 %v3425
        %3832 = vmatpush1.msra.mxu0 %v3424
        %3833 = vmatprep.subr.mxu0 %v3427
        %3834 = vmatpush1.msra.mxu0 %v3426
        %3835 = vmatprep.subr.mxu0 %v3429
        %3836 = vmatpush1.msra.mxu0 %v3428
        %3837 = vmatprep.subr.mxu0 %v3431
        %3838 = vmatpush1.msra.mxu0 %v3430
        %3839 = vmatprep.subr.mxu0 %v3433
        %3840 = vmatpush1.msra.mxu0 %v3432
        %3841 = vmatprep.subr.mxu0 %v3435
        %3842 = vmatpush1.msra.mxu0 %v3434
        %3843 = vmatprep.subr.mxu0 %v3437
        %3844 = vmatpush1.msra.mxu0 %v3436
        %3845 = vmatprep.subr.mxu0 %v3439
        %3846 = vmatpush1.msra.mxu0 %v3438
        %3847 = vmatprep.subr.mxu0 %v3441
        %3848 = vmatpush1.msra.mxu0 %v3440
        %3849 = vmatprep.subr.mxu0 %v3443
        %3850 = vmatpush1.msra.mxu0 %v3442
        %3851 = vmatprep.subr.mxu0 %v3445
        %3852 = vmatpush1.msra.mxu0 %v3444
        %3853 = vmatprep.subr.mxu0 %v3447
        %3854 = vmatpush1.msra.mxu0 %v3446
        %3855 = vmatprep.subr.mxu0 %v3449
        %3856 = vmatpush1.msra.mxu0 %v3448
        %3857 = vmatprep.subr.mxu0 %v3451
        %3858 = vmatpush1.msra.mxu0 %v3450
        %3859 = vmatprep.subr.mxu0 %v3453
        %3860 = vmatpush1.msra.mxu0 %v3452
        %3861 = vmatprep.subr.mxu0 %v3455
        %3862 = vmatpush1.msra.mxu0 %v3454
        %3863 = vmatprep.subr.mxu0 %v3457
        %3864 = vmatpush1.msra.mxu0 %v3456
        %3865 = vmatprep.subr.mxu0 %v3459
        %3866 = vmatpush1.msra.mxu0 %v3458
        %3867 = vmatprep.subr.mxu0 %v3461
        %3868 = vmatpush1.msra.mxu0 %v3460
        %3869 = vmatprep.subr.mxu0 %v3463
        %3870 = vmatpush1.msra.mxu0 %v3462
        %3871 = vmatprep.subr.mxu0 %v3465
        %3872 = vmatpush1.msra.mxu0 %v3464
        %3873 = vmatprep.subr.mxu0 %v3467
        %3874 = vmatpush1.msra.mxu0 %v3466
        %3875 = vmatprep.subr.mxu0 %v3469
        %3876 = vmatpush1.msra.mxu0 %v3468
        %3877 = vmatprep.subr.mxu0 %v3471
        %3878 = vmatpush1.msra.mxu0 %v3470
        %3879 = vmatprep.subr.mxu0 %v3473
        %3880 = vmatpush1.msra.mxu0 %v3472
        %3881 = vmatprep.subr.mxu0 %v3475
        %3882 = vmatpush1.msra.mxu0 %v3474
        %3883 = vmatprep.subr.mxu0 %v3477
        %3884 = vmatpush1.msra.mxu0 %v3476
        %3885 = vmatprep.subr.mxu0 %v3479
        %3886 = vmatpush1.msra.mxu0 %v3478
        %3887 = vmatprep.subr.mxu0 %v3481
        %3888 = vmatpush1.msra.mxu0 %v3480
        %3889 = vmatprep.subr.mxu0 %v3483
        %3890 = vmatpush1.msra.mxu0 %v3482
        %3891 = vmatprep.subr.mxu0 %v3485
        %3892 = vmatpush1.msra.mxu0 %v3484
        %3893 = vmatprep.subr.mxu0 %v3487
        %3894 = vmatpush1.msra.mxu0 %v3486
        %3895 = vmatprep.mubr.f32.mxu0 %v3774
        %3896 = vmatmul.mubr.f32.gmra.mrb[0].mxu0 %v3771
        %v3897 = vpop.f32.mrb[0].mxu0
        %v3898 = vadd.f32 %v3707, %v3897
        %v3899 = vpop.f32.mrb[0].mxu0
        %v3900 = vadd.f32 %v3709, %v3899
        %3901 = vmatprep.mubr.f32.mxu0 %v3778
        %3902 = vmatmul.mubr.f32.gmra.mrb[0].mxu0 %v3776
        %v3903 = vpop.f32.mrb[0].mxu0
        %v3904 = vadd.f32 %v3713, %v3903
        %v3905 = vpop.f32.mrb[0].mxu0
        %v3906 = vadd.f32 %v3715, %v3905
        %3907 = vmatprep.mubr.f32.mxu0 %v3782
        %3908 = vmatmul.mubr.f32.gmra.mrb[0].mxu0 %v3780
        %v3909 = vpop.f32.mrb[0].mxu0
        %v3910 = vadd.f32 %v3719, %v3909
        %v3911 = vpop.f32.mrb[0].mxu0
        %v3912 = vadd.f32 %v3721, %v3911
        %3913 = vmatprep.mubr.f32.mxu0 %v3786
        %3914 = vmatmul.mubr.f32.gmra.mrb[0].mxu0 %v3784
        %v3915 = vpop.f32.mrb[0].mxu0
        %v3916 = vadd.f32 %v3725, %v3915
        %v3917 = vpop.f32.mrb[0].mxu0
        %v3918 = vadd.f32 %v3727, %v3917
        %3919 = vmatprep.mubr.f32.mxu0 %v3790
        %3920 = vmatmul.mubr.f32.gmra.mrb[0].mxu0 %v3788
        %v3921 = vpop.f32.mrb[0].mxu0
        %v3922 = vadd.f32 %v3731, %v3921
        %v3923 = vpop.f32.mrb[0].mxu0
        %v3924 = vadd.f32 %v3733, %v3923
        %3925 = vmatprep.mubr.f32.mxu0 %v3794
        %3926 = vmatmul.mubr.f32.gmra.mrb[0].mxu0 %v3792
        %v3927 = vpop.f32.mrb[0].mxu0
        %v3928 = vadd.f32 %v3737, %v3927
        %v3929 = vpop.f32.mrb[0].mxu0
        %v3930 = vadd.f32 %v3739, %v3929
        %3931 = vmatprep.mubr.f32.mxu0 %v3798
        %3932 = vmatmul.mubr.f32.gmra.mrb[0].mxu0 %v3796
        %v3933 = vpop.f32.mrb[0].mxu0
        %v3934 = vadd.f32 %v3743, %v3933
        %v3935 = vpop.f32.mrb[0].mxu0
        %v3936 = vadd.f32 %v3745, %v3935
        %3937 = vmatprep.mubr.f32.mxu0 %v3802
        %3938 = vmatmul.mubr.f32.gmra.mrb[0].mxu0 %v3800
        %v3939 = vpop.f32.mrb[0].mxu0
        %v3940 = vadd.f32 %v3749, %v3939
        %v3941 = vpop.f32.mrb[0].mxu0
        %v3942 = vadd.f32 %v3751, %v3941
        %3943 = vmatprep.mubr.f32.mxu0 %v3806
        %3944 = vmatmul.mubr.f32.gmra.mrb[0].mxu0 %v3804
        %v3945 = vpop.f32.mrb[0].mxu0
        %v3946 = vadd.f32 %v3755, %v3945
        %v3947 = vpop.f32.mrb[0].mxu0
        %v3948 = vadd.f32 %v3757, %v3947
        %3949 = vmatprep.mubr.f32.mxu0 %v3810
        %3950 = vmatmul.mubr.f32.gmra.mrb[0].mxu0 %v3808
        %v3951 = vpop.f32.mrb[0].mxu0
        %v3952 = vadd.f32 %v3761, %v3951
        %v3953 = vpop.f32.mrb[0].mxu0
        %v3954 = vadd.f32 %v3763, %v3953
        %3955 = vdwg.mxu0
        %v3956 = vld [vmem:[#allocation2 + $0xa0] sm:$0xff]
        %v3957 = vld [vmem:[#allocation2 + $0xa8] sm:$0xff]
        %v3958 = vld [vmem:[#allocation14 + $0x400] sm:$0xff]
        %v3959 = vld [vmem:[#allocation14 + $0x408] sm:$0xff]
        %v3960 = vld [vmem:[#allocation14 + $0x410] sm:$0xff]
        %v3961 = vld [vmem:[#allocation14 + $0x418] sm:$0xff]
        %v3962 = vld [vmem:[#allocation14 + $0x420] sm:$0xff]
        %v3963 = vld [vmem:[#allocation14 + $0x428] sm:$0xff]
        %v3964 = vld [vmem:[#allocation14 + $0x430] sm:$0xff]
        %v3965 = vld [vmem:[#allocation14 + $0x438] sm:$0xff]
        %v3966 = vld [vmem:[#allocation14 + $0x440] sm:$0xff]
        %v3967 = vld [vmem:[#allocation14 + $0x448] sm:$0xff]
        %v3968 = vld [vmem:[#allocation14 + $0x450] sm:$0xff]
        %v3969 = vld [vmem:[#allocation14 + $0x458] sm:$0xff]
        %v3970 = vld [vmem:[#allocation14 + $0x460] sm:$0xff]
        %v3971 = vld [vmem:[#allocation14 + $0x468] sm:$0xff]
        %v3972 = vld [vmem:[#allocation14 + $0x470] sm:$0xff]
        %v3973 = vld [vmem:[#allocation14 + $0x478] sm:$0xff]
        %v3974 = vld [vmem:[#allocation14 + $0x480] sm:$0xff]
        %v3975 = vld [vmem:[#allocation14 + $0x488] sm:$0xff]
        %v3976 = vld [vmem:[#allocation14 + $0x490] sm:$0xff]
        %v3977 = vld [vmem:[#allocation14 + $0x498] sm:$0xff]
        %v3978 = vld [vmem:[#allocation14 + $0x4a0] sm:$0xff]
        %v3979 = vld [vmem:[#allocation14 + $0x4a8] sm:$0xff]
        %v3980 = vld [vmem:[#allocation14 + $0x4b0] sm:$0xff]
        %v3981 = vld [vmem:[#allocation14 + $0x4b8] sm:$0xff]
        %v3982 = vld [vmem:[#allocation14 + $0x4c0] sm:$0xff]
        %v3983 = vld [vmem:[#allocation14 + $0x4c8] sm:$0xff]
        %v3984 = vld [vmem:[#allocation14 + $0x4d0] sm:$0xff]
        %v3985 = vld [vmem:[#allocation14 + $0x4d8] sm:$0xff]
        %v3986 = vld [vmem:[#allocation14 + $0x4e0] sm:$0xff]
        %v3987 = vld [vmem:[#allocation14 + $0x4e8] sm:$0xff]
        %v3988 = vld [vmem:[#allocation14 + $0x4f0] sm:$0xff]
        %v3989 = vld [vmem:[#allocation14 + $0x4f8] sm:$0xff]
        %v3990 = vld [vmem:[#allocation14 + $0x500] sm:$0xff]
        %v3991 = vld [vmem:[#allocation14 + $0x508] sm:$0xff]
        %v3992 = vld [vmem:[#allocation14 + $0x510] sm:$0xff]
        %v3993 = vld [vmem:[#allocation14 + $0x518] sm:$0xff]
        %v3994 = vld [vmem:[#allocation14 + $0x520] sm:$0xff]
        %v3995 = vld [vmem:[#allocation14 + $0x528] sm:$0xff]
        %v3996 = vld [vmem:[#allocation14 + $0x530] sm:$0xff]
        %v3997 = vld [vmem:[#allocation14 + $0x538] sm:$0xff]
        %v3998 = vld [vmem:[#allocation14 + $0x540] sm:$0xff]
        %v3999 = vld [vmem:[#allocation14 + $0x548] sm:$0xff]
        %v4000 = vld [vmem:[#allocation14 + $0x550] sm:$0xff]
        %v4001 = vld [vmem:[#allocation14 + $0x558] sm:$0xff]
        %v4002 = vld [vmem:[#allocation14 + $0x560] sm:$0xff]
        %v4003 = vld [vmem:[#allocation14 + $0x568] sm:$0xff]
        %v4004 = vld [vmem:[#allocation14 + $0x570] sm:$0xff]
        %v4005 = vld [vmem:[#allocation14 + $0x578] sm:$0xff]
        %v4006 = vld [vmem:[#allocation14 + $0x580] sm:$0xff]
        %v4007 = vld [vmem:[#allocation14 + $0x588] sm:$0xff]
        %v4008 = vld [vmem:[#allocation14 + $0x590] sm:$0xff]
        %v4009 = vld [vmem:[#allocation14 + $0x598] sm:$0xff]
        %v4010 = vld [vmem:[#allocation14 + $0x5a0] sm:$0xff]
        %v4011 = vld [vmem:[#allocation14 + $0x5a8] sm:$0xff]
        %v4012 = vld [vmem:[#allocation14 + $0x5b0] sm:$0xff]
        %v4013 = vld [vmem:[#allocation14 + $0x5b8] sm:$0xff]
        %v4014 = vld [vmem:[#allocation14 + $0x5c0] sm:$0xff]
        %v4015 = vld [vmem:[#allocation14 + $0x5c8] sm:$0xff]
        %v4016 = vld [vmem:[#allocation14 + $0x5d0] sm:$0xff]
        %v4017 = vld [vmem:[#allocation14 + $0x5d8] sm:$0xff]
        %v4018 = vld [vmem:[#allocation14 + $0x5e0] sm:$0xff]
        %v4019 = vld [vmem:[#allocation14 + $0x5e8] sm:$0xff]
        %v4020 = vld [vmem:[#allocation14 + $0x5f0] sm:$0xff]
        %v4021 = vld [vmem:[#allocation14 + $0x5f8] sm:$0xff]
        %4022 = vmatprep.subr.mxu0 %v3959
        %4023 = vmatpush1.msra.mxu0 %v3958
        %4024 = vmatprep.subr.mxu0 %v3961
        %4025 = vmatpush1.msra.mxu0 %v3960
        %4026 = vmatprep.subr.mxu0 %v3963
        %4027 = vmatpush1.msra.mxu0 %v3962
        %4028 = vmatprep.subr.mxu0 %v3965
        %4029 = vmatpush1.msra.mxu0 %v3964
        %4030 = vmatprep.subr.mxu0 %v3967
        %4031 = vmatpush1.msra.mxu0 %v3966
        %4032 = vmatprep.subr.mxu0 %v3969
        %4033 = vmatpush1.msra.mxu0 %v3968
        %4034 = vmatprep.subr.mxu0 %v3971
        %4035 = vmatpush1.msra.mxu0 %v3970
        %4036 = vmatprep.subr.mxu0 %v3973
        %4037 = vmatpush1.msra.mxu0 %v3972
        %4038 = vmatprep.subr.mxu0 %v3975
        %4039 = vmatpush1.msra.mxu0 %v3974
        %4040 = vmatprep.subr.mxu0 %v3977
        %4041 = vmatpush1.msra.mxu0 %v3976
        %4042 = vmatprep.subr.mxu0 %v3979
        %4043 = vmatpush1.msra.mxu0 %v3978
        %4044 = vmatprep.subr.mxu0 %v3981
        %4045 = vmatpush1.msra.mxu0 %v3980
        %4046 = vmatprep.subr.mxu0 %v3983
        %4047 = vmatpush1.msra.mxu0 %v3982
        %4048 = vmatprep.subr.mxu0 %v3985
        %4049 = vmatpush1.msra.mxu0 %v3984
        %4050 = vmatprep.subr.mxu0 %v3987
        %4051 = vmatpush1.msra.mxu0 %v3986
        %4052 = vmatprep.subr.mxu0 %v3989
        %4053 = vmatpush1.msra.mxu0 %v3988
        %4054 = vmatprep.subr.mxu0 %v3991
        %4055 = vmatpush1.msra.mxu0 %v3990
        %4056 = vmatprep.subr.mxu0 %v3993
        %4057 = vmatpush1.msra.mxu0 %v3992
        %4058 = vmatprep.subr.mxu0 %v3995
        %4059 = vmatpush1.msra.mxu0 %v3994
        %4060 = vmatprep.subr.mxu0 %v3997
        %4061 = vmatpush1.msra.mxu0 %v3996
        %4062 = vmatprep.subr.mxu0 %v3999
        %4063 = vmatpush1.msra.mxu0 %v3998
        %4064 = vmatprep.subr.mxu0 %v4001
        %4065 = vmatpush1.msra.mxu0 %v4000
        %4066 = vmatprep.subr.mxu0 %v4003
        %4067 = vmatpush1.msra.mxu0 %v4002
        %4068 = vmatprep.subr.mxu0 %v4005
        %4069 = vmatpush1.msra.mxu0 %v4004
        %4070 = vmatprep.subr.mxu0 %v4007
        %4071 = vmatpush1.msra.mxu0 %v4006
        %4072 = vmatprep.subr.mxu0 %v4009
        %4073 = vmatpush1.msra.mxu0 %v4008
        %4074 = vmatprep.subr.mxu0 %v4011
        %4075 = vmatpush1.msra.mxu0 %v4010
        %4076 = vmatprep.subr.mxu0 %v4013
        %4077 = vmatpush1.msra.mxu0 %v4012
        %4078 = vmatprep.subr.mxu0 %v4015
        %4079 = vmatpush1.msra.mxu0 %v4014
        %4080 = vmatprep.subr.mxu0 %v4017
        %4081 = vmatpush1.msra.mxu0 %v4016
        %4082 = vmatprep.subr.mxu0 %v4019
        %4083 = vmatpush1.msra.mxu0 %v4018
        %4084 = vmatprep.subr.mxu0 %v4021
        %4085 = vmatpush1.msra.mxu0 %v4020
        %4086 = vmatprep.mubr.f32.mxu0 %v3405
        %4087 = vmatmul.mubr.f32.gmra.mrb[0].mxu0 %v3404
        %v4088 = vpop.f32.mrb[0].mxu0
        %v4089 = vadd.f32 0.0, %v4088
        %v4090 = vpop.f32.mrb[0].mxu0
        %v4091 = vadd.f32 0.0, %v4090
        %4092 = vmatprep.mubr.f32.mxu0 %v3407
        %4093 = vmatmul.mubr.f32.gmra.mrb[0].mxu0 %v3406
        %v4094 = vpop.f32.mrb[0].mxu0
        %v4095 = vadd.f32 0.0, %v4094
        %v4096 = vpop.f32.mrb[0].mxu0
        %v4097 = vadd.f32 0.0, %v4096
        %4098 = vmatprep.mubr.f32.mxu0 %v3409
        %4099 = vmatmul.mubr.f32.gmra.mrb[0].mxu0 %v3408
        %v4100 = vpop.f32.mrb[0].mxu0
        %v4101 = vadd.f32 0.0, %v4100
        %v4102 = vpop.f32.mrb[0].mxu0
        %v4103 = vadd.f32 0.0, %v4102
        %4104 = vmatprep.mubr.f32.mxu0 %v3411
        %4105 = vmatmul.mubr.f32.gmra.mrb[0].mxu0 %v3410
        %v4106 = vpop.f32.mrb[0].mxu0
        %v4107 = vadd.f32 0.0, %v4106
        %v4108 = vpop.f32.mrb[0].mxu0
        %v4109 = vadd.f32 0.0, %v4108
        %4110 = vmatprep.mubr.f32.mxu0 %v3413
        %4111 = vmatmul.mubr.f32.gmra.mrb[0].mxu0 %v3412
        %v4112 = vpop.f32.mrb[0].mxu0
        %v4113 = vadd.f32 0.0, %v4112
        %v4114 = vpop.f32.mrb[0].mxu0
        %v4115 = vadd.f32 0.0, %v4114
        %4116 = vmatprep.mubr.f32.mxu0 %v3415
        %4117 = vmatmul.mubr.f32.gmra.mrb[0].mxu0 %v3414
        %v4118 = vpop.f32.mrb[0].mxu0
        %v4119 = vadd.f32 0.0, %v4118
        %v4120 = vpop.f32.mrb[0].mxu0
        %v4121 = vadd.f32 0.0, %v4120
        %4122 = vmatprep.mubr.f32.mxu0 %v3417
        %4123 = vmatmul.mubr.f32.gmra.mrb[0].mxu0 %v3416
        %v4124 = vpop.f32.mrb[0].mxu0
        %v4125 = vadd.f32 0.0, %v4124
        %v4126 = vpop.f32.mrb[0].mxu0
        %v4127 = vadd.f32 0.0, %v4126
        %4128 = vmatprep.mubr.f32.mxu0 %v3419
        %4129 = vmatmul.mubr.f32.gmra.mrb[0].mxu0 %v3418
        %v4130 = vpop.f32.mrb[0].mxu0
        %v4131 = vadd.f32 0.0, %v4130
        %v4132 = vpop.f32.mrb[0].mxu0
        %v4133 = vadd.f32 0.0, %v4132
        %4134 = vmatprep.mubr.f32.mxu0 %v3421
        %4135 = vmatmul.mubr.f32.gmra.mrb[0].mxu0 %v3420
        %v4136 = vpop.f32.mrb[0].mxu0
        %v4137 = vadd.f32 0.0, %v4136
        %v4138 = vpop.f32.mrb[0].mxu0
        %v4139 = vadd.f32 0.0, %v4138
        %4140 = vmatprep.mubr.f32.mxu0 %v3957
        %4141 = vmatmul.mubr.f32.gmra.mrb[0].mxu0 %v3956
        %v4142 = vpop.f32.mrb[0].mxu0
        %v4143 = vadd.f32 0.0, %v4142
        %v4144 = vpop.f32.mrb[0].mxu0
        %v4145 = vadd.f32 0.0, %v4144
        %4146 = vdwg.mxu0
        %v4147 = vadd.f32 %v3898, %v4089
        %v4148 = vadd.f32 %v3900, %v4091
        %v4149 = vadd.f32 %v3904, %v4095
        %v4150 = vadd.f32 %v3906, %v4097
        %v4151 = vadd.f32 %v3910, %v4101
        %v4152 = vadd.f32 %v3912, %v4103
        %v4153 = vadd.f32 %v3916, %v4107
        %v4154 = vadd.f32 %v3918, %v4109
        %v4155 = vadd.f32 %v3922, %v4113
        %v4156 = vadd.f32 %v3924, %v4115
        %v4157 = vadd.f32 %v3928, %v4119
        %v4158 = vadd.f32 %v3930, %v4121
        %v4159 = vadd.f32 %v3934, %v4125
        %v4160 = vadd.f32 %v3936, %v4127
        %v4161 = vadd.f32 %v3940, %v4131
        %v4162 = vadd.f32 %v3942, %v4133
        %v4163 = vadd.f32 %v3946, %v4137
        %v4164 = vadd.f32 %v3948, %v4139
        %v4165 = vadd.f32 %v3952, %v4143
        %v4166 = vadd.f32 %v3954, %v4145
        %v4167 = vld [vmem:[#allocation2 + $0x10] sm:$0xfe]
        %v4168 = vld [vmem:[#allocation2 + $0x18] sm:$0xfe]
        %v4169 = vld [vmem:[#allocation2 + $0x20] sm:$0xff]
        %v4170 = vld [vmem:[#allocation2 + $0x28] sm:$0xff]
        %v4171 = vld [vmem:[#allocation2 + $0x30] sm:$0xff]
        %v4172 = vld [vmem:[#allocation2 + $0x38] sm:$0xff]
        %v4173 = vld [vmem:[#allocation2 + $0x40] sm:$0xff]
        %v4174 = vld [vmem:[#allocation2 + $0x48] sm:$0xff]
        %v4175 = vld [vmem:[#allocation2 + $0x50] sm:$0xff]
        %v4176 = vld [vmem:[#allocation2 + $0x58] sm:$0xff]
        %v4177 = vld [vmem:[#allocation2 + $0x60] sm:$0xff]
        %v4178 = vld [vmem:[#allocation2 + $0x68] sm:$0xff]
        %v4179 = vld [vmem:[#allocation2 + $0x70] sm:$0xff]
        %v4180 = vld [vmem:[#allocation2 + $0x78] sm:$0xff]
        %v4181 = vld [vmem:[#allocation2 + $0x80] sm:$0xff]
        %v4182 = vld [vmem:[#allocation2 + $0x88] sm:$0xff]
        %v4183 = vld [vmem:[#allocation2 + $0x90] sm:$0xff]
        %v4184 = vld [vmem:[#allocation2 + $0x98] sm:$0xff]
        %v4185 = vld [vmem:[#allocation2 + $0xa0] sm:$0xff]
        %v4186 = vld [vmem:[#allocation2 + $0xa8] sm:$0xff]
        %v4187 = vld [vmem:[#allocation2 + $0xb0] sm:$0x1]
        %v4188 = vld [vmem:[#allocation2 + $0xb8] sm:$0x1]
        %v4189 = vld [vmem:[#allocation14 + $0x600] sm:$0xff]
        %v4190 = vld [vmem:[#allocation14 + $0x608] sm:$0xff]
        %v4191 = vld [vmem:[#allocation14 + $0x610] sm:$0xff]
        %v4192 = vld [vmem:[#allocation14 + $0x618] sm:$0xff]
        %v4193 = vld [vmem:[#allocation14 + $0x620] sm:$0xff]
        %v4194 = vld [vmem:[#allocation14 + $0x628] sm:$0xff]
        %v4195 = vld [vmem:[#allocation14 + $0x630] sm:$0xff]
        %v4196 = vld [vmem:[#allocation14 + $0x638] sm:$0xff]
        %v4197 = vld [vmem:[#allocation14 + $0x640] sm:$0xff]
        %v4198 = vld [vmem:[#allocation14 + $0x648] sm:$0xff]
        %v4199 = vld [vmem:[#allocation14 + $0x650] sm:$0xff]
        %v4200 = vld [vmem:[#allocation14 + $0x658] sm:$0xff]
        %v4201 = vld [vmem:[#allocation14 + $0x660] sm:$0xff]
        %v4202 = vld [vmem:[#allocation14 + $0x668] sm:$0xff]
        %v4203 = vld [vmem:[#allocation14 + $0x670] sm:$0xff]
        %v4204 = vld [vmem:[#allocation14 + $0x678] sm:$0xff]
        %v4205 = vld [vmem:[#allocation14 + $0x680] sm:$0xff]
        %v4206 = vld [vmem:[#allocation14 + $0x688] sm:$0xff]
        %v4207 = vld [vmem:[#allocation14 + $0x690] sm:$0xff]
        %v4208 = vld [vmem:[#allocation14 + $0x698] sm:$0xff]
        %v4209 = vld [vmem:[#allocation14 + $0x6a0] sm:$0xff]
        %v4210 = vld [vmem:[#allocation14 + $0x6a8] sm:$0xff]
        %v4211 = vld [vmem:[#allocation14 + $0x6b0] sm:$0xff]
        %v4212 = vld [vmem:[#allocation14 + $0x6b8] sm:$0xff]
        %v4213 = vld [vmem:[#allocation14 + $0x6c0] sm:$0xff]
        %v4214 = vld [vmem:[#allocation14 + $0x6c8] sm:$0xff]
        %v4215 = vld [vmem:[#allocation14 + $0x6d0] sm:$0xff]
        %v4216 = vld [vmem:[#allocation14 + $0x6d8] sm:$0xff]
        %v4217 = vld [vmem:[#allocation14 + $0x6e0] sm:$0xff]
        %v4218 = vld [vmem:[#allocation14 + $0x6e8] sm:$0xff]
        %v4219 = vld [vmem:[#allocation14 + $0x6f0] sm:$0xff]
        %v4220 = vld [vmem:[#allocation14 + $0x6f8] sm:$0xff]
        %v4221 = vld [vmem:[#allocation14 + $0x700] sm:$0xff]
        %v4222 = vld [vmem:[#allocation14 + $0x708] sm:$0xff]
        %v4223 = vld [vmem:[#allocation14 + $0x710] sm:$0xff]
        %v4224 = vld [vmem:[#allocation14 + $0x718] sm:$0xff]
        %v4225 = vld [vmem:[#allocation14 + $0x720] sm:$0xff]
        %v4226 = vld [vmem:[#allocation14 + $0x728] sm:$0xff]
        %v4227 = vld [vmem:[#allocation14 + $0x730] sm:$0xff]
        %v4228 = vld [vmem:[#allocation14 + $0x738] sm:$0xff]
        %v4229 = vld [vmem:[#allocation14 + $0x740] sm:$0xff]
        %v4230 = vld [vmem:[#allocation14 + $0x748] sm:$0xff]
        %v4231 = vld [vmem:[#allocation14 + $0x750] sm:$0xff]
        %v4232 = vld [vmem:[#allocation14 + $0x758] sm:$0xff]
        %v4233 = vld [vmem:[#allocation14 + $0x760] sm:$0xff]
        %v4234 = vld [vmem:[#allocation14 + $0x768] sm:$0xff]
        %v4235 = vld [vmem:[#allocation14 + $0x770] sm:$0xff]
        %v4236 = vld [vmem:[#allocation14 + $0x778] sm:$0xff]
        %v4237 = vld [vmem:[#allocation14 + $0x780] sm:$0xff]
        %v4238 = vld [vmem:[#allocation14 + $0x788] sm:$0xff]
        %v4239 = vld [vmem:[#allocation14 + $0x790] sm:$0xff]
        %v4240 = vld [vmem:[#allocation14 + $0x798] sm:$0xff]
        %v4241 = vld [vmem:[#allocation14 + $0x7a0] sm:$0xff]
        %v4242 = vld [vmem:[#allocation14 + $0x7a8] sm:$0xff]
        %v4243 = vld [vmem:[#allocation14 + $0x7b0] sm:$0xff]
        %v4244 = vld [vmem:[#allocation14 + $0x7b8] sm:$0xff]
        %v4245 = vld [vmem:[#allocation14 + $0x7c0] sm:$0xff]
        %v4246 = vld [vmem:[#allocation14 + $0x7c8] sm:$0xff]
        %v4247 = vld [vmem:[#allocation14 + $0x7d0] sm:$0xff]
        %v4248 = vld [vmem:[#allocation14 + $0x7d8] sm:$0xff]
        %v4249 = vld [vmem:[#allocation14 + $0x7e0] sm:$0xff]
        %v4250 = vld [vmem:[#allocation14 + $0x7e8] sm:$0xff]
        %v4251 = vld [vmem:[#allocation14 + $0x7f0] sm:$0xff]
        %v4252 = vld [vmem:[#allocation14 + $0x7f8] sm:$0xff]
        %v4275 = vrot.slane %v4167, 1
        %v4276 = vrot.slane %v4169, 1
        %v4277 = vsel %vm1649, %v4275, %v4276
        %v4278 = vrot.slane %v4168, 1
        %v4279 = vrot.slane %v4170, 1
        %v4280 = vsel %vm1649, %v4278, %v4279
        %v4281 = vrot.slane %v4171, 1
        %v4282 = vsel %vm1649, %v4276, %v4281
        %v4283 = vrot.slane %v4172, 1
        %v4284 = vsel %vm1649, %v4279, %v4283
        %v4285 = vrot.slane %v4173, 1
        %v4286 = vsel %vm1649, %v4281, %v4285
        %v4287 = vrot.slane %v4174, 1
        %v4288 = vsel %vm1649, %v4283, %v4287
        %v4289 = vrot.slane %v4175, 1
        %v4290 = vsel %vm1649, %v4285, %v4289
        %v4291 = vrot.slane %v4176, 1
        %v4292 = vsel %vm1649, %v4287, %v4291
        %v4293 = vrot.slane %v4177, 1
        %v4294 = vsel %vm1649, %v4289, %v4293
        %v4295 = vrot.slane %v4178, 1
        %v4296 = vsel %vm1649, %v4291, %v4295
        %v4297 = vrot.slane %v4179, 1
        %v4298 = vsel %vm1649, %v4293, %v4297
        %v4299 = vrot.slane %v4180, 1
        %v4300 = vsel %vm1649, %v4295, %v4299
        %v4301 = vrot.slane %v4181, 1
        %v4302 = vsel %vm1649, %v4297, %v4301
        %v4303 = vrot.slane %v4182, 1
        %v4304 = vsel %vm1649, %v4299, %v4303
        %v4305 = vrot.slane %v4183, 1
        %v4306 = vsel %vm1649, %v4301, %v4305
        %v4307 = vrot.slane %v4184, 1
        %v4308 = vsel %vm1649, %v4303, %v4307
        %v4309 = vrot.slane %v4185, 1
        %v4310 = vsel %vm1649, %v4305, %v4309
        %v4311 = vrot.slane %v4186, 1
        %v4312 = vsel %vm1649, %v4307, %v4311
        %v4313 = vrot.slane %v4187, 1
        %v4314 = vsel %vm1649, %v4309, %v4313
        %v4315 = vrot.slane %v4188, 1
        %v4316 = vsel %vm1649, %v4311, %v4315
        %4337 = vmatprep.subr.mxu0 %v4190
        %4338 = vmatpush1.msra.mxu0 %v4189
        %4339 = vmatprep.subr.mxu0 %v4192
        %4340 = vmatpush1.msra.mxu0 %v4191
        %4341 = vmatprep.subr.mxu0 %v4194
        %4342 = vmatpush1.msra.mxu0 %v4193
        %4343 = vmatprep.subr.mxu0 %v4196
        %4344 = vmatpush1.msra.mxu0 %v4195
        %4345 = vmatprep.subr.mxu0 %v4198
        %4346 = vmatpush1.msra.mxu0 %v4197
        %4347 = vmatprep.subr.mxu0 %v4200
        %4348 = vmatpush1.msra.mxu0 %v4199
        %4349 = vmatprep.subr.mxu0 %v4202
        %4350 = vmatpush1.msra.mxu0 %v4201
        %4351 = vmatprep.subr.mxu0 %v4204
        %4352 = vmatpush1.msra.mxu0 %v4203
        %4353 = vmatprep.subr.mxu0 %v4206
        %4354 = vmatpush1.msra.mxu0 %v4205
        %4355 = vmatprep.subr.mxu0 %v4208
        %4356 = vmatpush1.msra.mxu0 %v4207
        %4357 = vmatprep.subr.mxu0 %v4210
        %4358 = vmatpush1.msra.mxu0 %v4209
        %4359 = vmatprep.subr.mxu0 %v4212
        %4360 = vmatpush1.msra.mxu0 %v4211
        %4361 = vmatprep.subr.mxu0 %v4214
        %4362 = vmatpush1.msra.mxu0 %v4213
        %4363 = vmatprep.subr.mxu0 %v4216
        %4364 = vmatpush1.msra.mxu0 %v4215
        %4365 = vmatprep.subr.mxu0 %v4218
        %4366 = vmatpush1.msra.mxu0 %v4217
        %4367 = vmatprep.subr.mxu0 %v4220
        %4368 = vmatpush1.msra.mxu0 %v4219
        %4369 = vmatprep.subr.mxu0 %v4222
        %4370 = vmatpush1.msra.mxu0 %v4221
        %4371 = vmatprep.subr.mxu0 %v4224
        %4372 = vmatpush1.msra.mxu0 %v4223
        %4373 = vmatprep.subr.mxu0 %v4226
        %4374 = vmatpush1.msra.mxu0 %v4225
        %4375 = vmatprep.subr.mxu0 %v4228
        %4376 = vmatpush1.msra.mxu0 %v4227
        %4377 = vmatprep.subr.mxu0 %v4230
        %4378 = vmatpush1.msra.mxu0 %v4229
        %4379 = vmatprep.subr.mxu0 %v4232
        %4380 = vmatpush1.msra.mxu0 %v4231
        %4381 = vmatprep.subr.mxu0 %v4234
        %4382 = vmatpush1.msra.mxu0 %v4233
        %4383 = vmatprep.subr.mxu0 %v4236
        %4384 = vmatpush1.msra.mxu0 %v4235
        %4385 = vmatprep.subr.mxu0 %v4238
        %4386 = vmatpush1.msra.mxu0 %v4237
        %4387 = vmatprep.subr.mxu0 %v4240
        %4388 = vmatpush1.msra.mxu0 %v4239
        %4389 = vmatprep.subr.mxu0 %v4242
        %4390 = vmatpush1.msra.mxu0 %v4241
        %4391 = vmatprep.subr.mxu0 %v4244
        %4392 = vmatpush1.msra.mxu0 %v4243
        %4393 = vmatprep.subr.mxu0 %v4246
        %4394 = vmatpush1.msra.mxu0 %v4245
        %4395 = vmatprep.subr.mxu0 %v4248
        %4396 = vmatpush1.msra.mxu0 %v4247
        %4397 = vmatprep.subr.mxu0 %v4250
        %4398 = vmatpush1.msra.mxu0 %v4249
        %4399 = vmatprep.subr.mxu0 %v4252
        %4400 = vmatpush1.msra.mxu0 %v4251
        %4401 = vmatprep.mubr.f32.mxu0 %v4280
        %4402 = vmatmul.mubr.f32.gmra.mrb[0].mxu0 %v4277
        %v4403 = vpop.f32.mrb[0].mxu0
        %v4404 = vadd.f32 0.0, %v4403
        %v4405 = vpop.f32.mrb[0].mxu0
        %v4406 = vadd.f32 0.0, %v4405
        %4407 = vmatprep.mubr.f32.mxu0 %v4284
        %4408 = vmatmul.mubr.f32.gmra.mrb[0].mxu0 %v4282
        %v4409 = vpop.f32.mrb[0].mxu0
        %v4410 = vadd.f32 0.0, %v4409
        %v4411 = vpop.f32.mrb[0].mxu0
        %v4412 = vadd.f32 0.0, %v4411
        %4413 = vmatprep.mubr.f32.mxu0 %v4288
        %4414 = vmatmul.mubr.f32.gmra.mrb[0].mxu0 %v4286
        %v4415 = vpop.f32.mrb[0].mxu0
        %v4416 = vadd.f32 0.0, %v4415
        %v4417 = vpop.f32.mrb[0].mxu0
        %v4418 = vadd.f32 0.0, %v4417
        %4419 = vmatprep.mubr.f32.mxu0 %v4292
        %4420 = vmatmul.mubr.f32.gmra.mrb[0].mxu0 %v4290
        %v4421 = vpop.f32.mrb[0].mxu0
        %v4422 = vadd.f32 0.0, %v4421
        %v4423 = vpop.f32.mrb[0].mxu0
        %v4424 = vadd.f32 0.0, %v4423
        %4425 = vmatprep.mubr.f32.mxu0 %v4296
        %4426 = vmatmul.mubr.f32.gmra.mrb[0].mxu0 %v4294
        %v4427 = vpop.f32.mrb[0].mxu0
        %v4428 = vadd.f32 0.0, %v4427
        %v4429 = vpop.f32.mrb[0].mxu0
        %v4430 = vadd.f32 0.0, %v4429
        %4431 = vmatprep.mubr.f32.mxu0 %v4300
        %4432 = vmatmul.mubr.f32.gmra.mrb[0].mxu0 %v4298
        %v4433 = vpop.f32.mrb[0].mxu0
        %v4434 = vadd.f32 0.0, %v4433
        %v4435 = vpop.f32.mrb[0].mxu0
        %v4436 = vadd.f32 0.0, %v4435
        %4437 = vmatprep.mubr.f32.mxu0 %v4304
        %4438 = vmatmul.mubr.f32.gmra.mrb[0].mxu0 %v4302
        %v4439 = vpop.f32.mrb[0].mxu0
        %v4440 = vadd.f32 0.0, %v4439
        %v4441 = vpop.f32.mrb[0].mxu0
        %v4442 = vadd.f32 0.0, %v4441
        %4443 = vmatprep.mubr.f32.mxu0 %v4308
        %4444 = vmatmul.mubr.f32.gmra.mrb[0].mxu0 %v4306
        %v4445 = vpop.f32.mrb[0].mxu0
        %v4446 = vadd.f32 0.0, %v4445
        %v4447 = vpop.f32.mrb[0].mxu0
        %v4448 = vadd.f32 0.0, %v4447
        %4449 = vmatprep.mubr.f32.mxu0 %v4312
        %4450 = vmatmul.mubr.f32.gmra.mrb[0].mxu0 %v4310
        %v4451 = vpop.f32.mrb[0].mxu0
        %v4452 = vadd.f32 0.0, %v4451
        %v4453 = vpop.f32.mrb[0].mxu0
        %v4454 = vadd.f32 0.0, %v4453
        %4455 = vmatprep.mubr.f32.mxu0 %v4316
        %4456 = vmatmul.mubr.f32.gmra.mrb[0].mxu0 %v4314
        %v4457 = vpop.f32.mrb[0].mxu0
        %v4458 = vadd.f32 0.0, %v4457
        %v4459 = vpop.f32.mrb[0].mxu0
        %v4460 = vadd.f32 0.0, %v4459
        %4461 = vdwg.mxu0
        %v4462 = vadd.f32 %v4147, %v4404
        %v4463 = vadd.f32 %v4148, %v4406
        %v4464 = vadd.f32 %v4149, %v4410
        %v4465 = vadd.f32 %v4150, %v4412
        %v4466 = vadd.f32 %v4151, %v4416
        %v4467 = vadd.f32 %v4152, %v4418
        %v4468 = vadd.f32 %v4153, %v4422
        %v4469 = vadd.f32 %v4154, %v4424
        %v4470 = vadd.f32 %v4155, %v4428
        %v4471 = vadd.f32 %v4156, %v4430
        %v4472 = vadd.f32 %v4157, %v4434
        %v4473 = vadd.f32 %v4158, %v4436
        %v4474 = vadd.f32 %v4159, %v4440
        %v4475 = vadd.f32 %v4160, %v4442
        %v4476 = vadd.f32 %v4161, %v4446
        %v4477 = vadd.f32 %v4162, %v4448
        %v4478 = vadd.f32 %v4163, %v4452
        %v4479 = vadd.f32 %v4164, %v4454
        %v4480 = vadd.f32 %v4165, %v4458
        %v4481 = vadd.f32 %v4166, %v4460
        %v4482 = vld [vmem:[#allocation2 + $0x10] sm:$0xfc]
        %v4483 = vld [vmem:[#allocation2 + $0x18] sm:$0xfc]
        %v4484 = vld [vmem:[#allocation2 + $0xb0] sm:$0x3]
        %v4485 = vld [vmem:[#allocation2 + $0xb8] sm:$0x3]
        %v4486 = vld [vmem:[#allocation14 + $0x800] sm:$0xff]
        %v4487 = vld [vmem:[#allocation14 + $0x808] sm:$0xff]
        %v4488 = vld [vmem:[#allocation14 + $0x810] sm:$0xff]
        %v4489 = vld [vmem:[#allocation14 + $0x818] sm:$0xff]
        %v4490 = vld [vmem:[#allocation14 + $0x820] sm:$0xff]
        %v4491 = vld [vmem:[#allocation14 + $0x828] sm:$0xff]
        %v4492 = vld [vmem:[#allocation14 + $0x830] sm:$0xff]
        %v4493 = vld [vmem:[#allocation14 + $0x838] sm:$0xff]
        %v4494 = vld [vmem:[#allocation14 + $0x840] sm:$0xff]
        %v4495 = vld [vmem:[#allocation14 + $0x848] sm:$0xff]
        %v4496 = vld [vmem:[#allocation14 + $0x850] sm:$0xff]
        %v4497 = vld [vmem:[#allocation14 + $0x858] sm:$0xff]
        %v4498 = vld [vmem:[#allocation14 + $0x860] sm:$0xff]
        %v4499 = vld [vmem:[#allocation14 + $0x868] sm:$0xff]
        %v4500 = vld [vmem:[#allocation14 + $0x870] sm:$0xff]
        %v4501 = vld [vmem:[#allocation14 + $0x878] sm:$0xff]
        %v4502 = vld [vmem:[#allocation14 + $0x880] sm:$0xff]
        %v4503 = vld [vmem:[#allocation14 + $0x888] sm:$0xff]
        %v4504 = vld [vmem:[#allocation14 + $0x890] sm:$0xff]
        %v4505 = vld [vmem:[#allocation14 + $0x898] sm:$0xff]
        %v4506 = vld [vmem:[#allocation14 + $0x8a0] sm:$0xff]
        %v4507 = vld [vmem:[#allocation14 + $0x8a8] sm:$0xff]
        %v4508 = vld [vmem:[#allocation14 + $0x8b0] sm:$0xff]
        %v4509 = vld [vmem:[#allocation14 + $0x8b8] sm:$0xff]
        %v4510 = vld [vmem:[#allocation14 + $0x8c0] sm:$0xff]
        %v4511 = vld [vmem:[#allocation14 + $0x8c8] sm:$0xff]
        %v4512 = vld [vmem:[#allocation14 + $0x8d0] sm:$0xff]
        %v4513 = vld [vmem:[#allocation14 + $0x8d8] sm:$0xff]
        %v4514 = vld [vmem:[#allocation14 + $0x8e0] sm:$0xff]
        %v4515 = vld [vmem:[#allocation14 + $0x8e8] sm:$0xff]
        %v4516 = vld [vmem:[#allocation14 + $0x8f0] sm:$0xff]
        %v4517 = vld [vmem:[#allocation14 + $0x8f8] sm:$0xff]
        %v4518 = vld [vmem:[#allocation14 + $0x900] sm:$0xff]
        %v4519 = vld [vmem:[#allocation14 + $0x908] sm:$0xff]
        %v4520 = vld [vmem:[#allocation14 + $0x910] sm:$0xff]
        %v4521 = vld [vmem:[#allocation14 + $0x918] sm:$0xff]
        %v4522 = vld [vmem:[#allocation14 + $0x920] sm:$0xff]
        %v4523 = vld [vmem:[#allocation14 + $0x928] sm:$0xff]
        %v4524 = vld [vmem:[#allocation14 + $0x930] sm:$0xff]
        %v4525 = vld [vmem:[#allocation14 + $0x938] sm:$0xff]
        %v4526 = vld [vmem:[#allocation14 + $0x940] sm:$0xff]
        %v4527 = vld [vmem:[#allocation14 + $0x948] sm:$0xff]
        %v4528 = vld [vmem:[#allocation14 + $0x950] sm:$0xff]
        %v4529 = vld [vmem:[#allocation14 + $0x958] sm:$0xff]
        %v4530 = vld [vmem:[#allocation14 + $0x960] sm:$0xff]
        %v4531 = vld [vmem:[#allocation14 + $0x968] sm:$0xff]
        %v4532 = vld [vmem:[#allocation14 + $0x970] sm:$0xff]
        %v4533 = vld [vmem:[#allocation14 + $0x978] sm:$0xff]
        %v4534 = vld [vmem:[#allocation14 + $0x980] sm:$0xff]
        %v4535 = vld [vmem:[#allocation14 + $0x988] sm:$0xff]
        %v4536 = vld [vmem:[#allocation14 + $0x990] sm:$0xff]
        %v4537 = vld [vmem:[#allocation14 + $0x998] sm:$0xff]
        %v4538 = vld [vmem:[#allocation14 + $0x9a0] sm:$0xff]
        %v4539 = vld [vmem:[#allocation14 + $0x9a8] sm:$0xff]
        %v4540 = vld [vmem:[#allocation14 + $0x9b0] sm:$0xff]
        %v4541 = vld [vmem:[#allocation14 + $0x9b8] sm:$0xff]
        %v4542 = vld [vmem:[#allocation14 + $0x9c0] sm:$0xff]
        %v4543 = vld [vmem:[#allocation14 + $0x9c8] sm:$0xff]
        %v4544 = vld [vmem:[#allocation14 + $0x9d0] sm:$0xff]
        %v4545 = vld [vmem:[#allocation14 + $0x9d8] sm:$0xff]
        %v4546 = vld [vmem:[#allocation14 + $0x9e0] sm:$0xff]
        %v4547 = vld [vmem:[#allocation14 + $0x9e8] sm:$0xff]
        %v4548 = vld [vmem:[#allocation14 + $0x9f0] sm:$0xff]
        %v4549 = vld [vmem:[#allocation14 + $0x9f8] sm:$0xff]
        %v4554 = vrot.slane %v4482, 2
        %v4555 = vrot.slane %v4169, 2
        %v4556 = vsel %vm3102, %v4554, %v4555
        %v4557 = vrot.slane %v4483, 2
        %v4558 = vrot.slane %v4170, 2
        %v4559 = vsel %vm3102, %v4557, %v4558
        %v4560 = vrot.slane %v4171, 2
        %v4561 = vsel %vm3102, %v4555, %v4560
        %v4562 = vrot.slane %v4172, 2
        %v4563 = vsel %vm3102, %v4558, %v4562
        %v4564 = vrot.slane %v4173, 2
        %v4565 = vsel %vm3102, %v4560, %v4564
        %v4566 = vrot.slane %v4174, 2
        %v4567 = vsel %vm3102, %v4562, %v4566
        %v4568 = vrot.slane %v4175, 2
        %v4569 = vsel %vm3102, %v4564, %v4568
        %v4570 = vrot.slane %v4176, 2
        %v4571 = vsel %vm3102, %v4566, %v4570
        %v4572 = vrot.slane %v4177, 2
        %v4573 = vsel %vm3102, %v4568, %v4572
        %v4574 = vrot.slane %v4178, 2
        %v4575 = vsel %vm3102, %v4570, %v4574
        %v4576 = vrot.slane %v4179, 2
        %v4577 = vsel %vm3102, %v4572, %v4576
        %v4578 = vrot.slane %v4180, 2
        %v4579 = vsel %vm3102, %v4574, %v4578
        %v4580 = vrot.slane %v4181, 2
        %v4581 = vsel %vm3102, %v4576, %v4580
        %v4582 = vrot.slane %v4182, 2
        %v4583 = vsel %vm3102, %v4578, %v4582
        %v4584 = vrot.slane %v4183, 2
        %v4585 = vsel %vm3102, %v4580, %v4584
        %v4586 = vrot.slane %v4184, 2
        %v4587 = vsel %vm3102, %v4582, %v4586
        %v4588 = vrot.slane %v4185, 2
        %v4589 = vsel %vm3102, %v4584, %v4588
        %v4590 = vrot.slane %v4186, 2
        %v4591 = vsel %vm3102, %v4586, %v4590
        %v4592 = vrot.slane %v4484, 2
        %v4593 = vsel %vm3102, %v4588, %v4592
        %v4594 = vrot.slane %v4485, 2
        %v4595 = vsel %vm3102, %v4590, %v4594
        %4616 = vmatprep.subr.mxu0 %v4487
        %4617 = vmatpush1.msra.mxu0 %v4486
        %4618 = vmatprep.subr.mxu0 %v4489
        %4619 = vmatpush1.msra.mxu0 %v4488
        %4620 = vmatprep.subr.mxu0 %v4491
        %4621 = vmatpush1.msra.mxu0 %v4490
        %4622 = vmatprep.subr.mxu0 %v4493
        %4623 = vmatpush1.msra.mxu0 %v4492
        %4624 = vmatprep.subr.mxu0 %v4495
        %4625 = vmatpush1.msra.mxu0 %v4494
        %4626 = vmatprep.subr.mxu0 %v4497
        %4627 = vmatpush1.msra.mxu0 %v4496
        %4628 = vmatprep.subr.mxu0 %v4499
        %4629 = vmatpush1.msra.mxu0 %v4498
        %4630 = vmatprep.subr.mxu0 %v4501
        %4631 = vmatpush1.msra.mxu0 %v4500
        %4632 = vmatprep.subr.mxu0 %v4503
        %4633 = vmatpush1.msra.mxu0 %v4502
        %4634 = vmatprep.subr.mxu0 %v4505
        %4635 = vmatpush1.msra.mxu0 %v4504
        %4636 = vmatprep.subr.mxu0 %v4507
        %4637 = vmatpush1.msra.mxu0 %v4506
        %4638 = vmatprep.subr.mxu0 %v4509
        %4639 = vmatpush1.msra.mxu0 %v4508
        %4640 = vmatprep.subr.mxu0 %v4511
        %4641 = vmatpush1.msra.mxu0 %v4510
        %4642 = vmatprep.subr.mxu0 %v4513
        %4643 = vmatpush1.msra.mxu0 %v4512
        %4644 = vmatprep.subr.mxu0 %v4515
        %4645 = vmatpush1.msra.mxu0 %v4514
        %4646 = vmatprep.subr.mxu0 %v4517
        %4647 = vmatpush1.msra.mxu0 %v4516
        %4648 = vmatprep.subr.mxu0 %v4519
        %4649 = vmatpush1.msra.mxu0 %v4518
        %4650 = vmatprep.subr.mxu0 %v4521
        %4651 = vmatpush1.msra.mxu0 %v4520
        %4652 = vmatprep.subr.mxu0 %v4523
        %4653 = vmatpush1.msra.mxu0 %v4522
        %4654 = vmatprep.subr.mxu0 %v4525
        %4655 = vmatpush1.msra.mxu0 %v4524
        %4656 = vmatprep.subr.mxu0 %v4527
        %4657 = vmatpush1.msra.mxu0 %v4526
        %4658 = vmatprep.subr.mxu0 %v4529
        %4659 = vmatpush1.msra.mxu0 %v4528
        %4660 = vmatprep.subr.mxu0 %v4531
        %4661 = vmatpush1.msra.mxu0 %v4530
        %4662 = vmatprep.subr.mxu0 %v4533
        %4663 = vmatpush1.msra.mxu0 %v4532
        %4664 = vmatprep.subr.mxu0 %v4535
        %4665 = vmatpush1.msra.mxu0 %v4534
        %4666 = vmatprep.subr.mxu0 %v4537
        %4667 = vmatpush1.msra.mxu0 %v4536
        %4668 = vmatprep.subr.mxu0 %v4539
        %4669 = vmatpush1.msra.mxu0 %v4538
        %4670 = vmatprep.subr.mxu0 %v4541
        %4671 = vmatpush1.msra.mxu0 %v4540
        %4672 = vmatprep.subr.mxu0 %v4543
        %4673 = vmatpush1.msra.mxu0 %v4542
        %4674 = vmatprep.subr.mxu0 %v4545
        %4675 = vmatpush1.msra.mxu0 %v4544
        %4676 = vmatprep.subr.mxu0 %v4547
        %4677 = vmatpush1.msra.mxu0 %v4546
        %4678 = vmatprep.subr.mxu0 %v4549
        %4679 = vmatpush1.msra.mxu0 %v4548
        %4680 = vmatprep.mubr.f32.mxu0 %v4559
        %4681 = vmatmul.mubr.f32.gmra.mrb[0].mxu0 %v4556
        %v4682 = vpop.f32.mrb[0].mxu0
        %v4683 = vadd.f32 0.0, %v4682
        %v4684 = vpop.f32.mrb[0].mxu0
        %v4685 = vadd.f32 0.0, %v4684
        %4686 = vmatprep.mubr.f32.mxu0 %v4563
        %4687 = vmatmul.mubr.f32.gmra.mrb[0].mxu0 %v4561
        %v4688 = vpop.f32.mrb[0].mxu0
        %v4689 = vadd.f32 0.0, %v4688
        %v4690 = vpop.f32.mrb[0].mxu0
        %v4691 = vadd.f32 0.0, %v4690
        %4692 = vmatprep.mubr.f32.mxu0 %v4567
        %4693 = vmatmul.mubr.f32.gmra.mrb[0].mxu0 %v4565
        %v4694 = vpop.f32.mrb[0].mxu0
        %v4695 = vadd.f32 0.0, %v4694
        %v4696 = vpop.f32.mrb[0].mxu0
        %v4697 = vadd.f32 0.0, %v4696
        %4698 = vmatprep.mubr.f32.mxu0 %v4571
        %4699 = vmatmul.mubr.f32.gmra.mrb[0].mxu0 %v4569
        %v4700 = vpop.f32.mrb[0].mxu0
        %v4701 = vadd.f32 0.0, %v4700
        %v4702 = vpop.f32.mrb[0].mxu0
        %v4703 = vadd.f32 0.0, %v4702
        %4704 = vmatprep.mubr.f32.mxu0 %v4575
        %4705 = vmatmul.mubr.f32.gmra.mrb[0].mxu0 %v4573
        %v4706 = vpop.f32.mrb[0].mxu0
        %v4707 = vadd.f32 0.0, %v4706
        %v4708 = vpop.f32.mrb[0].mxu0
        %v4709 = vadd.f32 0.0, %v4708
        %4710 = vmatprep.mubr.f32.mxu0 %v4579
        %4711 = vmatmul.mubr.f32.gmra.mrb[0].mxu0 %v4577
        %v4712 = vpop.f32.mrb[0].mxu0
        %v4713 = vadd.f32 0.0, %v4712
        %v4714 = vpop.f32.mrb[0].mxu0
        %v4715 = vadd.f32 0.0, %v4714
        %4716 = vmatprep.mubr.f32.mxu0 %v4583
        %4717 = vmatmul.mubr.f32.gmra.mrb[0].mxu0 %v4581
        %v4718 = vpop.f32.mrb[0].mxu0
        %v4719 = vadd.f32 0.0, %v4718
        %v4720 = vpop.f32.mrb[0].mxu0
        %v4721 = vadd.f32 0.0, %v4720
        %4722 = vmatprep.mubr.f32.mxu0 %v4587
        %4723 = vmatmul.mubr.f32.gmra.mrb[0].mxu0 %v4585
        %v4724 = vpop.f32.mrb[0].mxu0
        %v4725 = vadd.f32 0.0, %v4724
        %v4726 = vpop.f32.mrb[0].mxu0
        %v4727 = vadd.f32 0.0, %v4726
        %4728 = vmatprep.mubr.f32.mxu0 %v4591
        %4729 = vmatmul.mubr.f32.gmra.mrb[0].mxu0 %v4589
        %v4730 = vpop.f32.mrb[0].mxu0
        %v4731 = vadd.f32 0.0, %v4730
        %v4732 = vpop.f32.mrb[0].mxu0
        %v4733 = vadd.f32 0.0, %v4732
        %4734 = vmatprep.mubr.f32.mxu0 %v4595
        %4735 = vmatmul.mubr.f32.gmra.mrb[0].mxu0 %v4593
        %v4736 = vpop.f32.mrb[0].mxu0
        %v4737 = vadd.f32 0.0, %v4736
        %v4738 = vpop.f32.mrb[0].mxu0
        %v4739 = vadd.f32 0.0, %v4738
        %4740 = vdwg.mxu0
        %v4741 = vadd.f32 %v4462, %v4683
        %v4742 = vadd.f32 %v4463, %v4685
        %v4743 = vadd.f32 %v4464, %v4689
        %v4744 = vadd.f32 %v4465, %v4691
        %v4745 = vadd.f32 %v4466, %v4695
        %v4746 = vadd.f32 %v4467, %v4697
        %v4747 = vadd.f32 %v4468, %v4701
        %v4748 = vadd.f32 %v4469, %v4703
        %v4749 = vadd.f32 %v4470, %v4707
        %v4750 = vadd.f32 %v4471, %v4709
        %v4751 = vadd.f32 %v4472, %v4713
        %v4752 = vadd.f32 %v4473, %v4715
        %v4753 = vadd.f32 %v4474, %v4719
        %v4754 = vadd.f32 %v4475, %v4721
        %v4755 = vadd.f32 %v4476, %v4725
        %v4756 = vadd.f32 %v4477, %v4727
        %v4757 = vadd.f32 %v4478, %v4731
        %v4758 = vadd.f32 %v4479, %v4733
        %v4759 = vadd.f32 %v4480, %v4737
        %v4760 = vadd.f32 %v4481, %v4739
        %v4761 = vld [vmem:[#allocation15] sm:$0x3]
        %v4763 = vlaneseq
        %v4764 = vshrl.u32 %v4763, 7
        %v4765 = vsub.s32 0, %v4764
        %v4766 = vrot.slane %v4761, %v4765
        %v4767 = vlaneseq
        %v4768 = vshrl.u32 %v4767, 7
        %v4769 = vsub.s32 1, %v4768
        %v4770 = vrot.slane %v4761, %v4769
        %v4773 = vadd.f32 %v4741, %v4766
        %v4774 = vadd.f32 %v4742, %v4770
        %v4775 = vadd.f32 %v4743, %v4766
        %v4776 = vadd.f32 %v4744, %v4770
        %v4777 = vadd.f32 %v4745, %v4766
        %v4778 = vadd.f32 %v4746, %v4770
        %v4779 = vadd.f32 %v4747, %v4766
        %v4780 = vadd.f32 %v4748, %v4770
        %v4781 = vadd.f32 %v4749, %v4766
        %v4782 = vadd.f32 %v4750, %v4770
        %v4783 = vadd.f32 %v4751, %v4766
        %v4784 = vadd.f32 %v4752, %v4770
        %v4785 = vadd.f32 %v4753, %v4766
        %v4786 = vadd.f32 %v4754, %v4770
        %v4787 = vadd.f32 %v4755, %v4766
        %v4788 = vadd.f32 %v4756, %v4770
        %v4789 = vadd.f32 %v4757, %v4766
        %v4790 = vadd.f32 %v4758, %v4770
        %v4791 = vadd.f32 %v4759, %v4766
        %v4792 = vadd.f32 %v4760, %v4770
        %v4793 = vmax.f32 %v4773, 0.0
        %v4794 = vmax.f32 %v4774, 0.0
        %v4795 = vmax.f32 %v4775, 0.0
        %v4796 = vmax.f32 %v4776, 0.0
        %v4797 = vmax.f32 %v4777, 0.0
        %v4798 = vmax.f32 %v4778, 0.0
        %v4799 = vmax.f32 %v4779, 0.0
        %v4800 = vmax.f32 %v4780, 0.0
        %v4801 = vmax.f32 %v4781, 0.0
        %v4802 = vmax.f32 %v4782, 0.0
        %v4803 = vmax.f32 %v4783, 0.0
        %v4804 = vmax.f32 %v4784, 0.0
        %v4805 = vmax.f32 %v4785, 0.0
        %v4806 = vmax.f32 %v4786, 0.0
        %v4807 = vmax.f32 %v4787, 0.0
        %v4808 = vmax.f32 %v4788, 0.0
        %v4809 = vmax.f32 %v4789, 0.0
        %v4810 = vmax.f32 %v4790, 0.0
        %v4811 = vmax.f32 %v4791, 0.0
        %v4812 = vmax.f32 %v4792, 0.0
        %v4813 = vsel %vm678, %v4793, 0.0
        %v4814 = vsel %vm678, %v4794, 0.0
        %v4815 = vsel %vm679, %v4795, 0.0
        %v4816 = vsel %vm679, %v4796, 0.0
        %v4817 = vsel %vm680, %v4797, 0.0
        %v4818 = vsel %vm680, %v4798, 0.0
        %v4819 = vsel %vm681, %v4799, 0.0
        %v4820 = vsel %vm681, %v4800, 0.0
        %v4821 = vsel %vm682, %v4801, 0.0
        %v4822 = vsel %vm682, %v4802, 0.0
        %v4823 = vsel %vm683, %v4803, 0.0
        %v4824 = vsel %vm683, %v4804, 0.0
        %v4825 = vsel %vm684, %v4805, 0.0
        %v4826 = vsel %vm684, %v4806, 0.0
        %v4827 = vsel %vm685, %v4807, 0.0
        %v4828 = vsel %vm685, %v4808, 0.0
        %v4829 = vsel %vm686, %v4809, 0.0
        %v4830 = vsel %vm686, %v4810, 0.0
        %v4831 = vsel %vm687, %v4811, 0.0
        %v4832 = vsel %vm687, %v4812, 0.0
        %4833 = vst [vmem:[#allocation3 + $0x10] sm:$0xff] %v4813
        %4834 = vst [vmem:[#allocation3 + $0x18] sm:$0xff] %v4814
        %4835 = vst [vmem:[#allocation3 + $0x20] sm:$0xff] %v4815
        %4836 = vst [vmem:[#allocation3 + $0x28] sm:$0xff] %v4816
        %4837 = vst [vmem:[#allocation3 + $0x30] sm:$0xff] %v4817
        %4838 = vst [vmem:[#allocation3 + $0x38] sm:$0xff] %v4818
        %4839 = vst [vmem:[#allocation3 + $0x40] sm:$0xff] %v4819
        %4840 = vst [vmem:[#allocation3 + $0x48] sm:$0xff] %v4820
        %4841 = vst [vmem:[#allocation3 + $0x50] sm:$0xff] %v4821
        %4842 = vst [vmem:[#allocation3 + $0x58] sm:$0xff] %v4822
        %4843 = vst [vmem:[#allocation3 + $0x60] sm:$0xff] %v4823
        %4844 = vst [vmem:[#allocation3 + $0x68] sm:$0xff] %v4824
        %4845 = vst [vmem:[#allocation3 + $0x70] sm:$0xff] %v4825
        %4846 = vst [vmem:[#allocation3 + $0x78] sm:$0xff] %v4826
        %4847 = vst [vmem:[#allocation3 + $0x80] sm:$0xff] %v4827
        %4848 = vst [vmem:[#allocation3 + $0x88] sm:$0xff] %v4828
        %4849 = vst [vmem:[#allocation3 + $0x90] sm:$0xff] %v4829
        %4850 = vst [vmem:[#allocation3 + $0x98] sm:$0xff] %v4830
        %4851 = vst [vmem:[#allocation3 + $0xa0] sm:$0xff] %v4831
        %4852 = vst [vmem:[#allocation3 + $0xa8] sm:$0xff] %v4832
        %v4853 = vld [vmem:[#allocation3] sm:$0x80]
        %v4854 = vld [vmem:[#allocation3 + $0x8] sm:$0x80]
        %v4855 = vld [vmem:[#allocation3 + $0x10] sm:$0xff]
        %v4856 = vld [vmem:[#allocation3 + $0x18] sm:$0xff]
        %v4857 = vld [vmem:[#allocation3 + $0x20] sm:$0xff]
        %v4858 = vld [vmem:[#allocation3 + $0x28] sm:$0xff]
        %v4859 = vld [vmem:[#allocation3 + $0x30] sm:$0xff]
        %v4860 = vld [vmem:[#allocation3 + $0x38] sm:$0xff]
        %v4861 = vld [vmem:[#allocation3 + $0x40] sm:$0xff]
        %v4862 = vld [vmem:[#allocation3 + $0x48] sm:$0xff]
        %v4863 = vld [vmem:[#allocation3 + $0x50] sm:$0xff]
        %v4864 = vld [vmem:[#allocation3 + $0x58] sm:$0xff]
        %v4865 = vld [vmem:[#allocation3 + $0x60] sm:$0xff]
        %v4866 = vld [vmem:[#allocation3 + $0x68] sm:$0xff]
        %v4867 = vld [vmem:[#allocation3 + $0x70] sm:$0xff]
        %v4868 = vld [vmem:[#allocation3 + $0x78] sm:$0xff]
        %v4869 = vld [vmem:[#allocation3 + $0x80] sm:$0xff]
        %v4870 = vld [vmem:[#allocation3 + $0x88] sm:$0xff]
        %v4871 = vld [vmem:[#allocation3 + $0x90] sm:$0xff]
        %v4872 = vld [vmem:[#allocation3 + $0x98] sm:$0xff]
        %v4873 = vld [vmem:[#allocation3 + $0xa0] sm:$0x7f]
        %v4874 = vld [vmem:[#allocation3 + $0xa8] sm:$0x7f]
        %v4875 = vld [vmem:[#allocation17] sm:$0xff]
        %v4876 = vld [vmem:[#allocation17 + $0x8] sm:$0xff]
        %v4877 = vld [vmem:[#allocation17 + $0x10] sm:$0xff]
        %v4878 = vld [vmem:[#allocation17 + $0x18] sm:$0xff]
        %v4879 = vld [vmem:[#allocation17 + $0x20] sm:$0xff]
        %v4880 = vld [vmem:[#allocation17 + $0x28] sm:$0xff]
        %v4881 = vld [vmem:[#allocation17 + $0x30] sm:$0xff]
        %v4882 = vld [vmem:[#allocation17 + $0x38] sm:$0xff]
        %v4883 = vld [vmem:[#allocation17 + $0x40] sm:$0xff]
        %v4884 = vld [vmem:[#allocation17 + $0x48] sm:$0xff]
        %v4885 = vld [vmem:[#allocation17 + $0x50] sm:$0xff]
        %v4886 = vld [vmem:[#allocation17 + $0x58] sm:$0xff]
        %v4887 = vld [vmem:[#allocation17 + $0x60] sm:$0xff]
        %v4888 = vld [vmem:[#allocation17 + $0x68] sm:$0xff]
        %v4889 = vld [vmem:[#allocation17 + $0x70] sm:$0xff]
        %v4890 = vld [vmem:[#allocation17 + $0x78] sm:$0xff]
        %v4891 = vld [vmem:[#allocation17 + $0x80] sm:$0xff]
        %v4892 = vld [vmem:[#allocation17 + $0x88] sm:$0xff]
        %v4893 = vld [vmem:[#allocation17 + $0x90] sm:$0xff]
        %v4894 = vld [vmem:[#allocation17 + $0x98] sm:$0xff]
        %v4895 = vld [vmem:[#allocation17 + $0xa0] sm:$0xff]
        %v4896 = vld [vmem:[#allocation17 + $0xa8] sm:$0xff]
        %v4897 = vld [vmem:[#allocation17 + $0xb0] sm:$0xff]
        %v4898 = vld [vmem:[#allocation17 + $0xb8] sm:$0xff]
        %v4899 = vld [vmem:[#allocation17 + $0xc0] sm:$0xff]
        %v4900 = vld [vmem:[#allocation17 + $0xc8] sm:$0xff]
        %v4901 = vld [vmem:[#allocation17 + $0xd0] sm:$0xff]
        %v4902 = vld [vmem:[#allocation17 + $0xd8] sm:$0xff]
        %v4903 = vld [vmem:[#allocation17 + $0xe0] sm:$0xff]
        %v4904 = vld [vmem:[#allocation17 + $0xe8] sm:$0xff]
        %v4905 = vld [vmem:[#allocation17 + $0xf0] sm:$0xff]
        %v4906 = vld [vmem:[#allocation17 + $0xf8] sm:$0xff]
        %v4907 = vld [vmem:[#allocation17 + $0x100] sm:$0xff]
        %v4908 = vld [vmem:[#allocation17 + $0x108] sm:$0xff]
        %v4909 = vld [vmem:[#allocation17 + $0x110] sm:$0xff]
        %v4910 = vld [vmem:[#allocation17 + $0x118] sm:$0xff]
        %v4911 = vld [vmem:[#allocation17 + $0x120] sm:$0xff]
        %v4912 = vld [vmem:[#allocation17 + $0x128] sm:$0xff]
        %v4913 = vld [vmem:[#allocation17 + $0x130] sm:$0xff]
        %v4914 = vld [vmem:[#allocation17 + $0x138] sm:$0xff]
        %v4915 = vld [vmem:[#allocation17 + $0x140] sm:$0xff]
        %v4916 = vld [vmem:[#allocation17 + $0x148] sm:$0xff]
        %v4917 = vld [vmem:[#allocation17 + $0x150] sm:$0xff]
        %v4918 = vld [vmem:[#allocation17 + $0x158] sm:$0xff]
        %v4919 = vld [vmem:[#allocation17 + $0x160] sm:$0xff]
        %v4920 = vld [vmem:[#allocation17 + $0x168] sm:$0xff]
        %v4921 = vld [vmem:[#allocation17 + $0x170] sm:$0xff]
        %v4922 = vld [vmem:[#allocation17 + $0x178] sm:$0xff]
        %v4923 = vld [vmem:[#allocation17 + $0x180] sm:$0xff]
        %v4924 = vld [vmem:[#allocation17 + $0x188] sm:$0xff]
        %v4925 = vld [vmem:[#allocation17 + $0x190] sm:$0xff]
        %v4926 = vld [vmem:[#allocation17 + $0x198] sm:$0xff]
        %v4927 = vld [vmem:[#allocation17 + $0x1a0] sm:$0xff]
        %v4928 = vld [vmem:[#allocation17 + $0x1a8] sm:$0xff]
        %v4929 = vld [vmem:[#allocation17 + $0x1b0] sm:$0xff]
        %v4930 = vld [vmem:[#allocation17 + $0x1b8] sm:$0xff]
        %v4931 = vld [vmem:[#allocation17 + $0x1c0] sm:$0xff]
        %v4932 = vld [vmem:[#allocation17 + $0x1c8] sm:$0xff]
        %v4933 = vld [vmem:[#allocation17 + $0x1d0] sm:$0xff]
        %v4934 = vld [vmem:[#allocation17 + $0x1d8] sm:$0xff]
        %v4935 = vld [vmem:[#allocation17 + $0x1e0] sm:$0xff]
        %v4936 = vld [vmem:[#allocation17 + $0x1e8] sm:$0xff]
        %v4937 = vld [vmem:[#allocation17 + $0x1f0] sm:$0xff]
        %v4938 = vld [vmem:[#allocation17 + $0x1f8] sm:$0xff]
        %v4939 = vld [vmem:[#allocation3 + $0xa0] sm:$0xff]
        %v4940 = vld [vmem:[#allocation3 + $0xa8] sm:$0xff]
        %v4941 = vld [vmem:[#allocation17 + $0x200] sm:$0xff]
        %v4942 = vld [vmem:[#allocation17 + $0x208] sm:$0xff]
        %v4943 = vld [vmem:[#allocation17 + $0x210] sm:$0xff]
        %v4944 = vld [vmem:[#allocation17 + $0x218] sm:$0xff]
        %v4945 = vld [vmem:[#allocation17 + $0x220] sm:$0xff]
        %v4946 = vld [vmem:[#allocation17 + $0x228] sm:$0xff]
        %v4947 = vld [vmem:[#allocation17 + $0x230] sm:$0xff]
        %v4948 = vld [vmem:[#allocation17 + $0x238] sm:$0xff]
        %v4949 = vld [vmem:[#allocation17 + $0x240] sm:$0xff]
        %v4950 = vld [vmem:[#allocation17 + $0x248] sm:$0xff]
        %v4951 = vld [vmem:[#allocation17 + $0x250] sm:$0xff]
        %v4952 = vld [vmem:[#allocation17 + $0x258] sm:$0xff]
        %v4953 = vld [vmem:[#allocation17 + $0x260] sm:$0xff]
        %v4954 = vld [vmem:[#allocation17 + $0x268] sm:$0xff]
        %v4955 = vld [vmem:[#allocation17 + $0x270] sm:$0xff]
        %v4956 = vld [vmem:[#allocation17 + $0x278] sm:$0xff]
        %v4957 = vld [vmem:[#allocation17 + $0x280] sm:$0xff]
        %v4958 = vld [vmem:[#allocation17 + $0x288] sm:$0xff]
        %v4959 = vld [vmem:[#allocation17 + $0x290] sm:$0xff]
        %v4960 = vld [vmem:[#allocation17 + $0x298] sm:$0xff]
        %v4961 = vld [vmem:[#allocation17 + $0x2a0] sm:$0xff]
        %v4962 = vld [vmem:[#allocation17 + $0x2a8] sm:$0xff]
        %v4963 = vld [vmem:[#allocation17 + $0x2b0] sm:$0xff]
        %v4964 = vld [vmem:[#allocation17 + $0x2b8] sm:$0xff]
        %v4965 = vld [vmem:[#allocation17 + $0x2c0] sm:$0xff]
        %v4966 = vld [vmem:[#allocation17 + $0x2c8] sm:$0xff]
        %v4967 = vld [vmem:[#allocation17 + $0x2d0] sm:$0xff]
        %v4968 = vld [vmem:[#allocation17 + $0x2d8] sm:$0xff]
        %v4969 = vld [vmem:[#allocation17 + $0x2e0] sm:$0xff]
        %v4970 = vld [vmem:[#allocation17 + $0x2e8] sm:$0xff]
        %v4971 = vld [vmem:[#allocation17 + $0x2f0] sm:$0xff]
        %v4972 = vld [vmem:[#allocation17 + $0x2f8] sm:$0xff]
        %v4973 = vld [vmem:[#allocation17 + $0x300] sm:$0xff]
        %v4974 = vld [vmem:[#allocation17 + $0x308] sm:$0xff]
        %v4975 = vld [vmem:[#allocation17 + $0x310] sm:$0xff]
        %v4976 = vld [vmem:[#allocation17 + $0x318] sm:$0xff]
        %v4977 = vld [vmem:[#allocation17 + $0x320] sm:$0xff]
        %v4978 = vld [vmem:[#allocation17 + $0x328] sm:$0xff]
        %v4979 = vld [vmem:[#allocation17 + $0x330] sm:$0xff]
        %v4980 = vld [vmem:[#allocation17 + $0x338] sm:$0xff]
        %v4981 = vld [vmem:[#allocation17 + $0x340] sm:$0xff]
        %v4982 = vld [vmem:[#allocation17 + $0x348] sm:$0xff]
        %v4983 = vld [vmem:[#allocation17 + $0x350] sm:$0xff]
        %v4984 = vld [vmem:[#allocation17 + $0x358] sm:$0xff]
        %v4985 = vld [vmem:[#allocation17 + $0x360] sm:$0xff]
        %v4986 = vld [vmem:[#allocation17 + $0x368] sm:$0xff]
        %v4987 = vld [vmem:[#allocation17 + $0x370] sm:$0xff]
        %v4988 = vld [vmem:[#allocation17 + $0x378] sm:$0xff]
        %v4989 = vld [vmem:[#allocation17 + $0x380] sm:$0xff]
        %v4990 = vld [vmem:[#allocation17 + $0x388] sm:$0xff]
        %v4991 = vld [vmem:[#allocation17 + $0x390] sm:$0xff]
        %v4992 = vld [vmem:[#allocation17 + $0x398] sm:$0xff]
        %v4993 = vld [vmem:[#allocation17 + $0x3a0] sm:$0xff]
        %v4994 = vld [vmem:[#allocation17 + $0x3a8] sm:$0xff]
        %v4995 = vld [vmem:[#allocation17 + $0x3b0] sm:$0xff]
        %v4996 = vld [vmem:[#allocation17 + $0x3b8] sm:$0xff]
        %v4997 = vld [vmem:[#allocation17 + $0x3c0] sm:$0xff]
        %v4998 = vld [vmem:[#allocation17 + $0x3c8] sm:$0xff]
        %v4999 = vld [vmem:[#allocation17 + $0x3d0] sm:$0xff]
        %v5000 = vld [vmem:[#allocation17 + $0x3d8] sm:$0xff]
        %v5001 = vld [vmem:[#allocation17 + $0x3e0] sm:$0xff]
        %v5002 = vld [vmem:[#allocation17 + $0x3e8] sm:$0xff]
        %v5003 = vld [vmem:[#allocation17 + $0x3f0] sm:$0xff]
        %v5004 = vld [vmem:[#allocation17 + $0x3f8] sm:$0xff]
        %5005 = vmatprep.subr.mxu0 %v4942
        %5006 = vmatpush1.msra.mxu0 %v4941
        %5007 = vmatprep.subr.mxu0 %v4944
        %5008 = vmatpush1.msra.mxu0 %v4943
        %5009 = vmatprep.subr.mxu0 %v4946
        %5010 = vmatpush1.msra.mxu0 %v4945
        %5011 = vmatprep.subr.mxu0 %v4948
        %5012 = vmatpush1.msra.mxu0 %v4947
        %5013 = vmatprep.subr.mxu0 %v4950
        %5014 = vmatpush1.msra.mxu0 %v4949
        %5015 = vmatprep.subr.mxu0 %v4952
        %5016 = vmatpush1.msra.mxu0 %v4951
        %5017 = vmatprep.subr.mxu0 %v4954
        %5018 = vmatpush1.msra.mxu0 %v4953
        %5019 = vmatprep.subr.mxu0 %v4956
        %5020 = vmatpush1.msra.mxu0 %v4955
        %5021 = vmatprep.subr.mxu0 %v4958
        %5022 = vmatpush1.msra.mxu0 %v4957
        %5023 = vmatprep.subr.mxu0 %v4960
        %5024 = vmatpush1.msra.mxu0 %v4959
        %5025 = vmatprep.subr.mxu0 %v4962
        %5026 = vmatpush1.msra.mxu0 %v4961
        %5027 = vmatprep.subr.mxu0 %v4964
        %5028 = vmatpush1.msra.mxu0 %v4963
        %5029 = vmatprep.subr.mxu0 %v4966
        %5030 = vmatpush1.msra.mxu0 %v4965
        %5031 = vmatprep.subr.mxu0 %v4968
        %5032 = vmatpush1.msra.mxu0 %v4967
        %5033 = vmatprep.subr.mxu0 %v4970
        %5034 = vmatpush1.msra.mxu0 %v4969
        %5035 = vmatprep.subr.mxu0 %v4972
        %5036 = vmatpush1.msra.mxu0 %v4971
        %5037 = vmatprep.subr.mxu0 %v4974
        %5038 = vmatpush1.msra.mxu0 %v4973
        %5039 = vmatprep.subr.mxu0 %v4976
        %5040 = vmatpush1.msra.mxu0 %v4975
        %5041 = vmatprep.subr.mxu0 %v4978
        %5042 = vmatpush1.msra.mxu0 %v4977
        %5043 = vmatprep.subr.mxu0 %v4980
        %5044 = vmatpush1.msra.mxu0 %v4979
        %5045 = vmatprep.subr.mxu0 %v4982
        %5046 = vmatpush1.msra.mxu0 %v4981
        %5047 = vmatprep.subr.mxu0 %v4984
        %5048 = vmatpush1.msra.mxu0 %v4983
        %5049 = vmatprep.subr.mxu0 %v4986
        %5050 = vmatpush1.msra.mxu0 %v4985
        %5051 = vmatprep.subr.mxu0 %v4988
        %5052 = vmatpush1.msra.mxu0 %v4987
        %5053 = vmatprep.subr.mxu0 %v4990
        %5054 = vmatpush1.msra.mxu0 %v4989
        %5055 = vmatprep.subr.mxu0 %v4992
        %5056 = vmatpush1.msra.mxu0 %v4991
        %5057 = vmatprep.subr.mxu0 %v4994
        %5058 = vmatpush1.msra.mxu0 %v4993
        %5059 = vmatprep.subr.mxu0 %v4996
        %5060 = vmatpush1.msra.mxu0 %v4995
        %5061 = vmatprep.subr.mxu0 %v4998
        %5062 = vmatpush1.msra.mxu0 %v4997
        %5063 = vmatprep.subr.mxu0 %v5000
        %5064 = vmatpush1.msra.mxu0 %v4999
        %5065 = vmatprep.subr.mxu0 %v5002
        %5066 = vmatpush1.msra.mxu0 %v5001
        %5067 = vmatprep.subr.mxu0 %v5004
        %5068 = vmatpush1.msra.mxu0 %v5003
        %5069 = vmatprep.mubr.f32.mxu0 %v4856
        %5070 = vmatmul.mubr.f32.gmra.mrb[0].mxu0 %v4855
        %v5071 = vpop.f32.mrb[0].mxu0
        %v5072 = vadd.f32 0.0, %v5071
        %v5073 = vpop.f32.mrb[0].mxu0
        %v5074 = vadd.f32 0.0, %v5073
        %5075 = vmatprep.mubr.f32.mxu0 %v4858
        %5076 = vmatmul.mubr.f32.gmra.mrb[0].mxu0 %v4857
        %v5077 = vpop.f32.mrb[0].mxu0
        %v5078 = vadd.f32 0.0, %v5077
        %v5079 = vpop.f32.mrb[0].mxu0
        %v5080 = vadd.f32 0.0, %v5079
        %5081 = vmatprep.mubr.f32.mxu0 %v4860
        %5082 = vmatmul.mubr.f32.gmra.mrb[0].mxu0 %v4859
        %v5083 = vpop.f32.mrb[0].mxu0
        %v5084 = vadd.f32 0.0, %v5083
        %v5085 = vpop.f32.mrb[0].mxu0
        %v5086 = vadd.f32 0.0, %v5085
        %5087 = vmatprep.mubr.f32.mxu0 %v4862
        %5088 = vmatmul.mubr.f32.gmra.mrb[0].mxu0 %v4861
        %v5089 = vpop.f32.mrb[0].mxu0
        %v5090 = vadd.f32 0.0, %v5089
        %v5091 = vpop.f32.mrb[0].mxu0
        %v5092 = vadd.f32 0.0, %v5091
        %5093 = vmatprep.mubr.f32.mxu0 %v4864
        %5094 = vmatmul.mubr.f32.gmra.mrb[0].mxu0 %v4863
        %v5095 = vpop.f32.mrb[0].mxu0
        %v5096 = vadd.f32 0.0, %v5095
        %v5097 = vpop.f32.mrb[0].mxu0
        %v5098 = vadd.f32 0.0, %v5097
        %5099 = vmatprep.mubr.f32.mxu0 %v4866
        %5100 = vmatmul.mubr.f32.gmra.mrb[0].mxu0 %v4865
        %v5101 = vpop.f32.mrb[0].mxu0
        %v5102 = vadd.f32 0.0, %v5101
        %v5103 = vpop.f32.mrb[0].mxu0
        %v5104 = vadd.f32 0.0, %v5103
        %5105 = vmatprep.mubr.f32.mxu0 %v4868
        %5106 = vmatmul.mubr.f32.gmra.mrb[0].mxu0 %v4867
        %v5107 = vpop.f32.mrb[0].mxu0
        %v5108 = vadd.f32 0.0, %v5107
        %v5109 = vpop.f32.mrb[0].mxu0
        %v5110 = vadd.f32 0.0, %v5109
        %5111 = vmatprep.mubr.f32.mxu0 %v4870
        %5112 = vmatmul.mubr.f32.gmra.mrb[0].mxu0 %v4869
        %v5113 = vpop.f32.mrb[0].mxu0
        %v5114 = vadd.f32 0.0, %v5113
        %v5115 = vpop.f32.mrb[0].mxu0
        %v5116 = vadd.f32 0.0, %v5115
        %5117 = vmatprep.mubr.f32.mxu0 %v4872
        %5118 = vmatmul.mubr.f32.gmra.mrb[0].mxu0 %v4871
        %v5119 = vpop.f32.mrb[0].mxu0
        %v5120 = vadd.f32 0.0, %v5119
        %v5121 = vpop.f32.mrb[0].mxu0
        %v5122 = vadd.f32 0.0, %v5121
        %5123 = vmatprep.mubr.f32.mxu0 %v4940
        %5124 = vmatmul.mubr.f32.gmra.mrb[0].mxu0 %v4939
        %v5125 = vpop.f32.mrb[0].mxu0
        %v5126 = vadd.f32 0.0, %v5125
        %v5127 = vpop.f32.mrb[0].mxu0
        %v5128 = vadd.f32 0.0, %v5127
        %5129 = vdwg.mxu0
        %v5152 = vrot.slane %v4853, 7
        %v5153 = vrot.slane %v4855, 7
        %v5154 = vsel %vm1353, %v5152, %v5153
        %v5155 = vrot.slane %v4854, 7
        %v5156 = vrot.slane %v4856, 7
        %v5157 = vsel %vm1353, %v5155, %v5156
        %v5158 = vrot.slane %v4857, 7
        %v5159 = vsel %vm1353, %v5153, %v5158
        %v5160 = vrot.slane %v4858, 7
        %v5161 = vsel %vm1353, %v5156, %v5160
        %v5162 = vrot.slane %v4859, 7
        %v5163 = vsel %vm1353, %v5158, %v5162
        %v5164 = vrot.slane %v4860, 7
        %v5165 = vsel %vm1353, %v5160, %v5164
        %v5166 = vrot.slane %v4861, 7
        %v5167 = vsel %vm1353, %v5162, %v5166
        %v5168 = vrot.slane %v4862, 7
        %v5169 = vsel %vm1353, %v5164, %v5168
        %v5170 = vrot.slane %v4863, 7
        %v5171 = vsel %vm1353, %v5166, %v5170
        %v5172 = vrot.slane %v4864, 7
        %v5173 = vsel %vm1353, %v5168, %v5172
        %v5174 = vrot.slane %v4865, 7
        %v5175 = vsel %vm1353, %v5170, %v5174
        %v5176 = vrot.slane %v4866, 7
        %v5177 = vsel %vm1353, %v5172, %v5176
        %v5178 = vrot.slane %v4867, 7
        %v5179 = vsel %vm1353, %v5174, %v5178
        %v5180 = vrot.slane %v4868, 7
        %v5181 = vsel %vm1353, %v5176, %v5180
        %v5182 = vrot.slane %v4869, 7
        %v5183 = vsel %vm1353, %v5178, %v5182
        %v5184 = vrot.slane %v4870, 7
        %v5185 = vsel %vm1353, %v5180, %v5184
        %v5186 = vrot.slane %v4871, 7
        %v5187 = vsel %vm1353, %v5182, %v5186
        %v5188 = vrot.slane %v4872, 7
        %v5189 = vsel %vm1353, %v5184, %v5188
        %v5190 = vrot.slane %v4873, 7
        %v5191 = vsel %vm1353, %v5186, %v5190
        %v5192 = vrot.slane %v4874, 7
        %v5193 = vsel %vm1353, %v5188, %v5192
        %5214 = vmatprep.subr.mxu0 %v4876
        %5215 = vmatpush1.msra.mxu0 %v4875
        %5216 = vmatprep.subr.mxu0 %v4878
        %5217 = vmatpush1.msra.mxu0 %v4877
        %5218 = vmatprep.subr.mxu0 %v4880
        %5219 = vmatpush1.msra.mxu0 %v4879
        %5220 = vmatprep.subr.mxu0 %v4882
        %5221 = vmatpush1.msra.mxu0 %v4881
        %5222 = vmatprep.subr.mxu0 %v4884
        %5223 = vmatpush1.msra.mxu0 %v4883
        %5224 = vmatprep.subr.mxu0 %v4886
        %5225 = vmatpush1.msra.mxu0 %v4885
        %5226 = vmatprep.subr.mxu0 %v4888
        %5227 = vmatpush1.msra.mxu0 %v4887
        %5228 = vmatprep.subr.mxu0 %v4890
        %5229 = vmatpush1.msra.mxu0 %v4889
        %5230 = vmatprep.subr.mxu0 %v4892
        %5231 = vmatpush1.msra.mxu0 %v4891
        %5232 = vmatprep.subr.mxu0 %v4894
        %5233 = vmatpush1.msra.mxu0 %v4893
        %5234 = vmatprep.subr.mxu0 %v4896
        %5235 = vmatpush1.msra.mxu0 %v4895
        %5236 = vmatprep.subr.mxu0 %v4898
        %5237 = vmatpush1.msra.mxu0 %v4897
        %5238 = vmatprep.subr.mxu0 %v4900
        %5239 = vmatpush1.msra.mxu0 %v4899
        %5240 = vmatprep.subr.mxu0 %v4902
        %5241 = vmatpush1.msra.mxu0 %v4901
        %5242 = vmatprep.subr.mxu0 %v4904
        %5243 = vmatpush1.msra.mxu0 %v4903
        %5244 = vmatprep.subr.mxu0 %v4906
        %5245 = vmatpush1.msra.mxu0 %v4905
        %5246 = vmatprep.subr.mxu0 %v4908
        %5247 = vmatpush1.msra.mxu0 %v4907
        %5248 = vmatprep.subr.mxu0 %v4910
        %5249 = vmatpush1.msra.mxu0 %v4909
        %5250 = vmatprep.subr.mxu0 %v4912
        %5251 = vmatpush1.msra.mxu0 %v4911
        %5252 = vmatprep.subr.mxu0 %v4914
        %5253 = vmatpush1.msra.mxu0 %v4913
        %5254 = vmatprep.subr.mxu0 %v4916
        %5255 = vmatpush1.msra.mxu0 %v4915
        %5256 = vmatprep.subr.mxu0 %v4918
        %5257 = vmatpush1.msra.mxu0 %v4917
        %5258 = vmatprep.subr.mxu0 %v4920
        %5259 = vmatpush1.msra.mxu0 %v4919
        %5260 = vmatprep.subr.mxu0 %v4922
        %5261 = vmatpush1.msra.mxu0 %v4921
        %5262 = vmatprep.subr.mxu0 %v4924
        %5263 = vmatpush1.msra.mxu0 %v4923
        %5264 = vmatprep.subr.mxu0 %v4926
        %5265 = vmatpush1.msra.mxu0 %v4925
        %5266 = vmatprep.subr.mxu0 %v4928
        %5267 = vmatpush1.msra.mxu0 %v4927
        %5268 = vmatprep.subr.mxu0 %v4930
        %5269 = vmatpush1.msra.mxu0 %v4929
        %5270 = vmatprep.subr.mxu0 %v4932
        %5271 = vmatpush1.msra.mxu0 %v4931
        %5272 = vmatprep.subr.mxu0 %v4934
        %5273 = vmatpush1.msra.mxu0 %v4933
        %5274 = vmatprep.subr.mxu0 %v4936
        %5275 = vmatpush1.msra.mxu0 %v4935
        %5276 = vmatprep.subr.mxu0 %v4938
        %5277 = vmatpush1.msra.mxu0 %v4937
        %5278 = vmatprep.mubr.f32.mxu0 %v5157
        %5279 = vmatmul.mubr.f32.gmra.mrb[0].mxu0 %v5154
        %v5280 = vpop.f32.mrb[0].mxu0
        %v5281 = vadd.f32 %v5072, %v5280
        %v5282 = vpop.f32.mrb[0].mxu0
        %v5283 = vadd.f32 %v5074, %v5282
        %5284 = vmatprep.mubr.f32.mxu0 %v5161
        %5285 = vmatmul.mubr.f32.gmra.mrb[0].mxu0 %v5159
        %v5286 = vpop.f32.mrb[0].mxu0
        %v5287 = vadd.f32 %v5078, %v5286
        %v5288 = vpop.f32.mrb[0].mxu0
        %v5289 = vadd.f32 %v5080, %v5288
        %5290 = vmatprep.mubr.f32.mxu0 %v5165
        %5291 = vmatmul.mubr.f32.gmra.mrb[0].mxu0 %v5163
        %v5292 = vpop.f32.mrb[0].mxu0
        %v5293 = vadd.f32 %v5084, %v5292
        %v5294 = vpop.f32.mrb[0].mxu0
        %v5295 = vadd.f32 %v5086, %v5294
        %5296 = vmatprep.mubr.f32.mxu0 %v5169
        %5297 = vmatmul.mubr.f32.gmra.mrb[0].mxu0 %v5167
        %v5298 = vpop.f32.mrb[0].mxu0
        %v5299 = vadd.f32 %v5090, %v5298
        %v5300 = vpop.f32.mrb[0].mxu0
        %v5301 = vadd.f32 %v5092, %v5300
        %5302 = vmatprep.mubr.f32.mxu0 %v5173
        %5303 = vmatmul.mubr.f32.gmra.mrb[0].mxu0 %v5171
        %v5304 = vpop.f32.mrb[0].mxu0
        %v5305 = vadd.f32 %v5096, %v5304
        %v5306 = vpop.f32.mrb[0].mxu0
        %v5307 = vadd.f32 %v5098, %v5306
        %5308 = vmatprep.mubr.f32.mxu0 %v5177
        %5309 = vmatmul.mubr.f32.gmra.mrb[0].mxu0 %v5175
        %v5310 = vpop.f32.mrb[0].mxu0
        %v5311 = vadd.f32 %v5102, %v5310
        %v5312 = vpop.f32.mrb[0].mxu0
        %v5313 = vadd.f32 %v5104, %v5312
        %5314 = vmatprep.mubr.f32.mxu0 %v5181
        %5315 = vmatmul.mubr.f32.gmra.mrb[0].mxu0 %v5179
        %v5316 = vpop.f32.mrb[0].mxu0
        %v5317 = vadd.f32 %v5108, %v5316
        %v5318 = vpop.f32.mrb[0].mxu0
        %v5319 = vadd.f32 %v5110, %v5318
        %5320 = vmatprep.mubr.f32.mxu0 %v5185
        %5321 = vmatmul.mubr.f32.gmra.mrb[0].mxu0 %v5183
        %v5322 = vpop.f32.mrb[0].mxu0
        %v5323 = vadd.f32 %v5114, %v5322
        %v5324 = vpop.f32.mrb[0].mxu0
        %v5325 = vadd.f32 %v5116, %v5324
        %5326 = vmatprep.mubr.f32.mxu0 %v5189
        %5327 = vmatmul.mubr.f32.gmra.mrb[0].mxu0 %v5187
        %v5328 = vpop.f32.mrb[0].mxu0
        %v5329 = vadd.f32 %v5120, %v5328
        %v5330 = vpop.f32.mrb[0].mxu0
        %v5331 = vadd.f32 %v5122, %v5330
        %5332 = vmatprep.mubr.f32.mxu0 %v5193
        %5333 = vmatmul.mubr.f32.gmra.mrb[0].mxu0 %v5191
        %v5334 = vpop.f32.mrb[0].mxu0
        %v5335 = vadd.f32 %v5126, %v5334
        %v5336 = vpop.f32.mrb[0].mxu0
        %v5337 = vadd.f32 %v5128, %v5336
        %5338 = vdwg.mxu0
        %v5339 = vld [vmem:[#allocation3 + $0x10] sm:$0xfe]
        %v5340 = vld [vmem:[#allocation3 + $0x18] sm:$0xfe]
        %v5341 = vld [vmem:[#allocation3 + $0x20] sm:$0xff]
        %v5342 = vld [vmem:[#allocation3 + $0x28] sm:$0xff]
        %v5343 = vld [vmem:[#allocation3 + $0x30] sm:$0xff]
        %v5344 = vld [vmem:[#allocation3 + $0x38] sm:$0xff]
        %v5345 = vld [vmem:[#allocation3 + $0x40] sm:$0xff]
        %v5346 = vld [vmem:[#allocation3 + $0x48] sm:$0xff]
        %v5347 = vld [vmem:[#allocation3 + $0x50] sm:$0xff]
        %v5348 = vld [vmem:[#allocation3 + $0x58] sm:$0xff]
        %v5349 = vld [vmem:[#allocation3 + $0x60] sm:$0xff]
        %v5350 = vld [vmem:[#allocation3 + $0x68] sm:$0xff]
        %v5351 = vld [vmem:[#allocation3 + $0x70] sm:$0xff]
        %v5352 = vld [vmem:[#allocation3 + $0x78] sm:$0xff]
        %v5353 = vld [vmem:[#allocation3 + $0x80] sm:$0xff]
        %v5354 = vld [vmem:[#allocation3 + $0x88] sm:$0xff]
        %v5355 = vld [vmem:[#allocation3 + $0x90] sm:$0xff]
        %v5356 = vld [vmem:[#allocation3 + $0x98] sm:$0xff]
        %v5357 = vld [vmem:[#allocation3 + $0xa0] sm:$0xff]
        %v5358 = vld [vmem:[#allocation3 + $0xa8] sm:$0xff]
        %v5359 = vld [vmem:[#allocation3 + $0xb0] sm:$0x1]
        %v5360 = vld [vmem:[#allocation3 + $0xb8] sm:$0x1]
        %v5361 = vld [vmem:[#allocation17 + $0x400] sm:$0xff]
        %v5362 = vld [vmem:[#allocation17 + $0x408] sm:$0xff]
        %v5363 = vld [vmem:[#allocation17 + $0x410] sm:$0xff]
        %v5364 = vld [vmem:[#allocation17 + $0x418] sm:$0xff]
        %v5365 = vld [vmem:[#allocation17 + $0x420] sm:$0xff]
        %v5366 = vld [vmem:[#allocation17 + $0x428] sm:$0xff]
        %v5367 = vld [vmem:[#allocation17 + $0x430] sm:$0xff]
        %v5368 = vld [vmem:[#allocation17 + $0x438] sm:$0xff]
        %v5369 = vld [vmem:[#allocation17 + $0x440] sm:$0xff]
        %v5370 = vld [vmem:[#allocation17 + $0x448] sm:$0xff]
        %v5371 = vld [vmem:[#allocation17 + $0x450] sm:$0xff]
        %v5372 = vld [vmem:[#allocation17 + $0x458] sm:$0xff]
        %v5373 = vld [vmem:[#allocation17 + $0x460] sm:$0xff]
        %v5374 = vld [vmem:[#allocation17 + $0x468] sm:$0xff]
        %v5375 = vld [vmem:[#allocation17 + $0x470] sm:$0xff]
        %v5376 = vld [vmem:[#allocation17 + $0x478] sm:$0xff]
        %v5377 = vld [vmem:[#allocation17 + $0x480] sm:$0xff]
        %v5378 = vld [vmem:[#allocation17 + $0x488] sm:$0xff]
        %v5379 = vld [vmem:[#allocation17 + $0x490] sm:$0xff]
        %v5380 = vld [vmem:[#allocation17 + $0x498] sm:$0xff]
        %v5381 = vld [vmem:[#allocation17 + $0x4a0] sm:$0xff]
        %v5382 = vld [vmem:[#allocation17 + $0x4a8] sm:$0xff]
        %v5383 = vld [vmem:[#allocation17 + $0x4b0] sm:$0xff]
        %v5384 = vld [vmem:[#allocation17 + $0x4b8] sm:$0xff]
        %v5385 = vld [vmem:[#allocation17 + $0x4c0] sm:$0xff]
        %v5386 = vld [vmem:[#allocation17 + $0x4c8] sm:$0xff]
        %v5387 = vld [vmem:[#allocation17 + $0x4d0] sm:$0xff]
        %v5388 = vld [vmem:[#allocation17 + $0x4d8] sm:$0xff]
        %v5389 = vld [vmem:[#allocation17 + $0x4e0] sm:$0xff]
        %v5390 = vld [vmem:[#allocation17 + $0x4e8] sm:$0xff]
        %v5391 = vld [vmem:[#allocation17 + $0x4f0] sm:$0xff]
        %v5392 = vld [vmem:[#allocation17 + $0x4f8] sm:$0xff]
        %v5393 = vld [vmem:[#allocation17 + $0x500] sm:$0xff]
        %v5394 = vld [vmem:[#allocation17 + $0x508] sm:$0xff]
        %v5395 = vld [vmem:[#allocation17 + $0x510] sm:$0xff]
        %v5396 = vld [vmem:[#allocation17 + $0x518] sm:$0xff]
        %v5397 = vld [vmem:[#allocation17 + $0x520] sm:$0xff]
        %v5398 = vld [vmem:[#allocation17 + $0x528] sm:$0xff]
        %v5399 = vld [vmem:[#allocation17 + $0x530] sm:$0xff]
        %v5400 = vld [vmem:[#allocation17 + $0x538] sm:$0xff]
        %v5401 = vld [vmem:[#allocation17 + $0x540] sm:$0xff]
        %v5402 = vld [vmem:[#allocation17 + $0x548] sm:$0xff]
        %v5403 = vld [vmem:[#allocation17 + $0x550] sm:$0xff]
        %v5404 = vld [vmem:[#allocation17 + $0x558] sm:$0xff]
        %v5405 = vld [vmem:[#allocation17 + $0x560] sm:$0xff]
        %v5406 = vld [vmem:[#allocation17 + $0x568] sm:$0xff]
        %v5407 = vld [vmem:[#allocation17 + $0x570] sm:$0xff]
        %v5408 = vld [vmem:[#allocation17 + $0x578] sm:$0xff]
        %v5409 = vld [vmem:[#allocation17 + $0x580] sm:$0xff]
        %v5410 = vld [vmem:[#allocation17 + $0x588] sm:$0xff]
        %v5411 = vld [vmem:[#allocation17 + $0x590] sm:$0xff]
        %v5412 = vld [vmem:[#allocation17 + $0x598] sm:$0xff]
        %v5413 = vld [vmem:[#allocation17 + $0x5a0] sm:$0xff]
        %v5414 = vld [vmem:[#allocation17 + $0x5a8] sm:$0xff]
        %v5415 = vld [vmem:[#allocation17 + $0x5b0] sm:$0xff]
        %v5416 = vld [vmem:[#allocation17 + $0x5b8] sm:$0xff]
        %v5417 = vld [vmem:[#allocation17 + $0x5c0] sm:$0xff]
        %v5418 = vld [vmem:[#allocation17 + $0x5c8] sm:$0xff]
        %v5419 = vld [vmem:[#allocation17 + $0x5d0] sm:$0xff]
        %v5420 = vld [vmem:[#allocation17 + $0x5d8] sm:$0xff]
        %v5421 = vld [vmem:[#allocation17 + $0x5e0] sm:$0xff]
        %v5422 = vld [vmem:[#allocation17 + $0x5e8] sm:$0xff]
        %v5423 = vld [vmem:[#allocation17 + $0x5f0] sm:$0xff]
        %v5424 = vld [vmem:[#allocation17 + $0x5f8] sm:$0xff]
        %v5447 = vrot.slane %v5339, 1
        %v5448 = vrot.slane %v5341, 1
        %v5449 = vsel %vm1649, %v5447, %v5448
        %v5450 = vrot.slane %v5340, 1
        %v5451 = vrot.slane %v5342, 1
        %v5452 = vsel %vm1649, %v5450, %v5451
        %v5453 = vrot.slane %v5343, 1
        %v5454 = vsel %vm1649, %v5448, %v5453
        %v5455 = vrot.slane %v5344, 1
        %v5456 = vsel %vm1649, %v5451, %v5455
        %v5457 = vrot.slane %v5345, 1
        %v5458 = vsel %vm1649, %v5453, %v5457
        %v5459 = vrot.slane %v5346, 1
        %v5460 = vsel %vm1649, %v5455, %v5459
        %v5461 = vrot.slane %v5347, 1
        %v5462 = vsel %vm1649, %v5457, %v5461
        %v5463 = vrot.slane %v5348, 1
        %v5464 = vsel %vm1649, %v5459, %v5463
        %v5465 = vrot.slane %v5349, 1
        %v5466 = vsel %vm1649, %v5461, %v5465
        %v5467 = vrot.slane %v5350, 1
        %v5468 = vsel %vm1649, %v5463, %v5467
        %v5469 = vrot.slane %v5351, 1
        %v5470 = vsel %vm1649, %v5465, %v5469
        %v5471 = vrot.slane %v5352, 1
        %v5472 = vsel %vm1649, %v5467, %v5471
        %v5473 = vrot.slane %v5353, 1
        %v5474 = vsel %vm1649, %v5469, %v5473
        %v5475 = vrot.slane %v5354, 1
        %v5476 = vsel %vm1649, %v5471, %v5475
        %v5477 = vrot.slane %v5355, 1
        %v5478 = vsel %vm1649, %v5473, %v5477
        %v5479 = vrot.slane %v5356, 1
        %v5480 = vsel %vm1649, %v5475, %v5479
        %v5481 = vrot.slane %v5357, 1
        %v5482 = vsel %vm1649, %v5477, %v5481
        %v5483 = vrot.slane %v5358, 1
        %v5484 = vsel %vm1649, %v5479, %v5483
        %v5485 = vrot.slane %v5359, 1
        %v5486 = vsel %vm1649, %v5481, %v5485
        %v5487 = vrot.slane %v5360, 1
        %v5488 = vsel %vm1649, %v5483, %v5487
        %5509 = vmatprep.subr.mxu0 %v5362
        %5510 = vmatpush1.msra.mxu0 %v5361
        %5511 = vmatprep.subr.mxu0 %v5364
        %5512 = vmatpush1.msra.mxu0 %v5363
        %5513 = vmatprep.subr.mxu0 %v5366
        %5514 = vmatpush1.msra.mxu0 %v5365
        %5515 = vmatprep.subr.mxu0 %v5368
        %5516 = vmatpush1.msra.mxu0 %v5367
        %5517 = vmatprep.subr.mxu0 %v5370
        %5518 = vmatpush1.msra.mxu0 %v5369
        %5519 = vmatprep.subr.mxu0 %v5372
        %5520 = vmatpush1.msra.mxu0 %v5371
        %5521 = vmatprep.subr.mxu0 %v5374
        %5522 = vmatpush1.msra.mxu0 %v5373
        %5523 = vmatprep.subr.mxu0 %v5376
        %5524 = vmatpush1.msra.mxu0 %v5375
        %5525 = vmatprep.subr.mxu0 %v5378
        %5526 = vmatpush1.msra.mxu0 %v5377
        %5527 = vmatprep.subr.mxu0 %v5380
        %5528 = vmatpush1.msra.mxu0 %v5379
        %5529 = vmatprep.subr.mxu0 %v5382
        %5530 = vmatpush1.msra.mxu0 %v5381
        %5531 = vmatprep.subr.mxu0 %v5384
        %5532 = vmatpush1.msra.mxu0 %v5383
        %5533 = vmatprep.subr.mxu0 %v5386
        %5534 = vmatpush1.msra.mxu0 %v5385
        %5535 = vmatprep.subr.mxu0 %v5388
        %5536 = vmatpush1.msra.mxu0 %v5387
        %5537 = vmatprep.subr.mxu0 %v5390
        %5538 = vmatpush1.msra.mxu0 %v5389
        %5539 = vmatprep.subr.mxu0 %v5392
        %5540 = vmatpush1.msra.mxu0 %v5391
        %5541 = vmatprep.subr.mxu0 %v5394
        %5542 = vmatpush1.msra.mxu0 %v5393
        %5543 = vmatprep.subr.mxu0 %v5396
        %5544 = vmatpush1.msra.mxu0 %v5395
        %5545 = vmatprep.subr.mxu0 %v5398
        %5546 = vmatpush1.msra.mxu0 %v5397
        %5547 = vmatprep.subr.mxu0 %v5400
        %5548 = vmatpush1.msra.mxu0 %v5399
        %5549 = vmatprep.subr.mxu0 %v5402
        %5550 = vmatpush1.msra.mxu0 %v5401
        %5551 = vmatprep.subr.mxu0 %v5404
        %5552 = vmatpush1.msra.mxu0 %v5403
        %5553 = vmatprep.subr.mxu0 %v5406
        %5554 = vmatpush1.msra.mxu0 %v5405
        %5555 = vmatprep.subr.mxu0 %v5408
        %5556 = vmatpush1.msra.mxu0 %v5407
        %5557 = vmatprep.subr.mxu0 %v5410
        %5558 = vmatpush1.msra.mxu0 %v5409
        %5559 = vmatprep.subr.mxu0 %v5412
        %5560 = vmatpush1.msra.mxu0 %v5411
        %5561 = vmatprep.subr.mxu0 %v5414
        %5562 = vmatpush1.msra.mxu0 %v5413
        %5563 = vmatprep.subr.mxu0 %v5416
        %5564 = vmatpush1.msra.mxu0 %v5415
        %5565 = vmatprep.subr.mxu0 %v5418
        %5566 = vmatpush1.msra.mxu0 %v5417
        %5567 = vmatprep.subr.mxu0 %v5420
        %5568 = vmatpush1.msra.mxu0 %v5419
        %5569 = vmatprep.subr.mxu0 %v5422
        %5570 = vmatpush1.msra.mxu0 %v5421
        %5571 = vmatprep.subr.mxu0 %v5424
        %5572 = vmatpush1.msra.mxu0 %v5423
        %5573 = vmatprep.mubr.f32.mxu0 %v5452
        %5574 = vmatmul.mubr.f32.gmra.mrb[0].mxu0 %v5449
        %v5575 = vpop.f32.mrb[0].mxu0
        %v5576 = vadd.f32 0.0, %v5575
        %v5577 = vpop.f32.mrb[0].mxu0
        %v5578 = vadd.f32 0.0, %v5577
        %5579 = vmatprep.mubr.f32.mxu0 %v5456
        %5580 = vmatmul.mubr.f32.gmra.mrb[0].mxu0 %v5454
        %v5581 = vpop.f32.mrb[0].mxu0
        %v5582 = vadd.f32 0.0, %v5581
        %v5583 = vpop.f32.mrb[0].mxu0
        %v5584 = vadd.f32 0.0, %v5583
        %5585 = vmatprep.mubr.f32.mxu0 %v5460
        %5586 = vmatmul.mubr.f32.gmra.mrb[0].mxu0 %v5458
        %v5587 = vpop.f32.mrb[0].mxu0
        %v5588 = vadd.f32 0.0, %v5587
        %v5589 = vpop.f32.mrb[0].mxu0
        %v5590 = vadd.f32 0.0, %v5589
        %5591 = vmatprep.mubr.f32.mxu0 %v5464
        %5592 = vmatmul.mubr.f32.gmra.mrb[0].mxu0 %v5462
        %v5593 = vpop.f32.mrb[0].mxu0
        %v5594 = vadd.f32 0.0, %v5593
        %v5595 = vpop.f32.mrb[0].mxu0
        %v5596 = vadd.f32 0.0, %v5595
        %5597 = vmatprep.mubr.f32.mxu0 %v5468
        %5598 = vmatmul.mubr.f32.gmra.mrb[0].mxu0 %v5466
        %v5599 = vpop.f32.mrb[0].mxu0
        %v5600 = vadd.f32 0.0, %v5599
        %v5601 = vpop.f32.mrb[0].mxu0
        %v5602 = vadd.f32 0.0, %v5601
        %5603 = vmatprep.mubr.f32.mxu0 %v5472
        %5604 = vmatmul.mubr.f32.gmra.mrb[0].mxu0 %v5470
        %v5605 = vpop.f32.mrb[0].mxu0
        %v5606 = vadd.f32 0.0, %v5605
        %v5607 = vpop.f32.mrb[0].mxu0
        %v5608 = vadd.f32 0.0, %v5607
        %5609 = vmatprep.mubr.f32.mxu0 %v5476
        %5610 = vmatmul.mubr.f32.gmra.mrb[0].mxu0 %v5474
        %v5611 = vpop.f32.mrb[0].mxu0
        %v5612 = vadd.f32 0.0, %v5611
        %v5613 = vpop.f32.mrb[0].mxu0
        %v5614 = vadd.f32 0.0, %v5613
        %5615 = vmatprep.mubr.f32.mxu0 %v5480
        %5616 = vmatmul.mubr.f32.gmra.mrb[0].mxu0 %v5478
        %v5617 = vpop.f32.mrb[0].mxu0
        %v5618 = vadd.f32 0.0, %v5617
        %v5619 = vpop.f32.mrb[0].mxu0
        %v5620 = vadd.f32 0.0, %v5619
        %5621 = vmatprep.mubr.f32.mxu0 %v5484
        %5622 = vmatmul.mubr.f32.gmra.mrb[0].mxu0 %v5482
        %v5623 = vpop.f32.mrb[0].mxu0
        %v5624 = vadd.f32 0.0, %v5623
        %v5625 = vpop.f32.mrb[0].mxu0
        %v5626 = vadd.f32 0.0, %v5625
        %5627 = vmatprep.mubr.f32.mxu0 %v5488
        %5628 = vmatmul.mubr.f32.gmra.mrb[0].mxu0 %v5486
        %v5629 = vpop.f32.mrb[0].mxu0
        %v5630 = vadd.f32 0.0, %v5629
        %v5631 = vpop.f32.mrb[0].mxu0
        %v5632 = vadd.f32 0.0, %v5631
        %5633 = vdwg.mxu0
        %v5634 = vadd.f32 %v5281, %v5576
        %v5635 = vadd.f32 %v5283, %v5578
        %v5636 = vadd.f32 %v5287, %v5582
        %v5637 = vadd.f32 %v5289, %v5584
        %v5638 = vadd.f32 %v5293, %v5588
        %v5639 = vadd.f32 %v5295, %v5590
        %v5640 = vadd.f32 %v5299, %v5594
        %v5641 = vadd.f32 %v5301, %v5596
        %v5642 = vadd.f32 %v5305, %v5600
        %v5643 = vadd.f32 %v5307, %v5602
        %v5644 = vadd.f32 %v5311, %v5606
        %v5645 = vadd.f32 %v5313, %v5608
        %v5646 = vadd.f32 %v5317, %v5612
        %v5647 = vadd.f32 %v5319, %v5614
        %v5648 = vadd.f32 %v5323, %v5618
        %v5649 = vadd.f32 %v5325, %v5620
        %v5650 = vadd.f32 %v5329, %v5624
        %v5651 = vadd.f32 %v5331, %v5626
        %v5652 = vadd.f32 %v5335, %v5630
        %v5653 = vadd.f32 %v5337, %v5632
        %v5654 = vld [vmem:[#allocation18] sm:$0x3]
        %v5656 = vlaneseq
        %v5657 = vshrl.u32 %v5656, 7
        %v5658 = vsub.s32 0, %v5657
        %v5659 = vrot.slane %v5654, %v5658
        %v5660 = vlaneseq
        %v5661 = vshrl.u32 %v5660, 7
        %v5662 = vsub.s32 1, %v5661
        %v5663 = vrot.slane %v5654, %v5662
        %v5666 = vadd.f32 %v5634, %v5659
        %v5667 = vadd.f32 %v5635, %v5663
        %v5668 = vadd.f32 %v5636, %v5659
        %v5669 = vadd.f32 %v5637, %v5663
        %v5670 = vadd.f32 %v5638, %v5659
        %v5671 = vadd.f32 %v5639, %v5663
        %v5672 = vadd.f32 %v5640, %v5659
        %v5673 = vadd.f32 %v5641, %v5663
        %v5674 = vadd.f32 %v5642, %v5659
        %v5675 = vadd.f32 %v5643, %v5663
        %v5676 = vadd.f32 %v5644, %v5659
        %v5677 = vadd.f32 %v5645, %v5663
        %v5678 = vadd.f32 %v5646, %v5659
        %v5679 = vadd.f32 %v5647, %v5663
        %v5680 = vadd.f32 %v5648, %v5659
        %v5681 = vadd.f32 %v5649, %v5663
        %v5682 = vadd.f32 %v5650, %v5659
        %v5683 = vadd.f32 %v5651, %v5663
        %v5684 = vadd.f32 %v5652, %v5659
        %v5685 = vadd.f32 %v5653, %v5663
        %v5686 = vmax.f32 %v5666, 0.0
        %v5687 = vmax.f32 %v5667, 0.0
        %v5688 = vmax.f32 %v5668, 0.0
        %v5689 = vmax.f32 %v5669, 0.0
        %v5690 = vmax.f32 %v5670, 0.0
        %v5691 = vmax.f32 %v5671, 0.0
        %v5692 = vmax.f32 %v5672, 0.0
        %v5693 = vmax.f32 %v5673, 0.0
        %v5694 = vmax.f32 %v5674, 0.0
        %v5695 = vmax.f32 %v5675, 0.0
        %v5696 = vmax.f32 %v5676, 0.0
        %v5697 = vmax.f32 %v5677, 0.0
        %v5698 = vmax.f32 %v5678, 0.0
        %v5699 = vmax.f32 %v5679, 0.0
        %v5700 = vmax.f32 %v5680, 0.0
        %v5701 = vmax.f32 %v5681, 0.0
        %v5702 = vmax.f32 %v5682, 0.0
        %v5703 = vmax.f32 %v5683, 0.0
        %v5704 = vmax.f32 %v5684, 0.0
        %v5705 = vmax.f32 %v5685, 0.0
        %v5706 = vsel %vm678, %v5686, 0.0
        %v5707 = vsel %vm678, %v5687, 0.0
        %v5708 = vsel %vm679, %v5688, 0.0
        %v5709 = vsel %vm679, %v5689, 0.0
        %v5710 = vsel %vm680, %v5690, 0.0
        %v5711 = vsel %vm680, %v5691, 0.0
        %v5712 = vsel %vm681, %v5692, 0.0
        %v5713 = vsel %vm681, %v5693, 0.0
        %v5714 = vsel %vm682, %v5694, 0.0
        %v5715 = vsel %vm682, %v5695, 0.0
        %v5716 = vsel %vm683, %v5696, 0.0
        %v5717 = vsel %vm683, %v5697, 0.0
        %v5718 = vsel %vm684, %v5698, 0.0
        %v5719 = vsel %vm684, %v5699, 0.0
        %v5720 = vsel %vm685, %v5700, 0.0
        %v5721 = vsel %vm685, %v5701, 0.0
        %v5722 = vsel %vm686, %v5702, 0.0
        %v5723 = vsel %vm686, %v5703, 0.0
        %v5724 = vsel %vm687, %v5704, 0.0
        %v5725 = vsel %vm687, %v5705, 0.0
        %5726 = vst [vmem:[#allocation2 + $0x10] sm:$0xff] %v5706
        %5727 = vst [vmem:[#allocation2 + $0x18] sm:$0xff] %v5707
        %5728 = vst [vmem:[#allocation2 + $0x20] sm:$0xff] %v5708
        %5729 = vst [vmem:[#allocation2 + $0x28] sm:$0xff] %v5709
        %5730 = vst [vmem:[#allocation2 + $0x30] sm:$0xff] %v5710
        %5731 = vst [vmem:[#allocation2 + $0x38] sm:$0xff] %v5711
        %5732 = vst [vmem:[#allocation2 + $0x40] sm:$0xff] %v5712
        %5733 = vst [vmem:[#allocation2 + $0x48] sm:$0xff] %v5713
        %5734 = vst [vmem:[#allocation2 + $0x50] sm:$0xff] %v5714
        %5735 = vst [vmem:[#allocation2 + $0x58] sm:$0xff] %v5715
        %5736 = vst [vmem:[#allocation2 + $0x60] sm:$0xff] %v5716
        %5737 = vst [vmem:[#allocation2 + $0x68] sm:$0xff] %v5717
        %5738 = vst [vmem:[#allocation2 + $0x70] sm:$0xff] %v5718
        %5739 = vst [vmem:[#allocation2 + $0x78] sm:$0xff] %v5719
        %5740 = vst [vmem:[#allocation2 + $0x80] sm:$0xff] %v5720
        %5741 = vst [vmem:[#allocation2 + $0x88] sm:$0xff] %v5721
        %5742 = vst [vmem:[#allocation2 + $0x90] sm:$0xff] %v5722
        %5743 = vst [vmem:[#allocation2 + $0x98] sm:$0xff] %v5723
        %5744 = vst [vmem:[#allocation2 + $0xa0] sm:$0xff] %v5724
        %5745 = vst [vmem:[#allocation2 + $0xa8] sm:$0xff] %v5725
        %v5746 = vld [vmem:[#allocation2 + $0x10] sm:$0x80]
        %v5747 = vld [vmem:[#allocation2 + $0x18] sm:$0x80]
        %v5748 = vld [vmem:[#allocation2 + $0x20] sm:$0xff]
        %v5749 = vld [vmem:[#allocation2 + $0x28] sm:$0xff]
        %v5750 = vld [vmem:[#allocation2 + $0x30] sm:$0xff]
        %v5751 = vld [vmem:[#allocation2 + $0x38] sm:$0xff]
        %v5752 = vld [vmem:[#allocation2 + $0x40] sm:$0xff]
        %v5753 = vld [vmem:[#allocation2 + $0x48] sm:$0xff]
        %v5754 = vld [vmem:[#allocation2 + $0x50] sm:$0xff]
        %v5755 = vld [vmem:[#allocation2 + $0x58] sm:$0xff]
        %v5756 = vld [vmem:[#allocation2 + $0x60] sm:$0xff]
        %v5757 = vld [vmem:[#allocation2 + $0x68] sm:$0xff]
        %v5758 = vld [vmem:[#allocation2 + $0x70] sm:$0xff]
        %v5759 = vld [vmem:[#allocation2 + $0x78] sm:$0xff]
        %v5760 = vld [vmem:[#allocation2 + $0x80] sm:$0xff]
        %v5761 = vld [vmem:[#allocation2 + $0x88] sm:$0xff]
        %v5762 = vld [vmem:[#allocation2 + $0x90] sm:$0x7f]
        %v5763 = vld [vmem:[#allocation2 + $0x98] sm:$0x7f]
        %v5764 = vld [vmem:[%s11] sm:$0xff]
        %v5765 = vld [vmem:[%s11 + $0x8] sm:$0xff]
        %v5766 = vld [vmem:[%s11 + $0x10] sm:$0xff]
        %v5767 = vld [vmem:[%s11 + $0x18] sm:$0xff]
        %v5768 = vld [vmem:[%s11 + $0x20] sm:$0xff]
        %v5769 = vld [vmem:[%s11 + $0x28] sm:$0xff]
        %v5770 = vld [vmem:[%s11 + $0x30] sm:$0xff]
        %v5771 = vld [vmem:[%s11 + $0x38] sm:$0xff]
        %v5772 = vld [vmem:[%s11 + $0x40] sm:$0xff]
        %v5773 = vld [vmem:[%s11 + $0x48] sm:$0xff]
        %v5774 = vld [vmem:[%s11 + $0x50] sm:$0xff]
        %v5775 = vld [vmem:[%s11 + $0x58] sm:$0xff]
        %v5776 = vld [vmem:[%s11 + $0x60] sm:$0xff]
        %v5777 = vld [vmem:[%s11 + $0x68] sm:$0xff]
        %v5778 = vld [vmem:[%s11 + $0x70] sm:$0xff]
        %v5779 = vld [vmem:[%s11 + $0x78] sm:$0xff]
        %v5780 = vld [vmem:[%s11 + $0x80] sm:$0xff]
        %v5781 = vld [vmem:[%s11 + $0x88] sm:$0xff]
        %v5782 = vld [vmem:[%s11 + $0x90] sm:$0xff]
        %v5783 = vld [vmem:[%s11 + $0x98] sm:$0xff]
        %v5784 = vld [vmem:[%s11 + $0xa0] sm:$0xff]
        %v5785 = vld [vmem:[%s11 + $0xa8] sm:$0xff]
        %v5786 = vld [vmem:[%s11 + $0xb0] sm:$0xff]
        %v5787 = vld [vmem:[%s11 + $0xb8] sm:$0xff]
        %v5788 = vld [vmem:[%s11 + $0xc0] sm:$0xff]
        %v5789 = vld [vmem:[%s11 + $0xc8] sm:$0xff]
        %v5790 = vld [vmem:[%s11 + $0xd0] sm:$0xff]
        %v5791 = vld [vmem:[%s11 + $0xd8] sm:$0xff]
        %v5792 = vld [vmem:[%s11 + $0xe0] sm:$0xff]
        %v5793 = vld [vmem:[%s11 + $0xe8] sm:$0xff]
        %v5794 = vld [vmem:[%s11 + $0xf0] sm:$0xff]
        %v5795 = vld [vmem:[%s11 + $0xf8] sm:$0xff]
        %v5796 = vld [vmem:[#allocation2 + $0x90] sm:$0xff]
        %v5797 = vld [vmem:[#allocation2 + $0x98] sm:$0xff]
        %v5798 = vld [vmem:[%s11 + $0x100] sm:$0xff]
        %v5799 = vld [vmem:[%s11 + $0x108] sm:$0xff]
        %v5800 = vld [vmem:[%s11 + $0x110] sm:$0xff]
        %v5801 = vld [vmem:[%s11 + $0x118] sm:$0xff]
        %v5802 = vld [vmem:[%s11 + $0x120] sm:$0xff]
        %v5803 = vld [vmem:[%s11 + $0x128] sm:$0xff]
        %v5804 = vld [vmem:[%s11 + $0x130] sm:$0xff]
        %v5805 = vld [vmem:[%s11 + $0x138] sm:$0xff]
        %v5806 = vld [vmem:[%s11 + $0x140] sm:$0xff]
        %v5807 = vld [vmem:[%s11 + $0x148] sm:$0xff]
        %v5808 = vld [vmem:[%s11 + $0x150] sm:$0xff]
        %v5809 = vld [vmem:[%s11 + $0x158] sm:$0xff]
        %v5810 = vld [vmem:[%s11 + $0x160] sm:$0xff]
        %v5811 = vld [vmem:[%s11 + $0x168] sm:$0xff]
        %v5812 = vld [vmem:[%s11 + $0x170] sm:$0xff]
        %v5813 = vld [vmem:[%s11 + $0x178] sm:$0xff]
        %v5814 = vld [vmem:[%s11 + $0x180] sm:$0xff]
        %v5815 = vld [vmem:[%s11 + $0x188] sm:$0xff]
        %v5816 = vld [vmem:[%s11 + $0x190] sm:$0xff]
        %v5817 = vld [vmem:[%s11 + $0x198] sm:$0xff]
        %v5818 = vld [vmem:[%s11 + $0x1a0] sm:$0xff]
        %v5819 = vld [vmem:[%s11 + $0x1a8] sm:$0xff]
        %v5820 = vld [vmem:[%s11 + $0x1b0] sm:$0xff]
        %v5821 = vld [vmem:[%s11 + $0x1b8] sm:$0xff]
        %v5822 = vld [vmem:[%s11 + $0x1c0] sm:$0xff]
        %v5823 = vld [vmem:[%s11 + $0x1c8] sm:$0xff]
        %v5824 = vld [vmem:[%s11 + $0x1d0] sm:$0xff]
        %v5825 = vld [vmem:[%s11 + $0x1d8] sm:$0xff]
        %v5826 = vld [vmem:[%s11 + $0x1e0] sm:$0xff]
        %v5827 = vld [vmem:[%s11 + $0x1e8] sm:$0xff]
        %v5828 = vld [vmem:[%s11 + $0x1f0] sm:$0xff]
        %v5829 = vld [vmem:[%s11 + $0x1f8] sm:$0xff]
        %5830 = vmatprep.subr.mxu0 0.0
        %5831 = vmatpush1.msra.mxu0 %v5798
        %5832 = vmatprep.subr.mxu0 0.0
        %5833 = vmatpush1.msra.mxu0 %v5799
        %5834 = vmatprep.subr.mxu0 0.0
        %5835 = vmatpush1.msra.mxu0 %v5800
        %5836 = vmatprep.subr.mxu0 0.0
        %5837 = vmatpush1.msra.mxu0 %v5801
        %5838 = vmatprep.subr.mxu0 0.0
        %5839 = vmatpush1.msra.mxu0 %v5802
        %5840 = vmatprep.subr.mxu0 0.0
        %5841 = vmatpush1.msra.mxu0 %v5803
        %5842 = vmatprep.subr.mxu0 0.0
        %5843 = vmatpush1.msra.mxu0 %v5804
        %5844 = vmatprep.subr.mxu0 0.0
        %5845 = vmatpush1.msra.mxu0 %v5805
        %5846 = vmatprep.subr.mxu0 0.0
        %5847 = vmatpush1.msra.mxu0 %v5806
        %5848 = vmatprep.subr.mxu0 0.0
        %5849 = vmatpush1.msra.mxu0 %v5807
        %5850 = vmatprep.subr.mxu0 0.0
        %5851 = vmatpush1.msra.mxu0 %v5808
        %5852 = vmatprep.subr.mxu0 0.0
        %5853 = vmatpush1.msra.mxu0 %v5809
        %5854 = vmatprep.subr.mxu0 0.0
        %5855 = vmatpush1.msra.mxu0 %v5810
        %5856 = vmatprep.subr.mxu0 0.0
        %5857 = vmatpush1.msra.mxu0 %v5811
        %5858 = vmatprep.subr.mxu0 0.0
        %5859 = vmatpush1.msra.mxu0 %v5812
        %5860 = vmatprep.subr.mxu0 0.0
        %5861 = vmatpush1.msra.mxu0 %v5813
        %5862 = vmatprep.subr.mxu0 0.0
        %5863 = vmatpush1.msra.mxu0 %v5814
        %5864 = vmatprep.subr.mxu0 0.0
        %5865 = vmatpush1.msra.mxu0 %v5815
        %5866 = vmatprep.subr.mxu0 0.0
        %5867 = vmatpush1.msra.mxu0 %v5816
        %5868 = vmatprep.subr.mxu0 0.0
        %5869 = vmatpush1.msra.mxu0 %v5817
        %5870 = vmatprep.subr.mxu0 0.0
        %5871 = vmatpush1.msra.mxu0 %v5818
        %5872 = vmatprep.subr.mxu0 0.0
        %5873 = vmatpush1.msra.mxu0 %v5819
        %5874 = vmatprep.subr.mxu0 0.0
        %5875 = vmatpush1.msra.mxu0 %v5820
        %5876 = vmatprep.subr.mxu0 0.0
        %5877 = vmatpush1.msra.mxu0 %v5821
        %5878 = vmatprep.subr.mxu0 0.0
        %5879 = vmatpush1.msra.mxu0 %v5822
        %5880 = vmatprep.subr.mxu0 0.0
        %5881 = vmatpush1.msra.mxu0 %v5823
        %5882 = vmatprep.subr.mxu0 0.0
        %5883 = vmatpush1.msra.mxu0 %v5824
        %5884 = vmatprep.subr.mxu0 0.0
        %5885 = vmatpush1.msra.mxu0 %v5825
        %5886 = vmatprep.subr.mxu0 0.0
        %5887 = vmatpush1.msra.mxu0 %v5826
        %5888 = vmatprep.subr.mxu0 0.0
        %5889 = vmatpush1.msra.mxu0 %v5827
        %5890 = vmatprep.subr.mxu0 0.0
        %5891 = vmatpush1.msra.mxu0 %v5828
        %5892 = vmatprep.subr.mxu0 0.0
        %5893 = vmatpush1.msra.mxu0 %v5829
        %5894 = vmatprep.mubr.f32.mxu0 %v5749
        %5895 = vmatmul.mubr.f32.gmra.mrb[0].mxu0 %v5748
        %v5896 = vpop.f32.mrb[0].mxu0
        %v5897 = vadd.f32 0.0, %v5896
        %v5898 = vpop.f32.mrb[0].mxu0
        %5899 = vmatprep.mubr.f32.mxu0 %v5751
        %5900 = vmatmul.mubr.f32.gmra.mrb[0].mxu0 %v5750
        %v5901 = vpop.f32.mrb[0].mxu0
        %v5902 = vadd.f32 0.0, %v5901
        %v5903 = vpop.f32.mrb[0].mxu0
        %5904 = vmatprep.mubr.f32.mxu0 %v5753
        %5905 = vmatmul.mubr.f32.gmra.mrb[0].mxu0 %v5752
        %v5906 = vpop.f32.mrb[0].mxu0
        %v5907 = vadd.f32 0.0, %v5906
        %v5908 = vpop.f32.mrb[0].mxu0
        %5909 = vmatprep.mubr.f32.mxu0 %v5755
        %5910 = vmatmul.mubr.f32.gmra.mrb[0].mxu0 %v5754
        %v5911 = vpop.f32.mrb[0].mxu0
        %v5912 = vadd.f32 0.0, %v5911
        %v5913 = vpop.f32.mrb[0].mxu0
        %5914 = vmatprep.mubr.f32.mxu0 %v5757
        %5915 = vmatmul.mubr.f32.gmra.mrb[0].mxu0 %v5756
        %v5916 = vpop.f32.mrb[0].mxu0
        %v5917 = vadd.f32 0.0, %v5916
        %v5918 = vpop.f32.mrb[0].mxu0
        %5919 = vmatprep.mubr.f32.mxu0 %v5759
        %5920 = vmatmul.mubr.f32.gmra.mrb[0].mxu0 %v5758
        %v5921 = vpop.f32.mrb[0].mxu0
        %v5922 = vadd.f32 0.0, %v5921
        %v5923 = vpop.f32.mrb[0].mxu0
        %5924 = vmatprep.mubr.f32.mxu0 %v5761
        %5925 = vmatmul.mubr.f32.gmra.mrb[0].mxu0 %v5760
        %v5926 = vpop.f32.mrb[0].mxu0
        %v5927 = vadd.f32 0.0, %v5926
        %v5928 = vpop.f32.mrb[0].mxu0
        %5929 = vmatprep.mubr.f32.mxu0 %v5797
        %5930 = vmatmul.mubr.f32.gmra.mrb[0].mxu0 %v5796
        %v5931 = vpop.f32.mrb[0].mxu0
        %v5932 = vadd.f32 0.0, %v5931
        %v5933 = vpop.f32.mrb[0].mxu0
        %5934 = vdwg.mxu0
        %v5953 = vrot.slane %v5746, 7
        %v5954 = vrot.slane %v5748, 7
        %v5955 = vsel %vm1353, %v5953, %v5954
        %v5956 = vrot.slane %v5747, 7
        %v5957 = vrot.slane %v5749, 7
        %v5958 = vsel %vm1353, %v5956, %v5957
        %v5959 = vrot.slane %v5750, 7
        %v5960 = vsel %vm1353, %v5954, %v5959
        %v5961 = vrot.slane %v5751, 7
        %v5962 = vsel %vm1353, %v5957, %v5961
        %v5963 = vrot.slane %v5752, 7
        %v5964 = vsel %vm1353, %v5959, %v5963
        %v5965 = vrot.slane %v5753, 7
        %v5966 = vsel %vm1353, %v5961, %v5965
        %v5967 = vrot.slane %v5754, 7
        %v5968 = vsel %vm1353, %v5963, %v5967
        %v5969 = vrot.slane %v5755, 7
        %v5970 = vsel %vm1353, %v5965, %v5969
        %v5971 = vrot.slane %v5756, 7
        %v5972 = vsel %vm1353, %v5967, %v5971
        %v5973 = vrot.slane %v5757, 7
        %v5974 = vsel %vm1353, %v5969, %v5973
        %v5975 = vrot.slane %v5758, 7
        %v5976 = vsel %vm1353, %v5971, %v5975
        %v5977 = vrot.slane %v5759, 7
        %v5978 = vsel %vm1353, %v5973, %v5977
        %v5979 = vrot.slane %v5760, 7
        %v5980 = vsel %vm1353, %v5975, %v5979
        %v5981 = vrot.slane %v5761, 7
        %v5982 = vsel %vm1353, %v5977, %v5981
        %v5983 = vrot.slane %v5762, 7
        %v5984 = vsel %vm1353, %v5979, %v5983
        %v5985 = vrot.slane %v5763, 7
        %v5986 = vsel %vm1353, %v5981, %v5985
        %6003 = vmatprep.subr.mxu0 0.0
        %6004 = vmatpush1.msra.mxu0 %v5764
        %6005 = vmatprep.subr.mxu0 0.0
        %6006 = vmatpush1.msra.mxu0 %v5765
        %6007 = vmatprep.subr.mxu0 0.0
        %6008 = vmatpush1.msra.mxu0 %v5766
        %6009 = vmatprep.subr.mxu0 0.0
        %6010 = vmatpush1.msra.mxu0 %v5767
        %6011 = vmatprep.subr.mxu0 0.0
        %6012 = vmatpush1.msra.mxu0 %v5768
        %6013 = vmatprep.subr.mxu0 0.0
        %6014 = vmatpush1.msra.mxu0 %v5769
        %6015 = vmatprep.subr.mxu0 0.0
        %6016 = vmatpush1.msra.mxu0 %v5770
        %6017 = vmatprep.subr.mxu0 0.0
        %6018 = vmatpush1.msra.mxu0 %v5771
        %6019 = vmatprep.subr.mxu0 0.0
        %6020 = vmatpush1.msra.mxu0 %v5772
        %6021 = vmatprep.subr.mxu0 0.0
        %6022 = vmatpush1.msra.mxu0 %v5773
        %6023 = vmatprep.subr.mxu0 0.0
        %6024 = vmatpush1.msra.mxu0 %v5774
        %6025 = vmatprep.subr.mxu0 0.0
        %6026 = vmatpush1.msra.mxu0 %v5775
        %6027 = vmatprep.subr.mxu0 0.0
        %6028 = vmatpush1.msra.mxu0 %v5776
        %6029 = vmatprep.subr.mxu0 0.0
        %6030 = vmatpush1.msra.mxu0 %v5777
        %6031 = vmatprep.subr.mxu0 0.0
        %6032 = vmatpush1.msra.mxu0 %v5778
        %6033 = vmatprep.subr.mxu0 0.0
        %6034 = vmatpush1.msra.mxu0 %v5779
        %6035 = vmatprep.subr.mxu0 0.0
        %6036 = vmatpush1.msra.mxu0 %v5780
        %6037 = vmatprep.subr.mxu0 0.0
        %6038 = vmatpush1.msra.mxu0 %v5781
        %6039 = vmatprep.subr.mxu0 0.0
        %6040 = vmatpush1.msra.mxu0 %v5782
        %6041 = vmatprep.subr.mxu0 0.0
        %6042 = vmatpush1.msra.mxu0 %v5783
        %6043 = vmatprep.subr.mxu0 0.0
        %6044 = vmatpush1.msra.mxu0 %v5784
        %6045 = vmatprep.subr.mxu0 0.0
        %6046 = vmatpush1.msra.mxu0 %v5785
        %6047 = vmatprep.subr.mxu0 0.0
        %6048 = vmatpush1.msra.mxu0 %v5786
        %6049 = vmatprep.subr.mxu0 0.0
        %6050 = vmatpush1.msra.mxu0 %v5787
        %6051 = vmatprep.subr.mxu0 0.0
        %6052 = vmatpush1.msra.mxu0 %v5788
        %6053 = vmatprep.subr.mxu0 0.0
        %6054 = vmatpush1.msra.mxu0 %v5789
        %6055 = vmatprep.subr.mxu0 0.0
        %6056 = vmatpush1.msra.mxu0 %v5790
        %6057 = vmatprep.subr.mxu0 0.0
        %6058 = vmatpush1.msra.mxu0 %v5791
        %6059 = vmatprep.subr.mxu0 0.0
        %6060 = vmatpush1.msra.mxu0 %v5792
        %6061 = vmatprep.subr.mxu0 0.0
        %6062 = vmatpush1.msra.mxu0 %v5793
        %6063 = vmatprep.subr.mxu0 0.0
        %6064 = vmatpush1.msra.mxu0 %v5794
        %6065 = vmatprep.subr.mxu0 0.0
        %6066 = vmatpush1.msra.mxu0 %v5795
        %6067 = vmatprep.mubr.f32.mxu0 %v5958
        %6068 = vmatmul.mubr.f32.gmra.mrb[0].mxu0 %v5955
        %v6069 = vpop.f32.mrb[0].mxu0
        %v6070 = vadd.f32 %v5897, %v6069
        %v6071 = vpop.f32.mrb[0].mxu0
        %6072 = vmatprep.mubr.f32.mxu0 %v5962
        %6073 = vmatmul.mubr.f32.gmra.mrb[0].mxu0 %v5960
        %v6074 = vpop.f32.mrb[0].mxu0
        %v6075 = vadd.f32 %v5902, %v6074
        %v6076 = vpop.f32.mrb[0].mxu0
        %6077 = vmatprep.mubr.f32.mxu0 %v5966
        %6078 = vmatmul.mubr.f32.gmra.mrb[0].mxu0 %v5964
        %v6079 = vpop.f32.mrb[0].mxu0
        %v6080 = vadd.f32 %v5907, %v6079
        %v6081 = vpop.f32.mrb[0].mxu0
        %6082 = vmatprep.mubr.f32.mxu0 %v5970
        %6083 = vmatmul.mubr.f32.gmra.mrb[0].mxu0 %v5968
        %v6084 = vpop.f32.mrb[0].mxu0
        %v6085 = vadd.f32 %v5912, %v6084
        %v6086 = vpop.f32.mrb[0].mxu0
        %6087 = vmatprep.mubr.f32.mxu0 %v5974
        %6088 = vmatmul.mubr.f32.gmra.mrb[0].mxu0 %v5972
        %v6089 = vpop.f32.mrb[0].mxu0
        %v6090 = vadd.f32 %v5917, %v6089
        %v6091 = vpop.f32.mrb[0].mxu0
        %6092 = vmatprep.mubr.f32.mxu0 %v5978
        %6093 = vmatmul.mubr.f32.gmra.mrb[0].mxu0 %v5976
        %v6094 = vpop.f32.mrb[0].mxu0
        %v6095 = vadd.f32 %v5922, %v6094
        %v6096 = vpop.f32.mrb[0].mxu0
        %6097 = vmatprep.mubr.f32.mxu0 %v5982
        %6098 = vmatmul.mubr.f32.gmra.mrb[0].mxu0 %v5980
        %v6099 = vpop.f32.mrb[0].mxu0
        %v6100 = vadd.f32 %v5927, %v6099
        %v6101 = vpop.f32.mrb[0].mxu0
        %6102 = vmatprep.mubr.f32.mxu0 %v5986
        %6103 = vmatmul.mubr.f32.gmra.mrb[0].mxu0 %v5984
        %v6104 = vpop.f32.mrb[0].mxu0
        %v6105 = vadd.f32 %v5932, %v6104
        %v6106 = vpop.f32.mrb[0].mxu0
        %6107 = vdwg.mxu0
        %v6108 = vld [vmem:[#allocation2 + $0x20] sm:$0xfe]
        %v6109 = vld [vmem:[#allocation2 + $0x28] sm:$0xfe]
        %v6110 = vld [vmem:[#allocation2 + $0x30] sm:$0xff]
        %v6111 = vld [vmem:[#allocation2 + $0x38] sm:$0xff]
        %v6112 = vld [vmem:[#allocation2 + $0x40] sm:$0xff]
        %v6113 = vld [vmem:[#allocation2 + $0x48] sm:$0xff]
        %v6114 = vld [vmem:[#allocation2 + $0x50] sm:$0xff]
        %v6115 = vld [vmem:[#allocation2 + $0x58] sm:$0xff]
        %v6116 = vld [vmem:[#allocation2 + $0x60] sm:$0xff]
        %v6117 = vld [vmem:[#allocation2 + $0x68] sm:$0xff]
        %v6118 = vld [vmem:[#allocation2 + $0x70] sm:$0xff]
        %v6119 = vld [vmem:[#allocation2 + $0x78] sm:$0xff]
        %v6120 = vld [vmem:[#allocation2 + $0x80] sm:$0xff]
        %v6121 = vld [vmem:[#allocation2 + $0x88] sm:$0xff]
        %v6122 = vld [vmem:[#allocation2 + $0x90] sm:$0xff]
        %v6123 = vld [vmem:[#allocation2 + $0x98] sm:$0xff]
        %v6124 = vld [vmem:[#allocation2 + $0xa0] sm:$0x1]
        %v6125 = vld [vmem:[#allocation2 + $0xa8] sm:$0x1]
        %v6126 = vld [vmem:[%s11 + $0x200] sm:$0xff]
        %v6127 = vld [vmem:[%s11 + $0x208] sm:$0xff]
        %v6128 = vld [vmem:[%s11 + $0x210] sm:$0xff]
        %v6129 = vld [vmem:[%s11 + $0x218] sm:$0xff]
        %v6130 = vld [vmem:[%s11 + $0x220] sm:$0xff]
        %v6131 = vld [vmem:[%s11 + $0x228] sm:$0xff]
        %v6132 = vld [vmem:[%s11 + $0x230] sm:$0xff]
        %v6133 = vld [vmem:[%s11 + $0x238] sm:$0xff]
        %v6134 = vld [vmem:[%s11 + $0x240] sm:$0xff]
        %v6135 = vld [vmem:[%s11 + $0x248] sm:$0xff]
        %v6136 = vld [vmem:[%s11 + $0x250] sm:$0xff]
        %v6137 = vld [vmem:[%s11 + $0x258] sm:$0xff]
        %v6138 = vld [vmem:[%s11 + $0x260] sm:$0xff]
        %v6139 = vld [vmem:[%s11 + $0x268] sm:$0xff]
        %v6140 = vld [vmem:[%s11 + $0x270] sm:$0xff]
        %v6141 = vld [vmem:[%s11 + $0x278] sm:$0xff]
        %v6142 = vld [vmem:[%s11 + $0x280] sm:$0xff]
        %v6143 = vld [vmem:[%s11 + $0x288] sm:$0xff]
        %v6144 = vld [vmem:[%s11 + $0x290] sm:$0xff]
        %v6145 = vld [vmem:[%s11 + $0x298] sm:$0xff]
        %v6146 = vld [vmem:[%s11 + $0x2a0] sm:$0xff]
        %v6147 = vld [vmem:[%s11 + $0x2a8] sm:$0xff]
        %v6148 = vld [vmem:[%s11 + $0x2b0] sm:$0xff]
        %v6149 = vld [vmem:[%s11 + $0x2b8] sm:$0xff]
        %v6150 = vld [vmem:[%s11 + $0x2c0] sm:$0xff]
        %v6151 = vld [vmem:[%s11 + $0x2c8] sm:$0xff]
        %v6152 = vld [vmem:[%s11 + $0x2d0] sm:$0xff]
        %v6153 = vld [vmem:[%s11 + $0x2d8] sm:$0xff]
        %v6154 = vld [vmem:[%s11 + $0x2e0] sm:$0xff]
        %v6155 = vld [vmem:[%s11 + $0x2e8] sm:$0xff]
        %v6156 = vld [vmem:[%s11 + $0x2f0] sm:$0xff]
        %v6157 = vld [vmem:[%s11 + $0x2f8] sm:$0xff]
        %v6176 = vrot.slane %v6108, 1
        %v6177 = vrot.slane %v6110, 1
        %v6178 = vsel %vm1649, %v6176, %v6177
        %v6179 = vrot.slane %v6109, 1
        %v6180 = vrot.slane %v6111, 1
        %v6181 = vsel %vm1649, %v6179, %v6180
        %v6182 = vrot.slane %v6112, 1
        %v6183 = vsel %vm1649, %v6177, %v6182
        %v6184 = vrot.slane %v6113, 1
        %v6185 = vsel %vm1649, %v6180, %v6184
        %v6186 = vrot.slane %v6114, 1
        %v6187 = vsel %vm1649, %v6182, %v6186
        %v6188 = vrot.slane %v6115, 1
        %v6189 = vsel %vm1649, %v6184, %v6188
        %v6190 = vrot.slane %v6116, 1
        %v6191 = vsel %vm1649, %v6186, %v6190
        %v6192 = vrot.slane %v6117, 1
        %v6193 = vsel %vm1649, %v6188, %v6192
        %v6194 = vrot.slane %v6118, 1
        %v6195 = vsel %vm1649, %v6190, %v6194
        %v6196 = vrot.slane %v6119, 1
        %v6197 = vsel %vm1649, %v6192, %v6196
        %v6198 = vrot.slane %v6120, 1
        %v6199 = vsel %vm1649, %v6194, %v6198
        %v6200 = vrot.slane %v6121, 1
        %v6201 = vsel %vm1649, %v6196, %v6200
        %v6202 = vrot.slane %v6122, 1
        %v6203 = vsel %vm1649, %v6198, %v6202
        %v6204 = vrot.slane %v6123, 1
        %v6205 = vsel %vm1649, %v6200, %v6204
        %v6206 = vrot.slane %v6124, 1
        %v6207 = vsel %vm1649, %v6202, %v6206
        %v6208 = vrot.slane %v6125, 1
        %v6209 = vsel %vm1649, %v6204, %v6208
        %6226 = vmatprep.subr.mxu0 0.0
        %6227 = vmatpush1.msra.mxu0 %v6126
        %6228 = vmatprep.subr.mxu0 0.0
        %6229 = vmatpush1.msra.mxu0 %v6127
        %6230 = vmatprep.subr.mxu0 0.0
        %6231 = vmatpush1.msra.mxu0 %v6128
        %6232 = vmatprep.subr.mxu0 0.0
        %6233 = vmatpush1.msra.mxu0 %v6129
        %6234 = vmatprep.subr.mxu0 0.0
        %6235 = vmatpush1.msra.mxu0 %v6130
        %6236 = vmatprep.subr.mxu0 0.0
        %6237 = vmatpush1.msra.mxu0 %v6131
        %6238 = vmatprep.subr.mxu0 0.0
        %6239 = vmatpush1.msra.mxu0 %v6132
        %6240 = vmatprep.subr.mxu0 0.0
        %6241 = vmatpush1.msra.mxu0 %v6133
        %6242 = vmatprep.subr.mxu0 0.0
        %6243 = vmatpush1.msra.mxu0 %v6134
        %6244 = vmatprep.subr.mxu0 0.0
        %6245 = vmatpush1.msra.mxu0 %v6135
        %6246 = vmatprep.subr.mxu0 0.0
        %6247 = vmatpush1.msra.mxu0 %v6136
        %6248 = vmatprep.subr.mxu0 0.0
        %6249 = vmatpush1.msra.mxu0 %v6137
        %6250 = vmatprep.subr.mxu0 0.0
        %6251 = vmatpush1.msra.mxu0 %v6138
        %6252 = vmatprep.subr.mxu0 0.0
        %6253 = vmatpush1.msra.mxu0 %v6139
        %6254 = vmatprep.subr.mxu0 0.0
        %6255 = vmatpush1.msra.mxu0 %v6140
        %6256 = vmatprep.subr.mxu0 0.0
        %6257 = vmatpush1.msra.mxu0 %v6141
        %6258 = vmatprep.subr.mxu0 0.0
        %6259 = vmatpush1.msra.mxu0 %v6142
        %6260 = vmatprep.subr.mxu0 0.0
        %6261 = vmatpush1.msra.mxu0 %v6143
        %6262 = vmatprep.subr.mxu0 0.0
        %6263 = vmatpush1.msra.mxu0 %v6144
        %6264 = vmatprep.subr.mxu0 0.0
        %6265 = vmatpush1.msra.mxu0 %v6145
        %6266 = vmatprep.subr.mxu0 0.0
        %6267 = vmatpush1.msra.mxu0 %v6146
        %6268 = vmatprep.subr.mxu0 0.0
        %6269 = vmatpush1.msra.mxu0 %v6147
        %6270 = vmatprep.subr.mxu0 0.0
        %6271 = vmatpush1.msra.mxu0 %v6148
        %6272 = vmatprep.subr.mxu0 0.0
        %6273 = vmatpush1.msra.mxu0 %v6149
        %6274 = vmatprep.subr.mxu0 0.0
        %6275 = vmatpush1.msra.mxu0 %v6150
        %6276 = vmatprep.subr.mxu0 0.0
        %6277 = vmatpush1.msra.mxu0 %v6151
        %6278 = vmatprep.subr.mxu0 0.0
        %6279 = vmatpush1.msra.mxu0 %v6152
        %6280 = vmatprep.subr.mxu0 0.0
        %6281 = vmatpush1.msra.mxu0 %v6153
        %6282 = vmatprep.subr.mxu0 0.0
        %6283 = vmatpush1.msra.mxu0 %v6154
        %6284 = vmatprep.subr.mxu0 0.0
        %6285 = vmatpush1.msra.mxu0 %v6155
        %6286 = vmatprep.subr.mxu0 0.0
        %6287 = vmatpush1.msra.mxu0 %v6156
        %6288 = vmatprep.subr.mxu0 0.0
        %6289 = vmatpush1.msra.mxu0 %v6157
        %6290 = vmatprep.mubr.f32.mxu0 %v6181
        %6291 = vmatmul.mubr.f32.gmra.mrb[0].mxu0 %v6178
        %v6292 = vpop.f32.mrb[0].mxu0
        %v6293 = vadd.f32 0.0, %v6292
        %v6294 = vpop.f32.mrb[0].mxu0
        %6295 = vmatprep.mubr.f32.mxu0 %v6185
        %6296 = vmatmul.mubr.f32.gmra.mrb[0].mxu0 %v6183
        %v6297 = vpop.f32.mrb[0].mxu0
        %v6298 = vadd.f32 0.0, %v6297
        %v6299 = vpop.f32.mrb[0].mxu0
        %6300 = vmatprep.mubr.f32.mxu0 %v6189
        %6301 = vmatmul.mubr.f32.gmra.mrb[0].mxu0 %v6187
        %v6302 = vpop.f32.mrb[0].mxu0
        %v6303 = vadd.f32 0.0, %v6302
        %v6304 = vpop.f32.mrb[0].mxu0
        %6305 = vmatprep.mubr.f32.mxu0 %v6193
        %6306 = vmatmul.mubr.f32.gmra.mrb[0].mxu0 %v6191
        %v6307 = vpop.f32.mrb[0].mxu0
        %v6308 = vadd.f32 0.0, %v6307
        %v6309 = vpop.f32.mrb[0].mxu0
        %6310 = vmatprep.mubr.f32.mxu0 %v6197
        %6311 = vmatmul.mubr.f32.gmra.mrb[0].mxu0 %v6195
        %v6312 = vpop.f32.mrb[0].mxu0
        %v6313 = vadd.f32 0.0, %v6312
        %v6314 = vpop.f32.mrb[0].mxu0
        %6315 = vmatprep.mubr.f32.mxu0 %v6201
        %6316 = vmatmul.mubr.f32.gmra.mrb[0].mxu0 %v6199
        %v6317 = vpop.f32.mrb[0].mxu0
        %v6318 = vadd.f32 0.0, %v6317
        %v6319 = vpop.f32.mrb[0].mxu0
        %6320 = vmatprep.mubr.f32.mxu0 %v6205
        %6321 = vmatmul.mubr.f32.gmra.mrb[0].mxu0 %v6203
        %v6322 = vpop.f32.mrb[0].mxu0
        %v6323 = vadd.f32 0.0, %v6322
        %v6324 = vpop.f32.mrb[0].mxu0
        %6325 = vmatprep.mubr.f32.mxu0 %v6209
        %6326 = vmatmul.mubr.f32.gmra.mrb[0].mxu0 %v6207
        %v6327 = vpop.f32.mrb[0].mxu0
        %v6328 = vadd.f32 0.0, %v6327
        %v6329 = vpop.f32.mrb[0].mxu0
        %6330 = vdwg.mxu0
        %v6331 = vadd.f32 %v6070, %v6293
        %v6332 = vadd.f32 %v6075, %v6298
        %v6333 = vadd.f32 %v6080, %v6303
        %v6334 = vadd.f32 %v6085, %v6308
        %v6335 = vadd.f32 %v6090, %v6313
        %v6336 = vadd.f32 %v6095, %v6318
        %v6337 = vadd.f32 %v6100, %v6323
        %v6338 = vadd.f32 %v6105, %v6328
        %v6339 = vld [vmem:[#allocation20] sm:$0x1]
        %v6341 = vlaneseq
        %v6342 = vshrl.u32 %v6341, 7
        %v6343 = vsub.s32 0, %v6342
        %v6344 = vrot.slane %v6339, %v6343
        %v6346 = vadd.f32 %v6331, %v6344
        %v6347 = vadd.f32 %v6332, %v6344
        %v6348 = vadd.f32 %v6333, %v6344
        %v6349 = vadd.f32 %v6334, %v6344
        %v6350 = vadd.f32 %v6335, %v6344
        %v6351 = vadd.f32 %v6336, %v6344
        %v6352 = vadd.f32 %v6337, %v6344
        %v6353 = vadd.f32 %v6338, %v6344
        %v6354 = vtanh.pop %v6346
        %v6355 = vtanh.pop %v6347
        %v6356 = vtanh.pop %v6348
        %v6357 = vtanh.pop %v6349
        %v6358 = vtanh.pop %v6350
        %v6359 = vtanh.pop %v6351
        %v6360 = vtanh.pop %v6352
        %v6361 = vtanh.pop %v6353
        %6362 = vst.msk [vmem:[%s624] sm:$0xff] %vm798, %v6354
        %6363 = vst.msk [vmem:[%s624 + $0x8] sm:$0xff] %vm798, %v6355
        %6364 = vst.msk [vmem:[%s624 + $0x10] sm:$0xff] %vm798, %v6356
        %6365 = vst.msk [vmem:[%s624 + $0x18] sm:$0xff] %vm798, %v6357
        %6366 = vst.msk [vmem:[%s624 + $0x20] sm:$0xff] %vm798, %v6358
        %6367 = vst.msk [vmem:[%s624 + $0x28] sm:$0xff] %vm798, %v6359
        %6368 = vst.msk [vmem:[%s624 + $0x30] sm:$0xff] %vm798, %v6360
        %6369 = vst.msk [vmem:[%s624 + $0x38] sm:$0xff] %vm798, %v6361
        %s6370 = smul.u32 8, %s35
        %p6371 = scmp.lt.s32.totalorder %s34, 1
        %s6372 = scalar_select %p6371, %s34, 1
        %p6373 = scmp.lt.s32.totalorder %s6370, 31
        %s6374 = scalar_select %p6373, %s6370, 31
        %s6375 = smul.addr %s6372, 32
        %s6376 = sadd.s32 %s6374, %s6375
        %s6377 = smul.addr %s6376, 8
        %s6378 = scalar_lea.vmem %s13, %s6377
        // Predicated region
        $region117: #{tpu_custom_call.1} parent=71 // pred_check
          %p6379 = pneg %p342
        $region118: #{tpu_custom_call.1} parent=71 // pred_check_branch
          %6381 = sbr.rel (%p6379) target = $region120
        $region119: #{tpu_custom_call.1} parent=71 // pred_region
          %s6382 = smul.u32 8, %s35
        $region120: #{tpu_custom_call.1} parent=71 // pred_fallthru
          _
      $region72: #{tpu_custom_call.1} parent=5 // pred_fallthru
        _
      %p6383 = scmp.le.s32.totalorder 2, %s25
      // Predicated region
      $region121: #{tpu_custom_call.1} parent=5 // pred_check
        %p6384 = pneg %p6383
      $region122: #{tpu_custom_call.1} parent=5 // pred_check_branch
        %6386 = sbr.rel (%p6384) target = $region124
      $region123: #{tpu_custom_call.1} parent=5 // pred_region
        %s6387 = ssub.s32 %s25, 2
        // Predicated region
        $region125: #{tpu_custom_call.1} parent=123 // pred_check
          %p6388 = pneg %p348
        $region126: #{tpu_custom_call.1} parent=123 // pred_check_branch
          %6390 = sbr.rel (%p6388) target = $region128
        $region127: #{tpu_custom_call.1} parent=123 // pred_region
          %s6391 = smul.u32 8, %s37
          %p6392 = scmp.lt.s32.totalorder %s36, 1
          %s6393 = scalar_select %p6392, %s36, 1
          %p6394 = scmp.lt.s32.totalorder %s6391, 31
          %s6395 = scalar_select %p6394, %s6391, 31
          %s6396 = smul.addr %s6393, 32
          %s6397 = sadd.s32 %s6395, %s6396
          %s6398 = smul.addr %s6397, 8
          %s6399 = scalar_lea.vmem %s13, %s6398
        $region128: #{tpu_custom_call.1} parent=123 // pred_fallthru
          _
      $region124: #{tpu_custom_call.1} parent=5 // pred_fallthru
        _
    $region6: #{tpu_custom_call.1} parent=1 // loop_footer
      %s29 = sadd.s32 1, %s25
    $region7: #{tpu_custom_call.1} parent=1 // loop_footer_branch
      %24 = sbr.rel target = $region3
    $region8: #{tpu_custom_call.1} parent=1 // loop_exit
      _
    %6400 = vsyncpa [#allocation5], 1
    %s6401 = scalar_lea.sflag [#allocation5], 1
    %6402 = vsyncpa %s6401, 1
    %6403 = vsyncpa [#allocation7], 1
    %6404 = vsyncpa [#allocation10], 1
    %6405 = vsyncpa [#allocation13], 1
    %6406 = vsyncpa [#allocation16], 1
    %6407 = vsyncpa [#allocation19], 1

</llo_original>
